<compile_context>
chip_gen: v7x
topology: tpu7x:2x2x1
jax: 0.10.0
libtpu: 0.0.40
codegen_flags: <defaults>
</compile_context>

<pallas_src>
import functools

import jax
import jax.numpy as jnp
import numpy as np
from jax import lax
from jax.experimental import pallas as pl
from jax.experimental.pallas import tpu as pltpu


def cnn_encoder_kernel(x_ref, sel_ref, mask_ref, c1_ref, w2_ref, b2_ref, out_ref,
                       p1_ref, y2_ref, pool_ref, *,
                       wp, n_flat, planes, pad_m, out_pp, block_n):
    """Processes block_n images per grid step, everything in lane-major layout."""
    sp_row = 2 * wp     # lane stride between vertically adjacent pooled pixels
    sp_col = 2          # lane stride between horizontally adjacent pooled pixels

    # ---- conv1 (1x1 on the zero-padded input) + bn1 + relu -------------------------
    # padded input pixel (yp, xp) sits at lane yp*wp + xp of the image's row.
    a = jnp.maximum(x_ref[...] * c1_ref[0] + c1_ref[1], 0.0)          # (block_n, n_flat)

    # ---- maxpool_1 (2x2, stride 2) in flat-lane space -------------------------------
    # only the two margins need (re)zeroing; the interior is fully overwritten below.
    p1_ref[:, pl.ds(0, pad_m)] = jnp.zeros((block_n, pad_m), jnp.float32)
    p1_ref[:, pl.ds(pad_m + n_flat, pad_m)] = jnp.zeros((block_n, pad_m), jnp.float32)
    p1_ref[:, pl.ds(pad_m, n_flat)] = a
    m = jnp.maximum(
        jnp.maximum(p1_ref[:, pl.ds(pad_m, n_flat)],
                    p1_ref[:, pl.ds(pad_m + 1, n_flat)]),
        jnp.maximum(p1_ref[:, pl.ds(pad_m + wp, n_flat)],
                    p1_ref[:, pl.ds(pad_m + wp + 1, n_flat)]))
    # pooled pixel (i, j) now lives at sparse lane i*sp_row + j*sp_col.  mask_ref zeroes
    # exactly the lanes the 3x3 taps will read as conv2's x-direction zero padding.
    p1_ref[:, pl.ds(pad_m, n_flat)] = m * mask_ref[...]

    # ---- conv2 (3x3, pad=1) + bn2 + relu + maxpool_2 --------------------------------
    # the nine shifted tap views are loaded once and reused for every output plane.
    taps = [p1_ref[:, pl.ds(pad_m + (ky - 1) * sp_row + (kx - 1) * sp_col, n_flat)]
            for ky in range(3) for kx in range(3)]
    y2_ref[:, pl.ds(n_flat, pad_m)] = jnp.zeros((block_n, pad_m), jnp.float32)
    for p in range(planes):
        acc = taps[0] * w2_ref[p, 0]
        for t in range(1, 9):
            acc = acc + taps[t] * w2_ref[p, t]
        # BN2 scale is pre-folded into w2_ref; only the bias + ReLU remain.
        y2_ref[:, pl.ds(0, n_flat)] = jnp.maximum(acc + b2_ref[p], 0.0)
        pooled = jnp.maximum(
            jnp.maximum(y2_ref[:, pl.ds(0, n_flat)],
                        y2_ref[:, pl.ds(sp_col, n_flat)]),
            jnp.maximum(y2_ref[:, pl.ds(sp_row, n_flat)],
                        y2_ref[:, pl.ds(sp_row + sp_col, n_flat)]))
        pool_ref[pl.ds(p * block_n, block_n), :] = pooled

    # ---- compact sparse pooled lanes into the dense (b, planes*h2*w2) output (MXU) ---
    dense = jnp.dot(pool_ref[...], sel_ref[...],
                    preferred_element_type=jnp.float32,
                    precision=jax.lax.Precision.HIGHEST)       # (planes*block_n, out_pp)
    for p in range(planes):
        out_ref[:, pl.ds(p * out_pp, out_pp)] = dense[p * block_n:(p + 1) * block_n, :]


def cnn_encoder_forward(x, w_conv1, bn1_scale_bias, w_conv2, bn2_scale_bias, *, block_n=8):
    """x: (N, 1, H, W) f32.  Returns (N, planes, 1, (H+2)//4 * (W+2)//4)."""
    n, cin, h, w = x.shape
    planes = w_conv2.shape[0]
    assert cin == 1 and w_conv2.shape[1] == 1, "module forward requires input_planes == 1"
    hp, wp = h + 2, w + 2
    assert hp % 4 == 0 and wp % 4 == 0, "pick spatial dims so both maxpools divide evenly"
    assert n % block_n == 0, "batch must be a multiple of block_n"
    h1, w1 = hp // 2, wp // 2
    h2, w2 = h1 // 2, w1 // 2
    n_flat = hp * wp
    out_pp = h2 * w2
    pad_m = ((2 * wp + 2 + 127) // 128) * 128       # margin >= one pooled-row stride + 2

    # conv1 is 1x1 with padding=1: pad once in XLA; the pad also acts as the pitch-(W+2)
    # flattener for the kernel's lane-major layout.
    # TODO(synk): at real PubTabNet resolutions fold this pad into the kernel to save one
    # HBM pass over the input.
    x_flat = jnp.pad(x.astype(jnp.float32),
                     ((0, 0), (0, 0), (1, 1), (1, 1))).reshape(n, n_flat)

    # fold eval-mode BN scales into the conv weights (bias stays separate).
    k1 = w_conv1.reshape(()).astype(jnp.float32) * bn1_scale_bias[0]
    conv1_p = jnp.stack([k1, bn1_scale_bias[1].astype(jnp.float32)])            # (2,)
    w2_eff = (w_conv2.reshape(planes, 9).astype(jnp.float32)
              * bn2_scale_bias[0][:, None].astype(jnp.float32))                 # (planes, 9)
    b2_eff = bn2_scale_bias[1].astype(jnp.float32)                              # (planes,)

    # host-built constants:
    #   mask: zero the sparse lanes conv2 reads as its x-direction zero padding
    lanes_idx = np.arange(n_flat)
    r = lanes_idx % (2 * wp)
    mask = ((r != wp) & (r != 2 * wp - 2)).astype(np.float32)[None, :]          # (1, n_flat)
    #   sel : 0/1 matrix compacting sparse pooled lanes -> dense (i*w2 + j)
    d = np.arange(out_pp)
    src = (d // w2) * (4 * wp) + (d % w2) * 4
    sel = np.zeros((n_flat, out_pp), np.float32)
    sel[src, d] = 1.0

    kernel = functools.partial(cnn_encoder_kernel, wp=wp, n_flat=n_flat, planes=planes,
                               pad_m=pad_m, out_pp=out_pp, block_n=block_n)
    out = pl.pallas_call(
        kernel,
        out_shape=jax.ShapeDtypeStruct((n, planes * out_pp), jnp.float32),
        grid=(n // block_n,),
        in_specs=[
            pl.BlockSpec((block_n, n_flat), lambda i: (i, 0)),       # images, lane-major
            pl.BlockSpec((n_flat, out_pp), lambda i: (0, 0)),        # selection matrix
            pl.BlockSpec((1, n_flat), lambda i: (0, 0)),             # conv2 x-pad mask
            pl.BlockSpec(memory_space=pltpu.MemorySpace.SMEM),       # conv1 k / bn1 bias
            pl.BlockSpec(memory_space=pltpu.MemorySpace.SMEM),       # folded conv2 weights
            pl.BlockSpec(memory_space=pltpu.MemorySpace.SMEM),       # bn2 bias
        ],
        out_specs=pl.BlockSpec((block_n, planes * out_pp), lambda i: (i, 0)),
        scratch_shapes=[
            pltpu.VMEM((block_n, n_flat + 2 * pad_m), jnp.float32),  # sparse pooled map
            pltpu.VMEM((block_n, n_flat + pad_m), jnp.float32),      # conv2+bn2+relu plane
            pltpu.VMEM((planes * block_n, n_flat), jnp.float32),     # pooled planes (sparse)
        ],
        compiler_params=pltpu.CompilerParams(dimension_semantics=("parallel",)),
    )(x_flat, jnp.asarray(sel), jnp.asarray(mask), conv1_p, w2_eff, b2_eff)

    # out.view(N, C, 1, H*W) — metadata-only reshape
    return out.reshape(n, planes, 1, out_pp)


def reference_forward(x, w_conv1, w_conv2, bn1_sb, bn2_sb):
    """Pure-JAX (XLA) reference of the same eval-mode forward."""
    dn = ('NCHW', 'OIHW', 'NCHW')
    y = lax.conv_general_dilated(x, w_conv1, (1, 1), ((1, 1), (1, 1)),
                                 dimension_numbers=dn,
                                 precision=lax.Precision.HIGHEST)
    y = y * bn1_sb[0] + bn1_sb[1]
    y = jnp.maximum(y, 0.0)
    y = lax.reduce_window(y, -jnp.inf, lax.max, (1, 1, 2, 2), (1, 1, 2, 2), 'VALID')
    y = lax.conv_general_dilated(y, w_conv2, (1, 1), ((1, 1), (1, 1)),
                                 dimension_numbers=dn,
                                 precision=lax.Precision.HIGHEST)
    y = y * bn2_sb[0].reshape(1, -1, 1, 1) + bn2_sb[1].reshape(1, -1, 1, 1)
    y = jnp.maximum(y, 0.0)
    y = lax.reduce_window(y, -jnp.inf, lax.max, (1, 1, 2, 2), (1, 1, 2, 2), 'VALID')
    return y.reshape(y.shape[0], y.shape[1], 1, y.shape[2] * y.shape[3])


if __name__ == "__main__":
    key = jax.random.PRNGKey(0)
    keys = jax.random.split(key, 11)

    # params dict of the module: only input_planes / planes affect forward()
    N, input_planes, H, W = 16, 1, 30, 30      # forward requires input_planes == 1
    planes = 8
    eps = 1e-5

    x = jax.random.normal(keys[0], (N, input_planes, H, W), jnp.float32)

    # conv weights (bias=False in the module), deterministic init
    w_conv1 = 0.5 * jax.random.normal(keys[1], (1, input_planes, 1, 1), jnp.float32)
    w_conv2 = 0.2 * jax.random.normal(keys[2], (planes, input_planes, 3, 3), jnp.float32)

    # BatchNorm (eval-mode) parameters, deterministic init
    g1 = 1.0 + 0.1 * jax.random.normal(keys[3], (1,), jnp.float32)
    b1 = 0.1 * jax.random.normal(keys[4], (1,), jnp.float32)
    m1 = 0.1 * jax.random.normal(keys[5], (1,), jnp.float32)
    v1 = jnp.abs(jax.random.normal(keys[6], (1,), jnp.float32)) + 0.5
    g2 = 1.0 + 0.1 * jax.random.normal(keys[7], (planes,), jnp.float32)
    b2 = 0.1 * jax.random.normal(keys[8], (planes,), jnp.float32)
    m2 = 0.1 * jax.random.normal(keys[9], (planes,), jnp.float32)
    v2 = jnp.abs(jax.random.normal(keys[10], (planes,), jnp.float32)) + 0.5

    # fold BN (eval) into per-channel scale/bias
    scale1 = g1 / jnp.sqrt(v1 + eps)
    bias1 = b1 - m1 * scale1
    bn1_sb = jnp.concatenate([scale1, bias1])              # (2,)
    scale2 = g2 / jnp.sqrt(v2 + eps)
    bias2 = b2 - m2 * scale2
    bn2_sb = jnp.stack([scale2, bias2])                    # (2, planes)

    out = cnn_encoder_forward(x, w_conv1, bn1_sb, w_conv2, bn2_sb, block_n=8)
    jax.block_until_ready(out)

    ref = reference_forward(x, w_conv1, w_conv2, bn1_sb, bn2_sb)
    np.testing.assert_allclose(np.asarray(out), np.asarray(ref), rtol=1e-5, atol=1e-5)
    assert out.shape == (N, planes, 1, ((H + 2) // 4) * ((W + 2) // 4))

    print("KERNEL_OK")
</pallas_src>

<mosaic_0001>
module attributes {stable_mosaic.version = 11 : i64} {
  func.func @cnn_encoder_kernel(%arg0: i32, %arg1: memref<8x1024xf32, #tpu.memory_space<vmem>>, %arg2: memref<1024x64xf32, #tpu.memory_space<vmem>>, %arg3: memref<1x1024xf32, #tpu.memory_space<vmem>>, %arg4: memref<2xf32, #tpu.memory_space<smem>>, %arg5: memref<8x9xf32, #tpu.memory_space<smem>>, %arg6: memref<8xf32, #tpu.memory_space<smem>>, %arg7: memref<8x512xf32, #tpu.memory_space<vmem>>, %arg8: memref<8x1280xf32, #tpu.memory_space<vmem>>, %arg9: memref<8x1152xf32, #tpu.memory_space<vmem>>, %arg10: memref<64x1024xf32, #tpu.memory_space<vmem>>) attributes {dimension_semantics = [#tpu.dimension_semantics<parallel>], iteration_bounds = array<i64: 2>, scalar_prefetch = 0 : i64, scratch_operands = 3 : i64, tpu.core_type = #tpu.core_type<tc>, window_params = [{transform_indices = @transform_0, window_bounds = array<i64: 8, 1024>}, {pipeline_mode = #tpu.pipeline_mode<synchronous>, transform_indices = @transform_1, window_bounds = array<i64: 1024, 64>}, {pipeline_mode = #tpu.pipeline_mode<synchronous>, transform_indices = @transform_2, window_bounds = array<i64: 1, 1024>}, {transform_indices = @transform_3, window_bounds = array<i64: 2>}, {transform_indices = @transform_4, window_bounds = array<i64: 8, 9>}, {transform_indices = @transform_5, window_bounds = array<i64: 8>}, {transform_indices = @transform_6, window_bounds = array<i64: 8, 512>}]} {
    %c0 = arith.constant 0 : index
    %c0_0 = arith.constant 0 : index
    %0 = vector.load %arg1[%c0, %c0_0] : memref<8x1024xf32, #tpu.memory_space<vmem>>, vector<8x1024xf32>
    %c0_1 = arith.constant 0 : index
    %1 = memref.load %arg4[%c0_1] : memref<2xf32, #tpu.memory_space<smem>>
    %2 = vector.broadcast %1 : f32 to vector<8x1024xf32>
    %3 = arith.mulf %0, %2 : vector<8x1024xf32>
    %c1 = arith.constant 1 : index
    %4 = memref.load %arg4[%c1] : memref<2xf32, #tpu.memory_space<smem>>
    %5 = vector.broadcast %4 : f32 to vector<8x1024xf32>
    %6 = arith.addf %3, %5 : vector<8x1024xf32>
    %cst = arith.constant 0.000000e+00 : f32
    %7 = vector.broadcast %cst : f32 to vector<8x1024xf32>
    %8 = arith.maximumf %6, %7 : vector<8x1024xf32>
    %cst_2 = arith.constant 0.000000e+00 : f32
    %9 = vector.broadcast %cst_2 : f32 to vector<8x128xf32>
    %c0_3 = arith.constant 0 : index
    %c0_4 = arith.constant 0 : index
    %10 = vector.load %arg8[%c0_3, %c0_4] : memref<8x1280xf32, #tpu.memory_space<vmem>>, vector<8x128xf32>
    tpu.vector_store %arg8[%c0_3, %c0_4], %9 {strides = array<i32>} : memref<8x1280xf32, #tpu.memory_space<vmem>>, vector<8x128xf32>,
    %cst_5 = arith.constant 0.000000e+00 : f32
    %11 = vector.broadcast %cst_5 : f32 to vector<8x128xf32>
    %c0_6 = arith.constant 0 : index
    %c1152 = arith.constant 1152 : index
    %12 = vector.load %arg8[%c0_6, %c1152] : memref<8x1280xf32, #tpu.memory_space<vmem>>, vector<8x128xf32>
    tpu.vector_store %arg8[%c0_6, %c1152], %11 {strides = array<i32>} : memref<8x1280xf32, #tpu.memory_space<vmem>>, vector<8x128xf32>,
    %c0_7 = arith.constant 0 : index
    %c128 = arith.constant 128 : index
    %13 = vector.load %arg8[%c0_7, %c128] : memref<8x1280xf32, #tpu.memory_space<vmem>>, vector<8x1024xf32>
    tpu.vector_store %arg8[%c0_7, %c128], %8 {strides = array<i32>} : memref<8x1280xf32, #tpu.memory_space<vmem>>, vector<8x1024xf32>,
    %c0_8 = arith.constant 0 : index
    %c128_9 = arith.constant 128 : index
    %14 = vector.load %arg8[%c0_8, %c128_9] : memref<8x1280xf32, #tpu.memory_space<vmem>>, vector<8x1024xf32>
    %c0_10 = arith.constant 0 : index
    %c129 = arith.constant 129 : index
    %15 = vector.load %arg8[%c0_10, %c129] : memref<8x1280xf32, #tpu.memory_space<vmem>>, vector<8x1024xf32>
    %16 = arith.maximumf %14, %15 : vector<8x1024xf32>
    %c0_11 = arith.constant 0 : index
    %c160 = arith.constant 160 : index
    %17 = vector.load %arg8[%c0_11, %c160] : memref<8x1280xf32, #tpu.memory_space<vmem>>, vector<8x1024xf32>
    %c0_12 = arith.constant 0 : index
    %c161 = arith.constant 161 : index
    %18 = vector.load %arg8[%c0_12, %c161] : memref<8x1280xf32, #tpu.memory_space<vmem>>, vector<8x1024xf32>
    %19 = arith.maximumf %17, %18 : vector<8x1024xf32>
    %20 = arith.maximumf %16, %19 : vector<8x1024xf32>
    %c0_13 = arith.constant 0 : index
    %c0_14 = arith.constant 0 : index
    %21 = vector.load %arg3[%c0_13, %c0_14] : memref<1x1024xf32, #tpu.memory_space<vmem>>, vector<1x1024xf32>
    %22 = vector.broadcast %21 : vector<1x1024xf32> to vector<8x1024xf32>
    %23 = arith.mulf %20, %22 : vector<8x1024xf32>
    %c0_15 = arith.constant 0 : index
    %c128_16 = arith.constant 128 : index
    %24 = vector.load %arg8[%c0_15, %c128_16] : memref<8x1280xf32, #tpu.memory_space<vmem>>, vector<8x1024xf32>
    tpu.vector_store %arg8[%c0_15, %c128_16], %23 {strides = array<i32>} : memref<8x1280xf32, #tpu.memory_space<vmem>>, vector<8x1024xf32>,
    %c0_17 = arith.constant 0 : index
    %c62 = arith.constant 62 : index
    %25 = vector.load %arg8[%c0_17, %c62] : memref<8x1280xf32, #tpu.memory_space<vmem>>, vector<8x1024xf32>
    %c0_18 = arith.constant 0 : index
    %c64 = arith.constant 64 : index
    %26 = vector.load %arg8[%c0_18, %c64] : memref<8x1280xf32, #tpu.memory_space<vmem>>, vector<8x1024xf32>
    %c0_19 = arith.constant 0 : index
    %c66 = arith.constant 66 : index
    %27 = vector.load %arg8[%c0_19, %c66] : memref<8x1280xf32, #tpu.memory_space<vmem>>, vector<8x1024xf32>
    %c0_20 = arith.constant 0 : index
    %c126 = arith.constant 126 : index
    %28 = vector.load %arg8[%c0_20, %c126] : memref<8x1280xf32, #tpu.memory_space<vmem>>, vector<8x1024xf32>
    %c0_21 = arith.constant 0 : index
    %c128_22 = arith.constant 128 : index
    %29 = vector.load %arg8[%c0_21, %c128_22] : memref<8x1280xf32, #tpu.memory_space<vmem>>, vector<8x1024xf32>
    %c0_23 = arith.constant 0 : index
    %c130 = arith.constant 130 : index
    %30 = vector.load %arg8[%c0_23, %c130] : memref<8x1280xf32, #tpu.memory_space<vmem>>, vector<8x1024xf32>
    %c0_24 = arith.constant 0 : index
    %c190 = arith.constant 190 : index
    %31 = vector.load %arg8[%c0_24, %c190] : memref<8x1280xf32, #tpu.memory_space<vmem>>, vector<8x1024xf32>
    %c0_25 = arith.constant 0 : index
    %c192 = arith.constant 192 : index
    %32 = vector.load %arg8[%c0_25, %c192] : memref<8x1280xf32, #tpu.memory_space<vmem>>, vector<8x1024xf32>
    %c0_26 = arith.constant 0 : index
    %c194 = arith.constant 194 : index
    %33 = vector.load %arg8[%c0_26, %c194] : memref<8x1280xf32, #tpu.memory_space<vmem>>, vector<8x1024xf32>
    %cst_27 = arith.constant 0.000000e+00 : f32
    %34 = vector.broadcast %cst_27 : f32 to vector<8x128xf32>
    %c0_28 = arith.constant 0 : index
    %c1024 = arith.constant 1024 : index
    %35 = vector.load %arg9[%c0_28, %c1024] : memref<8x1152xf32, #tpu.memory_space<vmem>>, vector<8x128xf32>
    tpu.vector_store %arg9[%c0_28, %c1024], %34 {strides = array<i32>} : memref<8x1152xf32, #tpu.memory_space<vmem>>, vector<8x128xf32>,
    %c0_29 = arith.constant 0 : index
    %c0_30 = arith.constant 0 : index
    %36 = memref.load %arg5[%c0_29, %c0_30] : memref<8x9xf32, #tpu.memory_space<smem>>
    %37 = vector.broadcast %36 : f32 to vector<8x1024xf32>
    %38 = arith.mulf %25, %37 : vector<8x1024xf32>
    %c0_31 = arith.constant 0 : index
    %c1_32 = arith.constant 1 : index
    %39 = memref.load %arg5[%c0_31, %c1_32] : memref<8x9xf32, #tpu.memory_space<smem>>
    %40 = vector.broadcast %39 : f32 to vector<8x1024xf32>
    %41 = arith.mulf %26, %40 : vector<8x1024xf32>
    %42 = arith.addf %38, %41 : vector<8x1024xf32>
    %c0_33 = arith.constant 0 : index
    %c2 = arith.constant 2 : index
    %43 = memref.load %arg5[%c0_33, %c2] : memref<8x9xf32, #tpu.memory_space<smem>>
    %44 = vector.broadcast %43 : f32 to vector<8x1024xf32>
    %45 = arith.mulf %27, %44 : vector<8x1024xf32>
    %46 = arith.addf %42, %45 : vector<8x1024xf32>
    %c0_34 = arith.constant 0 : index
    %c3 = arith.constant 3 : index
    %47 = memref.load %arg5[%c0_34, %c3] : memref<8x9xf32, #tpu.memory_space<smem>>
    %48 = vector.broadcast %47 : f32 to vector<8x1024xf32>
    %49 = arith.mulf %28, %48 : vector<8x1024xf32>
    %50 = arith.addf %46, %49 : vector<8x1024xf32>
    %c0_35 = arith.constant 0 : index
    %c4 = arith.constant 4 : index
    %51 = memref.load %arg5[%c0_35, %c4] : memref<8x9xf32, #tpu.memory_space<smem>>
    %52 = vector.broadcast %51 : f32 to vector<8x1024xf32>
    %53 = arith.mulf %29, %52 : vector<8x1024xf32>
    %54 = arith.addf %50, %53 : vector<8x1024xf32>
    %c0_36 = arith.constant 0 : index
    %c5 = arith.constant 5 : index
    %55 = memref.load %arg5[%c0_36, %c5] : memref<8x9xf32, #tpu.memory_space<smem>>
    %56 = vector.broadcast %55 : f32 to vector<8x1024xf32>
    %57 = arith.mulf %30, %56 : vector<8x1024xf32>
    %58 = arith.addf %54, %57 : vector<8x1024xf32>
    %c0_37 = arith.constant 0 : index
    %c6 = arith.constant 6 : index
    %59 = memref.load %arg5[%c0_37, %c6] : memref<8x9xf32, #tpu.memory_space<smem>>
    %60 = vector.broadcast %59 : f32 to vector<8x1024xf32>
    %61 = arith.mulf %31, %60 : vector<8x1024xf32>
    %62 = arith.addf %58, %61 : vector<8x1024xf32>
    %c0_38 = arith.constant 0 : index
    %c7 = arith.constant 7 : index
    %63 = memref.load %arg5[%c0_38, %c7] : memref<8x9xf32, #tpu.memory_space<smem>>
    %64 = vector.broadcast %63 : f32 to vector<8x1024xf32>
    %65 = arith.mulf %32, %64 : vector<8x1024xf32>
    %66 = arith.addf %62, %65 : vector<8x1024xf32>
    %c0_39 = arith.constant 0 : index
    %c8 = arith.constant 8 : index
    %67 = memref.load %arg5[%c0_39, %c8] : memref<8x9xf32, #tpu.memory_space<smem>>
    %68 = vector.broadcast %67 : f32 to vector<8x1024xf32>
    %69 = arith.mulf %33, %68 : vector<8x1024xf32>
    %70 = arith.addf %66, %69 : vector<8x1024xf32>
    %c0_40 = arith.constant 0 : index
    %71 = memref.load %arg6[%c0_40] : memref<8xf32, #tpu.memory_space<smem>>
    %72 = vector.broadcast %71 : f32 to vector<8x1024xf32>
    %73 = arith.addf %70, %72 : vector<8x1024xf32>
    %cst_41 = arith.constant 0.000000e+00 : f32
    %74 = vector.broadcast %cst_41 : f32 to vector<8x1024xf32>
    %75 = arith.maximumf %73, %74 : vector<8x1024xf32>
    %c0_42 = arith.constant 0 : index
    %c0_43 = arith.constant 0 : index
    %76 = vector.load %arg9[%c0_42, %c0_43] : memref<8x1152xf32, #tpu.memory_space<vmem>>, vector<8x1024xf32>
    tpu.vector_store %arg9[%c0_42, %c0_43], %75 {strides = array<i32>} : memref<8x1152xf32, #tpu.memory_space<vmem>>, vector<8x1024xf32>,
    %c0_44 = arith.constant 0 : index
    %c0_45 = arith.constant 0 : index
    %77 = vector.load %arg9[%c0_44, %c0_45] : memref<8x1152xf32, #tpu.memory_space<vmem>>, vector<8x1024xf32>
    %c0_46 = arith.constant 0 : index
    %c2_47 = arith.constant 2 : index
    %78 = vector.load %arg9[%c0_46, %c2_47] : memref<8x1152xf32, #tpu.memory_space<vmem>>, vector<8x1024xf32>
    %79 = arith.maximumf %77, %78 : vector<8x1024xf32>
    %c0_48 = arith.constant 0 : index
    %c64_49 = arith.constant 64 : index
    %80 = vector.load %arg9[%c0_48, %c64_49] : memref<8x1152xf32, #tpu.memory_space<vmem>>, vector<8x1024xf32>
    %c0_50 = arith.constant 0 : index
    %c66_51 = arith.constant 66 : index
    %81 = vector.load %arg9[%c0_50, %c66_51] : memref<8x1152xf32, #tpu.memory_space<vmem>>, vector<8x1024xf32>
    %82 = arith.maximumf %80, %81 : vector<8x1024xf32>
    %83 = arith.maximumf %79, %82 : vector<8x1024xf32>
    %c0_52 = arith.constant 0 : index
    %c0_53 = arith.constant 0 : index
    %84 = vector.load %arg10[%c0_52, %c0_53] : memref<64x1024xf32, #tpu.memory_space<vmem>>, vector<8x1024xf32>
    tpu.vector_store %arg10[%c0_52, %c0_53], %83 {strides = array<i32>} : memref<64x1024xf32, #tpu.memory_space<vmem>>, vector<8x1024xf32>,
    %c1_54 = arith.constant 1 : index
    %c0_55 = arith.constant 0 : index
    %85 = memref.load %arg5[%c1_54, %c0_55] : memref<8x9xf32, #tpu.memory_space<smem>>
    %86 = vector.broadcast %85 : f32 to vector<8x1024xf32>
    %87 = arith.mulf %25, %86 : vector<8x1024xf32>
    %c1_56 = arith.constant 1 : index
    %c1_57 = arith.constant 1 : index
    %88 = memref.load %arg5[%c1_56, %c1_57] : memref<8x9xf32, #tpu.memory_space<smem>>
    %89 = vector.broadcast %88 : f32 to vector<8x1024xf32>
    %90 = arith.mulf %26, %89 : vector<8x1024xf32>
    %91 = arith.addf %87, %90 : vector<8x1024xf32>
    %c1_58 = arith.constant 1 : index
    %c2_59 = arith.constant 2 : index
    %92 = memref.load %arg5[%c1_58, %c2_59] : memref<8x9xf32, #tpu.memory_space<smem>>
    %93 = vector.broadcast %92 : f32 to vector<8x1024xf32>
    %94 = arith.mulf %27, %93 : vector<8x1024xf32>
    %95 = arith.addf %91, %94 : vector<8x1024xf32>
    %c1_60 = arith.constant 1 : index
    %c3_61 = arith.constant 3 : index
    %96 = memref.load %arg5[%c1_60, %c3_61] : memref<8x9xf32, #tpu.memory_space<smem>>
    %97 = vector.broadcast %96 : f32 to vector<8x1024xf32>
    %98 = arith.mulf %28, %97 : vector<8x1024xf32>
    %99 = arith.addf %95, %98 : vector<8x1024xf32>
    %c1_62 = arith.constant 1 : index
    %c4_63 = arith.constant 4 : index
    %100 = memref.load %arg5[%c1_62, %c4_63] : memref<8x9xf32, #tpu.memory_space<smem>>
    %101 = vector.broadcast %100 : f32 to vector<8x1024xf32>
    %102 = arith.mulf %29, %101 : vector<8x1024xf32>
    %103 = arith.addf %99, %102 : vector<8x1024xf32>
    %c1_64 = arith.constant 1 : index
    %c5_65 = arith.constant 5 : index
    %104 = memref.load %arg5[%c1_64, %c5_65] : memref<8x9xf32, #tpu.memory_space<smem>>
    %105 = vector.broadcast %104 : f32 to vector<8x1024xf32>
    %106 = arith.mulf %30, %105 : vector<8x1024xf32>
    %107 = arith.addf %103, %106 : vector<8x1024xf32>
    %c1_66 = arith.constant 1 : index
    %c6_67 = arith.constant 6 : index
    %108 = memref.load %arg5[%c1_66, %c6_67] : memref<8x9xf32, #tpu.memory_space<smem>>
    %109 = vector.broadcast %108 : f32 to vector<8x1024xf32>
    %110 = arith.mulf %31, %109 : vector<8x1024xf32>
    %111 = arith.addf %107, %110 : vector<8x1024xf32>
    %c1_68 = arith.constant 1 : index
    %c7_69 = arith.constant 7 : index
    %112 = memref.load %arg5[%c1_68, %c7_69] : memref<8x9xf32, #tpu.memory_space<smem>>
    %113 = vector.broadcast %112 : f32 to vector<8x1024xf32>
    %114 = arith.mulf %32, %113 : vector<8x1024xf32>
    %115 = arith.addf %111, %114 : vector<8x1024xf32>
    %c1_70 = arith.constant 1 : index
    %c8_71 = arith.constant 8 : index
    %116 = memref.load %arg5[%c1_70, %c8_71] : memref<8x9xf32, #tpu.memory_space<smem>>
    %117 = vector.broadcast %116 : f32 to vector<8x1024xf32>
    %118 = arith.mulf %33, %117 : vector<8x1024xf32>
    %119 = arith.addf %115, %118 : vector<8x1024xf32>
    %c1_72 = arith.constant 1 : index
    %120 = memref.load %arg6[%c1_72] : memref<8xf32, #tpu.memory_space<smem>>
    %121 = vector.broadcast %120 : f32 to vector<8x1024xf32>
    %122 = arith.addf %119, %121 : vector<8x1024xf32>
    %cst_73 = arith.constant 0.000000e+00 : f32
    %123 = vector.broadcast %cst_73 : f32 to vector<8x1024xf32>
    %124 = arith.maximumf %122, %123 : vector<8x1024xf32>
    %c0_74 = arith.constant 0 : index
    %c0_75 = arith.constant 0 : index
    %125 = vector.load %arg9[%c0_74, %c0_75] : memref<8x1152xf32, #tpu.memory_space<vmem>>, vector<8x1024xf32>
    tpu.vector_store %arg9[%c0_74, %c0_75], %124 {strides = array<i32>} : memref<8x1152xf32, #tpu.memory_space<vmem>>, vector<8x1024xf32>,
    %c0_76 = arith.constant 0 : index
    %c0_77 = arith.constant 0 : index
    %126 = vector.load %arg9[%c0_76, %c0_77] : memref<8x1152xf32, #tpu.memory_space<vmem>>, vector<8x1024xf32>
    %c0_78 = arith.constant 0 : index
    %c2_79 = arith.constant 2 : index
    %127 = vector.load %arg9[%c0_78, %c2_79] : memref<8x1152xf32, #tpu.memory_space<vmem>>, vector<8x1024xf32>
    %128 = arith.maximumf %126, %127 : vector<8x1024xf32>
    %c0_80 = arith.constant 0 : index
    %c64_81 = arith.constant 64 : index
    %129 = vector.load %arg9[%c0_80, %c64_81] : memref<8x1152xf32, #tpu.memory_space<vmem>>, vector<8x1024xf32>
    %c0_82 = arith.constant 0 : index
    %c66_83 = arith.constant 66 : index
    %130 = vector.load %arg9[%c0_82, %c66_83] : memref<8x1152xf32, #tpu.memory_space<vmem>>, vector<8x1024xf32>
    %131 = arith.maximumf %129, %130 : vector<8x1024xf32>
    %132 = arith.maximumf %128, %131 : vector<8x1024xf32>
    %c8_84 = arith.constant 8 : index
    %c0_85 = arith.constant 0 : index
    %133 = vector.load %arg10[%c8_84, %c0_85] : memref<64x1024xf32, #tpu.memory_space<vmem>>, vector<8x1024xf32>
    tpu.vector_store %arg10[%c8_84, %c0_85], %132 {strides = array<i32>} : memref<64x1024xf32, #tpu.memory_space<vmem>>, vector<8x1024xf32>,
    %c2_86 = arith.constant 2 : index
    %c0_87 = arith.constant 0 : index
    %134 = memref.load %arg5[%c2_86, %c0_87] : memref<8x9xf32, #tpu.memory_space<smem>>
    %135 = vector.broadcast %134 : f32 to vector<8x1024xf32>
    %136 = arith.mulf %25, %135 : vector<8x1024xf32>
    %c2_88 = arith.constant 2 : index
    %c1_89 = arith.constant 1 : index
    %137 = memref.load %arg5[%c2_88, %c1_89] : memref<8x9xf32, #tpu.memory_space<smem>>
    %138 = vector.broadcast %137 : f32 to vector<8x1024xf32>
    %139 = arith.mulf %26, %138 : vector<8x1024xf32>
    %140 = arith.addf %136, %139 : vector<8x1024xf32>
    %c2_90 = arith.constant 2 : index
    %c2_91 = arith.constant 2 : index
    %141 = memref.load %arg5[%c2_90, %c2_91] : memref<8x9xf32, #tpu.memory_space<smem>>
    %142 = vector.broadcast %141 : f32 to vector<8x1024xf32>
    %143 = arith.mulf %27, %142 : vector<8x1024xf32>
    %144 = arith.addf %140, %143 : vector<8x1024xf32>
    %c2_92 = arith.constant 2 : index
    %c3_93 = arith.constant 3 : index
    %145 = memref.load %arg5[%c2_92, %c3_93] : memref<8x9xf32, #tpu.memory_space<smem>>
    %146 = vector.broadcast %145 : f32 to vector<8x1024xf32>
    %147 = arith.mulf %28, %146 : vector<8x1024xf32>
    %148 = arith.addf %144, %147 : vector<8x1024xf32>
    %c2_94 = arith.constant 2 : index
    %c4_95 = arith.constant 4 : index
    %149 = memref.load %arg5[%c2_94, %c4_95] : memref<8x9xf32, #tpu.memory_space<smem>>
    %150 = vector.broadcast %149 : f32 to vector<8x1024xf32>
    %151 = arith.mulf %29, %150 : vector<8x1024xf32>
    %152 = arith.addf %148, %151 : vector<8x1024xf32>
    %c2_96 = arith.constant 2 : index
    %c5_97 = arith.constant 5 : index
    %153 = memref.load %arg5[%c2_96, %c5_97] : memref<8x9xf32, #tpu.memory_space<smem>>
    %154 = vector.broadcast %153 : f32 to vector<8x1024xf32>
    %155 = arith.mulf %30, %154 : vector<8x1024xf32>
    %156 = arith.addf %152, %155 : vector<8x1024xf32>
    %c2_98 = arith.constant 2 : index
    %c6_99 = arith.constant 6 : index
    %157 = memref.load %arg5[%c2_98, %c6_99] : memref<8x9xf32, #tpu.memory_space<smem>>
    %158 = vector.broadcast %157 : f32 to vector<8x1024xf32>
    %159 = arith.mulf %31, %158 : vector<8x1024xf32>
    %160 = arith.addf %156, %159 : vector<8x1024xf32>
    %c2_100 = arith.constant 2 : index
    %c7_101 = arith.constant 7 : index
    %161 = memref.load %arg5[%c2_100, %c7_101] : memref<8x9xf32, #tpu.memory_space<smem>>
    %162 = vector.broadcast %161 : f32 to vector<8x1024xf32>
    %163 = arith.mulf %32, %162 : vector<8x1024xf32>
    %164 = arith.addf %160, %163 : vector<8x1024xf32>
    %c2_102 = arith.constant 2 : index
    %c8_103 = arith.constant 8 : index
    %165 = memref.load %arg5[%c2_102, %c8_103] : memref<8x9xf32, #tpu.memory_space<smem>>
    %166 = vector.broadcast %165 : f32 to vector<8x1024xf32>
    %167 = arith.mulf %33, %166 : vector<8x1024xf32>
    %168 = arith.addf %164, %167 : vector<8x1024xf32>
    %c2_104 = arith.constant 2 : index
    %169 = memref.load %arg6[%c2_104] : memref<8xf32, #tpu.memory_space<smem>>
    %170 = vector.broadcast %169 : f32 to vector<8x1024xf32>
    %171 = arith.addf %168, %170 : vector<8x1024xf32>
    %cst_105 = arith.constant 0.000000e+00 : f32
    %172 = vector.broadcast %cst_105 : f32 to vector<8x1024xf32>
    %173 = arith.maximumf %171, %172 : vector<8x1024xf32>
    %c0_106 = arith.constant 0 : index
    %c0_107 = arith.constant 0 : index
    %174 = vector.load %arg9[%c0_106, %c0_107] : memref<8x1152xf32, #tpu.memory_space<vmem>>, vector<8x1024xf32>
    tpu.vector_store %arg9[%c0_106, %c0_107], %173 {strides = array<i32>} : memref<8x1152xf32, #tpu.memory_space<vmem>>, vector<8x1024xf32>,
    %c0_108 = arith.constant 0 : index
    %c0_109 = arith.constant 0 : index
    %175 = vector.load %arg9[%c0_108, %c0_109] : memref<8x1152xf32, #tpu.memory_space<vmem>>, vector<8x1024xf32>
    %c0_110 = arith.constant 0 : index
    %c2_111 = arith.constant 2 : index
    %176 = vector.load %arg9[%c0_110, %c2_111] : memref<8x1152xf32, #tpu.memory_space<vmem>>, vector<8x1024xf32>
    %177 = arith.maximumf %175, %176 : vector<8x1024xf32>
    %c0_112 = arith.constant 0 : index
    %c64_113 = arith.constant 64 : index
    %178 = vector.load %arg9[%c0_112, %c64_113] : memref<8x1152xf32, #tpu.memory_space<vmem>>, vector<8x1024xf32>
    %c0_114 = arith.constant 0 : index
    %c66_115 = arith.constant 66 : index
    %179 = vector.load %arg9[%c0_114, %c66_115] : memref<8x1152xf32, #tpu.memory_space<vmem>>, vector<8x1024xf32>
    %180 = arith.maximumf %178, %179 : vector<8x1024xf32>
    %181 = arith.maximumf %177, %180 : vector<8x1024xf32>
    %c16 = arith.constant 16 : index
    %c0_116 = arith.constant 0 : index
    %182 = vector.load %arg10[%c16, %c0_116] : memref<64x1024xf32, #tpu.memory_space<vmem>>, vector<8x1024xf32>
    tpu.vector_store %arg10[%c16, %c0_116], %181 {strides = array<i32>} : memref<64x1024xf32, #tpu.memory_space<vmem>>, vector<8x1024xf32>,
    %c3_117 = arith.constant 3 : index
    %c0_118 = arith.constant 0 : index
    %183 = memref.load %arg5[%c3_117, %c0_118] : memref<8x9xf32, #tpu.memory_space<smem>>
    %184 = vector.broadcast %183 : f32 to vector<8x1024xf32>
    %185 = arith.mulf %25, %184 : vector<8x1024xf32>
    %c3_119 = arith.constant 3 : index
    %c1_120 = arith.constant 1 : index
    %186 = memref.load %arg5[%c3_119, %c1_120] : memref<8x9xf32, #tpu.memory_space<smem>>
    %187 = vector.broadcast %186 : f32 to vector<8x1024xf32>
    %188 = arith.mulf %26, %187 : vector<8x1024xf32>
    %189 = arith.addf %185, %188 : vector<8x1024xf32>
    %c3_121 = arith.constant 3 : index
    %c2_122 = arith.constant 2 : index
    %190 = memref.load %arg5[%c3_121, %c2_122] : memref<8x9xf32, #tpu.memory_space<smem>>
    %191 = vector.broadcast %190 : f32 to vector<8x1024xf32>
    %192 = arith.mulf %27, %191 : vector<8x1024xf32>
    %193 = arith.addf %189, %192 : vector<8x1024xf32>
    %c3_123 = arith.constant 3 : index
    %c3_124 = arith.constant 3 : index
    %194 = memref.load %arg5[%c3_123, %c3_124] : memref<8x9xf32, #tpu.memory_space<smem>>
    %195 = vector.broadcast %194 : f32 to vector<8x1024xf32>
    %196 = arith.mulf %28, %195 : vector<8x1024xf32>
    %197 = arith.addf %193, %196 : vector<8x1024xf32>
    %c3_125 = arith.constant 3 : index
    %c4_126 = arith.constant 4 : index
    %198 = memref.load %arg5[%c3_125, %c4_126] : memref<8x9xf32, #tpu.memory_space<smem>>
    %199 = vector.broadcast %198 : f32 to vector<8x1024xf32>
    %200 = arith.mulf %29, %199 : vector<8x1024xf32>
    %201 = arith.addf %197, %200 : vector<8x1024xf32>
    %c3_127 = arith.constant 3 : index
    %c5_128 = arith.constant 5 : index
    %202 = memref.load %arg5[%c3_127, %c5_128] : memref<8x9xf32, #tpu.memory_space<smem>>
    %203 = vector.broadcast %202 : f32 to vector<8x1024xf32>
    %204 = arith.mulf %30, %203 : vector<8x1024xf32>
    %205 = arith.addf %201, %204 : vector<8x1024xf32>
    %c3_129 = arith.constant 3 : index
    %c6_130 = arith.constant 6 : index
    %206 = memref.load %arg5[%c3_129, %c6_130] : memref<8x9xf32, #tpu.memory_space<smem>>
    %207 = vector.broadcast %206 : f32 to vector<8x1024xf32>
    %208 = arith.mulf %31, %207 : vector<8x1024xf32>
    %209 = arith.addf %205, %208 : vector<8x1024xf32>
    %c3_131 = arith.constant 3 : index
    %c7_132 = arith.constant 7 : index
    %210 = memref.load %arg5[%c3_131, %c7_132] : memref<8x9xf32, #tpu.memory_space<smem>>
    %211 = vector.broadcast %210 : f32 to vector<8x1024xf32>
    %212 = arith.mulf %32, %211 : vector<8x1024xf32>
    %213 = arith.addf %209, %212 : vector<8x1024xf32>
    %c3_133 = arith.constant 3 : index
    %c8_134 = arith.constant 8 : index
    %214 = memref.load %arg5[%c3_133, %c8_134] : memref<8x9xf32, #tpu.memory_space<smem>>
    %215 = vector.broadcast %214 : f32 to vector<8x1024xf32>
    %216 = arith.mulf %33, %215 : vector<8x1024xf32>
    %217 = arith.addf %213, %216 : vector<8x1024xf32>
    %c3_135 = arith.constant 3 : index
    %218 = memref.load %arg6[%c3_135] : memref<8xf32, #tpu.memory_space<smem>>
    %219 = vector.broadcast %218 : f32 to vector<8x1024xf32>
    %220 = arith.addf %217, %219 : vector<8x1024xf32>
    %cst_136 = arith.constant 0.000000e+00 : f32
    %221 = vector.broadcast %cst_136 : f32 to vector<8x1024xf32>
    %222 = arith.maximumf %220, %221 : vector<8x1024xf32>
    %c0_137 = arith.constant 0 : index
    %c0_138 = arith.constant 0 : index
    %223 = vector.load %arg9[%c0_137, %c0_138] : memref<8x1152xf32, #tpu.memory_space<vmem>>, vector<8x1024xf32>
    tpu.vector_store %arg9[%c0_137, %c0_138], %222 {strides = array<i32>} : memref<8x1152xf32, #tpu.memory_space<vmem>>, vector<8x1024xf32>,
    %c0_139 = arith.constant 0 : index
    %c0_140 = arith.constant 0 : index
    %224 = vector.load %arg9[%c0_139, %c0_140] : memref<8x1152xf32, #tpu.memory_space<vmem>>, vector<8x1024xf32>
    %c0_141 = arith.constant 0 : index
    %c2_142 = arith.constant 2 : index
    %225 = vector.load %arg9[%c0_141, %c2_142] : memref<8x1152xf32, #tpu.memory_space<vmem>>, vector<8x1024xf32>
    %226 = arith.maximumf %224, %225 : vector<8x1024xf32>
    %c0_143 = arith.constant 0 : index
    %c64_144 = arith.constant 64 : index
    %227 = vector.load %arg9[%c0_143, %c64_144] : memref<8x1152xf32, #tpu.memory_space<vmem>>, vector<8x1024xf32>
    %c0_145 = arith.constant 0 : index
    %c66_146 = arith.constant 66 : index
    %228 = vector.load %arg9[%c0_145, %c66_146] : memref<8x1152xf32, #tpu.memory_space<vmem>>, vector<8x1024xf32>
    %229 = arith.maximumf %227, %228 : vector<8x1024xf32>
    %230 = arith.maximumf %226, %229 : vector<8x1024xf32>
    %c24 = arith.constant 24 : index
    %c0_147 = arith.constant 0 : index
    %231 = vector.load %arg10[%c24, %c0_147] : memref<64x1024xf32, #tpu.memory_space<vmem>>, vector<8x1024xf32>
    tpu.vector_store %arg10[%c24, %c0_147], %230 {strides = array<i32>} : memref<64x1024xf32, #tpu.memory_space<vmem>>, vector<8x1024xf32>,
    %c4_148 = arith.constant 4 : index
    %c0_149 = arith.constant 0 : index
    %232 = memref.load %arg5[%c4_148, %c0_149] : memref<8x9xf32, #tpu.memory_space<smem>>
    %233 = vector.broadcast %232 : f32 to vector<8x1024xf32>
    %234 = arith.mulf %25, %233 : vector<8x1024xf32>
    %c4_150 = arith.constant 4 : index
    %c1_151 = arith.constant 1 : index
    %235 = memref.load %arg5[%c4_150, %c1_151] : memref<8x9xf32, #tpu.memory_space<smem>>
    %236 = vector.broadcast %235 : f32 to vector<8x1024xf32>
    %237 = arith.mulf %26, %236 : vector<8x1024xf32>
    %238 = arith.addf %234, %237 : vector<8x1024xf32>
    %c4_152 = arith.constant 4 : index
    %c2_153 = arith.constant 2 : index
    %239 = memref.load %arg5[%c4_152, %c2_153] : memref<8x9xf32, #tpu.memory_space<smem>>
    %240 = vector.broadcast %239 : f32 to vector<8x1024xf32>
    %241 = arith.mulf %27, %240 : vector<8x1024xf32>
    %242 = arith.addf %238, %241 : vector<8x1024xf32>
    %c4_154 = arith.constant 4 : index
    %c3_155 = arith.constant 3 : index
    %243 = memref.load %arg5[%c4_154, %c3_155] : memref<8x9xf32, #tpu.memory_space<smem>>
    %244 = vector.broadcast %243 : f32 to vector<8x1024xf32>
    %245 = arith.mulf %28, %244 : vector<8x1024xf32>
    %246 = arith.addf %242, %245 : vector<8x1024xf32>
    %c4_156 = arith.constant 4 : index
    %c4_157 = arith.constant 4 : index
    %247 = memref.load %arg5[%c4_156, %c4_157] : memref<8x9xf32, #tpu.memory_space<smem>>
    %248 = vector.broadcast %247 : f32 to vector<8x1024xf32>
    %249 = arith.mulf %29, %248 : vector<8x1024xf32>
    %250 = arith.addf %246, %249 : vector<8x1024xf32>
    %c4_158 = arith.constant 4 : index
    %c5_159 = arith.constant 5 : index
    %251 = memref.load %arg5[%c4_158, %c5_159] : memref<8x9xf32, #tpu.memory_space<smem>>
    %252 = vector.broadcast %251 : f32 to vector<8x1024xf32>
    %253 = arith.mulf %30, %252 : vector<8x1024xf32>
    %254 = arith.addf %250, %253 : vector<8x1024xf32>
    %c4_160 = arith.constant 4 : index
    %c6_161 = arith.constant 6 : index
    %255 = memref.load %arg5[%c4_160, %c6_161] : memref<8x9xf32, #tpu.memory_space<smem>>
    %256 = vector.broadcast %255 : f32 to vector<8x1024xf32>
    %257 = arith.mulf %31, %256 : vector<8x1024xf32>
    %258 = arith.addf %254, %257 : vector<8x1024xf32>
    %c4_162 = arith.constant 4 : index
    %c7_163 = arith.constant 7 : index
    %259 = memref.load %arg5[%c4_162, %c7_163] : memref<8x9xf32, #tpu.memory_space<smem>>
    %260 = vector.broadcast %259 : f32 to vector<8x1024xf32>
    %261 = arith.mulf %32, %260 : vector<8x1024xf32>
    %262 = arith.addf %258, %261 : vector<8x1024xf32>
    %c4_164 = arith.constant 4 : index
    %c8_165 = arith.constant 8 : index
    %263 = memref.load %arg5[%c4_164, %c8_165] : memref<8x9xf32, #tpu.memory_space<smem>>
    %264 = vector.broadcast %263 : f32 to vector<8x1024xf32>
    %265 = arith.mulf %33, %264 : vector<8x1024xf32>
    %266 = arith.addf %262, %265 : vector<8x1024xf32>
    %c4_166 = arith.constant 4 : index
    %267 = memref.load %arg6[%c4_166] : memref<8xf32, #tpu.memory_space<smem>>
    %268 = vector.broadcast %267 : f32 to vector<8x1024xf32>
    %269 = arith.addf %266, %268 : vector<8x1024xf32>
    %cst_167 = arith.constant 0.000000e+00 : f32
    %270 = vector.broadcast %cst_167 : f32 to vector<8x1024xf32>
    %271 = arith.maximumf %269, %270 : vector<8x1024xf32>
    %c0_168 = arith.constant 0 : index
    %c0_169 = arith.constant 0 : index
    %272 = vector.load %arg9[%c0_168, %c0_169] : memref<8x1152xf32, #tpu.memory_space<vmem>>, vector<8x1024xf32>
    tpu.vector_store %arg9[%c0_168, %c0_169], %271 {strides = array<i32>} : memref<8x1152xf32, #tpu.memory_space<vmem>>, vector<8x1024xf32>,
    %c0_170 = arith.constant 0 : index
    %c0_171 = arith.constant 0 : index
    %273 = vector.load %arg9[%c0_170, %c0_171] : memref<8x1152xf32, #tpu.memory_space<vmem>>, vector<8x1024xf32>
    %c0_172 = arith.constant 0 : index
    %c2_173 = arith.constant 2 : index
    %274 = vector.load %arg9[%c0_172, %c2_173] : memref<8x1152xf32, #tpu.memory_space<vmem>>, vector<8x1024xf32>
    %275 = arith.maximumf %273, %274 : vector<8x1024xf32>
    %c0_174 = arith.constant 0 : index
    %c64_175 = arith.constant 64 : index
    %276 = vector.load %arg9[%c0_174, %c64_175] : memref<8x1152xf32, #tpu.memory_space<vmem>>, vector<8x1024xf32>
    %c0_176 = arith.constant 0 : index
    %c66_177 = arith.constant 66 : index
    %277 = vector.load %arg9[%c0_176, %c66_177] : memref<8x1152xf32, #tpu.memory_space<vmem>>, vector<8x1024xf32>
    %278 = arith.maximumf %276, %277 : vector<8x1024xf32>
    %279 = arith.maximumf %275, %278 : vector<8x1024xf32>
    %c32 = arith.constant 32 : index
    %c0_178 = arith.constant 0 : index
    %280 = vector.load %arg10[%c32, %c0_178] : memref<64x1024xf32, #tpu.memory_space<vmem>>, vector<8x1024xf32>
    tpu.vector_store %arg10[%c32, %c0_178], %279 {strides = array<i32>} : memref<64x1024xf32, #tpu.memory_space<vmem>>, vector<8x1024xf32>,
    %c5_179 = arith.constant 5 : index
    %c0_180 = arith.constant 0 : index
    %281 = memref.load %arg5[%c5_179, %c0_180] : memref<8x9xf32, #tpu.memory_space<smem>>
    %282 = vector.broadcast %281 : f32 to vector<8x1024xf32>
    %283 = arith.mulf %25, %282 : vector<8x1024xf32>
    %c5_181 = arith.constant 5 : index
    %c1_182 = arith.constant 1 : index
    %284 = memref.load %arg5[%c5_181, %c1_182] : memref<8x9xf32, #tpu.memory_space<smem>>
    %285 = vector.broadcast %284 : f32 to vector<8x1024xf32>
    %286 = arith.mulf %26, %285 : vector<8x1024xf32>
    %287 = arith.addf %283, %286 : vector<8x1024xf32>
    %c5_183 = arith.constant 5 : index
    %c2_184 = arith.constant 2 : index
    %288 = memref.load %arg5[%c5_183, %c2_184] : memref<8x9xf32, #tpu.memory_space<smem>>
    %289 = vector.broadcast %288 : f32 to vector<8x1024xf32>
    %290 = arith.mulf %27, %289 : vector<8x1024xf32>
    %291 = arith.addf %287, %290 : vector<8x1024xf32>
    %c5_185 = arith.constant 5 : index
    %c3_186 = arith.constant 3 : index
    %292 = memref.load %arg5[%c5_185, %c3_186] : memref<8x9xf32, #tpu.memory_space<smem>>
    %293 = vector.broadcast %292 : f32 to vector<8x1024xf32>
    %294 = arith.mulf %28, %293 : vector<8x1024xf32>
    %295 = arith.addf %291, %294 : vector<8x1024xf32>
    %c5_187 = arith.constant 5 : index
    %c4_188 = arith.constant 4 : index
    %296 = memref.load %arg5[%c5_187, %c4_188] : memref<8x9xf32, #tpu.memory_space<smem>>
    %297 = vector.broadcast %296 : f32 to vector<8x1024xf32>
    %298 = arith.mulf %29, %297 : vector<8x1024xf32>
    %299 = arith.addf %295, %298 : vector<8x1024xf32>
    %c5_189 = arith.constant 5 : index
    %c5_190 = arith.constant 5 : index
    %300 = memref.load %arg5[%c5_189, %c5_190] : memref<8x9xf32, #tpu.memory_space<smem>>
    %301 = vector.broadcast %300 : f32 to vector<8x1024xf32>
    %302 = arith.mulf %30, %301 : vector<8x1024xf32>
    %303 = arith.addf %299, %302 : vector<8x1024xf32>
    %c5_191 = arith.constant 5 : index
    %c6_192 = arith.constant 6 : index
    %304 = memref.load %arg5[%c5_191, %c6_192] : memref<8x9xf32, #tpu.memory_space<smem>>
    %305 = vector.broadcast %304 : f32 to vector<8x1024xf32>
    %306 = arith.mulf %31, %305 : vector<8x1024xf32>
    %307 = arith.addf %303, %306 : vector<8x1024xf32>
    %c5_193 = arith.constant 5 : index
    %c7_194 = arith.constant 7 : index
    %308 = memref.load %arg5[%c5_193, %c7_194] : memref<8x9xf32, #tpu.memory_space<smem>>
    %309 = vector.broadcast %308 : f32 to vector<8x1024xf32>
    %310 = arith.mulf %32, %309 : vector<8x1024xf32>
    %311 = arith.addf %307, %310 : vector<8x1024xf32>
    %c5_195 = arith.constant 5 : index
    %c8_196 = arith.constant 8 : index
    %312 = memref.load %arg5[%c5_195, %c8_196] : memref<8x9xf32, #tpu.memory_space<smem>>
    %313 = vector.broadcast %312 : f32 to vector<8x1024xf32>
    %314 = arith.mulf %33, %313 : vector<8x1024xf32>
    %315 = arith.addf %311, %314 : vector<8x1024xf32>
    %c5_197 = arith.constant 5 : index
    %316 = memref.load %arg6[%c5_197] : memref<8xf32, #tpu.memory_space<smem>>
    %317 = vector.broadcast %316 : f32 to vector<8x1024xf32>
    %318 = arith.addf %315, %317 : vector<8x1024xf32>
    %cst_198 = arith.constant 0.000000e+00 : f32
    %319 = vector.broadcast %cst_198 : f32 to vector<8x1024xf32>
    %320 = arith.maximumf %318, %319 : vector<8x1024xf32>
    %c0_199 = arith.constant 0 : index
    %c0_200 = arith.constant 0 : index
    %321 = vector.load %arg9[%c0_199, %c0_200] : memref<8x1152xf32, #tpu.memory_space<vmem>>, vector<8x1024xf32>
    tpu.vector_store %arg9[%c0_199, %c0_200], %320 {strides = array<i32>} : memref<8x1152xf32, #tpu.memory_space<vmem>>, vector<8x1024xf32>,
    %c0_201 = arith.constant 0 : index
    %c0_202 = arith.constant 0 : index
    %322 = vector.load %arg9[%c0_201, %c0_202] : memref<8x1152xf32, #tpu.memory_space<vmem>>, vector<8x1024xf32>
    %c0_203 = arith.constant 0 : index
    %c2_204 = arith.constant 2 : index
    %323 = vector.load %arg9[%c0_203, %c2_204] : memref<8x1152xf32, #tpu.memory_space<vmem>>, vector<8x1024xf32>
    %324 = arith.maximumf %322, %323 : vector<8x1024xf32>
    %c0_205 = arith.constant 0 : index
    %c64_206 = arith.constant 64 : index
    %325 = vector.load %arg9[%c0_205, %c64_206] : memref<8x1152xf32, #tpu.memory_space<vmem>>, vector<8x1024xf32>
    %c0_207 = arith.constant 0 : index
    %c66_208 = arith.constant 66 : index
    %326 = vector.load %arg9[%c0_207, %c66_208] : memref<8x1152xf32, #tpu.memory_space<vmem>>, vector<8x1024xf32>
    %327 = arith.maximumf %325, %326 : vector<8x1024xf32>
    %328 = arith.maximumf %324, %327 : vector<8x1024xf32>
    %c40 = arith.constant 40 : index
    %c0_209 = arith.constant 0 : index
    %329 = vector.load %arg10[%c40, %c0_209] : memref<64x1024xf32, #tpu.memory_space<vmem>>, vector<8x1024xf32>
    tpu.vector_store %arg10[%c40, %c0_209], %328 {strides = array<i32>} : memref<64x1024xf32, #tpu.memory_space<vmem>>, vector<8x1024xf32>,
    %c6_210 = arith.constant 6 : index
    %c0_211 = arith.constant 0 : index
    %330 = memref.load %arg5[%c6_210, %c0_211] : memref<8x9xf32, #tpu.memory_space<smem>>
    %331 = vector.broadcast %330 : f32 to vector<8x1024xf32>
    %332 = arith.mulf %25, %331 : vector<8x1024xf32>
    %c6_212 = arith.constant 6 : index
    %c1_213 = arith.constant 1 : index
    %333 = memref.load %arg5[%c6_212, %c1_213] : memref<8x9xf32, #tpu.memory_space<smem>>
    %334 = vector.broadcast %333 : f32 to vector<8x1024xf32>
    %335 = arith.mulf %26, %334 : vector<8x1024xf32>
    %336 = arith.addf %332, %335 : vector<8x1024xf32>
    %c6_214 = arith.constant 6 : index
    %c2_215 = arith.constant 2 : index
    %337 = memref.load %arg5[%c6_214, %c2_215] : memref<8x9xf32, #tpu.memory_space<smem>>
    %338 = vector.broadcast %337 : f32 to vector<8x1024xf32>
    %339 = arith.mulf %27, %338 : vector<8x1024xf32>
    %340 = arith.addf %336, %339 : vector<8x1024xf32>
    %c6_216 = arith.constant 6 : index
    %c3_217 = arith.constant 3 : index
    %341 = memref.load %arg5[%c6_216, %c3_217] : memref<8x9xf32, #tpu.memory_space<smem>>
    %342 = vector.broadcast %341 : f32 to vector<8x1024xf32>
    %343 = arith.mulf %28, %342 : vector<8x1024xf32>
    %344 = arith.addf %340, %343 : vector<8x1024xf32>
    %c6_218 = arith.constant 6 : index
    %c4_219 = arith.constant 4 : index
    %345 = memref.load %arg5[%c6_218, %c4_219] : memref<8x9xf32, #tpu.memory_space<smem>>
    %346 = vector.broadcast %345 : f32 to vector<8x1024xf32>
    %347 = arith.mulf %29, %346 : vector<8x1024xf32>
    %348 = arith.addf %344, %347 : vector<8x1024xf32>
    %c6_220 = arith.constant 6 : index
    %c5_221 = arith.constant 5 : index
    %349 = memref.load %arg5[%c6_220, %c5_221] : memref<8x9xf32, #tpu.memory_space<smem>>
    %350 = vector.broadcast %349 : f32 to vector<8x1024xf32>
    %351 = arith.mulf %30, %350 : vector<8x1024xf32>
    %352 = arith.addf %348, %351 : vector<8x1024xf32>
    %c6_222 = arith.constant 6 : index
    %c6_223 = arith.constant 6 : index
    %353 = memref.load %arg5[%c6_222, %c6_223] : memref<8x9xf32, #tpu.memory_space<smem>>
    %354 = vector.broadcast %353 : f32 to vector<8x1024xf32>
    %355 = arith.mulf %31, %354 : vector<8x1024xf32>
    %356 = arith.addf %352, %355 : vector<8x1024xf32>
    %c6_224 = arith.constant 6 : index
    %c7_225 = arith.constant 7 : index
    %357 = memref.load %arg5[%c6_224, %c7_225] : memref<8x9xf32, #tpu.memory_space<smem>>
    %358 = vector.broadcast %357 : f32 to vector<8x1024xf32>
    %359 = arith.mulf %32, %358 : vector<8x1024xf32>
    %360 = arith.addf %356, %359 : vector<8x1024xf32>
    %c6_226 = arith.constant 6 : index
    %c8_227 = arith.constant 8 : index
    %361 = memref.load %arg5[%c6_226, %c8_227] : memref<8x9xf32, #tpu.memory_space<smem>>
    %362 = vector.broadcast %361 : f32 to vector<8x1024xf32>
    %363 = arith.mulf %33, %362 : vector<8x1024xf32>
    %364 = arith.addf %360, %363 : vector<8x1024xf32>
    %c6_228 = arith.constant 6 : index
    %365 = memref.load %arg6[%c6_228] : memref<8xf32, #tpu.memory_space<smem>>
    %366 = vector.broadcast %365 : f32 to vector<8x1024xf32>
    %367 = arith.addf %364, %366 : vector<8x1024xf32>
    %cst_229 = arith.constant 0.000000e+00 : f32
    %368 = vector.broadcast %cst_229 : f32 to vector<8x1024xf32>
    %369 = arith.maximumf %367, %368 : vector<8x1024xf32>
    %c0_230 = arith.constant 0 : index
    %c0_231 = arith.constant 0 : index
    %370 = vector.load %arg9[%c0_230, %c0_231] : memref<8x1152xf32, #tpu.memory_space<vmem>>, vector<8x1024xf32>
    tpu.vector_store %arg9[%c0_230, %c0_231], %369 {strides = array<i32>} : memref<8x1152xf32, #tpu.memory_space<vmem>>, vector<8x1024xf32>,
    %c0_232 = arith.constant 0 : index
    %c0_233 = arith.constant 0 : index
    %371 = vector.load %arg9[%c0_232, %c0_233] : memref<8x1152xf32, #tpu.memory_space<vmem>>, vector<8x1024xf32>
    %c0_234 = arith.constant 0 : index
    %c2_235 = arith.constant 2 : index
    %372 = vector.load %arg9[%c0_234, %c2_235] : memref<8x1152xf32, #tpu.memory_space<vmem>>, vector<8x1024xf32>
    %373 = arith.maximumf %371, %372 : vector<8x1024xf32>
    %c0_236 = arith.constant 0 : index
    %c64_237 = arith.constant 64 : index
    %374 = vector.load %arg9[%c0_236, %c64_237] : memref<8x1152xf32, #tpu.memory_space<vmem>>, vector<8x1024xf32>
    %c0_238 = arith.constant 0 : index
    %c66_239 = arith.constant 66 : index
    %375 = vector.load %arg9[%c0_238, %c66_239] : memref<8x1152xf32, #tpu.memory_space<vmem>>, vector<8x1024xf32>
    %376 = arith.maximumf %374, %375 : vector<8x1024xf32>
    %377 = arith.maximumf %373, %376 : vector<8x1024xf32>
    %c48 = arith.constant 48 : index
    %c0_240 = arith.constant 0 : index
    %378 = vector.load %arg10[%c48, %c0_240] : memref<64x1024xf32, #tpu.memory_space<vmem>>, vector<8x1024xf32>
    tpu.vector_store %arg10[%c48, %c0_240], %377 {strides = array<i32>} : memref<64x1024xf32, #tpu.memory_space<vmem>>, vector<8x1024xf32>,
    %c7_241 = arith.constant 7 : index
    %c0_242 = arith.constant 0 : index
    %379 = memref.load %arg5[%c7_241, %c0_242] : memref<8x9xf32, #tpu.memory_space<smem>>
    %380 = vector.broadcast %379 : f32 to vector<8x1024xf32>
    %381 = arith.mulf %25, %380 : vector<8x1024xf32>
    %c7_243 = arith.constant 7 : index
    %c1_244 = arith.constant 1 : index
    %382 = memref.load %arg5[%c7_243, %c1_244] : memref<8x9xf32, #tpu.memory_space<smem>>
    %383 = vector.broadcast %382 : f32 to vector<8x1024xf32>
    %384 = arith.mulf %26, %383 : vector<8x1024xf32>
    %385 = arith.addf %381, %384 : vector<8x1024xf32>
    %c7_245 = arith.constant 7 : index
    %c2_246 = arith.constant 2 : index
    %386 = memref.load %arg5[%c7_245, %c2_246] : memref<8x9xf32, #tpu.memory_space<smem>>
    %387 = vector.broadcast %386 : f32 to vector<8x1024xf32>
    %388 = arith.mulf %27, %387 : vector<8x1024xf32>
    %389 = arith.addf %385, %388 : vector<8x1024xf32>
    %c7_247 = arith.constant 7 : index
    %c3_248 = arith.constant 3 : index
    %390 = memref.load %arg5[%c7_247, %c3_248] : memref<8x9xf32, #tpu.memory_space<smem>>
    %391 = vector.broadcast %390 : f32 to vector<8x1024xf32>
    %392 = arith.mulf %28, %391 : vector<8x1024xf32>
    %393 = arith.addf %389, %392 : vector<8x1024xf32>
    %c7_249 = arith.constant 7 : index
    %c4_250 = arith.constant 4 : index
    %394 = memref.load %arg5[%c7_249, %c4_250] : memref<8x9xf32, #tpu.memory_space<smem>>
    %395 = vector.broadcast %394 : f32 to vector<8x1024xf32>
    %396 = arith.mulf %29, %395 : vector<8x1024xf32>
    %397 = arith.addf %393, %396 : vector<8x1024xf32>
    %c7_251 = arith.constant 7 : index
    %c5_252 = arith.constant 5 : index
    %398 = memref.load %arg5[%c7_251, %c5_252] : memref<8x9xf32, #tpu.memory_space<smem>>
    %399 = vector.broadcast %398 : f32 to vector<8x1024xf32>
    %400 = arith.mulf %30, %399 : vector<8x1024xf32>
    %401 = arith.addf %397, %400 : vector<8x1024xf32>
    %c7_253 = arith.constant 7 : index
    %c6_254 = arith.constant 6 : index
    %402 = memref.load %arg5[%c7_253, %c6_254] : memref<8x9xf32, #tpu.memory_space<smem>>
    %403 = vector.broadcast %402 : f32 to vector<8x1024xf32>
    %404 = arith.mulf %31, %403 : vector<8x1024xf32>
    %405 = arith.addf %401, %404 : vector<8x1024xf32>
    %c7_255 = arith.constant 7 : index
    %c7_256 = arith.constant 7 : index
    %406 = memref.load %arg5[%c7_255, %c7_256] : memref<8x9xf32, #tpu.memory_space<smem>>
    %407 = vector.broadcast %406 : f32 to vector<8x1024xf32>
    %408 = arith.mulf %32, %407 : vector<8x1024xf32>
    %409 = arith.addf %405, %408 : vector<8x1024xf32>
    %c7_257 = arith.constant 7 : index
    %c8_258 = arith.constant 8 : index
    %410 = memref.load %arg5[%c7_257, %c8_258] : memref<8x9xf32, #tpu.memory_space<smem>>
    %411 = vector.broadcast %410 : f32 to vector<8x1024xf32>
    %412 = arith.mulf %33, %411 : vector<8x1024xf32>
    %413 = arith.addf %409, %412 : vector<8x1024xf32>
    %c7_259 = arith.constant 7 : index
    %414 = memref.load %arg6[%c7_259] : memref<8xf32, #tpu.memory_space<smem>>
    %415 = vector.broadcast %414 : f32 to vector<8x1024xf32>
    %416 = arith.addf %413, %415 : vector<8x1024xf32>
    %cst_260 = arith.constant 0.000000e+00 : f32
    %417 = vector.broadcast %cst_260 : f32 to vector<8x1024xf32>
    %418 = arith.maximumf %416, %417 : vector<8x1024xf32>
    %c0_261 = arith.constant 0 : index
    %c0_262 = arith.constant 0 : index
    %419 = vector.load %arg9[%c0_261, %c0_262] : memref<8x1152xf32, #tpu.memory_space<vmem>>, vector<8x1024xf32>
    tpu.vector_store %arg9[%c0_261, %c0_262], %418 {strides = array<i32>} : memref<8x1152xf32, #tpu.memory_space<vmem>>, vector<8x1024xf32>,
    %c0_263 = arith.constant 0 : index
    %c0_264 = arith.constant 0 : index
    %420 = vector.load %arg9[%c0_263, %c0_264] : memref<8x1152xf32, #tpu.memory_space<vmem>>, vector<8x1024xf32>
    %c0_265 = arith.constant 0 : index
    %c2_266 = arith.constant 2 : index
    %421 = vector.load %arg9[%c0_265, %c2_266] : memref<8x1152xf32, #tpu.memory_space<vmem>>, vector<8x1024xf32>
    %422 = arith.maximumf %420, %421 : vector<8x1024xf32>
    %c0_267 = arith.constant 0 : index
    %c64_268 = arith.constant 64 : index
    %423 = vector.load %arg9[%c0_267, %c64_268] : memref<8x1152xf32, #tpu.memory_space<vmem>>, vector<8x1024xf32>
    %c0_269 = arith.constant 0 : index
    %c66_270 = arith.constant 66 : index
    %424 = vector.load %arg9[%c0_269, %c66_270] : memref<8x1152xf32, #tpu.memory_space<vmem>>, vector<8x1024xf32>
    %425 = arith.maximumf %423, %424 : vector<8x1024xf32>
    %426 = arith.maximumf %422, %425 : vector<8x1024xf32>
    %c56 = arith.constant 56 : index
    %c0_271 = arith.constant 0 : index
    %427 = vector.load %arg10[%c56, %c0_271] : memref<64x1024xf32, #tpu.memory_space<vmem>>, vector<8x1024xf32>
    tpu.vector_store %arg10[%c56, %c0_271], %426 {strides = array<i32>} : memref<64x1024xf32, #tpu.memory_space<vmem>>, vector<8x1024xf32>,
    %c0_272 = arith.constant 0 : index
    %c0_273 = arith.constant 0 : index
    %428 = vector.load %arg10[%c0_272, %c0_273] : memref<64x1024xf32, #tpu.memory_space<vmem>>, vector<64x1024xf32>
    %c0_274 = arith.constant 0 : index
    %c0_275 = arith.constant 0 : index
    %429 = vector.load %arg2[%c0_274, %c0_275] : memref<1024x64xf32, #tpu.memory_space<vmem>>, vector<1024x64xf32>
    %cst_276 = arith.constant dense<0.000000e+00> : vector<64x64xf32>
    %430 = tpu.matmul %428, %429, %cst_276 {dimension_numbers = #tpu.dot_dimension_numbers<[1], [0], [0], [1], [0, 0, 1, 1], [], []>, precision = #tpu.contract_precision<fp32>} : vector<64x1024xf32>, vector<1024x64xf32>, vector<64x64xf32> -> vector<64x64xf32>
    %431 = vector.extract_strided_slice %430 {offsets = [0, 0], sizes = [8, 64], strides = [1, 1]} : vector<64x64xf32> to vector<8x64xf32>
    %c0_277 = arith.constant 0 : index
    %c0_278 = arith.constant 0 : index
    %432 = vector.load %arg7[%c0_277, %c0_278] : memref<8x512xf32, #tpu.memory_space<vmem>>, vector<8x64xf32>
    tpu.vector_store %arg7[%c0_277, %c0_278], %431 {strides = array<i32>} : memref<8x512xf32, #tpu.memory_space<vmem>>, vector<8x64xf32>,
    %433 = vector.extract_strided_slice %430 {offsets = [8, 0], sizes = [8, 64], strides = [1, 1]} : vector<64x64xf32> to vector<8x64xf32>
    %c0_279 = arith.constant 0 : index
    %c64_280 = arith.constant 64 : index
    %434 = vector.load %arg7[%c0_279, %c64_280] : memref<8x512xf32, #tpu.memory_space<vmem>>, vector<8x64xf32>
    tpu.vector_store %arg7[%c0_279, %c64_280], %433 {strides = array<i32>} : memref<8x512xf32, #tpu.memory_space<vmem>>, vector<8x64xf32>,
    %435 = vector.extract_strided_slice %430 {offsets = [16, 0], sizes = [8, 64], strides = [1, 1]} : vector<64x64xf32> to vector<8x64xf32>
    %c0_281 = arith.constant 0 : index
    %c128_282 = arith.constant 128 : index
    %436 = vector.load %arg7[%c0_281, %c128_282] : memref<8x512xf32, #tpu.memory_space<vmem>>, vector<8x64xf32>
    tpu.vector_store %arg7[%c0_281, %c128_282], %435 {strides = array<i32>} : memref<8x512xf32, #tpu.memory_space<vmem>>, vector<8x64xf32>,
    %437 = vector.extract_strided_slice %430 {offsets = [24, 0], sizes = [8, 64], strides = [1, 1]} : vector<64x64xf32> to vector<8x64xf32>
    %c0_283 = arith.constant 0 : index
    %c192_284 = arith.constant 192 : index
    %438 = vector.load %arg7[%c0_283, %c192_284] : memref<8x512xf32, #tpu.memory_space<vmem>>, vector<8x64xf32>
    tpu.vector_store %arg7[%c0_283, %c192_284], %437 {strides = array<i32>} : memref<8x512xf32, #tpu.memory_space<vmem>>, vector<8x64xf32>,
    %439 = vector.extract_strided_slice %430 {offsets = [32, 0], sizes = [8, 64], strides = [1, 1]} : vector<64x64xf32> to vector<8x64xf32>
    %c0_285 = arith.constant 0 : index
    %c256 = arith.constant 256 : index
    %440 = vector.load %arg7[%c0_285, %c256] : memref<8x512xf32, #tpu.memory_space<vmem>>, vector<8x64xf32>
    tpu.vector_store %arg7[%c0_285, %c256], %439 {strides = array<i32>} : memref<8x512xf32, #tpu.memory_space<vmem>>, vector<8x64xf32>,
    %441 = vector.extract_strided_slice %430 {offsets = [40, 0], sizes = [8, 64], strides = [1, 1]} : vector<64x64xf32> to vector<8x64xf32>
    %c0_286 = arith.constant 0 : index
    %c320 = arith.constant 320 : index
    %442 = vector.load %arg7[%c0_286, %c320] : memref<8x512xf32, #tpu.memory_space<vmem>>, vector<8x64xf32>
    tpu.vector_store %arg7[%c0_286, %c320], %441 {strides = array<i32>} : memref<8x512xf32, #tpu.memory_space<vmem>>, vector<8x64xf32>,
    %443 = vector.extract_strided_slice %430 {offsets = [48, 0], sizes = [8, 64], strides = [1, 1]} : vector<64x64xf32> to vector<8x64xf32>
    %c0_287 = arith.constant 0 : index
    %c384 = arith.constant 384 : index
    %444 = vector.load %arg7[%c0_287, %c384] : memref<8x512xf32, #tpu.memory_space<vmem>>, vector<8x64xf32>
    tpu.vector_store %arg7[%c0_287, %c384], %443 {strides = array<i32>} : memref<8x512xf32, #tpu.memory_space<vmem>>, vector<8x64xf32>,
    %445 = vector.extract_strided_slice %430 {offsets = [56, 0], sizes = [8, 64], strides = [1, 1]} : vector<64x64xf32> to vector<8x64xf32>
    %c0_288 = arith.constant 0 : index
    %c448 = arith.constant 448 : index
    %446 = vector.load %arg7[%c0_288, %c448] : memref<8x512xf32, #tpu.memory_space<vmem>>, vector<8x64xf32>
    tpu.vector_store %arg7[%c0_288, %c448], %445 {strides = array<i32>} : memref<8x512xf32, #tpu.memory_space<vmem>>, vector<8x64xf32>,
    return
  }
  func.func @transform_0(%arg0: i32) -> (i32, i32) {
    %c0_i32 = arith.constant 0 : i32
    %c0_i32_0 = arith.constant 0 : i32
    return %arg0, %c0_i32 : i32, i32
  }
  func.func @transform_1(%arg0: i32) -> (i32, i32) {
    %c0_i32 = arith.constant 0 : i32
    %c0_i32_0 = arith.constant 0 : i32
    %c0_i32_1 = arith.constant 0 : i32
    return %c0_i32, %c0_i32_0 : i32, i32
  }
  func.func @transform_2(%arg0: i32) -> (i32, i32) {
    %c0_i32 = arith.constant 0 : i32
    %c0_i32_0 = arith.constant 0 : i32
    %c0_i32_1 = arith.constant 0 : i32
    return %c0_i32, %c0_i32_0 : i32, i32
  }
  func.func @transform_3(%arg0: i32) -> i32 {
    %c0_i32 = arith.constant 0 : i32
    %c0_i32_0 = arith.constant 0 : i32
    return %c0_i32 : i32
  }
  func.func @transform_4(%arg0: i32) -> (i32, i32) {
    %c0_i32 = arith.constant 0 : i32
    %c0_i32_0 = arith.constant 0 : i32
    %c0_i32_1 = arith.constant 0 : i32
    return %c0_i32, %c0_i32_0 : i32, i32
  }
  func.func @transform_5(%arg0: i32) -> i32 {
    %c0_i32 = arith.constant 0 : i32
    %c0_i32_0 = arith.constant 0 : i32
    return %c0_i32 : i32
  }
  func.func @transform_6(%arg0: i32) -> (i32, i32) {
    %c0_i32 = arith.constant 0 : i32
    %c0_i32_0 = arith.constant 0 : i32
    return %arg0, %c0_i32 : i32, i32
  }
}

</mosaic_0001>

<llo_original>
// kernel: tpu_custom_call.1
$region0: #{tpu_custom_call.1}
  #allocation0 [shape = 'u32[]', space=smem, size = 0x4, offset = 0x4, fixed_abs, tag = 'smem constant byte address 0x4 - core index']
  #allocation1 [shape = 'u32[144,128]{1,0:T(1,128)}', space=vmem, size = 0x12000, scoped, tag = 'internal scratch']
  #allocation2 [shape = 'f32[8,1280]{1,0:T(8,128)}', space=vmem, size = 0xa000, scoped, tag = 'scratch operand']
  #allocation3 [shape = 'f32[8,1152]{1,0:T(8,128)}', space=vmem, size = 0x9000, scoped, tag = 'scratch operand']
  #allocation4 [shape = 'f32[64,1024]{1,0:T(8,128)}', space=vmem, size = 0x40000, scoped, tag = 'scratch operand']
  %s0 = inlined_call_operand.vmem [shape: f32[16,1024], index: 0, kind: input, shape index: {}]
  %s1 = inlined_call_operand.vmem [shape: f32[1024,64], index: 1, kind: input, shape index: {}]
  %s2 = inlined_call_operand.vmem [shape: f32[1,1024], index: 2, kind: input, shape index: {}]
  %s3 = inlined_call_operand.vmem [shape: f32[2], index: 3, kind: input, shape index: {}]
  %s4 = inlined_call_operand.vmem [shape: f32[8,9], index: 4, kind: input, shape index: {}]
  %s5 = inlined_call_operand.vmem [shape: f32[8], index: 5, kind: input, shape index: {}]
  %s6 = inlined_call_operand.hbm [shape: f32[16,512], index: 6, kind: output, shape index: {}]
  %s7 = sld [smem:[#allocation0]]
  $region69: #{tpu_custom_call.1} parent=0
    _
  %s9 = ssub.s32 1, %s7
  %s10 = scalar_select 0, %s9, %s7
  $region1: #{tpu_custom_call.1} parent=0
    #allocation5 [shape = 'u8[512]{0}', space=smem, size = 0x200, scoped, tag = 'input window, operand 3, single buffered']
    #allocation6 [shape = 's32[2]{0}', space=sflag, size = 0x8, scoped, tag = 'scoped memory for tpu_custom_call.1']
    #allocation7 [shape = 's32[2]{0}', space=sflag, size = 0x8, scoped, tag = 'scoped memory for tpu_custom_call.1']
    #allocation8 [shape = 'u8[4096]{0}', space=smem, size = 0x1000, scoped, tag = 'input window, operand 4, single buffered']
    #allocation9 [shape = 's32[1]{0}', space=sflag, size = 0x4, scoped, tag = 'scoped memory for tpu_custom_call.1']
    #allocation10 [shape = 'u8[512]{0}', space=smem, size = 0x200, scoped, tag = 'input window, operand 5, single buffered']
    #allocation11 [shape = 'u8[32768]{0}', space=vmem, size = 0x8000, scoped, tag = 'output window, operand 0']
    %11 = vsyncpa [#allocation7], 0
    %12 = vsyncpa [#allocation9], 0
    %13 = vsyncpa [#allocation6], 0
    %s14 = scalar_lea.sflag [#allocation6], 1
    %15 = vsyncpa %s14, 0
    loop: start=0, step=1, limit=4
    $region2: #{tpu_custom_call.1} parent=1 // loop_pre_header
      _
    $region3: #{tpu_custom_call.1} parent=1 // loop_header
      %s17 = sphi 0, %s21
      %p18 = scmp.ge.s32.totalorder %s17, 4
      %s27 = sphi 0, %s29
      %s30 = sphi 0, %s27
      %s31 = sphi 0, %s30
      %s47 = sphi 0, %s31
      %s51 = sphi 0, %s51
      %s53 = sphi 0, %s51
      %s54 = sphi 0, %s53
      %s68 = sphi 0, %s54
      %s72 = sphi 0, %s72
      %s74 = sphi 0, %s72
      %s75 = sphi 0, %s74
      %s89 = sphi 0, %s75
      %s93 = sphi 0, %s93
      %s95 = sphi 0, %s93
      %s96 = sphi 0, %s95
      %s110 = sphi 0, %s96
      %s114 = sphi 0, %s114
      %s116 = sphi 0, %s114
      %s117 = sphi 0, %s116
      %s131 = sphi 0, %s117
      %s135 = sphi 0, %s135
      %s137 = sphi 0, %s135
      %s138 = sphi 0, %s137
      %s152 = sphi 0, %s138
      %s158 = sphi 0, %s160
      %s161 = sphi 0, %s158
      %s162 = sphi 0, %s161
      %s178 = sphi 0, %s162
    $region4: #{tpu_custom_call.1} parent=1 // loop_header_branch
      %20 = sbr.rel (%p18) target = $region8
    $region5: #{tpu_custom_call.1} parent=1 // loop_body
      %s22 = ssub.s32 %s17, 1
      %s23 = ssub.s32 %s17, 2
      %s24 = sadd.s32 %s17, 1
      %s25 = ssub.s32 %s17, %s24
      %p26 = scmp.eq.s32.totalorder %s25, 0
      %s28 = sadd.s32 %s27, 1
      %s29 = scalar_select %p26, %s27, %s28
      %p32 = pneg %p26
      %p33 = scmp.eq.s32.totalorder %s17, 1
      %p34 = por %p32, %p33
      %p35 = scmp.ne.s32.totalorder %s27, %s30
      %p36 = scmp.eq.s32.totalorder %s17, 0
      %p37 = por %p35, %p36
      %p38 = scmp.ne.s32.totalorder %s27, %s30
      %p39 = scmp.eq.s32.totalorder %s22, 1
      %p40 = por %p38, %p39
      %p41 = scmp.ne.s32.totalorder %s30, %s31
      %p42 = scmp.eq.s32.totalorder %s22, 0
      %p43 = por %p41, %p42
      %p44 = scmp.ne.s32.totalorder %s30, %s31
      %p45 = scmp.eq.s32.totalorder %s23, 1
      %p46 = por %p44, %p45
      %p48 = scmp.ne.s32.totalorder %s31, %s47
      %p49 = scmp.eq.s32.totalorder %s23, 0
      %p50 = por %p48, %p49
      %s52 = sadd.s32 %s51, 1
      %p55 = scmp.eq.s32.totalorder %s17, 1
      %p56 = scmp.ne.s32.totalorder %s51, %s53
      %p57 = scmp.eq.s32.totalorder %s17, 0
      %p58 = por %p56, %p57
      %p59 = scmp.ne.s32.totalorder %s51, %s53
      %p60 = scmp.eq.s32.totalorder %s22, 1
      %p61 = por %p59, %p60
      %p62 = scmp.ne.s32.totalorder %s53, %s54
      %p63 = scmp.eq.s32.totalorder %s22, 0
      %p64 = por %p62, %p63
      %p65 = scmp.ne.s32.totalorder %s53, %s54
      %p66 = scmp.eq.s32.totalorder %s23, 1
      %p67 = por %p65, %p66
      %p69 = scmp.ne.s32.totalorder %s54, %s68
      %p70 = scmp.eq.s32.totalorder %s23, 0
      %p71 = por %p69, %p70
      %s73 = sadd.s32 %s72, 1
      %p76 = scmp.eq.s32.totalorder %s17, 1
      %p77 = scmp.ne.s32.totalorder %s72, %s74
      %p78 = scmp.eq.s32.totalorder %s17, 0
      %p79 = por %p77, %p78
      %p80 = scmp.ne.s32.totalorder %s72, %s74
      %p81 = scmp.eq.s32.totalorder %s22, 1
      %p82 = por %p80, %p81
      %p83 = scmp.ne.s32.totalorder %s74, %s75
      %p84 = scmp.eq.s32.totalorder %s22, 0
      %p85 = por %p83, %p84
      %p86 = scmp.ne.s32.totalorder %s74, %s75
      %p87 = scmp.eq.s32.totalorder %s23, 1
      %p88 = por %p86, %p87
      %p90 = scmp.ne.s32.totalorder %s75, %s89
      %p91 = scmp.eq.s32.totalorder %s23, 0
      %p92 = por %p90, %p91
      %s94 = sadd.s32 %s93, 1
      %p97 = scmp.eq.s32.totalorder %s17, 1
      %p98 = scmp.ne.s32.totalorder %s93, %s95
      %p99 = scmp.eq.s32.totalorder %s17, 0
      %p100 = por %p98, %p99
      %p101 = scmp.ne.s32.totalorder %s93, %s95
      %p102 = scmp.eq.s32.totalorder %s22, 1
      %p103 = por %p101, %p102
      %p104 = scmp.ne.s32.totalorder %s95, %s96
      %p105 = scmp.eq.s32.totalorder %s22, 0
      %p106 = por %p104, %p105
      %p107 = scmp.ne.s32.totalorder %s95, %s96
      %p108 = scmp.eq.s32.totalorder %s23, 1
      %p109 = por %p107, %p108
      %p111 = scmp.ne.s32.totalorder %s96, %s110
      %p112 = scmp.eq.s32.totalorder %s23, 0
      %p113 = por %p111, %p112
      %s115 = sadd.s32 %s114, 1
      %p118 = scmp.eq.s32.totalorder %s17, 1
      %p119 = scmp.ne.s32.totalorder %s114, %s116
      %p120 = scmp.eq.s32.totalorder %s17, 0
      %p121 = por %p119, %p120
      %p122 = scmp.ne.s32.totalorder %s114, %s116
      %p123 = scmp.eq.s32.totalorder %s22, 1
      %p124 = por %p122, %p123
      %p125 = scmp.ne.s32.totalorder %s116, %s117
      %p126 = scmp.eq.s32.totalorder %s22, 0
      %p127 = por %p125, %p126
      %p128 = scmp.ne.s32.totalorder %s116, %s117
      %p129 = scmp.eq.s32.totalorder %s23, 1
      %p130 = por %p128, %p129
      %p132 = scmp.ne.s32.totalorder %s117, %s131
      %p133 = scmp.eq.s32.totalorder %s23, 0
      %p134 = por %p132, %p133
      %s136 = sadd.s32 %s135, 1
      %p139 = scmp.eq.s32.totalorder %s17, 1
      %p140 = scmp.ne.s32.totalorder %s135, %s137
      %p141 = scmp.eq.s32.totalorder %s17, 0
      %p142 = por %p140, %p141
      %p143 = scmp.ne.s32.totalorder %s135, %s137
      %p144 = scmp.eq.s32.totalorder %s22, 1
      %p145 = por %p143, %p144
      %p146 = scmp.ne.s32.totalorder %s137, %s138
      %p147 = scmp.eq.s32.totalorder %s22, 0
      %p148 = por %p146, %p147
      %p149 = scmp.ne.s32.totalorder %s137, %s138
      %p150 = scmp.eq.s32.totalorder %s23, 1
      %p151 = por %p149, %p150
      %p153 = scmp.ne.s32.totalorder %s138, %s152
      %p154 = scmp.eq.s32.totalorder %s23, 0
      %p155 = por %p153, %p154
      %s156 = ssub.s32 %s17, %s24
      %p157 = scmp.eq.s32.totalorder %s156, 0
      %s159 = sadd.s32 %s158, 1
      %s160 = scalar_select %p157, %s158, %s159
      %p163 = pneg %p157
      %p164 = scmp.eq.s32.totalorder %s17, 1
      %p165 = por %p163, %p164
      %p166 = scmp.ne.s32.totalorder %s158, %s161
      %p167 = scmp.eq.s32.totalorder %s17, 0
      %p168 = por %p166, %p167
      %p169 = scmp.ne.s32.totalorder %s158, %s161
      %p170 = scmp.eq.s32.totalorder %s22, 1
      %p171 = por %p169, %p170
      %p172 = scmp.ne.s32.totalorder %s161, %s162
      %p173 = scmp.eq.s32.totalorder %s22, 0
      %p174 = por %p172, %p173
      %p175 = scmp.ne.s32.totalorder %s161, %s162
      %p176 = scmp.eq.s32.totalorder %s23, 1
      %p177 = por %p175, %p176
      %p179 = scmp.ne.s32.totalorder %s162, %s178
      %p180 = scmp.eq.s32.totalorder %s23, 0
      %p181 = por %p179, %p180
      %p182 = scmp.le.s32.totalorder 1, %s17
      %p183 = scmp.lt.s32.totalorder %s17, 3
      %p184 = pnand %p182, %p183
      %p185 = pneg %p184
      // Predicated region
      $region9: #{tpu_custom_call.1} parent=5 // pred_check
        _
      $region10: #{tpu_custom_call.1} parent=5 // pred_check_branch
        %187 = sbr.rel (%p184) target = $region12
      $region11: #{tpu_custom_call.1} parent=5 // pred_region
        %s188 = ssub.s32 %s17, 1
        // Predicated region
        $region13: #{tpu_custom_call.1} parent=11 // pred_check
          %p189 = pneg %p64
        $region14: #{tpu_custom_call.1} parent=11 // pred_check_branch
          %191 = sbr.rel (%p189) target = $region16
        $region15: #{tpu_custom_call.1} parent=11 // pred_region
          _
        $region16: #{tpu_custom_call.1} parent=11 // pred_fallthru
          _
        // Predicated region
        $region17: #{tpu_custom_call.1} parent=11 // pred_check
          %p192 = pneg %p85
        $region18: #{tpu_custom_call.1} parent=11 // pred_check_branch
          %194 = sbr.rel (%p192) target = $region20
        $region19: #{tpu_custom_call.1} parent=11 // pred_region
          _
        $region20: #{tpu_custom_call.1} parent=11 // pred_fallthru
          _
        // Predicated region
        $region21: #{tpu_custom_call.1} parent=11 // pred_check
          %p195 = pneg %p106
        $region22: #{tpu_custom_call.1} parent=11 // pred_check_branch
          %197 = sbr.rel (%p195) target = $region24
        $region23: #{tpu_custom_call.1} parent=11 // pred_region
          %s199 = ssub.s32 16, 16
          %200 = vsyncadd [#allocation7], %s199
          %s202 = sshll.u32 %s3, 4
          %s203 = int_to_ptr.vmem [resolvable:$true] %s202
          %205 = dma.vmem_to_smem %s203, 16, [#allocation5], [#allocation7]
        $region24: #{tpu_custom_call.1} parent=11 // pred_fallthru
          _
        // Predicated region
        $region25: #{tpu_custom_call.1} parent=11 // pred_check
          %p206 = pneg %p127
        $region26: #{tpu_custom_call.1} parent=11 // pred_check_branch
          %208 = sbr.rel (%p206) target = $region28
        $region27: #{tpu_custom_call.1} parent=11 // pred_region
          %s210 = ssub.s32 128, 128
          %211 = vsyncadd [#allocation9], %s210
          %s213 = sshll.u32 %s4, 4
          %s214 = int_to_ptr.vmem [resolvable:$true] %s213
          %216 = dma.vmem_to_smem %s214, 128, [#allocation8], [#allocation9]
        $region28: #{tpu_custom_call.1} parent=11 // pred_fallthru
          _
        // Predicated region
        $region29: #{tpu_custom_call.1} parent=11 // pred_check
          %p217 = pneg %p148
        $region30: #{tpu_custom_call.1} parent=11 // pred_check_branch
          %219 = sbr.rel (%p217) target = $region32
        $region31: #{tpu_custom_call.1} parent=11 // pred_region
          %s221 = ssub.s32 16, 16
          %222 = vsyncadd [#allocation9], %s221
          %s224 = sshll.u32 %s5, 4
          %s225 = int_to_ptr.vmem [resolvable:$true] %s224
          %227 = dma.vmem_to_smem %s225, 16, [#allocation10], [#allocation9]
        $region32: #{tpu_custom_call.1} parent=11 // pred_fallthru
          _
      $region12: #{tpu_custom_call.1} parent=5 // pred_fallthru
        _
      %p228 = scmp.lt.s32.totalorder %s17, 2
      // Predicated region
      $region33: #{tpu_custom_call.1} parent=5 // pred_check
        %p229 = pneg %p228
      $region34: #{tpu_custom_call.1} parent=5 // pred_check_branch
        %231 = sbr.rel (%p229) target = $region36
      $region35: #{tpu_custom_call.1} parent=5 // pred_region
        // Predicated region
        $region37: #{tpu_custom_call.1} parent=35 // pred_check
          %p232 = pneg %p37
        $region38: #{tpu_custom_call.1} parent=35 // pred_check_branch
          %234 = sbr.rel (%p232) target = $region40
        $region39: #{tpu_custom_call.1} parent=35 // pred_region
          %p235 = scmp.lt.s32.totalorder %s17, 1
          %s236 = scalar_select %p235, %s17, 1
          %s237 = smul.addr %s236, 8
          %s238 = smul.addr %s237, 8
          %s239 = scalar_lea.vmem %s0, %s238
        $region40: #{tpu_custom_call.1} parent=35 // pred_fallthru
          _
      $region36: #{tpu_custom_call.1} parent=5 // pred_fallthru
        _
      %p240 = scmp.le.s32.totalorder 1, %s17
      %p241 = scmp.lt.s32.totalorder %s17, 3
      %p242 = pnand %p240, %p241
      %p243 = pneg %p242
      // Predicated region
      $region41: #{tpu_custom_call.1} parent=5 // pred_check
        _
      $region42: #{tpu_custom_call.1} parent=5 // pred_check_branch
        %245 = sbr.rel (%p242) target = $region44
      $region43: #{tpu_custom_call.1} parent=5 // pred_region
        %s246 = ssub.s32 %s17, 1
        // Predicated region
        $region45: #{tpu_custom_call.1} parent=43 // pred_check
          %p247 = pneg %p106
        $region46: #{tpu_custom_call.1} parent=43 // pred_check_branch
          %249 = sbr.rel (%p247) target = $region48
        $region47: #{tpu_custom_call.1} parent=43 // pred_region
          %250 = dma.done [#allocation7], 16
        $region48: #{tpu_custom_call.1} parent=43 // pred_fallthru
          _
        // Predicated region
        $region49: #{tpu_custom_call.1} parent=43 // pred_check
          %p251 = pneg %p127
        $region50: #{tpu_custom_call.1} parent=43 // pred_check_branch
          %253 = sbr.rel (%p251) target = $region52
        $region51: #{tpu_custom_call.1} parent=43 // pred_region
          %254 = dma.done [#allocation9], 128
        $region52: #{tpu_custom_call.1} parent=43 // pred_fallthru
          _
        // Predicated region
        $region53: #{tpu_custom_call.1} parent=43 // pred_check
          %p255 = pneg %p148
        $region54: #{tpu_custom_call.1} parent=43 // pred_check_branch
          %257 = sbr.rel (%p255) target = $region56
        $region55: #{tpu_custom_call.1} parent=43 // pred_region
          %258 = dma.done [#allocation9], 16
        $region56: #{tpu_custom_call.1} parent=43 // pred_fallthru
          _
        %259 = sfence
        %p260 = scmp.lt.s32.totalorder %s22, 1
        %s261 = scalar_select %p260, %s22, 1
        %s262 = smul.addr %s261, 8
        %s263 = smul.addr %s262, 8
        %s264 = scalar_lea.vmem %s0, %s263
        %p265 = pneg %p43
        %p266 = pneg %p40
        %p267 = pneg %p64
        %p268 = pneg %p61
        %p269 = pneg %p85
        %p270 = pneg %p82
        %p271 = pneg %p106
        %p272 = pneg %p103
        %p273 = pneg %p127
        %p274 = pneg %p124
        %p275 = pneg %p148
        %p276 = pneg %p145
        %p277 = pneg %p174
        %p278 = pneg %p171
        %s279 = sand.u32 %s161, 1
        %s280 = scalar_lea.sflag [#allocation6], %s279
        %s281 = sand.u32 %s161, 1
        %s282 = smul.addr %s281, 32
        %s283 = scalar_lea.vmem [#allocation11], %s282
        %p284 = scmp.lt.s32.totalorder %s22, 1
        %s285 = scalar_select %p284, %s22, 1
        %s286 = smul.addr %s285, 8
        %s287 = smul.addr %s286, 8
        %s288 = scalar_lea.vmem %s0, %s287
        %v289 = vld [vmem:[%s288] sm:$0xff]
        %v290 = vld [vmem:[%s288 + $0x8] sm:$0xff]
        %v291 = vld [vmem:[%s288 + $0x10] sm:$0xff]
        %v292 = vld [vmem:[%s288 + $0x18] sm:$0xff]
        %v293 = vld [vmem:[%s288 + $0x20] sm:$0xff]
        %v294 = vld [vmem:[%s288 + $0x28] sm:$0xff]
        %v295 = vld [vmem:[%s288 + $0x30] sm:$0xff]
        %v296 = vld [vmem:[%s288 + $0x38] sm:$0xff]
        %s297 = sld [smem:[#allocation5]]
        %v298 = vstv %s297
        %v299 = vmul.f32 %v289, %v298
        %v300 = vmul.f32 %v290, %v298
        %v301 = vmul.f32 %v291, %v298
        %v302 = vmul.f32 %v292, %v298
        %v303 = vmul.f32 %v293, %v298
        %v304 = vmul.f32 %v294, %v298
        %v305 = vmul.f32 %v295, %v298
        %v306 = vmul.f32 %v296, %v298
        %s307 = sld [smem:[#allocation5 + $0x1]]
        %v308 = vstv %s307
        %v309 = vadd.f32 %v299, %v308
        %v310 = vadd.f32 %v300, %v308
        %v311 = vadd.f32 %v301, %v308
        %v312 = vadd.f32 %v302, %v308
        %v313 = vadd.f32 %v303, %v308
        %v314 = vadd.f32 %v304, %v308
        %v315 = vadd.f32 %v305, %v308
        %v316 = vadd.f32 %v306, %v308
        %v317 = vmax.f32 %v309, 0.0
        %v318 = vmax.f32 %v310, 0.0
        %v319 = vmax.f32 %v311, 0.0
        %v320 = vmax.f32 %v312, 0.0
        %v321 = vmax.f32 %v313, 0.0
        %v322 = vmax.f32 %v314, 0.0
        %v323 = vmax.f32 %v315, 0.0
        %v324 = vmax.f32 %v316, 0.0
        %325 = vst [vmem:[#allocation2] sm:$0xff] 0.0
        %326 = vst [vmem:[#allocation2 + $0x48] sm:$0xff] 0.0
        %327 = vst [vmem:[#allocation2 + $0x8] sm:$0xff] %v317
        %328 = vst [vmem:[#allocation2 + $0x10] sm:$0xff] %v318
        %329 = vst [vmem:[#allocation2 + $0x18] sm:$0xff] %v319
        %330 = vst [vmem:[#allocation2 + $0x20] sm:$0xff] %v320
        %331 = vst [vmem:[#allocation2 + $0x28] sm:$0xff] %v321
        %332 = vst [vmem:[#allocation2 + $0x30] sm:$0xff] %v322
        %333 = vst [vmem:[#allocation2 + $0x38] sm:$0xff] %v323
        %334 = vst [vmem:[#allocation2 + $0x40] sm:$0xff] %v324
        %v335 = vld [vmem:[#allocation2 + $0x8] sm:$0xff]
        %v336 = vld [vmem:[#allocation2 + $0x10] sm:$0xff]
        %v337 = vld [vmem:[#allocation2 + $0x18] sm:$0xff]
        %v338 = vld [vmem:[#allocation2 + $0x20] sm:$0xff]
        %v339 = vld [vmem:[#allocation2 + $0x28] sm:$0xff]
        %v340 = vld [vmem:[#allocation2 + $0x30] sm:$0xff]
        %v341 = vld [vmem:[#allocation2 + $0x38] sm:$0xff]
        %v342 = vld [vmem:[#allocation2 + $0x40] sm:$0xff]
        %v343 = vld [vmem:[#allocation2 + $0x8] sm:$0xff]
        %v344 = vld [vmem:[#allocation2 + $0x10] sm:$0xff]
        %v345 = vld [vmem:[#allocation2 + $0x18] sm:$0xff]
        %v346 = vld [vmem:[#allocation2 + $0x20] sm:$0xff]
        %v347 = vld [vmem:[#allocation2 + $0x28] sm:$0xff]
        %v348 = vld [vmem:[#allocation2 + $0x30] sm:$0xff]
        %v349 = vld [vmem:[#allocation2 + $0x38] sm:$0xff]
        %v350 = vld [vmem:[#allocation2 + $0x40] sm:$0xff]
        %v351 = vld [vmem:[#allocation2 + $0x48] sm:$0xff]
        %361 = vrot.lane.b32.xlu0 %v343, 127
        %v362 = vpop.permute.xlu0 %361
        %363 = vrot.lane.b32.xlu0 %v344, 127
        %v364 = vpop.permute.xlu0 %363
        %365 = vrot.lane.b32.xlu0 %v345, 127
        %v366 = vpop.permute.xlu0 %365
        %367 = vrot.lane.b32.xlu0 %v346, 127
        %v368 = vpop.permute.xlu0 %367
        %369 = vrot.lane.b32.xlu0 %v347, 127
        %v370 = vpop.permute.xlu0 %369
        %371 = vrot.lane.b32.xlu0 %v348, 127
        %v372 = vpop.permute.xlu0 %371
        %373 = vrot.lane.b32.xlu0 %v349, 127
        %v374 = vpop.permute.xlu0 %373
        %375 = vrot.lane.b32.xlu0 %v350, 127
        %v376 = vpop.permute.xlu0 %375
        %377 = vrot.lane.b32.xlu0 %v351, 127
        %v378 = vpop.permute.xlu0 %377
        %vm379 = vcmask 1039360
        %v380 = vsel %vm379, %v362, %v364
        %v381 = vsel %vm379, %v364, %v366
        %v382 = vsel %vm379, %v366, %v368
        %v383 = vsel %vm379, %v368, %v370
        %v384 = vsel %vm379, %v370, %v372
        %v385 = vsel %vm379, %v372, %v374
        %v386 = vsel %vm379, %v374, %v376
        %v387 = vsel %vm379, %v376, %v378
        %v396 = vmax.f32 %v335, %v380
        %v397 = vmax.f32 %v336, %v381
        %v398 = vmax.f32 %v337, %v382
        %v399 = vmax.f32 %v338, %v383
        %v400 = vmax.f32 %v339, %v384
        %v401 = vmax.f32 %v340, %v385
        %v402 = vmax.f32 %v341, %v386
        %v403 = vmax.f32 %v342, %v387
        %v405 = vmax.f32 %v343, %v380
        %v406 = vmax.f32 %v344, %v381
        %v407 = vmax.f32 %v345, %v382
        %v408 = vmax.f32 %v346, %v383
        %v409 = vmax.f32 %v347, %v384
        %v410 = vmax.f32 %v348, %v385
        %v411 = vmax.f32 %v349, %v386
        %v412 = vmax.f32 %v350, %v387
        %v413 = vmax.f32 %v351, %v378
        %423 = vrot.lane.b32.xlu0 %v405, 96
        %v424 = vpop.permute.xlu0 %423
        %425 = vrot.lane.b32.xlu0 %v406, 96
        %v426 = vpop.permute.xlu0 %425
        %427 = vrot.lane.b32.xlu0 %v407, 96
        %v428 = vpop.permute.xlu0 %427
        %429 = vrot.lane.b32.xlu0 %v408, 96
        %v430 = vpop.permute.xlu0 %429
        %431 = vrot.lane.b32.xlu0 %v409, 96
        %v432 = vpop.permute.xlu0 %431
        %433 = vrot.lane.b32.xlu0 %v410, 96
        %v434 = vpop.permute.xlu0 %433
        %435 = vrot.lane.b32.xlu0 %v411, 96
        %v436 = vpop.permute.xlu0 %435
        %437 = vrot.lane.b32.xlu0 %v412, 96
        %v438 = vpop.permute.xlu0 %437
        %439 = vrot.lane.b32.xlu0 %v413, 96
        %v440 = vpop.permute.xlu0 %439
        %vm441 = vcmask 785408
        %v442 = vsel %vm441, %v424, %v426
        %v443 = vsel %vm441, %v426, %v428
        %v444 = vsel %vm441, %v428, %v430
        %v445 = vsel %vm441, %v430, %v432
        %v446 = vsel %vm441, %v432, %v434
        %v447 = vsel %vm441, %v434, %v436
        %v448 = vsel %vm441, %v436, %v438
        %v449 = vsel %vm441, %v438, %v440
        %v458 = vmax.f32 %v396, %v442
        %v459 = vmax.f32 %v397, %v443
        %v460 = vmax.f32 %v398, %v444
        %v461 = vmax.f32 %v399, %v445
        %v462 = vmax.f32 %v400, %v446
        %v463 = vmax.f32 %v401, %v447
        %v464 = vmax.f32 %v402, %v448
        %v465 = vmax.f32 %v403, %v449
        %v466 = vld [vmem:[%s2] sm:$0xff]
        %v468 = vlaneseq
        %v469 = vshrl.u32 %v468, 7
        %v470 = vsub.s32 0, %v469
        %v471 = vrot.slane %v466, %v470
        %v472 = vlaneseq
        %v473 = vshrl.u32 %v472, 7
        %v474 = vsub.s32 1, %v473
        %v475 = vrot.slane %v466, %v474
        %v476 = vlaneseq
        %v477 = vshrl.u32 %v476, 7
        %v478 = vsub.s32 2, %v477
        %v479 = vrot.slane %v466, %v478
        %v480 = vlaneseq
        %v481 = vshrl.u32 %v480, 7
        %v482 = vsub.s32 3, %v481
        %v483 = vrot.slane %v466, %v482
        %v484 = vlaneseq
        %v485 = vshrl.u32 %v484, 7
        %v486 = vsub.s32 4, %v485
        %v487 = vrot.slane %v466, %v486
        %v488 = vlaneseq
        %v489 = vshrl.u32 %v488, 7
        %v490 = vsub.s32 5, %v489
        %v491 = vrot.slane %v466, %v490
        %v492 = vlaneseq
        %v493 = vshrl.u32 %v492, 7
        %v494 = vsub.s32 6, %v493
        %v495 = vrot.slane %v466, %v494
        %v496 = vlaneseq
        %v497 = vshrl.u32 %v496, 7
        %v498 = vsub.s32 7, %v497
        %v499 = vrot.slane %v466, %v498
        %v508 = vmul.f32 %v458, %v471
        %v509 = vmul.f32 %v459, %v475
        %v510 = vmul.f32 %v460, %v479
        %v511 = vmul.f32 %v461, %v483
        %v512 = vmul.f32 %v462, %v487
        %v513 = vmul.f32 %v463, %v491
        %v514 = vmul.f32 %v464, %v495
        %v515 = vmul.f32 %v465, %v499
        %516 = vst [vmem:[#allocation2 + $0x8] sm:$0xff] %v508
        %517 = vst [vmem:[#allocation2 + $0x10] sm:$0xff] %v509
        %518 = vst [vmem:[#allocation2 + $0x18] sm:$0xff] %v510
        %519 = vst [vmem:[#allocation2 + $0x20] sm:$0xff] %v511
        %520 = vst [vmem:[#allocation2 + $0x28] sm:$0xff] %v512
        %521 = vst [vmem:[#allocation2 + $0x30] sm:$0xff] %v513
        %522 = vst [vmem:[#allocation2 + $0x38] sm:$0xff] %v514
        %523 = vst [vmem:[#allocation2 + $0x40] sm:$0xff] %v515
        %v524 = vld [vmem:[#allocation2] sm:$0xff]
        %v525 = vld [vmem:[#allocation2 + $0x8] sm:$0xff]
        %v526 = vld [vmem:[#allocation2 + $0x10] sm:$0xff]
        %v527 = vld [vmem:[#allocation2 + $0x18] sm:$0xff]
        %v528 = vld [vmem:[#allocation2 + $0x20] sm:$0xff]
        %v529 = vld [vmem:[#allocation2 + $0x28] sm:$0xff]
        %v530 = vld [vmem:[#allocation2 + $0x30] sm:$0xff]
        %v531 = vld [vmem:[#allocation2 + $0x38] sm:$0xff]
        %v532 = vld [vmem:[#allocation2 + $0x40] sm:$0xff]
        %v533 = vld [vmem:[#allocation2 + $0x8] sm:$0xff]
        %v534 = vld [vmem:[#allocation2 + $0x10] sm:$0xff]
        %v535 = vld [vmem:[#allocation2 + $0x18] sm:$0xff]
        %v536 = vld [vmem:[#allocation2 + $0x20] sm:$0xff]
        %v537 = vld [vmem:[#allocation2 + $0x28] sm:$0xff]
        %v538 = vld [vmem:[#allocation2 + $0x30] sm:$0xff]
        %v539 = vld [vmem:[#allocation2 + $0x38] sm:$0xff]
        %v540 = vld [vmem:[#allocation2 + $0x40] sm:$0xff]
        %v541 = vld [vmem:[#allocation2 + $0x48] sm:$0xff]
        %542 = vst [vmem:[#allocation3 + $0x40] sm:$0xff] 0.0
        %s543 = sld [smem:[#allocation8]]
        %v544 = vstv %s543
        %v545 = vmul.f32 %v524, %v544
        %v546 = vmul.f32 %v525, %v544
        %v547 = vmul.f32 %v526, %v544
        %v548 = vmul.f32 %v527, %v544
        %v549 = vmul.f32 %v528, %v544
        %v550 = vmul.f32 %v529, %v544
        %v551 = vmul.f32 %v530, %v544
        %v552 = vmul.f32 %v531, %v544
        %v553 = vmul.f32 %v532, %v544
        %s554 = sld [smem:[#allocation8 + $0x1]]
        %v555 = vstv %s554
        %v556 = vmul.f32 %v524, %v555
        %v557 = vmul.f32 %v525, %v555
        %v558 = vmul.f32 %v526, %v555
        %v559 = vmul.f32 %v527, %v555
        %v560 = vmul.f32 %v528, %v555
        %v561 = vmul.f32 %v529, %v555
        %v562 = vmul.f32 %v530, %v555
        %v563 = vmul.f32 %v531, %v555
        %v564 = vmul.f32 %v532, %v555
        %574 = vrot.lane.b32.xlu0 %v556, 126
        %v575 = vpop.permute.xlu0 %574
        %576 = vrot.lane.b32.xlu0 %v557, 126
        %v577 = vpop.permute.xlu0 %576
        %578 = vrot.lane.b32.xlu0 %v558, 126
        %v579 = vpop.permute.xlu0 %578
        %580 = vrot.lane.b32.xlu0 %v559, 126
        %v581 = vpop.permute.xlu0 %580
        %582 = vrot.lane.b32.xlu0 %v560, 126
        %v583 = vpop.permute.xlu0 %582
        %584 = vrot.lane.b32.xlu0 %v561, 126
        %v585 = vpop.permute.xlu0 %584
        %586 = vrot.lane.b32.xlu0 %v562, 126
        %v587 = vpop.permute.xlu0 %586
        %588 = vrot.lane.b32.xlu0 %v563, 126
        %v589 = vpop.permute.xlu0 %588
        %590 = vrot.lane.b32.xlu0 %v564, 126
        %v591 = vpop.permute.xlu0 %590
        %vm592 = vcmask 1031168
        %v593 = vsel %vm592, %v575, %v577
        %v594 = vsel %vm592, %v577, %v579
        %v595 = vsel %vm592, %v579, %v581
        %v596 = vsel %vm592, %v581, %v583
        %v597 = vsel %vm592, %v583, %v585
        %v598 = vsel %vm592, %v585, %v587
        %v599 = vsel %vm592, %v587, %v589
        %v600 = vsel %vm592, %v589, %v591
        %v610 = vadd.f32 %v545, %v593
        %v611 = vadd.f32 %v546, %v594
        %v612 = vadd.f32 %v547, %v595
        %v613 = vadd.f32 %v548, %v596
        %v614 = vadd.f32 %v549, %v597
        %v615 = vadd.f32 %v550, %v598
        %v616 = vadd.f32 %v551, %v599
        %v617 = vadd.f32 %v552, %v600
        %v618 = vadd.f32 %v553, %v591
        %s619 = sld [smem:[#allocation8 + $0x2]]
        %v620 = vstv %s619
        %v621 = vmul.f32 %v524, %v620
        %v622 = vmul.f32 %v525, %v620
        %v623 = vmul.f32 %v526, %v620
        %v624 = vmul.f32 %v527, %v620
        %v625 = vmul.f32 %v528, %v620
        %v626 = vmul.f32 %v529, %v620
        %v627 = vmul.f32 %v530, %v620
        %v628 = vmul.f32 %v531, %v620
        %v629 = vmul.f32 %v532, %v620
        %639 = vrot.lane.b32.xlu0 %v621, 124
        %v640 = vpop.permute.xlu0 %639
        %641 = vrot.lane.b32.xlu0 %v622, 124
        %v642 = vpop.permute.xlu0 %641
        %643 = vrot.lane.b32.xlu0 %v623, 124
        %v644 = vpop.permute.xlu0 %643
        %645 = vrot.lane.b32.xlu0 %v624, 124
        %v646 = vpop.permute.xlu0 %645
        %647 = vrot.lane.b32.xlu0 %v625, 124
        %v648 = vpop.permute.xlu0 %647
        %649 = vrot.lane.b32.xlu0 %v626, 124
        %v650 = vpop.permute.xlu0 %649
        %651 = vrot.lane.b32.xlu0 %v627, 124
        %v652 = vpop.permute.xlu0 %651
        %653 = vrot.lane.b32.xlu0 %v628, 124
        %v654 = vpop.permute.xlu0 %653
        %655 = vrot.lane.b32.xlu0 %v629, 124
        %v656 = vpop.permute.xlu0 %655
        %vm657 = vcmask 1014784
        %v658 = vsel %vm657, %v640, %v642
        %v659 = vsel %vm657, %v642, %v644
        %v660 = vsel %vm657, %v644, %v646
        %v661 = vsel %vm657, %v646, %v648
        %v662 = vsel %vm657, %v648, %v650
        %v663 = vsel %vm657, %v650, %v652
        %v664 = vsel %vm657, %v652, %v654
        %v665 = vsel %vm657, %v654, %v656
        %v675 = vadd.f32 %v610, %v658
        %v676 = vadd.f32 %v611, %v659
        %v677 = vadd.f32 %v612, %v660
        %v678 = vadd.f32 %v613, %v661
        %v679 = vadd.f32 %v614, %v662
        %v680 = vadd.f32 %v615, %v663
        %v681 = vadd.f32 %v616, %v664
        %v682 = vadd.f32 %v617, %v665
        %v683 = vadd.f32 %v618, %v656
        %s684 = sld [smem:[#allocation8 + $0x3]]
        %v685 = vstv %s684
        %v686 = vmul.f32 %v524, %v685
        %v687 = vmul.f32 %v525, %v685
        %v688 = vmul.f32 %v526, %v685
        %v689 = vmul.f32 %v527, %v685
        %v690 = vmul.f32 %v528, %v685
        %v691 = vmul.f32 %v529, %v685
        %v692 = vmul.f32 %v530, %v685
        %v693 = vmul.f32 %v531, %v685
        %v694 = vmul.f32 %v532, %v685
        %704 = vrot.lane.b32.xlu0 %v686, 64
        %v705 = vpop.permute.xlu0 %704
        %706 = vrot.lane.b32.xlu0 %v687, 64
        %v707 = vpop.permute.xlu0 %706
        %708 = vrot.lane.b32.xlu0 %v688, 64
        %v709 = vpop.permute.xlu0 %708
        %710 = vrot.lane.b32.xlu0 %v689, 64
        %v711 = vpop.permute.xlu0 %710
        %712 = vrot.lane.b32.xlu0 %v690, 64
        %v713 = vpop.permute.xlu0 %712
        %714 = vrot.lane.b32.xlu0 %v691, 64
        %v715 = vpop.permute.xlu0 %714
        %716 = vrot.lane.b32.xlu0 %v692, 64
        %v717 = vpop.permute.xlu0 %716
        %718 = vrot.lane.b32.xlu0 %v693, 64
        %v719 = vpop.permute.xlu0 %718
        %720 = vrot.lane.b32.xlu0 %v694, 64
        %v721 = vpop.permute.xlu0 %720
        %vm722 = vcmask 523264
        %v723 = vsel %vm722, %v705, %v707
        %v724 = vsel %vm722, %v707, %v709
        %v725 = vsel %vm722, %v709, %v711
        %v726 = vsel %vm722, %v711, %v713
        %v727 = vsel %vm722, %v713, %v715
        %v728 = vsel %vm722, %v715, %v717
        %v729 = vsel %vm722, %v717, %v719
        %v730 = vsel %vm722, %v719, %v721
        %v740 = vadd.f32 %v675, %v723
        %v741 = vadd.f32 %v676, %v724
        %v742 = vadd.f32 %v677, %v725
        %v743 = vadd.f32 %v678, %v726
        %v744 = vadd.f32 %v679, %v727
        %v745 = vadd.f32 %v680, %v728
        %v746 = vadd.f32 %v681, %v729
        %v747 = vadd.f32 %v682, %v730
        %v748 = vadd.f32 %v683, %v721
        %s749 = sld [smem:[#allocation8 + $0x4]]
        %v750 = vstv %s749
        %v751 = vmul.f32 %v525, %v750
        %v752 = vmul.f32 %v526, %v750
        %v753 = vmul.f32 %v527, %v750
        %v754 = vmul.f32 %v528, %v750
        %v755 = vmul.f32 %v529, %v750
        %v756 = vmul.f32 %v530, %v750
        %v757 = vmul.f32 %v531, %v750
        %v758 = vmul.f32 %v532, %v750
        %767 = vrot.lane.b32.xlu0 %v751, 62
        %v768 = vpop.permute.xlu0 %767
        %769 = vrot.lane.b32.xlu0 %v752, 62
        %v770 = vpop.permute.xlu0 %769
        %771 = vrot.lane.b32.xlu0 %v753, 62
        %v772 = vpop.permute.xlu0 %771
        %773 = vrot.lane.b32.xlu0 %v754, 62
        %v774 = vpop.permute.xlu0 %773
        %775 = vrot.lane.b32.xlu0 %v755, 62
        %v776 = vpop.permute.xlu0 %775
        %777 = vrot.lane.b32.xlu0 %v756, 62
        %v778 = vpop.permute.xlu0 %777
        %779 = vrot.lane.b32.xlu0 %v757, 62
        %v780 = vpop.permute.xlu0 %779
        %781 = vrot.lane.b32.xlu0 %v758, 62
        %v782 = vpop.permute.xlu0 %781
        %vm783 = vcmask 506880
        %v784 = vsel %vm783, %v768, %v770
        %v785 = vsel %vm783, %v770, %v772
        %v786 = vsel %vm783, %v772, %v774
        %v787 = vsel %vm783, %v774, %v776
        %v788 = vsel %vm783, %v776, %v778
        %v789 = vsel %vm783, %v778, %v780
        %v790 = vsel %vm783, %v780, %v782
        %v800 = vadd.f32 %v740, %v768
        %v801 = vadd.f32 %v741, %v784
        %v802 = vadd.f32 %v742, %v785
        %v803 = vadd.f32 %v743, %v786
        %v804 = vadd.f32 %v744, %v787
        %v805 = vadd.f32 %v745, %v788
        %v806 = vadd.f32 %v746, %v789
        %v807 = vadd.f32 %v747, %v790
        %v808 = vadd.f32 %v748, %v782
        %s809 = sld [smem:[#allocation8 + $0x5]]
        %v810 = vstv %s809
        %v811 = vmul.f32 %v533, %v810
        %v812 = vmul.f32 %v534, %v810
        %v813 = vmul.f32 %v535, %v810
        %v814 = vmul.f32 %v536, %v810
        %v815 = vmul.f32 %v537, %v810
        %v816 = vmul.f32 %v538, %v810
        %v817 = vmul.f32 %v539, %v810
        %v818 = vmul.f32 %v540, %v810
        %v819 = vmul.f32 %v541, %v810
        %829 = vrot.lane.b32.xlu0 %v811, 60
        %v830 = vpop.permute.xlu0 %829
        %831 = vrot.lane.b32.xlu0 %v812, 60
        %v832 = vpop.permute.xlu0 %831
        %833 = vrot.lane.b32.xlu0 %v813, 60
        %v834 = vpop.permute.xlu0 %833
        %835 = vrot.lane.b32.xlu0 %v814, 60
        %v836 = vpop.permute.xlu0 %835
        %837 = vrot.lane.b32.xlu0 %v815, 60
        %v838 = vpop.permute.xlu0 %837
        %839 = vrot.lane.b32.xlu0 %v816, 60
        %v840 = vpop.permute.xlu0 %839
        %841 = vrot.lane.b32.xlu0 %v817, 60
        %v842 = vpop.permute.xlu0 %841
        %843 = vrot.lane.b32.xlu0 %v818, 60
        %v844 = vpop.permute.xlu0 %843
        %845 = vrot.lane.b32.xlu0 %v819, 60
        %v846 = vpop.permute.xlu0 %845
        %vm847 = vcmask 490496
        %v848 = vsel %vm847, %v830, %v832
        %v849 = vsel %vm847, %v832, %v834
        %v850 = vsel %vm847, %v834, %v836
        %v851 = vsel %vm847, %v836, %v838
        %v852 = vsel %vm847, %v838, %v840
        %v853 = vsel %vm847, %v840, %v842
        %v854 = vsel %vm847, %v842, %v844
        %v855 = vsel %vm847, %v844, %v846
        %v865 = vadd.f32 %v800, %v830
        %v866 = vadd.f32 %v801, %v848
        %v867 = vadd.f32 %v802, %v849
        %v868 = vadd.f32 %v803, %v850
        %v869 = vadd.f32 %v804, %v851
        %v870 = vadd.f32 %v805, %v852
        %v871 = vadd.f32 %v806, %v853
        %v872 = vadd.f32 %v807, %v854
        %v873 = vadd.f32 %v808, %v855
        %s874 = sld [smem:[#allocation8 + $0x6]]
        %v875 = vstv %s874
        %v876 = vmul.f32 %v533, %v875
        %v877 = vmul.f32 %v534, %v875
        %v878 = vmul.f32 %v535, %v875
        %v879 = vmul.f32 %v536, %v875
        %v880 = vmul.f32 %v537, %v875
        %v881 = vmul.f32 %v538, %v875
        %v882 = vmul.f32 %v539, %v875
        %v883 = vmul.f32 %v540, %v875
        %v884 = vmul.f32 %v541, %v875
        %v885 = vadd.f32 %v865, %v876
        %v886 = vadd.f32 %v866, %v877
        %v887 = vadd.f32 %v867, %v878
        %v888 = vadd.f32 %v868, %v879
        %v889 = vadd.f32 %v869, %v880
        %v890 = vadd.f32 %v870, %v881
        %v891 = vadd.f32 %v871, %v882
        %v892 = vadd.f32 %v872, %v883
        %v893 = vadd.f32 %v873, %v884
        %s894 = sld [smem:[#allocation8 + $0x7]]
        %v895 = vstv %s894
        %v896 = vmul.f32 %v533, %v895
        %v897 = vmul.f32 %v534, %v895
        %v898 = vmul.f32 %v535, %v895
        %v899 = vmul.f32 %v536, %v895
        %v900 = vmul.f32 %v537, %v895
        %v901 = vmul.f32 %v538, %v895
        %v902 = vmul.f32 %v539, %v895
        %v903 = vmul.f32 %v540, %v895
        %v904 = vmul.f32 %v541, %v895
        %914 = vrot.lane.b32.xlu0 %v896, 126
        %v915 = vpop.permute.xlu0 %914
        %916 = vrot.lane.b32.xlu0 %v897, 126
        %v917 = vpop.permute.xlu0 %916
        %918 = vrot.lane.b32.xlu0 %v898, 126
        %v919 = vpop.permute.xlu0 %918
        %920 = vrot.lane.b32.xlu0 %v899, 126
        %v921 = vpop.permute.xlu0 %920
        %922 = vrot.lane.b32.xlu0 %v900, 126
        %v923 = vpop.permute.xlu0 %922
        %924 = vrot.lane.b32.xlu0 %v901, 126
        %v925 = vpop.permute.xlu0 %924
        %926 = vrot.lane.b32.xlu0 %v902, 126
        %v927 = vpop.permute.xlu0 %926
        %928 = vrot.lane.b32.xlu0 %v903, 126
        %v929 = vpop.permute.xlu0 %928
        %930 = vrot.lane.b32.xlu0 %v904, 126
        %v931 = vpop.permute.xlu0 %930
        %v932 = vsel %vm592, %v915, %v917
        %v933 = vsel %vm592, %v917, %v919
        %v934 = vsel %vm592, %v919, %v921
        %v935 = vsel %vm592, %v921, %v923
        %v936 = vsel %vm592, %v923, %v925
        %v937 = vsel %vm592, %v925, %v927
        %v938 = vsel %vm592, %v927, %v929
        %v939 = vsel %vm592, %v929, %v931
        %v949 = vadd.f32 %v885, %v932
        %v950 = vadd.f32 %v886, %v933
        %v951 = vadd.f32 %v887, %v934
        %v952 = vadd.f32 %v888, %v935
        %v953 = vadd.f32 %v889, %v936
        %v954 = vadd.f32 %v890, %v937
        %v955 = vadd.f32 %v891, %v938
        %v956 = vadd.f32 %v892, %v939
        %v957 = vadd.f32 %v893, %v931
        %s958 = sld [smem:[#allocation8 + $0x8]]
        %v959 = vstv %s958
        %v960 = vmul.f32 %v533, %v959
        %v961 = vmul.f32 %v534, %v959
        %v962 = vmul.f32 %v535, %v959
        %v963 = vmul.f32 %v536, %v959
        %v964 = vmul.f32 %v537, %v959
        %v965 = vmul.f32 %v538, %v959
        %v966 = vmul.f32 %v539, %v959
        %v967 = vmul.f32 %v540, %v959
        %v968 = vmul.f32 %v541, %v959
        %978 = vrot.lane.b32.xlu0 %v960, 124
        %v979 = vpop.permute.xlu0 %978
        %980 = vrot.lane.b32.xlu0 %v961, 124
        %v981 = vpop.permute.xlu0 %980
        %982 = vrot.lane.b32.xlu0 %v962, 124
        %v983 = vpop.permute.xlu0 %982
        %984 = vrot.lane.b32.xlu0 %v963, 124
        %v985 = vpop.permute.xlu0 %984
        %986 = vrot.lane.b32.xlu0 %v964, 124
        %v987 = vpop.permute.xlu0 %986
        %988 = vrot.lane.b32.xlu0 %v965, 124
        %v989 = vpop.permute.xlu0 %988
        %990 = vrot.lane.b32.xlu0 %v966, 124
        %v991 = vpop.permute.xlu0 %990
        %992 = vrot.lane.b32.xlu0 %v967, 124
        %v993 = vpop.permute.xlu0 %992
        %994 = vrot.lane.b32.xlu0 %v968, 124
        %v995 = vpop.permute.xlu0 %994
        %v996 = vsel %vm657, %v979, %v981
        %v997 = vsel %vm657, %v981, %v983
        %v998 = vsel %vm657, %v983, %v985
        %v999 = vsel %vm657, %v985, %v987
        %v1000 = vsel %vm657, %v987, %v989
        %v1001 = vsel %vm657, %v989, %v991
        %v1002 = vsel %vm657, %v991, %v993
        %v1003 = vsel %vm657, %v993, %v995
        %v1013 = vadd.f32 %v949, %v996
        %v1014 = vadd.f32 %v950, %v997
        %v1015 = vadd.f32 %v951, %v998
        %v1016 = vadd.f32 %v952, %v999
        %v1017 = vadd.f32 %v953, %v1000
        %v1018 = vadd.f32 %v954, %v1001
        %v1019 = vadd.f32 %v955, %v1002
        %v1020 = vadd.f32 %v956, %v1003
        %v1021 = vadd.f32 %v957, %v995
        %s1022 = sld [smem:[#allocation10]]
        %v1023 = vstv %s1022
        %v1024 = vadd.f32 %v1013, %v1023
        %v1025 = vadd.f32 %v1014, %v1023
        %v1026 = vadd.f32 %v1015, %v1023
        %v1027 = vadd.f32 %v1016, %v1023
        %v1028 = vadd.f32 %v1017, %v1023
        %v1029 = vadd.f32 %v1018, %v1023
        %v1030 = vadd.f32 %v1019, %v1023
        %v1031 = vadd.f32 %v1020, %v1023
        %v1032 = vadd.f32 %v1021, %v1023
        %v1033 = vmax.f32 %v1024, 0.0
        %v1034 = vmax.f32 %v1025, 0.0
        %v1035 = vmax.f32 %v1026, 0.0
        %v1036 = vmax.f32 %v1027, 0.0
        %v1037 = vmax.f32 %v1028, 0.0
        %v1038 = vmax.f32 %v1029, 0.0
        %v1039 = vmax.f32 %v1030, 0.0
        %v1040 = vmax.f32 %v1031, 0.0
        %v1041 = vmax.f32 %v1032, 0.0
        %1051 = vrot.lane.b32.xlu0 %v1033, 66
        %v1052 = vpop.permute.xlu0 %1051
        %1053 = vrot.lane.b32.xlu0 %v1034, 66
        %v1054 = vpop.permute.xlu0 %1053
        %1055 = vrot.lane.b32.xlu0 %v1035, 66
        %v1056 = vpop.permute.xlu0 %1055
        %1057 = vrot.lane.b32.xlu0 %v1036, 66
        %v1058 = vpop.permute.xlu0 %1057
        %1059 = vrot.lane.b32.xlu0 %v1037, 66
        %v1060 = vpop.permute.xlu0 %1059
        %1061 = vrot.lane.b32.xlu0 %v1038, 66
        %v1062 = vpop.permute.xlu0 %1061
        %1063 = vrot.lane.b32.xlu0 %v1039, 66
        %v1064 = vpop.permute.xlu0 %1063
        %1065 = vrot.lane.b32.xlu0 %v1040, 66
        %v1066 = vpop.permute.xlu0 %1065
        %1067 = vrot.lane.b32.xlu0 %v1041, 66
        %v1068 = vpop.permute.xlu0 %1067
        %vm1069 = vcmask 539648
        %v1070 = vsel %vm1069, %v1052, %v1054
        %v1071 = vsel %vm1069, %v1054, %v1056
        %v1072 = vsel %vm1069, %v1056, %v1058
        %v1073 = vsel %vm1069, %v1058, %v1060
        %v1074 = vsel %vm1069, %v1060, %v1062
        %v1075 = vsel %vm1069, %v1062, %v1064
        %v1076 = vsel %vm1069, %v1064, %v1066
        %v1077 = vsel %vm1069, %v1066, %v1068
        %1086 = vst [vmem:[#allocation3] sm:$0xff] %v1070
        %1087 = vst [vmem:[#allocation3 + $0x8] sm:$0xff] %v1071
        %1088 = vst [vmem:[#allocation3 + $0x10] sm:$0xff] %v1072
        %1089 = vst [vmem:[#allocation3 + $0x18] sm:$0xff] %v1073
        %1090 = vst [vmem:[#allocation3 + $0x20] sm:$0xff] %v1074
        %1091 = vst [vmem:[#allocation3 + $0x28] sm:$0xff] %v1075
        %1092 = vst [vmem:[#allocation3 + $0x30] sm:$0xff] %v1076
        %1093 = vst [vmem:[#allocation3 + $0x38] sm:$0xff] %v1077
        %v1094 = vld [vmem:[#allocation3] sm:$0xff]
        %v1095 = vld [vmem:[#allocation3 + $0x8] sm:$0xff]
        %v1096 = vld [vmem:[#allocation3 + $0x10] sm:$0xff]
        %v1097 = vld [vmem:[#allocation3 + $0x18] sm:$0xff]
        %v1098 = vld [vmem:[#allocation3 + $0x20] sm:$0xff]
        %v1099 = vld [vmem:[#allocation3 + $0x28] sm:$0xff]
        %v1100 = vld [vmem:[#allocation3 + $0x30] sm:$0xff]
        %v1101 = vld [vmem:[#allocation3 + $0x38] sm:$0xff]
        %v1102 = vld [vmem:[#allocation3] sm:$0xff]
        %v1103 = vld [vmem:[#allocation3 + $0x8] sm:$0xff]
        %v1104 = vld [vmem:[#allocation3 + $0x10] sm:$0xff]
        %v1105 = vld [vmem:[#allocation3 + $0x18] sm:$0xff]
        %v1106 = vld [vmem:[#allocation3 + $0x20] sm:$0xff]
        %v1107 = vld [vmem:[#allocation3 + $0x28] sm:$0xff]
        %v1108 = vld [vmem:[#allocation3 + $0x30] sm:$0xff]
        %v1109 = vld [vmem:[#allocation3 + $0x38] sm:$0xff]
        %v1110 = vld [vmem:[#allocation3 + $0x40] sm:$0xff]
        %1120 = vrot.lane.b32.xlu0 %v1102, 126
        %v1121 = vpop.permute.xlu0 %1120
        %1122 = vrot.lane.b32.xlu0 %v1103, 126
        %v1123 = vpop.permute.xlu0 %1122
        %1124 = vrot.lane.b32.xlu0 %v1104, 126
        %v1125 = vpop.permute.xlu0 %1124
        %1126 = vrot.lane.b32.xlu0 %v1105, 126
        %v1127 = vpop.permute.xlu0 %1126
        %1128 = vrot.lane.b32.xlu0 %v1106, 126
        %v1129 = vpop.permute.xlu0 %1128
        %1130 = vrot.lane.b32.xlu0 %v1107, 126
        %v1131 = vpop.permute.xlu0 %1130
        %1132 = vrot.lane.b32.xlu0 %v1108, 126
        %v1133 = vpop.permute.xlu0 %1132
        %1134 = vrot.lane.b32.xlu0 %v1109, 126
        %v1135 = vpop.permute.xlu0 %1134
        %1136 = vrot.lane.b32.xlu0 %v1110, 126
        %v1137 = vpop.permute.xlu0 %1136
        %v1138 = vsel %vm592, %v1121, %v1123
        %v1139 = vsel %vm592, %v1123, %v1125
        %v1140 = vsel %vm592, %v1125, %v1127
        %v1141 = vsel %vm592, %v1127, %v1129
        %v1142 = vsel %vm592, %v1129, %v1131
        %v1143 = vsel %vm592, %v1131, %v1133
        %v1144 = vsel %vm592, %v1133, %v1135
        %v1145 = vsel %vm592, %v1135, %v1137
        %v1154 = vmax.f32 %v1094, %v1138
        %v1155 = vmax.f32 %v1095, %v1139
        %v1156 = vmax.f32 %v1096, %v1140
        %v1157 = vmax.f32 %v1097, %v1141
        %v1158 = vmax.f32 %v1098, %v1142
        %v1159 = vmax.f32 %v1099, %v1143
        %v1160 = vmax.f32 %v1100, %v1144
        %v1161 = vmax.f32 %v1101, %v1145
        %v1163 = vmax.f32 %v1102, %v1138
        %v1164 = vmax.f32 %v1103, %v1139
        %v1165 = vmax.f32 %v1104, %v1140
        %v1166 = vmax.f32 %v1105, %v1141
        %v1167 = vmax.f32 %v1106, %v1142
        %v1168 = vmax.f32 %v1107, %v1143
        %v1169 = vmax.f32 %v1108, %v1144
        %v1170 = vmax.f32 %v1109, %v1145
        %v1171 = vmax.f32 %v1110, %v1137
        %1181 = vrot.lane.b32.xlu0 %v1163, 64
        %v1182 = vpop.permute.xlu0 %1181
        %1183 = vrot.lane.b32.xlu0 %v1164, 64
        %v1184 = vpop.permute.xlu0 %1183
        %1185 = vrot.lane.b32.xlu0 %v1165, 64
        %v1186 = vpop.permute.xlu0 %1185
        %1187 = vrot.lane.b32.xlu0 %v1166, 64
        %v1188 = vpop.permute.xlu0 %1187
        %1189 = vrot.lane.b32.xlu0 %v1167, 64
        %v1190 = vpop.permute.xlu0 %1189
        %1191 = vrot.lane.b32.xlu0 %v1168, 64
        %v1192 = vpop.permute.xlu0 %1191
        %1193 = vrot.lane.b32.xlu0 %v1169, 64
        %v1194 = vpop.permute.xlu0 %1193
        %1195 = vrot.lane.b32.xlu0 %v1170, 64
        %v1196 = vpop.permute.xlu0 %1195
        %1197 = vrot.lane.b32.xlu0 %v1171, 64
        %v1198 = vpop.permute.xlu0 %1197
        %v1199 = vsel %vm722, %v1182, %v1184
        %v1200 = vsel %vm722, %v1184, %v1186
        %v1201 = vsel %vm722, %v1186, %v1188
        %v1202 = vsel %vm722, %v1188, %v1190
        %v1203 = vsel %vm722, %v1190, %v1192
        %v1204 = vsel %vm722, %v1192, %v1194
        %v1205 = vsel %vm722, %v1194, %v1196
        %v1206 = vsel %vm722, %v1196, %v1198
        %v1215 = vmax.f32 %v1154, %v1199
        %v1216 = vmax.f32 %v1155, %v1200
        %v1217 = vmax.f32 %v1156, %v1201
        %v1218 = vmax.f32 %v1157, %v1202
        %v1219 = vmax.f32 %v1158, %v1203
        %v1220 = vmax.f32 %v1159, %v1204
        %v1221 = vmax.f32 %v1160, %v1205
        %v1222 = vmax.f32 %v1161, %v1206
        %1223 = vst [vmem:[#allocation4] sm:$0xff] %v1215
        %1224 = vst [vmem:[#allocation4 + $0x8] sm:$0xff] %v1216
        %1225 = vst [vmem:[#allocation4 + $0x10] sm:$0xff] %v1217
        %1226 = vst [vmem:[#allocation4 + $0x18] sm:$0xff] %v1218
        %1227 = vst [vmem:[#allocation4 + $0x20] sm:$0xff] %v1219
        %1228 = vst [vmem:[#allocation4 + $0x28] sm:$0xff] %v1220
        %1229 = vst [vmem:[#allocation4 + $0x30] sm:$0xff] %v1221
        %1230 = vst [vmem:[#allocation4 + $0x38] sm:$0xff] %v1222
        %s1231 = sld [smem:[#allocation8 + $0x80]]
        %v1232 = vstv %s1231
        %v1233 = vmul.f32 %v524, %v1232
        %v1234 = vmul.f32 %v525, %v1232
        %v1235 = vmul.f32 %v526, %v1232
        %v1236 = vmul.f32 %v527, %v1232
        %v1237 = vmul.f32 %v528, %v1232
        %v1238 = vmul.f32 %v529, %v1232
        %v1239 = vmul.f32 %v530, %v1232
        %v1240 = vmul.f32 %v531, %v1232
        %v1241 = vmul.f32 %v532, %v1232
        %s1242 = sld [smem:[#allocation8 + $0x81]]
        %v1243 = vstv %s1242
        %v1244 = vmul.f32 %v524, %v1243
        %v1245 = vmul.f32 %v525, %v1243
        %v1246 = vmul.f32 %v526, %v1243
        %v1247 = vmul.f32 %v527, %v1243
        %v1248 = vmul.f32 %v528, %v1243
        %v1249 = vmul.f32 %v529, %v1243
        %v1250 = vmul.f32 %v530, %v1243
        %v1251 = vmul.f32 %v531, %v1243
        %v1252 = vmul.f32 %v532, %v1243
        %1262 = vrot.lane.b32.xlu0 %v1244, 126
        %v1263 = vpop.permute.xlu0 %1262
        %1264 = vrot.lane.b32.xlu0 %v1245, 126
        %v1265 = vpop.permute.xlu0 %1264
        %1266 = vrot.lane.b32.xlu0 %v1246, 126
        %v1267 = vpop.permute.xlu0 %1266
        %1268 = vrot.lane.b32.xlu0 %v1247, 126
        %v1269 = vpop.permute.xlu0 %1268
        %1270 = vrot.lane.b32.xlu0 %v1248, 126
        %v1271 = vpop.permute.xlu0 %1270
        %1272 = vrot.lane.b32.xlu0 %v1249, 126
        %v1273 = vpop.permute.xlu0 %1272
        %1274 = vrot.lane.b32.xlu0 %v1250, 126
        %v1275 = vpop.permute.xlu0 %1274
        %1276 = vrot.lane.b32.xlu0 %v1251, 126
        %v1277 = vpop.permute.xlu0 %1276
        %1278 = vrot.lane.b32.xlu0 %v1252, 126
        %v1279 = vpop.permute.xlu0 %1278
        %v1280 = vsel %vm592, %v1263, %v1265
        %v1281 = vsel %vm592, %v1265, %v1267
        %v1282 = vsel %vm592, %v1267, %v1269
        %v1283 = vsel %vm592, %v1269, %v1271
        %v1284 = vsel %vm592, %v1271, %v1273
        %v1285 = vsel %vm592, %v1273, %v1275
        %v1286 = vsel %vm592, %v1275, %v1277
        %v1287 = vsel %vm592, %v1277, %v1279
        %v1297 = vadd.f32 %v1233, %v1280
        %v1298 = vadd.f32 %v1234, %v1281
        %v1299 = vadd.f32 %v1235, %v1282
        %v1300 = vadd.f32 %v1236, %v1283
        %v1301 = vadd.f32 %v1237, %v1284
        %v1302 = vadd.f32 %v1238, %v1285
        %v1303 = vadd.f32 %v1239, %v1286
        %v1304 = vadd.f32 %v1240, %v1287
        %v1305 = vadd.f32 %v1241, %v1279
        %s1306 = sld [smem:[#allocation8 + $0x82]]
        %v1307 = vstv %s1306
        %v1308 = vmul.f32 %v524, %v1307
        %v1309 = vmul.f32 %v525, %v1307
        %v1310 = vmul.f32 %v526, %v1307
        %v1311 = vmul.f32 %v527, %v1307
        %v1312 = vmul.f32 %v528, %v1307
        %v1313 = vmul.f32 %v529, %v1307
        %v1314 = vmul.f32 %v530, %v1307
        %v1315 = vmul.f32 %v531, %v1307
        %v1316 = vmul.f32 %v532, %v1307
        %1326 = vrot.lane.b32.xlu0 %v1308, 124
        %v1327 = vpop.permute.xlu0 %1326
        %1328 = vrot.lane.b32.xlu0 %v1309, 124
        %v1329 = vpop.permute.xlu0 %1328
        %1330 = vrot.lane.b32.xlu0 %v1310, 124
        %v1331 = vpop.permute.xlu0 %1330
        %1332 = vrot.lane.b32.xlu0 %v1311, 124
        %v1333 = vpop.permute.xlu0 %1332
        %1334 = vrot.lane.b32.xlu0 %v1312, 124
        %v1335 = vpop.permute.xlu0 %1334
        %1336 = vrot.lane.b32.xlu0 %v1313, 124
        %v1337 = vpop.permute.xlu0 %1336
        %1338 = vrot.lane.b32.xlu0 %v1314, 124
        %v1339 = vpop.permute.xlu0 %1338
        %1340 = vrot.lane.b32.xlu0 %v1315, 124
        %v1341 = vpop.permute.xlu0 %1340
        %1342 = vrot.lane.b32.xlu0 %v1316, 124
        %v1343 = vpop.permute.xlu0 %1342
        %v1344 = vsel %vm657, %v1327, %v1329
        %v1345 = vsel %vm657, %v1329, %v1331
        %v1346 = vsel %vm657, %v1331, %v1333
        %v1347 = vsel %vm657, %v1333, %v1335
        %v1348 = vsel %vm657, %v1335, %v1337
        %v1349 = vsel %vm657, %v1337, %v1339
        %v1350 = vsel %vm657, %v1339, %v1341
        %v1351 = vsel %vm657, %v1341, %v1343
        %v1361 = vadd.f32 %v1297, %v1344
        %v1362 = vadd.f32 %v1298, %v1345
        %v1363 = vadd.f32 %v1299, %v1346
        %v1364 = vadd.f32 %v1300, %v1347
        %v1365 = vadd.f32 %v1301, %v1348
        %v1366 = vadd.f32 %v1302, %v1349
        %v1367 = vadd.f32 %v1303, %v1350
        %v1368 = vadd.f32 %v1304, %v1351
        %v1369 = vadd.f32 %v1305, %v1343
        %s1370 = sld [smem:[#allocation8 + $0x83]]
        %v1371 = vstv %s1370
        %v1372 = vmul.f32 %v524, %v1371
        %v1373 = vmul.f32 %v525, %v1371
        %v1374 = vmul.f32 %v526, %v1371
        %v1375 = vmul.f32 %v527, %v1371
        %v1376 = vmul.f32 %v528, %v1371
        %v1377 = vmul.f32 %v529, %v1371
        %v1378 = vmul.f32 %v530, %v1371
        %v1379 = vmul.f32 %v531, %v1371
        %v1380 = vmul.f32 %v532, %v1371
        %1390 = vrot.lane.b32.xlu0 %v1372, 64
        %v1391 = vpop.permute.xlu0 %1390
        %1392 = vrot.lane.b32.xlu0 %v1373, 64
        %v1393 = vpop.permute.xlu0 %1392
        %1394 = vrot.lane.b32.xlu0 %v1374, 64
        %v1395 = vpop.permute.xlu0 %1394
        %1396 = vrot.lane.b32.xlu0 %v1375, 64
        %v1397 = vpop.permute.xlu0 %1396
        %1398 = vrot.lane.b32.xlu0 %v1376, 64
        %v1399 = vpop.permute.xlu0 %1398
        %1400 = vrot.lane.b32.xlu0 %v1377, 64
        %v1401 = vpop.permute.xlu0 %1400
        %1402 = vrot.lane.b32.xlu0 %v1378, 64
        %v1403 = vpop.permute.xlu0 %1402
        %1404 = vrot.lane.b32.xlu0 %v1379, 64
        %v1405 = vpop.permute.xlu0 %1404
        %1406 = vrot.lane.b32.xlu0 %v1380, 64
        %v1407 = vpop.permute.xlu0 %1406
        %v1408 = vsel %vm722, %v1391, %v1393
        %v1409 = vsel %vm722, %v1393, %v1395
        %v1410 = vsel %vm722, %v1395, %v1397
        %v1411 = vsel %vm722, %v1397, %v1399
        %v1412 = vsel %vm722, %v1399, %v1401
        %v1413 = vsel %vm722, %v1401, %v1403
        %v1414 = vsel %vm722, %v1403, %v1405
        %v1415 = vsel %vm722, %v1405, %v1407
        %v1425 = vadd.f32 %v1361, %v1408
        %v1426 = vadd.f32 %v1362, %v1409
        %v1427 = vadd.f32 %v1363, %v1410
        %v1428 = vadd.f32 %v1364, %v1411
        %v1429 = vadd.f32 %v1365, %v1412
        %v1430 = vadd.f32 %v1366, %v1413
        %v1431 = vadd.f32 %v1367, %v1414
        %v1432 = vadd.f32 %v1368, %v1415
        %v1433 = vadd.f32 %v1369, %v1407
        %s1434 = sld [smem:[#allocation8 + $0x84]]
        %v1435 = vstv %s1434
        %v1436 = vmul.f32 %v525, %v1435
        %v1437 = vmul.f32 %v526, %v1435
        %v1438 = vmul.f32 %v527, %v1435
        %v1439 = vmul.f32 %v528, %v1435
        %v1440 = vmul.f32 %v529, %v1435
        %v1441 = vmul.f32 %v530, %v1435
        %v1442 = vmul.f32 %v531, %v1435
        %v1443 = vmul.f32 %v532, %v1435
        %1452 = vrot.lane.b32.xlu0 %v1436, 62
        %v1453 = vpop.permute.xlu0 %1452
        %1454 = vrot.lane.b32.xlu0 %v1437, 62
        %v1455 = vpop.permute.xlu0 %1454
        %1456 = vrot.lane.b32.xlu0 %v1438, 62
        %v1457 = vpop.permute.xlu0 %1456
        %1458 = vrot.lane.b32.xlu0 %v1439, 62
        %v1459 = vpop.permute.xlu0 %1458
        %1460 = vrot.lane.b32.xlu0 %v1440, 62
        %v1461 = vpop.permute.xlu0 %1460
        %1462 = vrot.lane.b32.xlu0 %v1441, 62
        %v1463 = vpop.permute.xlu0 %1462
        %1464 = vrot.lane.b32.xlu0 %v1442, 62
        %v1465 = vpop.permute.xlu0 %1464
        %1466 = vrot.lane.b32.xlu0 %v1443, 62
        %v1467 = vpop.permute.xlu0 %1466
        %v1468 = vsel %vm783, %v1453, %v1455
        %v1469 = vsel %vm783, %v1455, %v1457
        %v1470 = vsel %vm783, %v1457, %v1459
        %v1471 = vsel %vm783, %v1459, %v1461
        %v1472 = vsel %vm783, %v1461, %v1463
        %v1473 = vsel %vm783, %v1463, %v1465
        %v1474 = vsel %vm783, %v1465, %v1467
        %v1484 = vadd.f32 %v1425, %v1453
        %v1485 = vadd.f32 %v1426, %v1468
        %v1486 = vadd.f32 %v1427, %v1469
        %v1487 = vadd.f32 %v1428, %v1470
        %v1488 = vadd.f32 %v1429, %v1471
        %v1489 = vadd.f32 %v1430, %v1472
        %v1490 = vadd.f32 %v1431, %v1473
        %v1491 = vadd.f32 %v1432, %v1474
        %v1492 = vadd.f32 %v1433, %v1467
        %s1493 = sld [smem:[#allocation8 + $0x85]]
        %v1494 = vstv %s1493
        %v1495 = vmul.f32 %v533, %v1494
        %v1496 = vmul.f32 %v534, %v1494
        %v1497 = vmul.f32 %v535, %v1494
        %v1498 = vmul.f32 %v536, %v1494
        %v1499 = vmul.f32 %v537, %v1494
        %v1500 = vmul.f32 %v538, %v1494
        %v1501 = vmul.f32 %v539, %v1494
        %v1502 = vmul.f32 %v540, %v1494
        %v1503 = vmul.f32 %v541, %v1494
        %1513 = vrot.lane.b32.xlu0 %v1495, 60
        %v1514 = vpop.permute.xlu0 %1513
        %1515 = vrot.lane.b32.xlu0 %v1496, 60
        %v1516 = vpop.permute.xlu0 %1515
        %1517 = vrot.lane.b32.xlu0 %v1497, 60
        %v1518 = vpop.permute.xlu0 %1517
        %1519 = vrot.lane.b32.xlu0 %v1498, 60
        %v1520 = vpop.permute.xlu0 %1519
        %1521 = vrot.lane.b32.xlu0 %v1499, 60
        %v1522 = vpop.permute.xlu0 %1521
        %1523 = vrot.lane.b32.xlu0 %v1500, 60
        %v1524 = vpop.permute.xlu0 %1523
        %1525 = vrot.lane.b32.xlu0 %v1501, 60
        %v1526 = vpop.permute.xlu0 %1525
        %1527 = vrot.lane.b32.xlu0 %v1502, 60
        %v1528 = vpop.permute.xlu0 %1527
        %1529 = vrot.lane.b32.xlu0 %v1503, 60
        %v1530 = vpop.permute.xlu0 %1529
        %v1531 = vsel %vm847, %v1514, %v1516
        %v1532 = vsel %vm847, %v1516, %v1518
        %v1533 = vsel %vm847, %v1518, %v1520
        %v1534 = vsel %vm847, %v1520, %v1522
        %v1535 = vsel %vm847, %v1522, %v1524
        %v1536 = vsel %vm847, %v1524, %v1526
        %v1537 = vsel %vm847, %v1526, %v1528
        %v1538 = vsel %vm847, %v1528, %v1530
        %v1548 = vadd.f32 %v1484, %v1514
        %v1549 = vadd.f32 %v1485, %v1531
        %v1550 = vadd.f32 %v1486, %v1532
        %v1551 = vadd.f32 %v1487, %v1533
        %v1552 = vadd.f32 %v1488, %v1534
        %v1553 = vadd.f32 %v1489, %v1535
        %v1554 = vadd.f32 %v1490, %v1536
        %v1555 = vadd.f32 %v1491, %v1537
        %v1556 = vadd.f32 %v1492, %v1538
        %s1557 = sld [smem:[#allocation8 + $0x86]]
        %v1558 = vstv %s1557
        %v1559 = vmul.f32 %v533, %v1558
        %v1560 = vmul.f32 %v534, %v1558
        %v1561 = vmul.f32 %v535, %v1558
        %v1562 = vmul.f32 %v536, %v1558
        %v1563 = vmul.f32 %v537, %v1558
        %v1564 = vmul.f32 %v538, %v1558
        %v1565 = vmul.f32 %v539, %v1558
        %v1566 = vmul.f32 %v540, %v1558
        %v1567 = vmul.f32 %v541, %v1558
        %v1568 = vadd.f32 %v1548, %v1559
        %v1569 = vadd.f32 %v1549, %v1560
        %v1570 = vadd.f32 %v1550, %v1561
        %v1571 = vadd.f32 %v1551, %v1562
        %v1572 = vadd.f32 %v1552, %v1563
        %v1573 = vadd.f32 %v1553, %v1564
        %v1574 = vadd.f32 %v1554, %v1565
        %v1575 = vadd.f32 %v1555, %v1566
        %v1576 = vadd.f32 %v1556, %v1567
        %s1577 = sld [smem:[#allocation8 + $0x87]]
        %v1578 = vstv %s1577
        %v1579 = vmul.f32 %v533, %v1578
        %v1580 = vmul.f32 %v534, %v1578
        %v1581 = vmul.f32 %v535, %v1578
        %v1582 = vmul.f32 %v536, %v1578
        %v1583 = vmul.f32 %v537, %v1578
        %v1584 = vmul.f32 %v538, %v1578
        %v1585 = vmul.f32 %v539, %v1578
        %v1586 = vmul.f32 %v540, %v1578
        %v1587 = vmul.f32 %v541, %v1578
        %1597 = vrot.lane.b32.xlu0 %v1579, 126
        %v1598 = vpop.permute.xlu0 %1597
        %1599 = vrot.lane.b32.xlu0 %v1580, 126
        %v1600 = vpop.permute.xlu0 %1599
        %1601 = vrot.lane.b32.xlu0 %v1581, 126
        %v1602 = vpop.permute.xlu0 %1601
        %1603 = vrot.lane.b32.xlu0 %v1582, 126
        %v1604 = vpop.permute.xlu0 %1603
        %1605 = vrot.lane.b32.xlu0 %v1583, 126
        %v1606 = vpop.permute.xlu0 %1605
        %1607 = vrot.lane.b32.xlu0 %v1584, 126
        %v1608 = vpop.permute.xlu0 %1607
        %1609 = vrot.lane.b32.xlu0 %v1585, 126
        %v1610 = vpop.permute.xlu0 %1609
        %1611 = vrot.lane.b32.xlu0 %v1586, 126
        %v1612 = vpop.permute.xlu0 %1611
        %1613 = vrot.lane.b32.xlu0 %v1587, 126
        %v1614 = vpop.permute.xlu0 %1613
        %v1615 = vsel %vm592, %v1598, %v1600
        %v1616 = vsel %vm592, %v1600, %v1602
        %v1617 = vsel %vm592, %v1602, %v1604
        %v1618 = vsel %vm592, %v1604, %v1606
        %v1619 = vsel %vm592, %v1606, %v1608
        %v1620 = vsel %vm592, %v1608, %v1610
        %v1621 = vsel %vm592, %v1610, %v1612
        %v1622 = vsel %vm592, %v1612, %v1614
        %v1632 = vadd.f32 %v1568, %v1615
        %v1633 = vadd.f32 %v1569, %v1616
        %v1634 = vadd.f32 %v1570, %v1617
        %v1635 = vadd.f32 %v1571, %v1618
        %v1636 = vadd.f32 %v1572, %v1619
        %v1637 = vadd.f32 %v1573, %v1620
        %v1638 = vadd.f32 %v1574, %v1621
        %v1639 = vadd.f32 %v1575, %v1622
        %v1640 = vadd.f32 %v1576, %v1614
        %s1641 = sld [smem:[#allocation8 + $0x88]]
        %v1642 = vstv %s1641
        %v1643 = vmul.f32 %v533, %v1642
        %v1644 = vmul.f32 %v534, %v1642
        %v1645 = vmul.f32 %v535, %v1642
        %v1646 = vmul.f32 %v536, %v1642
        %v1647 = vmul.f32 %v537, %v1642
        %v1648 = vmul.f32 %v538, %v1642
        %v1649 = vmul.f32 %v539, %v1642
        %v1650 = vmul.f32 %v540, %v1642
        %v1651 = vmul.f32 %v541, %v1642
        %1661 = vrot.lane.b32.xlu0 %v1643, 124
        %v1662 = vpop.permute.xlu0 %1661
        %1663 = vrot.lane.b32.xlu0 %v1644, 124
        %v1664 = vpop.permute.xlu0 %1663
        %1665 = vrot.lane.b32.xlu0 %v1645, 124
        %v1666 = vpop.permute.xlu0 %1665
        %1667 = vrot.lane.b32.xlu0 %v1646, 124
        %v1668 = vpop.permute.xlu0 %1667
        %1669 = vrot.lane.b32.xlu0 %v1647, 124
        %v1670 = vpop.permute.xlu0 %1669
        %1671 = vrot.lane.b32.xlu0 %v1648, 124
        %v1672 = vpop.permute.xlu0 %1671
        %1673 = vrot.lane.b32.xlu0 %v1649, 124
        %v1674 = vpop.permute.xlu0 %1673
        %1675 = vrot.lane.b32.xlu0 %v1650, 124
        %v1676 = vpop.permute.xlu0 %1675
        %1677 = vrot.lane.b32.xlu0 %v1651, 124
        %v1678 = vpop.permute.xlu0 %1677
        %v1679 = vsel %vm657, %v1662, %v1664
        %v1680 = vsel %vm657, %v1664, %v1666
        %v1681 = vsel %vm657, %v1666, %v1668
        %v1682 = vsel %vm657, %v1668, %v1670
        %v1683 = vsel %vm657, %v1670, %v1672
        %v1684 = vsel %vm657, %v1672, %v1674
        %v1685 = vsel %vm657, %v1674, %v1676
        %v1686 = vsel %vm657, %v1676, %v1678
        %v1696 = vadd.f32 %v1632, %v1679
        %v1697 = vadd.f32 %v1633, %v1680
        %v1698 = vadd.f32 %v1634, %v1681
        %v1699 = vadd.f32 %v1635, %v1682
        %v1700 = vadd.f32 %v1636, %v1683
        %v1701 = vadd.f32 %v1637, %v1684
        %v1702 = vadd.f32 %v1638, %v1685
        %v1703 = vadd.f32 %v1639, %v1686
        %v1704 = vadd.f32 %v1640, %v1678
        %s1705 = sld [smem:[#allocation10 + $0x1]]
        %v1706 = vstv %s1705
        %v1707 = vadd.f32 %v1696, %v1706
        %v1708 = vadd.f32 %v1697, %v1706
        %v1709 = vadd.f32 %v1698, %v1706
        %v1710 = vadd.f32 %v1699, %v1706
        %v1711 = vadd.f32 %v1700, %v1706
        %v1712 = vadd.f32 %v1701, %v1706
        %v1713 = vadd.f32 %v1702, %v1706
        %v1714 = vadd.f32 %v1703, %v1706
        %v1715 = vadd.f32 %v1704, %v1706
        %v1716 = vmax.f32 %v1707, 0.0
        %v1717 = vmax.f32 %v1708, 0.0
        %v1718 = vmax.f32 %v1709, 0.0
        %v1719 = vmax.f32 %v1710, 0.0
        %v1720 = vmax.f32 %v1711, 0.0
        %v1721 = vmax.f32 %v1712, 0.0
        %v1722 = vmax.f32 %v1713, 0.0
        %v1723 = vmax.f32 %v1714, 0.0
        %v1724 = vmax.f32 %v1715, 0.0
        %1734 = vrot.lane.b32.xlu0 %v1716, 66
        %v1735 = vpop.permute.xlu0 %1734
        %1736 = vrot.lane.b32.xlu0 %v1717, 66
        %v1737 = vpop.permute.xlu0 %1736
        %1738 = vrot.lane.b32.xlu0 %v1718, 66
        %v1739 = vpop.permute.xlu0 %1738
        %1740 = vrot.lane.b32.xlu0 %v1719, 66
        %v1741 = vpop.permute.xlu0 %1740
        %1742 = vrot.lane.b32.xlu0 %v1720, 66
        %v1743 = vpop.permute.xlu0 %1742
        %1744 = vrot.lane.b32.xlu0 %v1721, 66
        %v1745 = vpop.permute.xlu0 %1744
        %1746 = vrot.lane.b32.xlu0 %v1722, 66
        %v1747 = vpop.permute.xlu0 %1746
        %1748 = vrot.lane.b32.xlu0 %v1723, 66
        %v1749 = vpop.permute.xlu0 %1748
        %1750 = vrot.lane.b32.xlu0 %v1724, 66
        %v1751 = vpop.permute.xlu0 %1750
        %v1752 = vsel %vm1069, %v1735, %v1737
        %v1753 = vsel %vm1069, %v1737, %v1739
        %v1754 = vsel %vm1069, %v1739, %v1741
        %v1755 = vsel %vm1069, %v1741, %v1743
        %v1756 = vsel %vm1069, %v1743, %v1745
        %v1757 = vsel %vm1069, %v1745, %v1747
        %v1758 = vsel %vm1069, %v1747, %v1749
        %v1759 = vsel %vm1069, %v1749, %v1751
        %1768 = vst [vmem:[#allocation3] sm:$0xff] %v1752
        %1769 = vst [vmem:[#allocation3 + $0x8] sm:$0xff] %v1753
        %1770 = vst [vmem:[#allocation3 + $0x10] sm:$0xff] %v1754
        %1771 = vst [vmem:[#allocation3 + $0x18] sm:$0xff] %v1755
        %1772 = vst [vmem:[#allocation3 + $0x20] sm:$0xff] %v1756
        %1773 = vst [vmem:[#allocation3 + $0x28] sm:$0xff] %v1757
        %1774 = vst [vmem:[#allocation3 + $0x30] sm:$0xff] %v1758
        %1775 = vst [vmem:[#allocation3 + $0x38] sm:$0xff] %v1759
        %v1776 = vld [vmem:[#allocation3] sm:$0xff]
        %v1777 = vld [vmem:[#allocation3 + $0x8] sm:$0xff]
        %v1778 = vld [vmem:[#allocation3 + $0x10] sm:$0xff]
        %v1779 = vld [vmem:[#allocation3 + $0x18] sm:$0xff]
        %v1780 = vld [vmem:[#allocation3 + $0x20] sm:$0xff]
        %v1781 = vld [vmem:[#allocation3 + $0x28] sm:$0xff]
        %v1782 = vld [vmem:[#allocation3 + $0x30] sm:$0xff]
        %v1783 = vld [vmem:[#allocation3 + $0x38] sm:$0xff]
        %v1784 = vld [vmem:[#allocation3] sm:$0xff]
        %v1785 = vld [vmem:[#allocation3 + $0x8] sm:$0xff]
        %v1786 = vld [vmem:[#allocation3 + $0x10] sm:$0xff]
        %v1787 = vld [vmem:[#allocation3 + $0x18] sm:$0xff]
        %v1788 = vld [vmem:[#allocation3 + $0x20] sm:$0xff]
        %v1789 = vld [vmem:[#allocation3 + $0x28] sm:$0xff]
        %v1790 = vld [vmem:[#allocation3 + $0x30] sm:$0xff]
        %v1791 = vld [vmem:[#allocation3 + $0x38] sm:$0xff]
        %v1792 = vld [vmem:[#allocation3 + $0x40] sm:$0xff]
        %1802 = vrot.lane.b32.xlu0 %v1784, 126
        %v1803 = vpop.permute.xlu0 %1802
        %1804 = vrot.lane.b32.xlu0 %v1785, 126
        %v1805 = vpop.permute.xlu0 %1804
        %1806 = vrot.lane.b32.xlu0 %v1786, 126
        %v1807 = vpop.permute.xlu0 %1806
        %1808 = vrot.lane.b32.xlu0 %v1787, 126
        %v1809 = vpop.permute.xlu0 %1808
        %1810 = vrot.lane.b32.xlu0 %v1788, 126
        %v1811 = vpop.permute.xlu0 %1810
        %1812 = vrot.lane.b32.xlu0 %v1789, 126
        %v1813 = vpop.permute.xlu0 %1812
        %1814 = vrot.lane.b32.xlu0 %v1790, 126
        %v1815 = vpop.permute.xlu0 %1814
        %1816 = vrot.lane.b32.xlu0 %v1791, 126
        %v1817 = vpop.permute.xlu0 %1816
        %1818 = vrot.lane.b32.xlu0 %v1792, 126
        %v1819 = vpop.permute.xlu0 %1818
        %v1820 = vsel %vm592, %v1803, %v1805
        %v1821 = vsel %vm592, %v1805, %v1807
        %v1822 = vsel %vm592, %v1807, %v1809
        %v1823 = vsel %vm592, %v1809, %v1811
        %v1824 = vsel %vm592, %v1811, %v1813
        %v1825 = vsel %vm592, %v1813, %v1815
        %v1826 = vsel %vm592, %v1815, %v1817
        %v1827 = vsel %vm592, %v1817, %v1819
        %v1836 = vmax.f32 %v1776, %v1820
        %v1837 = vmax.f32 %v1777, %v1821
        %v1838 = vmax.f32 %v1778, %v1822
        %v1839 = vmax.f32 %v1779, %v1823
        %v1840 = vmax.f32 %v1780, %v1824
        %v1841 = vmax.f32 %v1781, %v1825
        %v1842 = vmax.f32 %v1782, %v1826
        %v1843 = vmax.f32 %v1783, %v1827
        %v1845 = vmax.f32 %v1784, %v1820
        %v1846 = vmax.f32 %v1785, %v1821
        %v1847 = vmax.f32 %v1786, %v1822
        %v1848 = vmax.f32 %v1787, %v1823
        %v1849 = vmax.f32 %v1788, %v1824
        %v1850 = vmax.f32 %v1789, %v1825
        %v1851 = vmax.f32 %v1790, %v1826
        %v1852 = vmax.f32 %v1791, %v1827
        %v1853 = vmax.f32 %v1792, %v1819
        %1863 = vrot.lane.b32.xlu0 %v1845, 64
        %v1864 = vpop.permute.xlu0 %1863
        %1865 = vrot.lane.b32.xlu0 %v1846, 64
        %v1866 = vpop.permute.xlu0 %1865
        %1867 = vrot.lane.b32.xlu0 %v1847, 64
        %v1868 = vpop.permute.xlu0 %1867
        %1869 = vrot.lane.b32.xlu0 %v1848, 64
        %v1870 = vpop.permute.xlu0 %1869
        %1871 = vrot.lane.b32.xlu0 %v1849, 64
        %v1872 = vpop.permute.xlu0 %1871
        %1873 = vrot.lane.b32.xlu0 %v1850, 64
        %v1874 = vpop.permute.xlu0 %1873
        %1875 = vrot.lane.b32.xlu0 %v1851, 64
        %v1876 = vpop.permute.xlu0 %1875
        %1877 = vrot.lane.b32.xlu0 %v1852, 64
        %v1878 = vpop.permute.xlu0 %1877
        %1879 = vrot.lane.b32.xlu0 %v1853, 64
        %v1880 = vpop.permute.xlu0 %1879
        %v1881 = vsel %vm722, %v1864, %v1866
        %v1882 = vsel %vm722, %v1866, %v1868
        %v1883 = vsel %vm722, %v1868, %v1870
        %v1884 = vsel %vm722, %v1870, %v1872
        %v1885 = vsel %vm722, %v1872, %v1874
        %v1886 = vsel %vm722, %v1874, %v1876
        %v1887 = vsel %vm722, %v1876, %v1878
        %v1888 = vsel %vm722, %v1878, %v1880
        %v1897 = vmax.f32 %v1836, %v1881
        %v1898 = vmax.f32 %v1837, %v1882
        %v1899 = vmax.f32 %v1838, %v1883
        %v1900 = vmax.f32 %v1839, %v1884
        %v1901 = vmax.f32 %v1840, %v1885
        %v1902 = vmax.f32 %v1841, %v1886
        %v1903 = vmax.f32 %v1842, %v1887
        %v1904 = vmax.f32 %v1843, %v1888
        %1905 = vst [vmem:[#allocation4 + $0x40] sm:$0xff] %v1897
        %1906 = vst [vmem:[#allocation4 + $0x48] sm:$0xff] %v1898
        %1907 = vst [vmem:[#allocation4 + $0x50] sm:$0xff] %v1899
        %1908 = vst [vmem:[#allocation4 + $0x58] sm:$0xff] %v1900
        %1909 = vst [vmem:[#allocation4 + $0x60] sm:$0xff] %v1901
        %1910 = vst [vmem:[#allocation4 + $0x68] sm:$0xff] %v1902
        %1911 = vst [vmem:[#allocation4 + $0x70] sm:$0xff] %v1903
        %1912 = vst [vmem:[#allocation4 + $0x78] sm:$0xff] %v1904
        %s1913 = sld [smem:[#allocation8 + $0x100]]
        %v1914 = vstv %s1913
        %v1915 = vmul.f32 %v524, %v1914
        %v1916 = vmul.f32 %v525, %v1914
        %v1917 = vmul.f32 %v526, %v1914
        %v1918 = vmul.f32 %v527, %v1914
        %v1919 = vmul.f32 %v528, %v1914
        %v1920 = vmul.f32 %v529, %v1914
        %v1921 = vmul.f32 %v530, %v1914
        %v1922 = vmul.f32 %v531, %v1914
        %v1923 = vmul.f32 %v532, %v1914
        %s1924 = sld [smem:[#allocation8 + $0x101]]
        %v1925 = vstv %s1924
        %v1926 = vmul.f32 %v524, %v1925
        %v1927 = vmul.f32 %v525, %v1925
        %v1928 = vmul.f32 %v526, %v1925
        %v1929 = vmul.f32 %v527, %v1925
        %v1930 = vmul.f32 %v528, %v1925
        %v1931 = vmul.f32 %v529, %v1925
        %v1932 = vmul.f32 %v530, %v1925
        %v1933 = vmul.f32 %v531, %v1925
        %v1934 = vmul.f32 %v532, %v1925
        %1944 = vrot.lane.b32.xlu0 %v1926, 126
        %v1945 = vpop.permute.xlu0 %1944
        %1946 = vrot.lane.b32.xlu0 %v1927, 126
        %v1947 = vpop.permute.xlu0 %1946
        %1948 = vrot.lane.b32.xlu0 %v1928, 126
        %v1949 = vpop.permute.xlu0 %1948
        %1950 = vrot.lane.b32.xlu0 %v1929, 126
        %v1951 = vpop.permute.xlu0 %1950
        %1952 = vrot.lane.b32.xlu0 %v1930, 126
        %v1953 = vpop.permute.xlu0 %1952
        %1954 = vrot.lane.b32.xlu0 %v1931, 126
        %v1955 = vpop.permute.xlu0 %1954
        %1956 = vrot.lane.b32.xlu0 %v1932, 126
        %v1957 = vpop.permute.xlu0 %1956
        %1958 = vrot.lane.b32.xlu0 %v1933, 126
        %v1959 = vpop.permute.xlu0 %1958
        %1960 = vrot.lane.b32.xlu0 %v1934, 126
        %v1961 = vpop.permute.xlu0 %1960
        %v1962 = vsel %vm592, %v1945, %v1947
        %v1963 = vsel %vm592, %v1947, %v1949
        %v1964 = vsel %vm592, %v1949, %v1951
        %v1965 = vsel %vm592, %v1951, %v1953
        %v1966 = vsel %vm592, %v1953, %v1955
        %v1967 = vsel %vm592, %v1955, %v1957
        %v1968 = vsel %vm592, %v1957, %v1959
        %v1969 = vsel %vm592, %v1959, %v1961
        %v1979 = vadd.f32 %v1915, %v1962
        %v1980 = vadd.f32 %v1916, %v1963
        %v1981 = vadd.f32 %v1917, %v1964
        %v1982 = vadd.f32 %v1918, %v1965
        %v1983 = vadd.f32 %v1919, %v1966
        %v1984 = vadd.f32 %v1920, %v1967
        %v1985 = vadd.f32 %v1921, %v1968
        %v1986 = vadd.f32 %v1922, %v1969
        %v1987 = vadd.f32 %v1923, %v1961
        %s1988 = sld [smem:[#allocation8 + $0x102]]
        %v1989 = vstv %s1988
        %v1990 = vmul.f32 %v524, %v1989
        %v1991 = vmul.f32 %v525, %v1989
        %v1992 = vmul.f32 %v526, %v1989
        %v1993 = vmul.f32 %v527, %v1989
        %v1994 = vmul.f32 %v528, %v1989
        %v1995 = vmul.f32 %v529, %v1989
        %v1996 = vmul.f32 %v530, %v1989
        %v1997 = vmul.f32 %v531, %v1989
        %v1998 = vmul.f32 %v532, %v1989
        %2008 = vrot.lane.b32.xlu0 %v1990, 124
        %v2009 = vpop.permute.xlu0 %2008
        %2010 = vrot.lane.b32.xlu0 %v1991, 124
        %v2011 = vpop.permute.xlu0 %2010
        %2012 = vrot.lane.b32.xlu0 %v1992, 124
        %v2013 = vpop.permute.xlu0 %2012
        %2014 = vrot.lane.b32.xlu0 %v1993, 124
        %v2015 = vpop.permute.xlu0 %2014
        %2016 = vrot.lane.b32.xlu0 %v1994, 124
        %v2017 = vpop.permute.xlu0 %2016
        %2018 = vrot.lane.b32.xlu0 %v1995, 124
        %v2019 = vpop.permute.xlu0 %2018
        %2020 = vrot.lane.b32.xlu0 %v1996, 124
        %v2021 = vpop.permute.xlu0 %2020
        %2022 = vrot.lane.b32.xlu0 %v1997, 124
        %v2023 = vpop.permute.xlu0 %2022
        %2024 = vrot.lane.b32.xlu0 %v1998, 124
        %v2025 = vpop.permute.xlu0 %2024
        %v2026 = vsel %vm657, %v2009, %v2011
        %v2027 = vsel %vm657, %v2011, %v2013
        %v2028 = vsel %vm657, %v2013, %v2015
        %v2029 = vsel %vm657, %v2015, %v2017
        %v2030 = vsel %vm657, %v2017, %v2019
        %v2031 = vsel %vm657, %v2019, %v2021
        %v2032 = vsel %vm657, %v2021, %v2023
        %v2033 = vsel %vm657, %v2023, %v2025
        %v2043 = vadd.f32 %v1979, %v2026
        %v2044 = vadd.f32 %v1980, %v2027
        %v2045 = vadd.f32 %v1981, %v2028
        %v2046 = vadd.f32 %v1982, %v2029
        %v2047 = vadd.f32 %v1983, %v2030
        %v2048 = vadd.f32 %v1984, %v2031
        %v2049 = vadd.f32 %v1985, %v2032
        %v2050 = vadd.f32 %v1986, %v2033
        %v2051 = vadd.f32 %v1987, %v2025
        %s2052 = sld [smem:[#allocation8 + $0x103]]
        %v2053 = vstv %s2052
        %v2054 = vmul.f32 %v524, %v2053
        %v2055 = vmul.f32 %v525, %v2053
        %v2056 = vmul.f32 %v526, %v2053
        %v2057 = vmul.f32 %v527, %v2053
        %v2058 = vmul.f32 %v528, %v2053
        %v2059 = vmul.f32 %v529, %v2053
        %v2060 = vmul.f32 %v530, %v2053
        %v2061 = vmul.f32 %v531, %v2053
        %v2062 = vmul.f32 %v532, %v2053
        %2072 = vrot.lane.b32.xlu0 %v2054, 64
        %v2073 = vpop.permute.xlu0 %2072
        %2074 = vrot.lane.b32.xlu0 %v2055, 64
        %v2075 = vpop.permute.xlu0 %2074
        %2076 = vrot.lane.b32.xlu0 %v2056, 64
        %v2077 = vpop.permute.xlu0 %2076
        %2078 = vrot.lane.b32.xlu0 %v2057, 64
        %v2079 = vpop.permute.xlu0 %2078
        %2080 = vrot.lane.b32.xlu0 %v2058, 64
        %v2081 = vpop.permute.xlu0 %2080
        %2082 = vrot.lane.b32.xlu0 %v2059, 64
        %v2083 = vpop.permute.xlu0 %2082
        %2084 = vrot.lane.b32.xlu0 %v2060, 64
        %v2085 = vpop.permute.xlu0 %2084
        %2086 = vrot.lane.b32.xlu0 %v2061, 64
        %v2087 = vpop.permute.xlu0 %2086
        %2088 = vrot.lane.b32.xlu0 %v2062, 64
        %v2089 = vpop.permute.xlu0 %2088
        %v2090 = vsel %vm722, %v2073, %v2075
        %v2091 = vsel %vm722, %v2075, %v2077
        %v2092 = vsel %vm722, %v2077, %v2079
        %v2093 = vsel %vm722, %v2079, %v2081
        %v2094 = vsel %vm722, %v2081, %v2083
        %v2095 = vsel %vm722, %v2083, %v2085
        %v2096 = vsel %vm722, %v2085, %v2087
        %v2097 = vsel %vm722, %v2087, %v2089
        %v2107 = vadd.f32 %v2043, %v2090
        %v2108 = vadd.f32 %v2044, %v2091
        %v2109 = vadd.f32 %v2045, %v2092
        %v2110 = vadd.f32 %v2046, %v2093
        %v2111 = vadd.f32 %v2047, %v2094
        %v2112 = vadd.f32 %v2048, %v2095
        %v2113 = vadd.f32 %v2049, %v2096
        %v2114 = vadd.f32 %v2050, %v2097
        %v2115 = vadd.f32 %v2051, %v2089
        %s2116 = sld [smem:[#allocation8 + $0x104]]
        %v2117 = vstv %s2116
        %v2118 = vmul.f32 %v525, %v2117
        %v2119 = vmul.f32 %v526, %v2117
        %v2120 = vmul.f32 %v527, %v2117
        %v2121 = vmul.f32 %v528, %v2117
        %v2122 = vmul.f32 %v529, %v2117
        %v2123 = vmul.f32 %v530, %v2117
        %v2124 = vmul.f32 %v531, %v2117
        %v2125 = vmul.f32 %v532, %v2117
        %2134 = vrot.lane.b32.xlu0 %v2118, 62
        %v2135 = vpop.permute.xlu0 %2134
        %2136 = vrot.lane.b32.xlu0 %v2119, 62
        %v2137 = vpop.permute.xlu0 %2136
        %2138 = vrot.lane.b32.xlu0 %v2120, 62
        %v2139 = vpop.permute.xlu0 %2138
        %2140 = vrot.lane.b32.xlu0 %v2121, 62
        %v2141 = vpop.permute.xlu0 %2140
        %2142 = vrot.lane.b32.xlu0 %v2122, 62
        %v2143 = vpop.permute.xlu0 %2142
        %2144 = vrot.lane.b32.xlu0 %v2123, 62
        %v2145 = vpop.permute.xlu0 %2144
        %2146 = vrot.lane.b32.xlu0 %v2124, 62
        %v2147 = vpop.permute.xlu0 %2146
        %2148 = vrot.lane.b32.xlu0 %v2125, 62
        %v2149 = vpop.permute.xlu0 %2148
        %v2150 = vsel %vm783, %v2135, %v2137
        %v2151 = vsel %vm783, %v2137, %v2139
        %v2152 = vsel %vm783, %v2139, %v2141
        %v2153 = vsel %vm783, %v2141, %v2143
        %v2154 = vsel %vm783, %v2143, %v2145
        %v2155 = vsel %vm783, %v2145, %v2147
        %v2156 = vsel %vm783, %v2147, %v2149
        %v2166 = vadd.f32 %v2107, %v2135
        %v2167 = vadd.f32 %v2108, %v2150
        %v2168 = vadd.f32 %v2109, %v2151
        %v2169 = vadd.f32 %v2110, %v2152
        %v2170 = vadd.f32 %v2111, %v2153
        %v2171 = vadd.f32 %v2112, %v2154
        %v2172 = vadd.f32 %v2113, %v2155
        %v2173 = vadd.f32 %v2114, %v2156
        %v2174 = vadd.f32 %v2115, %v2149
        %s2175 = sld [smem:[#allocation8 + $0x105]]
        %v2176 = vstv %s2175
        %v2177 = vmul.f32 %v533, %v2176
        %v2178 = vmul.f32 %v534, %v2176
        %v2179 = vmul.f32 %v535, %v2176
        %v2180 = vmul.f32 %v536, %v2176
        %v2181 = vmul.f32 %v537, %v2176
        %v2182 = vmul.f32 %v538, %v2176
        %v2183 = vmul.f32 %v539, %v2176
        %v2184 = vmul.f32 %v540, %v2176
        %v2185 = vmul.f32 %v541, %v2176
        %2195 = vrot.lane.b32.xlu0 %v2177, 60
        %v2196 = vpop.permute.xlu0 %2195
        %2197 = vrot.lane.b32.xlu0 %v2178, 60
        %v2198 = vpop.permute.xlu0 %2197
        %2199 = vrot.lane.b32.xlu0 %v2179, 60
        %v2200 = vpop.permute.xlu0 %2199
        %2201 = vrot.lane.b32.xlu0 %v2180, 60
        %v2202 = vpop.permute.xlu0 %2201
        %2203 = vrot.lane.b32.xlu0 %v2181, 60
        %v2204 = vpop.permute.xlu0 %2203
        %2205 = vrot.lane.b32.xlu0 %v2182, 60
        %v2206 = vpop.permute.xlu0 %2205
        %2207 = vrot.lane.b32.xlu0 %v2183, 60
        %v2208 = vpop.permute.xlu0 %2207
        %2209 = vrot.lane.b32.xlu0 %v2184, 60
        %v2210 = vpop.permute.xlu0 %2209
        %2211 = vrot.lane.b32.xlu0 %v2185, 60
        %v2212 = vpop.permute.xlu0 %2211
        %v2213 = vsel %vm847, %v2196, %v2198
        %v2214 = vsel %vm847, %v2198, %v2200
        %v2215 = vsel %vm847, %v2200, %v2202
        %v2216 = vsel %vm847, %v2202, %v2204
        %v2217 = vsel %vm847, %v2204, %v2206
        %v2218 = vsel %vm847, %v2206, %v2208
        %v2219 = vsel %vm847, %v2208, %v2210
        %v2220 = vsel %vm847, %v2210, %v2212
        %v2230 = vadd.f32 %v2166, %v2196
        %v2231 = vadd.f32 %v2167, %v2213
        %v2232 = vadd.f32 %v2168, %v2214
        %v2233 = vadd.f32 %v2169, %v2215
        %v2234 = vadd.f32 %v2170, %v2216
        %v2235 = vadd.f32 %v2171, %v2217
        %v2236 = vadd.f32 %v2172, %v2218
        %v2237 = vadd.f32 %v2173, %v2219
        %v2238 = vadd.f32 %v2174, %v2220
        %s2239 = sld [smem:[#allocation8 + $0x106]]
        %v2240 = vstv %s2239
        %v2241 = vmul.f32 %v533, %v2240
        %v2242 = vmul.f32 %v534, %v2240
        %v2243 = vmul.f32 %v535, %v2240
        %v2244 = vmul.f32 %v536, %v2240
        %v2245 = vmul.f32 %v537, %v2240
        %v2246 = vmul.f32 %v538, %v2240
        %v2247 = vmul.f32 %v539, %v2240
        %v2248 = vmul.f32 %v540, %v2240
        %v2249 = vmul.f32 %v541, %v2240
        %v2250 = vadd.f32 %v2230, %v2241
        %v2251 = vadd.f32 %v2231, %v2242
        %v2252 = vadd.f32 %v2232, %v2243
        %v2253 = vadd.f32 %v2233, %v2244
        %v2254 = vadd.f32 %v2234, %v2245
        %v2255 = vadd.f32 %v2235, %v2246
        %v2256 = vadd.f32 %v2236, %v2247
        %v2257 = vadd.f32 %v2237, %v2248
        %v2258 = vadd.f32 %v2238, %v2249
        %s2259 = sld [smem:[#allocation8 + $0x107]]
        %v2260 = vstv %s2259
        %v2261 = vmul.f32 %v533, %v2260
        %v2262 = vmul.f32 %v534, %v2260
        %v2263 = vmul.f32 %v535, %v2260
        %v2264 = vmul.f32 %v536, %v2260
        %v2265 = vmul.f32 %v537, %v2260
        %v2266 = vmul.f32 %v538, %v2260
        %v2267 = vmul.f32 %v539, %v2260
        %v2268 = vmul.f32 %v540, %v2260
        %v2269 = vmul.f32 %v541, %v2260
        %2279 = vrot.lane.b32.xlu0 %v2261, 126
        %v2280 = vpop.permute.xlu0 %2279
        %2281 = vrot.lane.b32.xlu0 %v2262, 126
        %v2282 = vpop.permute.xlu0 %2281
        %2283 = vrot.lane.b32.xlu0 %v2263, 126
        %v2284 = vpop.permute.xlu0 %2283
        %2285 = vrot.lane.b32.xlu0 %v2264, 126
        %v2286 = vpop.permute.xlu0 %2285
        %2287 = vrot.lane.b32.xlu0 %v2265, 126
        %v2288 = vpop.permute.xlu0 %2287
        %2289 = vrot.lane.b32.xlu0 %v2266, 126
        %v2290 = vpop.permute.xlu0 %2289
        %2291 = vrot.lane.b32.xlu0 %v2267, 126
        %v2292 = vpop.permute.xlu0 %2291
        %2293 = vrot.lane.b32.xlu0 %v2268, 126
        %v2294 = vpop.permute.xlu0 %2293
        %2295 = vrot.lane.b32.xlu0 %v2269, 126
        %v2296 = vpop.permute.xlu0 %2295
        %v2297 = vsel %vm592, %v2280, %v2282
        %v2298 = vsel %vm592, %v2282, %v2284
        %v2299 = vsel %vm592, %v2284, %v2286
        %v2300 = vsel %vm592, %v2286, %v2288
        %v2301 = vsel %vm592, %v2288, %v2290
        %v2302 = vsel %vm592, %v2290, %v2292
        %v2303 = vsel %vm592, %v2292, %v2294
        %v2304 = vsel %vm592, %v2294, %v2296
        %v2314 = vadd.f32 %v2250, %v2297
        %v2315 = vadd.f32 %v2251, %v2298
        %v2316 = vadd.f32 %v2252, %v2299
        %v2317 = vadd.f32 %v2253, %v2300
        %v2318 = vadd.f32 %v2254, %v2301
        %v2319 = vadd.f32 %v2255, %v2302
        %v2320 = vadd.f32 %v2256, %v2303
        %v2321 = vadd.f32 %v2257, %v2304
        %v2322 = vadd.f32 %v2258, %v2296
        %s2323 = sld [smem:[#allocation8 + $0x108]]
        %v2324 = vstv %s2323
        %v2325 = vmul.f32 %v533, %v2324
        %v2326 = vmul.f32 %v534, %v2324
        %v2327 = vmul.f32 %v535, %v2324
        %v2328 = vmul.f32 %v536, %v2324
        %v2329 = vmul.f32 %v537, %v2324
        %v2330 = vmul.f32 %v538, %v2324
        %v2331 = vmul.f32 %v539, %v2324
        %v2332 = vmul.f32 %v540, %v2324
        %v2333 = vmul.f32 %v541, %v2324
        %2343 = vrot.lane.b32.xlu0 %v2325, 124
        %v2344 = vpop.permute.xlu0 %2343
        %2345 = vrot.lane.b32.xlu0 %v2326, 124
        %v2346 = vpop.permute.xlu0 %2345
        %2347 = vrot.lane.b32.xlu0 %v2327, 124
        %v2348 = vpop.permute.xlu0 %2347
        %2349 = vrot.lane.b32.xlu0 %v2328, 124
        %v2350 = vpop.permute.xlu0 %2349
        %2351 = vrot.lane.b32.xlu0 %v2329, 124
        %v2352 = vpop.permute.xlu0 %2351
        %2353 = vrot.lane.b32.xlu0 %v2330, 124
        %v2354 = vpop.permute.xlu0 %2353
        %2355 = vrot.lane.b32.xlu0 %v2331, 124
        %v2356 = vpop.permute.xlu0 %2355
        %2357 = vrot.lane.b32.xlu0 %v2332, 124
        %v2358 = vpop.permute.xlu0 %2357
        %2359 = vrot.lane.b32.xlu0 %v2333, 124
        %v2360 = vpop.permute.xlu0 %2359
        %v2361 = vsel %vm657, %v2344, %v2346
        %v2362 = vsel %vm657, %v2346, %v2348
        %v2363 = vsel %vm657, %v2348, %v2350
        %v2364 = vsel %vm657, %v2350, %v2352
        %v2365 = vsel %vm657, %v2352, %v2354
        %v2366 = vsel %vm657, %v2354, %v2356
        %v2367 = vsel %vm657, %v2356, %v2358
        %v2368 = vsel %vm657, %v2358, %v2360
        %v2378 = vadd.f32 %v2314, %v2361
        %v2379 = vadd.f32 %v2315, %v2362
        %v2380 = vadd.f32 %v2316, %v2363
        %v2381 = vadd.f32 %v2317, %v2364
        %v2382 = vadd.f32 %v2318, %v2365
        %v2383 = vadd.f32 %v2319, %v2366
        %v2384 = vadd.f32 %v2320, %v2367
        %v2385 = vadd.f32 %v2321, %v2368
        %v2386 = vadd.f32 %v2322, %v2360
        %s2387 = sld [smem:[#allocation10 + $0x2]]
        %v2388 = vstv %s2387
        %v2389 = vadd.f32 %v2378, %v2388
        %v2390 = vadd.f32 %v2379, %v2388
        %v2391 = vadd.f32 %v2380, %v2388
        %v2392 = vadd.f32 %v2381, %v2388
        %v2393 = vadd.f32 %v2382, %v2388
        %v2394 = vadd.f32 %v2383, %v2388
        %v2395 = vadd.f32 %v2384, %v2388
        %v2396 = vadd.f32 %v2385, %v2388
        %v2397 = vadd.f32 %v2386, %v2388
        %v2398 = vmax.f32 %v2389, 0.0
        %v2399 = vmax.f32 %v2390, 0.0
        %v2400 = vmax.f32 %v2391, 0.0
        %v2401 = vmax.f32 %v2392, 0.0
        %v2402 = vmax.f32 %v2393, 0.0
        %v2403 = vmax.f32 %v2394, 0.0
        %v2404 = vmax.f32 %v2395, 0.0
        %v2405 = vmax.f32 %v2396, 0.0
        %v2406 = vmax.f32 %v2397, 0.0
        %2416 = vrot.lane.b32.xlu0 %v2398, 66
        %v2417 = vpop.permute.xlu0 %2416
        %2418 = vrot.lane.b32.xlu0 %v2399, 66
        %v2419 = vpop.permute.xlu0 %2418
        %2420 = vrot.lane.b32.xlu0 %v2400, 66
        %v2421 = vpop.permute.xlu0 %2420
        %2422 = vrot.lane.b32.xlu0 %v2401, 66
        %v2423 = vpop.permute.xlu0 %2422
        %2424 = vrot.lane.b32.xlu0 %v2402, 66
        %v2425 = vpop.permute.xlu0 %2424
        %2426 = vrot.lane.b32.xlu0 %v2403, 66
        %v2427 = vpop.permute.xlu0 %2426
        %2428 = vrot.lane.b32.xlu0 %v2404, 66
        %v2429 = vpop.permute.xlu0 %2428
        %2430 = vrot.lane.b32.xlu0 %v2405, 66
        %v2431 = vpop.permute.xlu0 %2430
        %2432 = vrot.lane.b32.xlu0 %v2406, 66
        %v2433 = vpop.permute.xlu0 %2432
        %v2434 = vsel %vm1069, %v2417, %v2419
        %v2435 = vsel %vm1069, %v2419, %v2421
        %v2436 = vsel %vm1069, %v2421, %v2423
        %v2437 = vsel %vm1069, %v2423, %v2425
        %v2438 = vsel %vm1069, %v2425, %v2427
        %v2439 = vsel %vm1069, %v2427, %v2429
        %v2440 = vsel %vm1069, %v2429, %v2431
        %v2441 = vsel %vm1069, %v2431, %v2433
        %2450 = vst [vmem:[#allocation3] sm:$0xff] %v2434
        %2451 = vst [vmem:[#allocation3 + $0x8] sm:$0xff] %v2435
        %2452 = vst [vmem:[#allocation3 + $0x10] sm:$0xff] %v2436
        %2453 = vst [vmem:[#allocation3 + $0x18] sm:$0xff] %v2437
        %2454 = vst [vmem:[#allocation3 + $0x20] sm:$0xff] %v2438
        %2455 = vst [vmem:[#allocation3 + $0x28] sm:$0xff] %v2439
        %2456 = vst [vmem:[#allocation3 + $0x30] sm:$0xff] %v2440
        %2457 = vst [vmem:[#allocation3 + $0x38] sm:$0xff] %v2441
        %v2458 = vld [vmem:[#allocation3] sm:$0xff]
        %v2459 = vld [vmem:[#allocation3 + $0x8] sm:$0xff]
        %v2460 = vld [vmem:[#allocation3 + $0x10] sm:$0xff]
        %v2461 = vld [vmem:[#allocation3 + $0x18] sm:$0xff]
        %v2462 = vld [vmem:[#allocation3 + $0x20] sm:$0xff]
        %v2463 = vld [vmem:[#allocation3 + $0x28] sm:$0xff]
        %v2464 = vld [vmem:[#allocation3 + $0x30] sm:$0xff]
        %v2465 = vld [vmem:[#allocation3 + $0x38] sm:$0xff]
        %v2466 = vld [vmem:[#allocation3] sm:$0xff]
        %v2467 = vld [vmem:[#allocation3 + $0x8] sm:$0xff]
        %v2468 = vld [vmem:[#allocation3 + $0x10] sm:$0xff]
        %v2469 = vld [vmem:[#allocation3 + $0x18] sm:$0xff]
        %v2470 = vld [vmem:[#allocation3 + $0x20] sm:$0xff]
        %v2471 = vld [vmem:[#allocation3 + $0x28] sm:$0xff]
        %v2472 = vld [vmem:[#allocation3 + $0x30] sm:$0xff]
        %v2473 = vld [vmem:[#allocation3 + $0x38] sm:$0xff]
        %v2474 = vld [vmem:[#allocation3 + $0x40] sm:$0xff]
        %2484 = vrot.lane.b32.xlu0 %v2466, 126
        %v2485 = vpop.permute.xlu0 %2484
        %2486 = vrot.lane.b32.xlu0 %v2467, 126
        %v2487 = vpop.permute.xlu0 %2486
        %2488 = vrot.lane.b32.xlu0 %v2468, 126
        %v2489 = vpop.permute.xlu0 %2488
        %2490 = vrot.lane.b32.xlu0 %v2469, 126
        %v2491 = vpop.permute.xlu0 %2490
        %2492 = vrot.lane.b32.xlu0 %v2470, 126
        %v2493 = vpop.permute.xlu0 %2492
        %2494 = vrot.lane.b32.xlu0 %v2471, 126
        %v2495 = vpop.permute.xlu0 %2494
        %2496 = vrot.lane.b32.xlu0 %v2472, 126
        %v2497 = vpop.permute.xlu0 %2496
        %2498 = vrot.lane.b32.xlu0 %v2473, 126
        %v2499 = vpop.permute.xlu0 %2498
        %2500 = vrot.lane.b32.xlu0 %v2474, 126
        %v2501 = vpop.permute.xlu0 %2500
        %v2502 = vsel %vm592, %v2485, %v2487
        %v2503 = vsel %vm592, %v2487, %v2489
        %v2504 = vsel %vm592, %v2489, %v2491
        %v2505 = vsel %vm592, %v2491, %v2493
        %v2506 = vsel %vm592, %v2493, %v2495
        %v2507 = vsel %vm592, %v2495, %v2497
        %v2508 = vsel %vm592, %v2497, %v2499
        %v2509 = vsel %vm592, %v2499, %v2501
        %v2518 = vmax.f32 %v2458, %v2502
        %v2519 = vmax.f32 %v2459, %v2503
        %v2520 = vmax.f32 %v2460, %v2504
        %v2521 = vmax.f32 %v2461, %v2505
        %v2522 = vmax.f32 %v2462, %v2506
        %v2523 = vmax.f32 %v2463, %v2507
        %v2524 = vmax.f32 %v2464, %v2508
        %v2525 = vmax.f32 %v2465, %v2509
        %v2527 = vmax.f32 %v2466, %v2502
        %v2528 = vmax.f32 %v2467, %v2503
        %v2529 = vmax.f32 %v2468, %v2504
        %v2530 = vmax.f32 %v2469, %v2505
        %v2531 = vmax.f32 %v2470, %v2506
        %v2532 = vmax.f32 %v2471, %v2507
        %v2533 = vmax.f32 %v2472, %v2508
        %v2534 = vmax.f32 %v2473, %v2509
        %v2535 = vmax.f32 %v2474, %v2501
        %2545 = vrot.lane.b32.xlu0 %v2527, 64
        %v2546 = vpop.permute.xlu0 %2545
        %2547 = vrot.lane.b32.xlu0 %v2528, 64
        %v2548 = vpop.permute.xlu0 %2547
        %2549 = vrot.lane.b32.xlu0 %v2529, 64
        %v2550 = vpop.permute.xlu0 %2549
        %2551 = vrot.lane.b32.xlu0 %v2530, 64
        %v2552 = vpop.permute.xlu0 %2551
        %2553 = vrot.lane.b32.xlu0 %v2531, 64
        %v2554 = vpop.permute.xlu0 %2553
        %2555 = vrot.lane.b32.xlu0 %v2532, 64
        %v2556 = vpop.permute.xlu0 %2555
        %2557 = vrot.lane.b32.xlu0 %v2533, 64
        %v2558 = vpop.permute.xlu0 %2557
        %2559 = vrot.lane.b32.xlu0 %v2534, 64
        %v2560 = vpop.permute.xlu0 %2559
        %2561 = vrot.lane.b32.xlu0 %v2535, 64
        %v2562 = vpop.permute.xlu0 %2561
        %v2563 = vsel %vm722, %v2546, %v2548
        %v2564 = vsel %vm722, %v2548, %v2550
        %v2565 = vsel %vm722, %v2550, %v2552
        %v2566 = vsel %vm722, %v2552, %v2554
        %v2567 = vsel %vm722, %v2554, %v2556
        %v2568 = vsel %vm722, %v2556, %v2558
        %v2569 = vsel %vm722, %v2558, %v2560
        %v2570 = vsel %vm722, %v2560, %v2562
        %v2579 = vmax.f32 %v2518, %v2563
        %v2580 = vmax.f32 %v2519, %v2564
        %v2581 = vmax.f32 %v2520, %v2565
        %v2582 = vmax.f32 %v2521, %v2566
        %v2583 = vmax.f32 %v2522, %v2567
        %v2584 = vmax.f32 %v2523, %v2568
        %v2585 = vmax.f32 %v2524, %v2569
        %v2586 = vmax.f32 %v2525, %v2570
        %2587 = vst [vmem:[#allocation4 + $0x80] sm:$0xff] %v2579
        %2588 = vst [vmem:[#allocation4 + $0x88] sm:$0xff] %v2580
        %2589 = vst [vmem:[#allocation4 + $0x90] sm:$0xff] %v2581
        %2590 = vst [vmem:[#allocation4 + $0x98] sm:$0xff] %v2582
        %2591 = vst [vmem:[#allocation4 + $0xa0] sm:$0xff] %v2583
        %2592 = vst [vmem:[#allocation4 + $0xa8] sm:$0xff] %v2584
        %2593 = vst [vmem:[#allocation4 + $0xb0] sm:$0xff] %v2585
        %2594 = vst [vmem:[#allocation4 + $0xb8] sm:$0xff] %v2586
        %s2595 = sld [smem:[#allocation8 + $0x180]]
        %v2596 = vstv %s2595
        %v2597 = vmul.f32 %v524, %v2596
        %v2598 = vmul.f32 %v525, %v2596
        %v2599 = vmul.f32 %v526, %v2596
        %v2600 = vmul.f32 %v527, %v2596
        %v2601 = vmul.f32 %v528, %v2596
        %v2602 = vmul.f32 %v529, %v2596
        %v2603 = vmul.f32 %v530, %v2596
        %v2604 = vmul.f32 %v531, %v2596
        %v2605 = vmul.f32 %v532, %v2596
        %s2606 = sld [smem:[#allocation8 + $0x181]]
        %v2607 = vstv %s2606
        %v2608 = vmul.f32 %v524, %v2607
        %v2609 = vmul.f32 %v525, %v2607
        %v2610 = vmul.f32 %v526, %v2607
        %v2611 = vmul.f32 %v527, %v2607
        %v2612 = vmul.f32 %v528, %v2607
        %v2613 = vmul.f32 %v529, %v2607
        %v2614 = vmul.f32 %v530, %v2607
        %v2615 = vmul.f32 %v531, %v2607
        %v2616 = vmul.f32 %v532, %v2607
        %2626 = vrot.lane.b32.xlu0 %v2608, 126
        %v2627 = vpop.permute.xlu0 %2626
        %2628 = vrot.lane.b32.xlu0 %v2609, 126
        %v2629 = vpop.permute.xlu0 %2628
        %2630 = vrot.lane.b32.xlu0 %v2610, 126
        %v2631 = vpop.permute.xlu0 %2630
        %2632 = vrot.lane.b32.xlu0 %v2611, 126
        %v2633 = vpop.permute.xlu0 %2632
        %2634 = vrot.lane.b32.xlu0 %v2612, 126
        %v2635 = vpop.permute.xlu0 %2634
        %2636 = vrot.lane.b32.xlu0 %v2613, 126
        %v2637 = vpop.permute.xlu0 %2636
        %2638 = vrot.lane.b32.xlu0 %v2614, 126
        %v2639 = vpop.permute.xlu0 %2638
        %2640 = vrot.lane.b32.xlu0 %v2615, 126
        %v2641 = vpop.permute.xlu0 %2640
        %2642 = vrot.lane.b32.xlu0 %v2616, 126
        %v2643 = vpop.permute.xlu0 %2642
        %v2644 = vsel %vm592, %v2627, %v2629
        %v2645 = vsel %vm592, %v2629, %v2631
        %v2646 = vsel %vm592, %v2631, %v2633
        %v2647 = vsel %vm592, %v2633, %v2635
        %v2648 = vsel %vm592, %v2635, %v2637
        %v2649 = vsel %vm592, %v2637, %v2639
        %v2650 = vsel %vm592, %v2639, %v2641
        %v2651 = vsel %vm592, %v2641, %v2643
        %v2661 = vadd.f32 %v2597, %v2644
        %v2662 = vadd.f32 %v2598, %v2645
        %v2663 = vadd.f32 %v2599, %v2646
        %v2664 = vadd.f32 %v2600, %v2647
        %v2665 = vadd.f32 %v2601, %v2648
        %v2666 = vadd.f32 %v2602, %v2649
        %v2667 = vadd.f32 %v2603, %v2650
        %v2668 = vadd.f32 %v2604, %v2651
        %v2669 = vadd.f32 %v2605, %v2643
        %s2670 = sld [smem:[#allocation8 + $0x182]]
        %v2671 = vstv %s2670
        %v2672 = vmul.f32 %v524, %v2671
        %v2673 = vmul.f32 %v525, %v2671
        %v2674 = vmul.f32 %v526, %v2671
        %v2675 = vmul.f32 %v527, %v2671
        %v2676 = vmul.f32 %v528, %v2671
        %v2677 = vmul.f32 %v529, %v2671
        %v2678 = vmul.f32 %v530, %v2671
        %v2679 = vmul.f32 %v531, %v2671
        %v2680 = vmul.f32 %v532, %v2671
        %2690 = vrot.lane.b32.xlu0 %v2672, 124
        %v2691 = vpop.permute.xlu0 %2690
        %2692 = vrot.lane.b32.xlu0 %v2673, 124
        %v2693 = vpop.permute.xlu0 %2692
        %2694 = vrot.lane.b32.xlu0 %v2674, 124
        %v2695 = vpop.permute.xlu0 %2694
        %2696 = vrot.lane.b32.xlu0 %v2675, 124
        %v2697 = vpop.permute.xlu0 %2696
        %2698 = vrot.lane.b32.xlu0 %v2676, 124
        %v2699 = vpop.permute.xlu0 %2698
        %2700 = vrot.lane.b32.xlu0 %v2677, 124
        %v2701 = vpop.permute.xlu0 %2700
        %2702 = vrot.lane.b32.xlu0 %v2678, 124
        %v2703 = vpop.permute.xlu0 %2702
        %2704 = vrot.lane.b32.xlu0 %v2679, 124
        %v2705 = vpop.permute.xlu0 %2704
        %2706 = vrot.lane.b32.xlu0 %v2680, 124
        %v2707 = vpop.permute.xlu0 %2706
        %v2708 = vsel %vm657, %v2691, %v2693
        %v2709 = vsel %vm657, %v2693, %v2695
        %v2710 = vsel %vm657, %v2695, %v2697
        %v2711 = vsel %vm657, %v2697, %v2699
        %v2712 = vsel %vm657, %v2699, %v2701
        %v2713 = vsel %vm657, %v2701, %v2703
        %v2714 = vsel %vm657, %v2703, %v2705
        %v2715 = vsel %vm657, %v2705, %v2707
        %v2725 = vadd.f32 %v2661, %v2708
        %v2726 = vadd.f32 %v2662, %v2709
        %v2727 = vadd.f32 %v2663, %v2710
        %v2728 = vadd.f32 %v2664, %v2711
        %v2729 = vadd.f32 %v2665, %v2712
        %v2730 = vadd.f32 %v2666, %v2713
        %v2731 = vadd.f32 %v2667, %v2714
        %v2732 = vadd.f32 %v2668, %v2715
        %v2733 = vadd.f32 %v2669, %v2707
        %s2734 = sld [smem:[#allocation8 + $0x183]]
        %v2735 = vstv %s2734
        %v2736 = vmul.f32 %v524, %v2735
        %v2737 = vmul.f32 %v525, %v2735
        %v2738 = vmul.f32 %v526, %v2735
        %v2739 = vmul.f32 %v527, %v2735
        %v2740 = vmul.f32 %v528, %v2735
        %v2741 = vmul.f32 %v529, %v2735
        %v2742 = vmul.f32 %v530, %v2735
        %v2743 = vmul.f32 %v531, %v2735
        %v2744 = vmul.f32 %v532, %v2735
        %2754 = vrot.lane.b32.xlu0 %v2736, 64
        %v2755 = vpop.permute.xlu0 %2754
        %2756 = vrot.lane.b32.xlu0 %v2737, 64
        %v2757 = vpop.permute.xlu0 %2756
        %2758 = vrot.lane.b32.xlu0 %v2738, 64
        %v2759 = vpop.permute.xlu0 %2758
        %2760 = vrot.lane.b32.xlu0 %v2739, 64
        %v2761 = vpop.permute.xlu0 %2760
        %2762 = vrot.lane.b32.xlu0 %v2740, 64
        %v2763 = vpop.permute.xlu0 %2762
        %2764 = vrot.lane.b32.xlu0 %v2741, 64
        %v2765 = vpop.permute.xlu0 %2764
        %2766 = vrot.lane.b32.xlu0 %v2742, 64
        %v2767 = vpop.permute.xlu0 %2766
        %2768 = vrot.lane.b32.xlu0 %v2743, 64
        %v2769 = vpop.permute.xlu0 %2768
        %2770 = vrot.lane.b32.xlu0 %v2744, 64
        %v2771 = vpop.permute.xlu0 %2770
        %v2772 = vsel %vm722, %v2755, %v2757
        %v2773 = vsel %vm722, %v2757, %v2759
        %v2774 = vsel %vm722, %v2759, %v2761
        %v2775 = vsel %vm722, %v2761, %v2763
        %v2776 = vsel %vm722, %v2763, %v2765
        %v2777 = vsel %vm722, %v2765, %v2767
        %v2778 = vsel %vm722, %v2767, %v2769
        %v2779 = vsel %vm722, %v2769, %v2771
        %v2789 = vadd.f32 %v2725, %v2772
        %v2790 = vadd.f32 %v2726, %v2773
        %v2791 = vadd.f32 %v2727, %v2774
        %v2792 = vadd.f32 %v2728, %v2775
        %v2793 = vadd.f32 %v2729, %v2776
        %v2794 = vadd.f32 %v2730, %v2777
        %v2795 = vadd.f32 %v2731, %v2778
        %v2796 = vadd.f32 %v2732, %v2779
        %v2797 = vadd.f32 %v2733, %v2771
        %s2798 = sld [smem:[#allocation8 + $0x184]]
        %v2799 = vstv %s2798
        %v2800 = vmul.f32 %v525, %v2799
        %v2801 = vmul.f32 %v526, %v2799
        %v2802 = vmul.f32 %v527, %v2799
        %v2803 = vmul.f32 %v528, %v2799
        %v2804 = vmul.f32 %v529, %v2799
        %v2805 = vmul.f32 %v530, %v2799
        %v2806 = vmul.f32 %v531, %v2799
        %v2807 = vmul.f32 %v532, %v2799
        %2816 = vrot.lane.b32.xlu0 %v2800, 62
        %v2817 = vpop.permute.xlu0 %2816
        %2818 = vrot.lane.b32.xlu0 %v2801, 62
        %v2819 = vpop.permute.xlu0 %2818
        %2820 = vrot.lane.b32.xlu0 %v2802, 62
        %v2821 = vpop.permute.xlu0 %2820
        %2822 = vrot.lane.b32.xlu0 %v2803, 62
        %v2823 = vpop.permute.xlu0 %2822
        %2824 = vrot.lane.b32.xlu0 %v2804, 62
        %v2825 = vpop.permute.xlu0 %2824
        %2826 = vrot.lane.b32.xlu0 %v2805, 62
        %v2827 = vpop.permute.xlu0 %2826
        %2828 = vrot.lane.b32.xlu0 %v2806, 62
        %v2829 = vpop.permute.xlu0 %2828
        %2830 = vrot.lane.b32.xlu0 %v2807, 62
        %v2831 = vpop.permute.xlu0 %2830
        %v2832 = vsel %vm783, %v2817, %v2819
        %v2833 = vsel %vm783, %v2819, %v2821
        %v2834 = vsel %vm783, %v2821, %v2823
        %v2835 = vsel %vm783, %v2823, %v2825
        %v2836 = vsel %vm783, %v2825, %v2827
        %v2837 = vsel %vm783, %v2827, %v2829
        %v2838 = vsel %vm783, %v2829, %v2831
        %v2848 = vadd.f32 %v2789, %v2817
        %v2849 = vadd.f32 %v2790, %v2832
        %v2850 = vadd.f32 %v2791, %v2833
        %v2851 = vadd.f32 %v2792, %v2834
        %v2852 = vadd.f32 %v2793, %v2835
        %v2853 = vadd.f32 %v2794, %v2836
        %v2854 = vadd.f32 %v2795, %v2837
        %v2855 = vadd.f32 %v2796, %v2838
        %v2856 = vadd.f32 %v2797, %v2831
        %s2857 = sld [smem:[#allocation8 + $0x185]]
        %v2858 = vstv %s2857
        %v2859 = vmul.f32 %v533, %v2858
        %v2860 = vmul.f32 %v534, %v2858
        %v2861 = vmul.f32 %v535, %v2858
        %v2862 = vmul.f32 %v536, %v2858
        %v2863 = vmul.f32 %v537, %v2858
        %v2864 = vmul.f32 %v538, %v2858
        %v2865 = vmul.f32 %v539, %v2858
        %v2866 = vmul.f32 %v540, %v2858
        %v2867 = vmul.f32 %v541, %v2858
        %2877 = vrot.lane.b32.xlu0 %v2859, 60
        %v2878 = vpop.permute.xlu0 %2877
        %2879 = vrot.lane.b32.xlu0 %v2860, 60
        %v2880 = vpop.permute.xlu0 %2879
        %2881 = vrot.lane.b32.xlu0 %v2861, 60
        %v2882 = vpop.permute.xlu0 %2881
        %2883 = vrot.lane.b32.xlu0 %v2862, 60
        %v2884 = vpop.permute.xlu0 %2883
        %2885 = vrot.lane.b32.xlu0 %v2863, 60
        %v2886 = vpop.permute.xlu0 %2885
        %2887 = vrot.lane.b32.xlu0 %v2864, 60
        %v2888 = vpop.permute.xlu0 %2887
        %2889 = vrot.lane.b32.xlu0 %v2865, 60
        %v2890 = vpop.permute.xlu0 %2889
        %2891 = vrot.lane.b32.xlu0 %v2866, 60
        %v2892 = vpop.permute.xlu0 %2891
        %2893 = vrot.lane.b32.xlu0 %v2867, 60
        %v2894 = vpop.permute.xlu0 %2893
        %v2895 = vsel %vm847, %v2878, %v2880
        %v2896 = vsel %vm847, %v2880, %v2882
        %v2897 = vsel %vm847, %v2882, %v2884
        %v2898 = vsel %vm847, %v2884, %v2886
        %v2899 = vsel %vm847, %v2886, %v2888
        %v2900 = vsel %vm847, %v2888, %v2890
        %v2901 = vsel %vm847, %v2890, %v2892
        %v2902 = vsel %vm847, %v2892, %v2894
        %v2912 = vadd.f32 %v2848, %v2878
        %v2913 = vadd.f32 %v2849, %v2895
        %v2914 = vadd.f32 %v2850, %v2896
        %v2915 = vadd.f32 %v2851, %v2897
        %v2916 = vadd.f32 %v2852, %v2898
        %v2917 = vadd.f32 %v2853, %v2899
        %v2918 = vadd.f32 %v2854, %v2900
        %v2919 = vadd.f32 %v2855, %v2901
        %v2920 = vadd.f32 %v2856, %v2902
        %s2921 = sld [smem:[#allocation8 + $0x186]]
        %v2922 = vstv %s2921
        %v2923 = vmul.f32 %v533, %v2922
        %v2924 = vmul.f32 %v534, %v2922
        %v2925 = vmul.f32 %v535, %v2922
        %v2926 = vmul.f32 %v536, %v2922
        %v2927 = vmul.f32 %v537, %v2922
        %v2928 = vmul.f32 %v538, %v2922
        %v2929 = vmul.f32 %v539, %v2922
        %v2930 = vmul.f32 %v540, %v2922
        %v2931 = vmul.f32 %v541, %v2922
        %v2932 = vadd.f32 %v2912, %v2923
        %v2933 = vadd.f32 %v2913, %v2924
        %v2934 = vadd.f32 %v2914, %v2925
        %v2935 = vadd.f32 %v2915, %v2926
        %v2936 = vadd.f32 %v2916, %v2927
        %v2937 = vadd.f32 %v2917, %v2928
        %v2938 = vadd.f32 %v2918, %v2929
        %v2939 = vadd.f32 %v2919, %v2930
        %v2940 = vadd.f32 %v2920, %v2931
        %s2941 = sld [smem:[#allocation8 + $0x187]]
        %v2942 = vstv %s2941
        %v2943 = vmul.f32 %v533, %v2942
        %v2944 = vmul.f32 %v534, %v2942
        %v2945 = vmul.f32 %v535, %v2942
        %v2946 = vmul.f32 %v536, %v2942
        %v2947 = vmul.f32 %v537, %v2942
        %v2948 = vmul.f32 %v538, %v2942
        %v2949 = vmul.f32 %v539, %v2942
        %v2950 = vmul.f32 %v540, %v2942
        %v2951 = vmul.f32 %v541, %v2942
        %2961 = vrot.lane.b32.xlu0 %v2943, 126
        %v2962 = vpop.permute.xlu0 %2961
        %2963 = vrot.lane.b32.xlu0 %v2944, 126
        %v2964 = vpop.permute.xlu0 %2963
        %2965 = vrot.lane.b32.xlu0 %v2945, 126
        %v2966 = vpop.permute.xlu0 %2965
        %2967 = vrot.lane.b32.xlu0 %v2946, 126
        %v2968 = vpop.permute.xlu0 %2967
        %2969 = vrot.lane.b32.xlu0 %v2947, 126
        %v2970 = vpop.permute.xlu0 %2969
        %2971 = vrot.lane.b32.xlu0 %v2948, 126
        %v2972 = vpop.permute.xlu0 %2971
        %2973 = vrot.lane.b32.xlu0 %v2949, 126
        %v2974 = vpop.permute.xlu0 %2973
        %2975 = vrot.lane.b32.xlu0 %v2950, 126
        %v2976 = vpop.permute.xlu0 %2975
        %2977 = vrot.lane.b32.xlu0 %v2951, 126
        %v2978 = vpop.permute.xlu0 %2977
        %v2979 = vsel %vm592, %v2962, %v2964
        %v2980 = vsel %vm592, %v2964, %v2966
        %v2981 = vsel %vm592, %v2966, %v2968
        %v2982 = vsel %vm592, %v2968, %v2970
        %v2983 = vsel %vm592, %v2970, %v2972
        %v2984 = vsel %vm592, %v2972, %v2974
        %v2985 = vsel %vm592, %v2974, %v2976
        %v2986 = vsel %vm592, %v2976, %v2978
        %v2996 = vadd.f32 %v2932, %v2979
        %v2997 = vadd.f32 %v2933, %v2980
        %v2998 = vadd.f32 %v2934, %v2981
        %v2999 = vadd.f32 %v2935, %v2982
        %v3000 = vadd.f32 %v2936, %v2983
        %v3001 = vadd.f32 %v2937, %v2984
        %v3002 = vadd.f32 %v2938, %v2985
        %v3003 = vadd.f32 %v2939, %v2986
        %v3004 = vadd.f32 %v2940, %v2978
        %s3005 = sld [smem:[#allocation8 + $0x188]]
        %v3006 = vstv %s3005
        %v3007 = vmul.f32 %v533, %v3006
        %v3008 = vmul.f32 %v534, %v3006
        %v3009 = vmul.f32 %v535, %v3006
        %v3010 = vmul.f32 %v536, %v3006
        %v3011 = vmul.f32 %v537, %v3006
        %v3012 = vmul.f32 %v538, %v3006
        %v3013 = vmul.f32 %v539, %v3006
        %v3014 = vmul.f32 %v540, %v3006
        %v3015 = vmul.f32 %v541, %v3006
        %3025 = vrot.lane.b32.xlu0 %v3007, 124
        %v3026 = vpop.permute.xlu0 %3025
        %3027 = vrot.lane.b32.xlu0 %v3008, 124
        %v3028 = vpop.permute.xlu0 %3027
        %3029 = vrot.lane.b32.xlu0 %v3009, 124
        %v3030 = vpop.permute.xlu0 %3029
        %3031 = vrot.lane.b32.xlu0 %v3010, 124
        %v3032 = vpop.permute.xlu0 %3031
        %3033 = vrot.lane.b32.xlu0 %v3011, 124
        %v3034 = vpop.permute.xlu0 %3033
        %3035 = vrot.lane.b32.xlu0 %v3012, 124
        %v3036 = vpop.permute.xlu0 %3035
        %3037 = vrot.lane.b32.xlu0 %v3013, 124
        %v3038 = vpop.permute.xlu0 %3037
        %3039 = vrot.lane.b32.xlu0 %v3014, 124
        %v3040 = vpop.permute.xlu0 %3039
        %3041 = vrot.lane.b32.xlu0 %v3015, 124
        %v3042 = vpop.permute.xlu0 %3041
        %v3043 = vsel %vm657, %v3026, %v3028
        %v3044 = vsel %vm657, %v3028, %v3030
        %v3045 = vsel %vm657, %v3030, %v3032
        %v3046 = vsel %vm657, %v3032, %v3034
        %v3047 = vsel %vm657, %v3034, %v3036
        %v3048 = vsel %vm657, %v3036, %v3038
        %v3049 = vsel %vm657, %v3038, %v3040
        %v3050 = vsel %vm657, %v3040, %v3042
        %v3060 = vadd.f32 %v2996, %v3043
        %v3061 = vadd.f32 %v2997, %v3044
        %v3062 = vadd.f32 %v2998, %v3045
        %v3063 = vadd.f32 %v2999, %v3046
        %v3064 = vadd.f32 %v3000, %v3047
        %v3065 = vadd.f32 %v3001, %v3048
        %v3066 = vadd.f32 %v3002, %v3049
        %v3067 = vadd.f32 %v3003, %v3050
        %v3068 = vadd.f32 %v3004, %v3042
        %s3069 = sld [smem:[#allocation10 + $0x3]]
        %v3070 = vstv %s3069
        %v3071 = vadd.f32 %v3060, %v3070
        %v3072 = vadd.f32 %v3061, %v3070
        %v3073 = vadd.f32 %v3062, %v3070
        %v3074 = vadd.f32 %v3063, %v3070
        %v3075 = vadd.f32 %v3064, %v3070
        %v3076 = vadd.f32 %v3065, %v3070
        %v3077 = vadd.f32 %v3066, %v3070
        %v3078 = vadd.f32 %v3067, %v3070
        %v3079 = vadd.f32 %v3068, %v3070
        %v3080 = vmax.f32 %v3071, 0.0
        %v3081 = vmax.f32 %v3072, 0.0
        %v3082 = vmax.f32 %v3073, 0.0
        %v3083 = vmax.f32 %v3074, 0.0
        %v3084 = vmax.f32 %v3075, 0.0
        %v3085 = vmax.f32 %v3076, 0.0
        %v3086 = vmax.f32 %v3077, 0.0
        %v3087 = vmax.f32 %v3078, 0.0
        %v3088 = vmax.f32 %v3079, 0.0
        %3098 = vrot.lane.b32.xlu0 %v3080, 66
        %v3099 = vpop.permute.xlu0 %3098
        %3100 = vrot.lane.b32.xlu0 %v3081, 66
        %v3101 = vpop.permute.xlu0 %3100
        %3102 = vrot.lane.b32.xlu0 %v3082, 66
        %v3103 = vpop.permute.xlu0 %3102
        %3104 = vrot.lane.b32.xlu0 %v3083, 66
        %v3105 = vpop.permute.xlu0 %3104
        %3106 = vrot.lane.b32.xlu0 %v3084, 66
        %v3107 = vpop.permute.xlu0 %3106
        %3108 = vrot.lane.b32.xlu0 %v3085, 66
        %v3109 = vpop.permute.xlu0 %3108
        %3110 = vrot.lane.b32.xlu0 %v3086, 66
        %v3111 = vpop.permute.xlu0 %3110
        %3112 = vrot.lane.b32.xlu0 %v3087, 66
        %v3113 = vpop.permute.xlu0 %3112
        %3114 = vrot.lane.b32.xlu0 %v3088, 66
        %v3115 = vpop.permute.xlu0 %3114
        %v3116 = vsel %vm1069, %v3099, %v3101
        %v3117 = vsel %vm1069, %v3101, %v3103
        %v3118 = vsel %vm1069, %v3103, %v3105
        %v3119 = vsel %vm1069, %v3105, %v3107
        %v3120 = vsel %vm1069, %v3107, %v3109
        %v3121 = vsel %vm1069, %v3109, %v3111
        %v3122 = vsel %vm1069, %v3111, %v3113
        %v3123 = vsel %vm1069, %v3113, %v3115
        %3132 = vst [vmem:[#allocation3] sm:$0xff] %v3116
        %3133 = vst [vmem:[#allocation3 + $0x8] sm:$0xff] %v3117
        %3134 = vst [vmem:[#allocation3 + $0x10] sm:$0xff] %v3118
        %3135 = vst [vmem:[#allocation3 + $0x18] sm:$0xff] %v3119
        %3136 = vst [vmem:[#allocation3 + $0x20] sm:$0xff] %v3120
        %3137 = vst [vmem:[#allocation3 + $0x28] sm:$0xff] %v3121
        %3138 = vst [vmem:[#allocation3 + $0x30] sm:$0xff] %v3122
        %3139 = vst [vmem:[#allocation3 + $0x38] sm:$0xff] %v3123
        %v3140 = vld [vmem:[#allocation3] sm:$0xff]
        %v3141 = vld [vmem:[#allocation3 + $0x8] sm:$0xff]
        %v3142 = vld [vmem:[#allocation3 + $0x10] sm:$0xff]
        %v3143 = vld [vmem:[#allocation3 + $0x18] sm:$0xff]
        %v3144 = vld [vmem:[#allocation3 + $0x20] sm:$0xff]
        %v3145 = vld [vmem:[#allocation3 + $0x28] sm:$0xff]
        %v3146 = vld [vmem:[#allocation3 + $0x30] sm:$0xff]
        %v3147 = vld [vmem:[#allocation3 + $0x38] sm:$0xff]
        %v3148 = vld [vmem:[#allocation3] sm:$0xff]
        %v3149 = vld [vmem:[#allocation3 + $0x8] sm:$0xff]
        %v3150 = vld [vmem:[#allocation3 + $0x10] sm:$0xff]
        %v3151 = vld [vmem:[#allocation3 + $0x18] sm:$0xff]
        %v3152 = vld [vmem:[#allocation3 + $0x20] sm:$0xff]
        %v3153 = vld [vmem:[#allocation3 + $0x28] sm:$0xff]
        %v3154 = vld [vmem:[#allocation3 + $0x30] sm:$0xff]
        %v3155 = vld [vmem:[#allocation3 + $0x38] sm:$0xff]
        %v3156 = vld [vmem:[#allocation3 + $0x40] sm:$0xff]
        %3166 = vrot.lane.b32.xlu0 %v3148, 126
        %v3167 = vpop.permute.xlu0 %3166
        %3168 = vrot.lane.b32.xlu0 %v3149, 126
        %v3169 = vpop.permute.xlu0 %3168
        %3170 = vrot.lane.b32.xlu0 %v3150, 126
        %v3171 = vpop.permute.xlu0 %3170
        %3172 = vrot.lane.b32.xlu0 %v3151, 126
        %v3173 = vpop.permute.xlu0 %3172
        %3174 = vrot.lane.b32.xlu0 %v3152, 126
        %v3175 = vpop.permute.xlu0 %3174
        %3176 = vrot.lane.b32.xlu0 %v3153, 126
        %v3177 = vpop.permute.xlu0 %3176
        %3178 = vrot.lane.b32.xlu0 %v3154, 126
        %v3179 = vpop.permute.xlu0 %3178
        %3180 = vrot.lane.b32.xlu0 %v3155, 126
        %v3181 = vpop.permute.xlu0 %3180
        %3182 = vrot.lane.b32.xlu0 %v3156, 126
        %v3183 = vpop.permute.xlu0 %3182
        %v3184 = vsel %vm592, %v3167, %v3169
        %v3185 = vsel %vm592, %v3169, %v3171
        %v3186 = vsel %vm592, %v3171, %v3173
        %v3187 = vsel %vm592, %v3173, %v3175
        %v3188 = vsel %vm592, %v3175, %v3177
        %v3189 = vsel %vm592, %v3177, %v3179
        %v3190 = vsel %vm592, %v3179, %v3181
        %v3191 = vsel %vm592, %v3181, %v3183
        %v3200 = vmax.f32 %v3140, %v3184
        %v3201 = vmax.f32 %v3141, %v3185
        %v3202 = vmax.f32 %v3142, %v3186
        %v3203 = vmax.f32 %v3143, %v3187
        %v3204 = vmax.f32 %v3144, %v3188
        %v3205 = vmax.f32 %v3145, %v3189
        %v3206 = vmax.f32 %v3146, %v3190
        %v3207 = vmax.f32 %v3147, %v3191
        %v3209 = vmax.f32 %v3148, %v3184
        %v3210 = vmax.f32 %v3149, %v3185
        %v3211 = vmax.f32 %v3150, %v3186
        %v3212 = vmax.f32 %v3151, %v3187
        %v3213 = vmax.f32 %v3152, %v3188
        %v3214 = vmax.f32 %v3153, %v3189
        %v3215 = vmax.f32 %v3154, %v3190
        %v3216 = vmax.f32 %v3155, %v3191
        %v3217 = vmax.f32 %v3156, %v3183
        %3227 = vrot.lane.b32.xlu0 %v3209, 64
        %v3228 = vpop.permute.xlu0 %3227
        %3229 = vrot.lane.b32.xlu0 %v3210, 64
        %v3230 = vpop.permute.xlu0 %3229
        %3231 = vrot.lane.b32.xlu0 %v3211, 64
        %v3232 = vpop.permute.xlu0 %3231
        %3233 = vrot.lane.b32.xlu0 %v3212, 64
        %v3234 = vpop.permute.xlu0 %3233
        %3235 = vrot.lane.b32.xlu0 %v3213, 64
        %v3236 = vpop.permute.xlu0 %3235
        %3237 = vrot.lane.b32.xlu0 %v3214, 64
        %v3238 = vpop.permute.xlu0 %3237
        %3239 = vrot.lane.b32.xlu0 %v3215, 64
        %v3240 = vpop.permute.xlu0 %3239
        %3241 = vrot.lane.b32.xlu0 %v3216, 64
        %v3242 = vpop.permute.xlu0 %3241
        %3243 = vrot.lane.b32.xlu0 %v3217, 64
        %v3244 = vpop.permute.xlu0 %3243
        %v3245 = vsel %vm722, %v3228, %v3230
        %v3246 = vsel %vm722, %v3230, %v3232
        %v3247 = vsel %vm722, %v3232, %v3234
        %v3248 = vsel %vm722, %v3234, %v3236
        %v3249 = vsel %vm722, %v3236, %v3238
        %v3250 = vsel %vm722, %v3238, %v3240
        %v3251 = vsel %vm722, %v3240, %v3242
        %v3252 = vsel %vm722, %v3242, %v3244
        %v3261 = vmax.f32 %v3200, %v3245
        %v3262 = vmax.f32 %v3201, %v3246
        %v3263 = vmax.f32 %v3202, %v3247
        %v3264 = vmax.f32 %v3203, %v3248
        %v3265 = vmax.f32 %v3204, %v3249
        %v3266 = vmax.f32 %v3205, %v3250
        %v3267 = vmax.f32 %v3206, %v3251
        %v3268 = vmax.f32 %v3207, %v3252
        %3269 = vst [vmem:[#allocation4 + $0xc0] sm:$0xff] %v3261
        %3270 = vst [vmem:[#allocation4 + $0xc8] sm:$0xff] %v3262
        %3271 = vst [vmem:[#allocation4 + $0xd0] sm:$0xff] %v3263
        %3272 = vst [vmem:[#allocation4 + $0xd8] sm:$0xff] %v3264
        %3273 = vst [vmem:[#allocation4 + $0xe0] sm:$0xff] %v3265
        %3274 = vst [vmem:[#allocation4 + $0xe8] sm:$0xff] %v3266
        %3275 = vst [vmem:[#allocation4 + $0xf0] sm:$0xff] %v3267
        %3276 = vst [vmem:[#allocation4 + $0xf8] sm:$0xff] %v3268
        %s3277 = sld [smem:[#allocation8 + $0x200]]
        %v3278 = vstv %s3277
        %v3279 = vmul.f32 %v524, %v3278
        %v3280 = vmul.f32 %v525, %v3278
        %v3281 = vmul.f32 %v526, %v3278
        %v3282 = vmul.f32 %v527, %v3278
        %v3283 = vmul.f32 %v528, %v3278
        %v3284 = vmul.f32 %v529, %v3278
        %v3285 = vmul.f32 %v530, %v3278
        %v3286 = vmul.f32 %v531, %v3278
        %v3287 = vmul.f32 %v532, %v3278
        %s3288 = sld [smem:[#allocation8 + $0x201]]
        %v3289 = vstv %s3288
        %v3290 = vmul.f32 %v524, %v3289
        %v3291 = vmul.f32 %v525, %v3289
        %v3292 = vmul.f32 %v526, %v3289
        %v3293 = vmul.f32 %v527, %v3289
        %v3294 = vmul.f32 %v528, %v3289
        %v3295 = vmul.f32 %v529, %v3289
        %v3296 = vmul.f32 %v530, %v3289
        %v3297 = vmul.f32 %v531, %v3289
        %v3298 = vmul.f32 %v532, %v3289
        %3308 = vrot.lane.b32.xlu0 %v3290, 126
        %v3309 = vpop.permute.xlu0 %3308
        %3310 = vrot.lane.b32.xlu0 %v3291, 126
        %v3311 = vpop.permute.xlu0 %3310
        %3312 = vrot.lane.b32.xlu0 %v3292, 126
        %v3313 = vpop.permute.xlu0 %3312
        %3314 = vrot.lane.b32.xlu0 %v3293, 126
        %v3315 = vpop.permute.xlu0 %3314
        %3316 = vrot.lane.b32.xlu0 %v3294, 126
        %v3317 = vpop.permute.xlu0 %3316
        %3318 = vrot.lane.b32.xlu0 %v3295, 126
        %v3319 = vpop.permute.xlu0 %3318
        %3320 = vrot.lane.b32.xlu0 %v3296, 126
        %v3321 = vpop.permute.xlu0 %3320
        %3322 = vrot.lane.b32.xlu0 %v3297, 126
        %v3323 = vpop.permute.xlu0 %3322
        %3324 = vrot.lane.b32.xlu0 %v3298, 126
        %v3325 = vpop.permute.xlu0 %3324
        %v3326 = vsel %vm592, %v3309, %v3311
        %v3327 = vsel %vm592, %v3311, %v3313
        %v3328 = vsel %vm592, %v3313, %v3315
        %v3329 = vsel %vm592, %v3315, %v3317
        %v3330 = vsel %vm592, %v3317, %v3319
        %v3331 = vsel %vm592, %v3319, %v3321
        %v3332 = vsel %vm592, %v3321, %v3323
        %v3333 = vsel %vm592, %v3323, %v3325
        %v3343 = vadd.f32 %v3279, %v3326
        %v3344 = vadd.f32 %v3280, %v3327
        %v3345 = vadd.f32 %v3281, %v3328
        %v3346 = vadd.f32 %v3282, %v3329
        %v3347 = vadd.f32 %v3283, %v3330
        %v3348 = vadd.f32 %v3284, %v3331
        %v3349 = vadd.f32 %v3285, %v3332
        %v3350 = vadd.f32 %v3286, %v3333
        %v3351 = vadd.f32 %v3287, %v3325
        %s3352 = sld [smem:[#allocation8 + $0x202]]
        %v3353 = vstv %s3352
        %v3354 = vmul.f32 %v524, %v3353
        %v3355 = vmul.f32 %v525, %v3353
        %v3356 = vmul.f32 %v526, %v3353
        %v3357 = vmul.f32 %v527, %v3353
        %v3358 = vmul.f32 %v528, %v3353
        %v3359 = vmul.f32 %v529, %v3353
        %v3360 = vmul.f32 %v530, %v3353
        %v3361 = vmul.f32 %v531, %v3353
        %v3362 = vmul.f32 %v532, %v3353
        %3372 = vrot.lane.b32.xlu0 %v3354, 124
        %v3373 = vpop.permute.xlu0 %3372
        %3374 = vrot.lane.b32.xlu0 %v3355, 124
        %v3375 = vpop.permute.xlu0 %3374
        %3376 = vrot.lane.b32.xlu0 %v3356, 124
        %v3377 = vpop.permute.xlu0 %3376
        %3378 = vrot.lane.b32.xlu0 %v3357, 124
        %v3379 = vpop.permute.xlu0 %3378
        %3380 = vrot.lane.b32.xlu0 %v3358, 124
        %v3381 = vpop.permute.xlu0 %3380
        %3382 = vrot.lane.b32.xlu0 %v3359, 124
        %v3383 = vpop.permute.xlu0 %3382
        %3384 = vrot.lane.b32.xlu0 %v3360, 124
        %v3385 = vpop.permute.xlu0 %3384
        %3386 = vrot.lane.b32.xlu0 %v3361, 124
        %v3387 = vpop.permute.xlu0 %3386
        %3388 = vrot.lane.b32.xlu0 %v3362, 124
        %v3389 = vpop.permute.xlu0 %3388
        %v3390 = vsel %vm657, %v3373, %v3375
        %v3391 = vsel %vm657, %v3375, %v3377
        %v3392 = vsel %vm657, %v3377, %v3379
        %v3393 = vsel %vm657, %v3379, %v3381
        %v3394 = vsel %vm657, %v3381, %v3383
        %v3395 = vsel %vm657, %v3383, %v3385
        %v3396 = vsel %vm657, %v3385, %v3387
        %v3397 = vsel %vm657, %v3387, %v3389
        %v3407 = vadd.f32 %v3343, %v3390
        %v3408 = vadd.f32 %v3344, %v3391
        %v3409 = vadd.f32 %v3345, %v3392
        %v3410 = vadd.f32 %v3346, %v3393
        %v3411 = vadd.f32 %v3347, %v3394
        %v3412 = vadd.f32 %v3348, %v3395
        %v3413 = vadd.f32 %v3349, %v3396
        %v3414 = vadd.f32 %v3350, %v3397
        %v3415 = vadd.f32 %v3351, %v3389
        %s3416 = sld [smem:[#allocation8 + $0x203]]
        %v3417 = vstv %s3416
        %v3418 = vmul.f32 %v524, %v3417
        %v3419 = vmul.f32 %v525, %v3417
        %v3420 = vmul.f32 %v526, %v3417
        %v3421 = vmul.f32 %v527, %v3417
        %v3422 = vmul.f32 %v528, %v3417
        %v3423 = vmul.f32 %v529, %v3417
        %v3424 = vmul.f32 %v530, %v3417
        %v3425 = vmul.f32 %v531, %v3417
        %v3426 = vmul.f32 %v532, %v3417
        %3436 = vrot.lane.b32.xlu0 %v3418, 64
        %v3437 = vpop.permute.xlu0 %3436
        %3438 = vrot.lane.b32.xlu0 %v3419, 64
        %v3439 = vpop.permute.xlu0 %3438
        %3440 = vrot.lane.b32.xlu0 %v3420, 64
        %v3441 = vpop.permute.xlu0 %3440
        %3442 = vrot.lane.b32.xlu0 %v3421, 64
        %v3443 = vpop.permute.xlu0 %3442
        %3444 = vrot.lane.b32.xlu0 %v3422, 64
        %v3445 = vpop.permute.xlu0 %3444
        %3446 = vrot.lane.b32.xlu0 %v3423, 64
        %v3447 = vpop.permute.xlu0 %3446
        %3448 = vrot.lane.b32.xlu0 %v3424, 64
        %v3449 = vpop.permute.xlu0 %3448
        %3450 = vrot.lane.b32.xlu0 %v3425, 64
        %v3451 = vpop.permute.xlu0 %3450
        %3452 = vrot.lane.b32.xlu0 %v3426, 64
        %v3453 = vpop.permute.xlu0 %3452
        %v3454 = vsel %vm722, %v3437, %v3439
        %v3455 = vsel %vm722, %v3439, %v3441
        %v3456 = vsel %vm722, %v3441, %v3443
        %v3457 = vsel %vm722, %v3443, %v3445
        %v3458 = vsel %vm722, %v3445, %v3447
        %v3459 = vsel %vm722, %v3447, %v3449
        %v3460 = vsel %vm722, %v3449, %v3451
        %v3461 = vsel %vm722, %v3451, %v3453
        %v3471 = vadd.f32 %v3407, %v3454
        %v3472 = vadd.f32 %v3408, %v3455
        %v3473 = vadd.f32 %v3409, %v3456
        %v3474 = vadd.f32 %v3410, %v3457
        %v3475 = vadd.f32 %v3411, %v3458
        %v3476 = vadd.f32 %v3412, %v3459
        %v3477 = vadd.f32 %v3413, %v3460
        %v3478 = vadd.f32 %v3414, %v3461
        %v3479 = vadd.f32 %v3415, %v3453
        %s3480 = sld [smem:[#allocation8 + $0x204]]
        %v3481 = vstv %s3480
        %v3482 = vmul.f32 %v525, %v3481
        %v3483 = vmul.f32 %v526, %v3481
        %v3484 = vmul.f32 %v527, %v3481
        %v3485 = vmul.f32 %v528, %v3481
        %v3486 = vmul.f32 %v529, %v3481
        %v3487 = vmul.f32 %v530, %v3481
        %v3488 = vmul.f32 %v531, %v3481
        %v3489 = vmul.f32 %v532, %v3481
        %3498 = vrot.lane.b32.xlu0 %v3482, 62
        %v3499 = vpop.permute.xlu0 %3498
        %3500 = vrot.lane.b32.xlu0 %v3483, 62
        %v3501 = vpop.permute.xlu0 %3500
        %3502 = vrot.lane.b32.xlu0 %v3484, 62
        %v3503 = vpop.permute.xlu0 %3502
        %3504 = vrot.lane.b32.xlu0 %v3485, 62
        %v3505 = vpop.permute.xlu0 %3504
        %3506 = vrot.lane.b32.xlu0 %v3486, 62
        %v3507 = vpop.permute.xlu0 %3506
        %3508 = vrot.lane.b32.xlu0 %v3487, 62
        %v3509 = vpop.permute.xlu0 %3508
        %3510 = vrot.lane.b32.xlu0 %v3488, 62
        %v3511 = vpop.permute.xlu0 %3510
        %3512 = vrot.lane.b32.xlu0 %v3489, 62
        %v3513 = vpop.permute.xlu0 %3512
        %v3514 = vsel %vm783, %v3499, %v3501
        %v3515 = vsel %vm783, %v3501, %v3503
        %v3516 = vsel %vm783, %v3503, %v3505
        %v3517 = vsel %vm783, %v3505, %v3507
        %v3518 = vsel %vm783, %v3507, %v3509
        %v3519 = vsel %vm783, %v3509, %v3511
        %v3520 = vsel %vm783, %v3511, %v3513
        %v3530 = vadd.f32 %v3471, %v3499
        %v3531 = vadd.f32 %v3472, %v3514
        %v3532 = vadd.f32 %v3473, %v3515
        %v3533 = vadd.f32 %v3474, %v3516
        %v3534 = vadd.f32 %v3475, %v3517
        %v3535 = vadd.f32 %v3476, %v3518
        %v3536 = vadd.f32 %v3477, %v3519
        %v3537 = vadd.f32 %v3478, %v3520
        %v3538 = vadd.f32 %v3479, %v3513
        %s3539 = sld [smem:[#allocation8 + $0x205]]
        %v3540 = vstv %s3539
        %v3541 = vmul.f32 %v533, %v3540
        %v3542 = vmul.f32 %v534, %v3540
        %v3543 = vmul.f32 %v535, %v3540
        %v3544 = vmul.f32 %v536, %v3540
        %v3545 = vmul.f32 %v537, %v3540
        %v3546 = vmul.f32 %v538, %v3540
        %v3547 = vmul.f32 %v539, %v3540
        %v3548 = vmul.f32 %v540, %v3540
        %v3549 = vmul.f32 %v541, %v3540
        %3559 = vrot.lane.b32.xlu0 %v3541, 60
        %v3560 = vpop.permute.xlu0 %3559
        %3561 = vrot.lane.b32.xlu0 %v3542, 60
        %v3562 = vpop.permute.xlu0 %3561
        %3563 = vrot.lane.b32.xlu0 %v3543, 60
        %v3564 = vpop.permute.xlu0 %3563
        %3565 = vrot.lane.b32.xlu0 %v3544, 60
        %v3566 = vpop.permute.xlu0 %3565
        %3567 = vrot.lane.b32.xlu0 %v3545, 60
        %v3568 = vpop.permute.xlu0 %3567
        %3569 = vrot.lane.b32.xlu0 %v3546, 60
        %v3570 = vpop.permute.xlu0 %3569
        %3571 = vrot.lane.b32.xlu0 %v3547, 60
        %v3572 = vpop.permute.xlu0 %3571
        %3573 = vrot.lane.b32.xlu0 %v3548, 60
        %v3574 = vpop.permute.xlu0 %3573
        %3575 = vrot.lane.b32.xlu0 %v3549, 60
        %v3576 = vpop.permute.xlu0 %3575
        %v3577 = vsel %vm847, %v3560, %v3562
        %v3578 = vsel %vm847, %v3562, %v3564
        %v3579 = vsel %vm847, %v3564, %v3566
        %v3580 = vsel %vm847, %v3566, %v3568
        %v3581 = vsel %vm847, %v3568, %v3570
        %v3582 = vsel %vm847, %v3570, %v3572
        %v3583 = vsel %vm847, %v3572, %v3574
        %v3584 = vsel %vm847, %v3574, %v3576
        %v3594 = vadd.f32 %v3530, %v3560
        %v3595 = vadd.f32 %v3531, %v3577
        %v3596 = vadd.f32 %v3532, %v3578
        %v3597 = vadd.f32 %v3533, %v3579
        %v3598 = vadd.f32 %v3534, %v3580
        %v3599 = vadd.f32 %v3535, %v3581
        %v3600 = vadd.f32 %v3536, %v3582
        %v3601 = vadd.f32 %v3537, %v3583
        %v3602 = vadd.f32 %v3538, %v3584
        %s3603 = sld [smem:[#allocation8 + $0x206]]
        %v3604 = vstv %s3603
        %v3605 = vmul.f32 %v533, %v3604
        %v3606 = vmul.f32 %v534, %v3604
        %v3607 = vmul.f32 %v535, %v3604
        %v3608 = vmul.f32 %v536, %v3604
        %v3609 = vmul.f32 %v537, %v3604
        %v3610 = vmul.f32 %v538, %v3604
        %v3611 = vmul.f32 %v539, %v3604
        %v3612 = vmul.f32 %v540, %v3604
        %v3613 = vmul.f32 %v541, %v3604
        %v3614 = vadd.f32 %v3594, %v3605
        %v3615 = vadd.f32 %v3595, %v3606
        %v3616 = vadd.f32 %v3596, %v3607
        %v3617 = vadd.f32 %v3597, %v3608
        %v3618 = vadd.f32 %v3598, %v3609
        %v3619 = vadd.f32 %v3599, %v3610
        %v3620 = vadd.f32 %v3600, %v3611
        %v3621 = vadd.f32 %v3601, %v3612
        %v3622 = vadd.f32 %v3602, %v3613
        %s3623 = sld [smem:[#allocation8 + $0x207]]
        %v3624 = vstv %s3623
        %v3625 = vmul.f32 %v533, %v3624
        %v3626 = vmul.f32 %v534, %v3624
        %v3627 = vmul.f32 %v535, %v3624
        %v3628 = vmul.f32 %v536, %v3624
        %v3629 = vmul.f32 %v537, %v3624
        %v3630 = vmul.f32 %v538, %v3624
        %v3631 = vmul.f32 %v539, %v3624
        %v3632 = vmul.f32 %v540, %v3624
        %v3633 = vmul.f32 %v541, %v3624
        %3643 = vrot.lane.b32.xlu0 %v3625, 126
        %v3644 = vpop.permute.xlu0 %3643
        %3645 = vrot.lane.b32.xlu0 %v3626, 126
        %v3646 = vpop.permute.xlu0 %3645
        %3647 = vrot.lane.b32.xlu0 %v3627, 126
        %v3648 = vpop.permute.xlu0 %3647
        %3649 = vrot.lane.b32.xlu0 %v3628, 126
        %v3650 = vpop.permute.xlu0 %3649
        %3651 = vrot.lane.b32.xlu0 %v3629, 126
        %v3652 = vpop.permute.xlu0 %3651
        %3653 = vrot.lane.b32.xlu0 %v3630, 126
        %v3654 = vpop.permute.xlu0 %3653
        %3655 = vrot.lane.b32.xlu0 %v3631, 126
        %v3656 = vpop.permute.xlu0 %3655
        %3657 = vrot.lane.b32.xlu0 %v3632, 126
        %v3658 = vpop.permute.xlu0 %3657
        %3659 = vrot.lane.b32.xlu0 %v3633, 126
        %v3660 = vpop.permute.xlu0 %3659
        %v3661 = vsel %vm592, %v3644, %v3646
        %v3662 = vsel %vm592, %v3646, %v3648
        %v3663 = vsel %vm592, %v3648, %v3650
        %v3664 = vsel %vm592, %v3650, %v3652
        %v3665 = vsel %vm592, %v3652, %v3654
        %v3666 = vsel %vm592, %v3654, %v3656
        %v3667 = vsel %vm592, %v3656, %v3658
        %v3668 = vsel %vm592, %v3658, %v3660
        %v3678 = vadd.f32 %v3614, %v3661
        %v3679 = vadd.f32 %v3615, %v3662
        %v3680 = vadd.f32 %v3616, %v3663
        %v3681 = vadd.f32 %v3617, %v3664
        %v3682 = vadd.f32 %v3618, %v3665
        %v3683 = vadd.f32 %v3619, %v3666
        %v3684 = vadd.f32 %v3620, %v3667
        %v3685 = vadd.f32 %v3621, %v3668
        %v3686 = vadd.f32 %v3622, %v3660
        %s3687 = sld [smem:[#allocation8 + $0x208]]
        %v3688 = vstv %s3687
        %v3689 = vmul.f32 %v533, %v3688
        %v3690 = vmul.f32 %v534, %v3688
        %v3691 = vmul.f32 %v535, %v3688
        %v3692 = vmul.f32 %v536, %v3688
        %v3693 = vmul.f32 %v537, %v3688
        %v3694 = vmul.f32 %v538, %v3688
        %v3695 = vmul.f32 %v539, %v3688
        %v3696 = vmul.f32 %v540, %v3688
        %v3697 = vmul.f32 %v541, %v3688
        %3707 = vrot.lane.b32.xlu0 %v3689, 124
        %v3708 = vpop.permute.xlu0 %3707
        %3709 = vrot.lane.b32.xlu0 %v3690, 124
        %v3710 = vpop.permute.xlu0 %3709
        %3711 = vrot.lane.b32.xlu0 %v3691, 124
        %v3712 = vpop.permute.xlu0 %3711
        %3713 = vrot.lane.b32.xlu0 %v3692, 124
        %v3714 = vpop.permute.xlu0 %3713
        %3715 = vrot.lane.b32.xlu0 %v3693, 124
        %v3716 = vpop.permute.xlu0 %3715
        %3717 = vrot.lane.b32.xlu0 %v3694, 124
        %v3718 = vpop.permute.xlu0 %3717
        %3719 = vrot.lane.b32.xlu0 %v3695, 124
        %v3720 = vpop.permute.xlu0 %3719
        %3721 = vrot.lane.b32.xlu0 %v3696, 124
        %v3722 = vpop.permute.xlu0 %3721
        %3723 = vrot.lane.b32.xlu0 %v3697, 124
        %v3724 = vpop.permute.xlu0 %3723
        %v3725 = vsel %vm657, %v3708, %v3710
        %v3726 = vsel %vm657, %v3710, %v3712
        %v3727 = vsel %vm657, %v3712, %v3714
        %v3728 = vsel %vm657, %v3714, %v3716
        %v3729 = vsel %vm657, %v3716, %v3718
        %v3730 = vsel %vm657, %v3718, %v3720
        %v3731 = vsel %vm657, %v3720, %v3722
        %v3732 = vsel %vm657, %v3722, %v3724
        %v3742 = vadd.f32 %v3678, %v3725
        %v3743 = vadd.f32 %v3679, %v3726
        %v3744 = vadd.f32 %v3680, %v3727
        %v3745 = vadd.f32 %v3681, %v3728
        %v3746 = vadd.f32 %v3682, %v3729
        %v3747 = vadd.f32 %v3683, %v3730
        %v3748 = vadd.f32 %v3684, %v3731
        %v3749 = vadd.f32 %v3685, %v3732
        %v3750 = vadd.f32 %v3686, %v3724
        %s3751 = sld [smem:[#allocation10 + $0x4]]
        %v3752 = vstv %s3751
        %v3753 = vadd.f32 %v3742, %v3752
        %v3754 = vadd.f32 %v3743, %v3752
        %v3755 = vadd.f32 %v3744, %v3752
        %v3756 = vadd.f32 %v3745, %v3752
        %v3757 = vadd.f32 %v3746, %v3752
        %v3758 = vadd.f32 %v3747, %v3752
        %v3759 = vadd.f32 %v3748, %v3752
        %v3760 = vadd.f32 %v3749, %v3752
        %v3761 = vadd.f32 %v3750, %v3752
        %v3762 = vmax.f32 %v3753, 0.0
        %v3763 = vmax.f32 %v3754, 0.0
        %v3764 = vmax.f32 %v3755, 0.0
        %v3765 = vmax.f32 %v3756, 0.0
        %v3766 = vmax.f32 %v3757, 0.0
        %v3767 = vmax.f32 %v3758, 0.0
        %v3768 = vmax.f32 %v3759, 0.0
        %v3769 = vmax.f32 %v3760, 0.0
        %v3770 = vmax.f32 %v3761, 0.0
        %3780 = vrot.lane.b32.xlu0 %v3762, 66
        %v3781 = vpop.permute.xlu0 %3780
        %3782 = vrot.lane.b32.xlu0 %v3763, 66
        %v3783 = vpop.permute.xlu0 %3782
        %3784 = vrot.lane.b32.xlu0 %v3764, 66
        %v3785 = vpop.permute.xlu0 %3784
        %3786 = vrot.lane.b32.xlu0 %v3765, 66
        %v3787 = vpop.permute.xlu0 %3786
        %3788 = vrot.lane.b32.xlu0 %v3766, 66
        %v3789 = vpop.permute.xlu0 %3788
        %3790 = vrot.lane.b32.xlu0 %v3767, 66
        %v3791 = vpop.permute.xlu0 %3790
        %3792 = vrot.lane.b32.xlu0 %v3768, 66
        %v3793 = vpop.permute.xlu0 %3792
        %3794 = vrot.lane.b32.xlu0 %v3769, 66
        %v3795 = vpop.permute.xlu0 %3794
        %3796 = vrot.lane.b32.xlu0 %v3770, 66
        %v3797 = vpop.permute.xlu0 %3796
        %v3798 = vsel %vm1069, %v3781, %v3783
        %v3799 = vsel %vm1069, %v3783, %v3785
        %v3800 = vsel %vm1069, %v3785, %v3787
        %v3801 = vsel %vm1069, %v3787, %v3789
        %v3802 = vsel %vm1069, %v3789, %v3791
        %v3803 = vsel %vm1069, %v3791, %v3793
        %v3804 = vsel %vm1069, %v3793, %v3795
        %v3805 = vsel %vm1069, %v3795, %v3797
        %3814 = vst [vmem:[#allocation3] sm:$0xff] %v3798
        %3815 = vst [vmem:[#allocation3 + $0x8] sm:$0xff] %v3799
        %3816 = vst [vmem:[#allocation3 + $0x10] sm:$0xff] %v3800
        %3817 = vst [vmem:[#allocation3 + $0x18] sm:$0xff] %v3801
        %3818 = vst [vmem:[#allocation3 + $0x20] sm:$0xff] %v3802
        %3819 = vst [vmem:[#allocation3 + $0x28] sm:$0xff] %v3803
        %3820 = vst [vmem:[#allocation3 + $0x30] sm:$0xff] %v3804
        %3821 = vst [vmem:[#allocation3 + $0x38] sm:$0xff] %v3805
        %v3822 = vld [vmem:[#allocation3] sm:$0xff]
        %v3823 = vld [vmem:[#allocation3 + $0x8] sm:$0xff]
        %v3824 = vld [vmem:[#allocation3 + $0x10] sm:$0xff]
        %v3825 = vld [vmem:[#allocation3 + $0x18] sm:$0xff]
        %v3826 = vld [vmem:[#allocation3 + $0x20] sm:$0xff]
        %v3827 = vld [vmem:[#allocation3 + $0x28] sm:$0xff]
        %v3828 = vld [vmem:[#allocation3 + $0x30] sm:$0xff]
        %v3829 = vld [vmem:[#allocation3 + $0x38] sm:$0xff]
        %v3830 = vld [vmem:[#allocation3] sm:$0xff]
        %v3831 = vld [vmem:[#allocation3 + $0x8] sm:$0xff]
        %v3832 = vld [vmem:[#allocation3 + $0x10] sm:$0xff]
        %v3833 = vld [vmem:[#allocation3 + $0x18] sm:$0xff]
        %v3834 = vld [vmem:[#allocation3 + $0x20] sm:$0xff]
        %v3835 = vld [vmem:[#allocation3 + $0x28] sm:$0xff]
        %v3836 = vld [vmem:[#allocation3 + $0x30] sm:$0xff]
        %v3837 = vld [vmem:[#allocation3 + $0x38] sm:$0xff]
        %v3838 = vld [vmem:[#allocation3 + $0x40] sm:$0xff]
        %3848 = vrot.lane.b32.xlu0 %v3830, 126
        %v3849 = vpop.permute.xlu0 %3848
        %3850 = vrot.lane.b32.xlu0 %v3831, 126
        %v3851 = vpop.permute.xlu0 %3850
        %3852 = vrot.lane.b32.xlu0 %v3832, 126
        %v3853 = vpop.permute.xlu0 %3852
        %3854 = vrot.lane.b32.xlu0 %v3833, 126
        %v3855 = vpop.permute.xlu0 %3854
        %3856 = vrot.lane.b32.xlu0 %v3834, 126
        %v3857 = vpop.permute.xlu0 %3856
        %3858 = vrot.lane.b32.xlu0 %v3835, 126
        %v3859 = vpop.permute.xlu0 %3858
        %3860 = vrot.lane.b32.xlu0 %v3836, 126
        %v3861 = vpop.permute.xlu0 %3860
        %3862 = vrot.lane.b32.xlu0 %v3837, 126
        %v3863 = vpop.permute.xlu0 %3862
        %3864 = vrot.lane.b32.xlu0 %v3838, 126
        %v3865 = vpop.permute.xlu0 %3864
        %v3866 = vsel %vm592, %v3849, %v3851
        %v3867 = vsel %vm592, %v3851, %v3853
        %v3868 = vsel %vm592, %v3853, %v3855
        %v3869 = vsel %vm592, %v3855, %v3857
        %v3870 = vsel %vm592, %v3857, %v3859
        %v3871 = vsel %vm592, %v3859, %v3861
        %v3872 = vsel %vm592, %v3861, %v3863
        %v3873 = vsel %vm592, %v3863, %v3865
        %v3882 = vmax.f32 %v3822, %v3866
        %v3883 = vmax.f32 %v3823, %v3867
        %v3884 = vmax.f32 %v3824, %v3868
        %v3885 = vmax.f32 %v3825, %v3869
        %v3886 = vmax.f32 %v3826, %v3870
        %v3887 = vmax.f32 %v3827, %v3871
        %v3888 = vmax.f32 %v3828, %v3872
        %v3889 = vmax.f32 %v3829, %v3873
        %v3891 = vmax.f32 %v3830, %v3866
        %v3892 = vmax.f32 %v3831, %v3867
        %v3893 = vmax.f32 %v3832, %v3868
        %v3894 = vmax.f32 %v3833, %v3869
        %v3895 = vmax.f32 %v3834, %v3870
        %v3896 = vmax.f32 %v3835, %v3871
        %v3897 = vmax.f32 %v3836, %v3872
        %v3898 = vmax.f32 %v3837, %v3873
        %v3899 = vmax.f32 %v3838, %v3865
        %3909 = vrot.lane.b32.xlu0 %v3891, 64
        %v3910 = vpop.permute.xlu0 %3909
        %3911 = vrot.lane.b32.xlu0 %v3892, 64
        %v3912 = vpop.permute.xlu0 %3911
        %3913 = vrot.lane.b32.xlu0 %v3893, 64
        %v3914 = vpop.permute.xlu0 %3913
        %3915 = vrot.lane.b32.xlu0 %v3894, 64
        %v3916 = vpop.permute.xlu0 %3915
        %3917 = vrot.lane.b32.xlu0 %v3895, 64
        %v3918 = vpop.permute.xlu0 %3917
        %3919 = vrot.lane.b32.xlu0 %v3896, 64
        %v3920 = vpop.permute.xlu0 %3919
        %3921 = vrot.lane.b32.xlu0 %v3897, 64
        %v3922 = vpop.permute.xlu0 %3921
        %3923 = vrot.lane.b32.xlu0 %v3898, 64
        %v3924 = vpop.permute.xlu0 %3923
        %3925 = vrot.lane.b32.xlu0 %v3899, 64
        %v3926 = vpop.permute.xlu0 %3925
        %v3927 = vsel %vm722, %v3910, %v3912
        %v3928 = vsel %vm722, %v3912, %v3914
        %v3929 = vsel %vm722, %v3914, %v3916
        %v3930 = vsel %vm722, %v3916, %v3918
        %v3931 = vsel %vm722, %v3918, %v3920
        %v3932 = vsel %vm722, %v3920, %v3922
        %v3933 = vsel %vm722, %v3922, %v3924
        %v3934 = vsel %vm722, %v3924, %v3926
        %v3943 = vmax.f32 %v3882, %v3927
        %v3944 = vmax.f32 %v3883, %v3928
        %v3945 = vmax.f32 %v3884, %v3929
        %v3946 = vmax.f32 %v3885, %v3930
        %v3947 = vmax.f32 %v3886, %v3931
        %v3948 = vmax.f32 %v3887, %v3932
        %v3949 = vmax.f32 %v3888, %v3933
        %v3950 = vmax.f32 %v3889, %v3934
        %3951 = vst [vmem:[#allocation4 + $0x100] sm:$0xff] %v3943
        %3952 = vst [vmem:[#allocation4 + $0x108] sm:$0xff] %v3944
        %3953 = vst [vmem:[#allocation4 + $0x110] sm:$0xff] %v3945
        %3954 = vst [vmem:[#allocation4 + $0x118] sm:$0xff] %v3946
        %3955 = vst [vmem:[#allocation4 + $0x120] sm:$0xff] %v3947
        %3956 = vst [vmem:[#allocation4 + $0x128] sm:$0xff] %v3948
        %3957 = vst [vmem:[#allocation4 + $0x130] sm:$0xff] %v3949
        %3958 = vst [vmem:[#allocation4 + $0x138] sm:$0xff] %v3950
        %s3959 = sld [smem:[#allocation8 + $0x280]]
        %v3960 = vstv %s3959
        %v3961 = vmul.f32 %v524, %v3960
        %v3962 = vmul.f32 %v525, %v3960
        %v3963 = vmul.f32 %v526, %v3960
        %v3964 = vmul.f32 %v527, %v3960
        %v3965 = vmul.f32 %v528, %v3960
        %v3966 = vmul.f32 %v529, %v3960
        %v3967 = vmul.f32 %v530, %v3960
        %v3968 = vmul.f32 %v531, %v3960
        %v3969 = vmul.f32 %v532, %v3960
        %s3970 = sld [smem:[#allocation8 + $0x281]]
        %v3971 = vstv %s3970
        %v3972 = vmul.f32 %v524, %v3971
        %v3973 = vmul.f32 %v525, %v3971
        %v3974 = vmul.f32 %v526, %v3971
        %v3975 = vmul.f32 %v527, %v3971
        %v3976 = vmul.f32 %v528, %v3971
        %v3977 = vmul.f32 %v529, %v3971
        %v3978 = vmul.f32 %v530, %v3971
        %v3979 = vmul.f32 %v531, %v3971
        %v3980 = vmul.f32 %v532, %v3971
        %3990 = vrot.lane.b32.xlu0 %v3972, 126
        %v3991 = vpop.permute.xlu0 %3990
        %3992 = vrot.lane.b32.xlu0 %v3973, 126
        %v3993 = vpop.permute.xlu0 %3992
        %3994 = vrot.lane.b32.xlu0 %v3974, 126
        %v3995 = vpop.permute.xlu0 %3994
        %3996 = vrot.lane.b32.xlu0 %v3975, 126
        %v3997 = vpop.permute.xlu0 %3996
        %3998 = vrot.lane.b32.xlu0 %v3976, 126
        %v3999 = vpop.permute.xlu0 %3998
        %4000 = vrot.lane.b32.xlu0 %v3977, 126
        %v4001 = vpop.permute.xlu0 %4000
        %4002 = vrot.lane.b32.xlu0 %v3978, 126
        %v4003 = vpop.permute.xlu0 %4002
        %4004 = vrot.lane.b32.xlu0 %v3979, 126
        %v4005 = vpop.permute.xlu0 %4004
        %4006 = vrot.lane.b32.xlu0 %v3980, 126
        %v4007 = vpop.permute.xlu0 %4006
        %v4008 = vsel %vm592, %v3991, %v3993
        %v4009 = vsel %vm592, %v3993, %v3995
        %v4010 = vsel %vm592, %v3995, %v3997
        %v4011 = vsel %vm592, %v3997, %v3999
        %v4012 = vsel %vm592, %v3999, %v4001
        %v4013 = vsel %vm592, %v4001, %v4003
        %v4014 = vsel %vm592, %v4003, %v4005
        %v4015 = vsel %vm592, %v4005, %v4007
        %v4025 = vadd.f32 %v3961, %v4008
        %v4026 = vadd.f32 %v3962, %v4009
        %v4027 = vadd.f32 %v3963, %v4010
        %v4028 = vadd.f32 %v3964, %v4011
        %v4029 = vadd.f32 %v3965, %v4012
        %v4030 = vadd.f32 %v3966, %v4013
        %v4031 = vadd.f32 %v3967, %v4014
        %v4032 = vadd.f32 %v3968, %v4015
        %v4033 = vadd.f32 %v3969, %v4007
        %s4034 = sld [smem:[#allocation8 + $0x282]]
        %v4035 = vstv %s4034
        %v4036 = vmul.f32 %v524, %v4035
        %v4037 = vmul.f32 %v525, %v4035
        %v4038 = vmul.f32 %v526, %v4035
        %v4039 = vmul.f32 %v527, %v4035
        %v4040 = vmul.f32 %v528, %v4035
        %v4041 = vmul.f32 %v529, %v4035
        %v4042 = vmul.f32 %v530, %v4035
        %v4043 = vmul.f32 %v531, %v4035
        %v4044 = vmul.f32 %v532, %v4035
        %4054 = vrot.lane.b32.xlu0 %v4036, 124
        %v4055 = vpop.permute.xlu0 %4054
        %4056 = vrot.lane.b32.xlu0 %v4037, 124
        %v4057 = vpop.permute.xlu0 %4056
        %4058 = vrot.lane.b32.xlu0 %v4038, 124
        %v4059 = vpop.permute.xlu0 %4058
        %4060 = vrot.lane.b32.xlu0 %v4039, 124
        %v4061 = vpop.permute.xlu0 %4060
        %4062 = vrot.lane.b32.xlu0 %v4040, 124
        %v4063 = vpop.permute.xlu0 %4062
        %4064 = vrot.lane.b32.xlu0 %v4041, 124
        %v4065 = vpop.permute.xlu0 %4064
        %4066 = vrot.lane.b32.xlu0 %v4042, 124
        %v4067 = vpop.permute.xlu0 %4066
        %4068 = vrot.lane.b32.xlu0 %v4043, 124
        %v4069 = vpop.permute.xlu0 %4068
        %4070 = vrot.lane.b32.xlu0 %v4044, 124
        %v4071 = vpop.permute.xlu0 %4070
        %v4072 = vsel %vm657, %v4055, %v4057
        %v4073 = vsel %vm657, %v4057, %v4059
        %v4074 = vsel %vm657, %v4059, %v4061
        %v4075 = vsel %vm657, %v4061, %v4063
        %v4076 = vsel %vm657, %v4063, %v4065
        %v4077 = vsel %vm657, %v4065, %v4067
        %v4078 = vsel %vm657, %v4067, %v4069
        %v4079 = vsel %vm657, %v4069, %v4071
        %v4089 = vadd.f32 %v4025, %v4072
        %v4090 = vadd.f32 %v4026, %v4073
        %v4091 = vadd.f32 %v4027, %v4074
        %v4092 = vadd.f32 %v4028, %v4075
        %v4093 = vadd.f32 %v4029, %v4076
        %v4094 = vadd.f32 %v4030, %v4077
        %v4095 = vadd.f32 %v4031, %v4078
        %v4096 = vadd.f32 %v4032, %v4079
        %v4097 = vadd.f32 %v4033, %v4071
        %s4098 = sld [smem:[#allocation8 + $0x283]]
        %v4099 = vstv %s4098
        %v4100 = vmul.f32 %v524, %v4099
        %v4101 = vmul.f32 %v525, %v4099
        %v4102 = vmul.f32 %v526, %v4099
        %v4103 = vmul.f32 %v527, %v4099
        %v4104 = vmul.f32 %v528, %v4099
        %v4105 = vmul.f32 %v529, %v4099
        %v4106 = vmul.f32 %v530, %v4099
        %v4107 = vmul.f32 %v531, %v4099
        %v4108 = vmul.f32 %v532, %v4099
        %4118 = vrot.lane.b32.xlu0 %v4100, 64
        %v4119 = vpop.permute.xlu0 %4118
        %4120 = vrot.lane.b32.xlu0 %v4101, 64
        %v4121 = vpop.permute.xlu0 %4120
        %4122 = vrot.lane.b32.xlu0 %v4102, 64
        %v4123 = vpop.permute.xlu0 %4122
        %4124 = vrot.lane.b32.xlu0 %v4103, 64
        %v4125 = vpop.permute.xlu0 %4124
        %4126 = vrot.lane.b32.xlu0 %v4104, 64
        %v4127 = vpop.permute.xlu0 %4126
        %4128 = vrot.lane.b32.xlu0 %v4105, 64
        %v4129 = vpop.permute.xlu0 %4128
        %4130 = vrot.lane.b32.xlu0 %v4106, 64
        %v4131 = vpop.permute.xlu0 %4130
        %4132 = vrot.lane.b32.xlu0 %v4107, 64
        %v4133 = vpop.permute.xlu0 %4132
        %4134 = vrot.lane.b32.xlu0 %v4108, 64
        %v4135 = vpop.permute.xlu0 %4134
        %v4136 = vsel %vm722, %v4119, %v4121
        %v4137 = vsel %vm722, %v4121, %v4123
        %v4138 = vsel %vm722, %v4123, %v4125
        %v4139 = vsel %vm722, %v4125, %v4127
        %v4140 = vsel %vm722, %v4127, %v4129
        %v4141 = vsel %vm722, %v4129, %v4131
        %v4142 = vsel %vm722, %v4131, %v4133
        %v4143 = vsel %vm722, %v4133, %v4135
        %v4153 = vadd.f32 %v4089, %v4136
        %v4154 = vadd.f32 %v4090, %v4137
        %v4155 = vadd.f32 %v4091, %v4138
        %v4156 = vadd.f32 %v4092, %v4139
        %v4157 = vadd.f32 %v4093, %v4140
        %v4158 = vadd.f32 %v4094, %v4141
        %v4159 = vadd.f32 %v4095, %v4142
        %v4160 = vadd.f32 %v4096, %v4143
        %v4161 = vadd.f32 %v4097, %v4135
        %s4162 = sld [smem:[#allocation8 + $0x284]]
        %v4163 = vstv %s4162
        %v4164 = vmul.f32 %v525, %v4163
        %v4165 = vmul.f32 %v526, %v4163
        %v4166 = vmul.f32 %v527, %v4163
        %v4167 = vmul.f32 %v528, %v4163
        %v4168 = vmul.f32 %v529, %v4163
        %v4169 = vmul.f32 %v530, %v4163
        %v4170 = vmul.f32 %v531, %v4163
        %v4171 = vmul.f32 %v532, %v4163
        %4180 = vrot.lane.b32.xlu0 %v4164, 62
        %v4181 = vpop.permute.xlu0 %4180
        %4182 = vrot.lane.b32.xlu0 %v4165, 62
        %v4183 = vpop.permute.xlu0 %4182
        %4184 = vrot.lane.b32.xlu0 %v4166, 62
        %v4185 = vpop.permute.xlu0 %4184
        %4186 = vrot.lane.b32.xlu0 %v4167, 62
        %v4187 = vpop.permute.xlu0 %4186
        %4188 = vrot.lane.b32.xlu0 %v4168, 62
        %v4189 = vpop.permute.xlu0 %4188
        %4190 = vrot.lane.b32.xlu0 %v4169, 62
        %v4191 = vpop.permute.xlu0 %4190
        %4192 = vrot.lane.b32.xlu0 %v4170, 62
        %v4193 = vpop.permute.xlu0 %4192
        %4194 = vrot.lane.b32.xlu0 %v4171, 62
        %v4195 = vpop.permute.xlu0 %4194
        %v4196 = vsel %vm783, %v4181, %v4183
        %v4197 = vsel %vm783, %v4183, %v4185
        %v4198 = vsel %vm783, %v4185, %v4187
        %v4199 = vsel %vm783, %v4187, %v4189
        %v4200 = vsel %vm783, %v4189, %v4191
        %v4201 = vsel %vm783, %v4191, %v4193
        %v4202 = vsel %vm783, %v4193, %v4195
        %v4212 = vadd.f32 %v4153, %v4181
        %v4213 = vadd.f32 %v4154, %v4196
        %v4214 = vadd.f32 %v4155, %v4197
        %v4215 = vadd.f32 %v4156, %v4198
        %v4216 = vadd.f32 %v4157, %v4199
        %v4217 = vadd.f32 %v4158, %v4200
        %v4218 = vadd.f32 %v4159, %v4201
        %v4219 = vadd.f32 %v4160, %v4202
        %v4220 = vadd.f32 %v4161, %v4195
        %s4221 = sld [smem:[#allocation8 + $0x285]]
        %v4222 = vstv %s4221
        %v4223 = vmul.f32 %v533, %v4222
        %v4224 = vmul.f32 %v534, %v4222
        %v4225 = vmul.f32 %v535, %v4222
        %v4226 = vmul.f32 %v536, %v4222
        %v4227 = vmul.f32 %v537, %v4222
        %v4228 = vmul.f32 %v538, %v4222
        %v4229 = vmul.f32 %v539, %v4222
        %v4230 = vmul.f32 %v540, %v4222
        %v4231 = vmul.f32 %v541, %v4222
        %4241 = vrot.lane.b32.xlu0 %v4223, 60
        %v4242 = vpop.permute.xlu0 %4241
        %4243 = vrot.lane.b32.xlu0 %v4224, 60
        %v4244 = vpop.permute.xlu0 %4243
        %4245 = vrot.lane.b32.xlu0 %v4225, 60
        %v4246 = vpop.permute.xlu0 %4245
        %4247 = vrot.lane.b32.xlu0 %v4226, 60
        %v4248 = vpop.permute.xlu0 %4247
        %4249 = vrot.lane.b32.xlu0 %v4227, 60
        %v4250 = vpop.permute.xlu0 %4249
        %4251 = vrot.lane.b32.xlu0 %v4228, 60
        %v4252 = vpop.permute.xlu0 %4251
        %4253 = vrot.lane.b32.xlu0 %v4229, 60
        %v4254 = vpop.permute.xlu0 %4253
        %4255 = vrot.lane.b32.xlu0 %v4230, 60
        %v4256 = vpop.permute.xlu0 %4255
        %4257 = vrot.lane.b32.xlu0 %v4231, 60
        %v4258 = vpop.permute.xlu0 %4257
        %v4259 = vsel %vm847, %v4242, %v4244
        %v4260 = vsel %vm847, %v4244, %v4246
        %v4261 = vsel %vm847, %v4246, %v4248
        %v4262 = vsel %vm847, %v4248, %v4250
        %v4263 = vsel %vm847, %v4250, %v4252
        %v4264 = vsel %vm847, %v4252, %v4254
        %v4265 = vsel %vm847, %v4254, %v4256
        %v4266 = vsel %vm847, %v4256, %v4258
        %v4276 = vadd.f32 %v4212, %v4242
        %v4277 = vadd.f32 %v4213, %v4259
        %v4278 = vadd.f32 %v4214, %v4260
        %v4279 = vadd.f32 %v4215, %v4261
        %v4280 = vadd.f32 %v4216, %v4262
        %v4281 = vadd.f32 %v4217, %v4263
        %v4282 = vadd.f32 %v4218, %v4264
        %v4283 = vadd.f32 %v4219, %v4265
        %v4284 = vadd.f32 %v4220, %v4266
        %s4285 = sld [smem:[#allocation8 + $0x286]]
        %v4286 = vstv %s4285
        %v4287 = vmul.f32 %v533, %v4286
        %v4288 = vmul.f32 %v534, %v4286
        %v4289 = vmul.f32 %v535, %v4286
        %v4290 = vmul.f32 %v536, %v4286
        %v4291 = vmul.f32 %v537, %v4286
        %v4292 = vmul.f32 %v538, %v4286
        %v4293 = vmul.f32 %v539, %v4286
        %v4294 = vmul.f32 %v540, %v4286
        %v4295 = vmul.f32 %v541, %v4286
        %v4296 = vadd.f32 %v4276, %v4287
        %v4297 = vadd.f32 %v4277, %v4288
        %v4298 = vadd.f32 %v4278, %v4289
        %v4299 = vadd.f32 %v4279, %v4290
        %v4300 = vadd.f32 %v4280, %v4291
        %v4301 = vadd.f32 %v4281, %v4292
        %v4302 = vadd.f32 %v4282, %v4293
        %v4303 = vadd.f32 %v4283, %v4294
        %v4304 = vadd.f32 %v4284, %v4295
        %s4305 = sld [smem:[#allocation8 + $0x287]]
        %v4306 = vstv %s4305
        %v4307 = vmul.f32 %v533, %v4306
        %v4308 = vmul.f32 %v534, %v4306
        %v4309 = vmul.f32 %v535, %v4306
        %v4310 = vmul.f32 %v536, %v4306
        %v4311 = vmul.f32 %v537, %v4306
        %v4312 = vmul.f32 %v538, %v4306
        %v4313 = vmul.f32 %v539, %v4306
        %v4314 = vmul.f32 %v540, %v4306
        %v4315 = vmul.f32 %v541, %v4306
        %4325 = vrot.lane.b32.xlu0 %v4307, 126
        %v4326 = vpop.permute.xlu0 %4325
        %4327 = vrot.lane.b32.xlu0 %v4308, 126
        %v4328 = vpop.permute.xlu0 %4327
        %4329 = vrot.lane.b32.xlu0 %v4309, 126
        %v4330 = vpop.permute.xlu0 %4329
        %4331 = vrot.lane.b32.xlu0 %v4310, 126
        %v4332 = vpop.permute.xlu0 %4331
        %4333 = vrot.lane.b32.xlu0 %v4311, 126
        %v4334 = vpop.permute.xlu0 %4333
        %4335 = vrot.lane.b32.xlu0 %v4312, 126
        %v4336 = vpop.permute.xlu0 %4335
        %4337 = vrot.lane.b32.xlu0 %v4313, 126
        %v4338 = vpop.permute.xlu0 %4337
        %4339 = vrot.lane.b32.xlu0 %v4314, 126
        %v4340 = vpop.permute.xlu0 %4339
        %4341 = vrot.lane.b32.xlu0 %v4315, 126
        %v4342 = vpop.permute.xlu0 %4341
        %v4343 = vsel %vm592, %v4326, %v4328
        %v4344 = vsel %vm592, %v4328, %v4330
        %v4345 = vsel %vm592, %v4330, %v4332
        %v4346 = vsel %vm592, %v4332, %v4334
        %v4347 = vsel %vm592, %v4334, %v4336
        %v4348 = vsel %vm592, %v4336, %v4338
        %v4349 = vsel %vm592, %v4338, %v4340
        %v4350 = vsel %vm592, %v4340, %v4342
        %v4360 = vadd.f32 %v4296, %v4343
        %v4361 = vadd.f32 %v4297, %v4344
        %v4362 = vadd.f32 %v4298, %v4345
        %v4363 = vadd.f32 %v4299, %v4346
        %v4364 = vadd.f32 %v4300, %v4347
        %v4365 = vadd.f32 %v4301, %v4348
        %v4366 = vadd.f32 %v4302, %v4349
        %v4367 = vadd.f32 %v4303, %v4350
        %v4368 = vadd.f32 %v4304, %v4342
        %s4369 = sld [smem:[#allocation8 + $0x288]]
        %v4370 = vstv %s4369
        %v4371 = vmul.f32 %v533, %v4370
        %v4372 = vmul.f32 %v534, %v4370
        %v4373 = vmul.f32 %v535, %v4370
        %v4374 = vmul.f32 %v536, %v4370
        %v4375 = vmul.f32 %v537, %v4370
        %v4376 = vmul.f32 %v538, %v4370
        %v4377 = vmul.f32 %v539, %v4370
        %v4378 = vmul.f32 %v540, %v4370
        %v4379 = vmul.f32 %v541, %v4370
        %4389 = vrot.lane.b32.xlu0 %v4371, 124
        %v4390 = vpop.permute.xlu0 %4389
        %4391 = vrot.lane.b32.xlu0 %v4372, 124
        %v4392 = vpop.permute.xlu0 %4391
        %4393 = vrot.lane.b32.xlu0 %v4373, 124
        %v4394 = vpop.permute.xlu0 %4393
        %4395 = vrot.lane.b32.xlu0 %v4374, 124
        %v4396 = vpop.permute.xlu0 %4395
        %4397 = vrot.lane.b32.xlu0 %v4375, 124
        %v4398 = vpop.permute.xlu0 %4397
        %4399 = vrot.lane.b32.xlu0 %v4376, 124
        %v4400 = vpop.permute.xlu0 %4399
        %4401 = vrot.lane.b32.xlu0 %v4377, 124
        %v4402 = vpop.permute.xlu0 %4401
        %4403 = vrot.lane.b32.xlu0 %v4378, 124
        %v4404 = vpop.permute.xlu0 %4403
        %4405 = vrot.lane.b32.xlu0 %v4379, 124
        %v4406 = vpop.permute.xlu0 %4405
        %v4407 = vsel %vm657, %v4390, %v4392
        %v4408 = vsel %vm657, %v4392, %v4394
        %v4409 = vsel %vm657, %v4394, %v4396
        %v4410 = vsel %vm657, %v4396, %v4398
        %v4411 = vsel %vm657, %v4398, %v4400
        %v4412 = vsel %vm657, %v4400, %v4402
        %v4413 = vsel %vm657, %v4402, %v4404
        %v4414 = vsel %vm657, %v4404, %v4406
        %v4424 = vadd.f32 %v4360, %v4407
        %v4425 = vadd.f32 %v4361, %v4408
        %v4426 = vadd.f32 %v4362, %v4409
        %v4427 = vadd.f32 %v4363, %v4410
        %v4428 = vadd.f32 %v4364, %v4411
        %v4429 = vadd.f32 %v4365, %v4412
        %v4430 = vadd.f32 %v4366, %v4413
        %v4431 = vadd.f32 %v4367, %v4414
        %v4432 = vadd.f32 %v4368, %v4406
        %s4433 = sld [smem:[#allocation10 + $0x5]]
        %v4434 = vstv %s4433
        %v4435 = vadd.f32 %v4424, %v4434
        %v4436 = vadd.f32 %v4425, %v4434
        %v4437 = vadd.f32 %v4426, %v4434
        %v4438 = vadd.f32 %v4427, %v4434
        %v4439 = vadd.f32 %v4428, %v4434
        %v4440 = vadd.f32 %v4429, %v4434
        %v4441 = vadd.f32 %v4430, %v4434
        %v4442 = vadd.f32 %v4431, %v4434
        %v4443 = vadd.f32 %v4432, %v4434
        %v4444 = vmax.f32 %v4435, 0.0
        %v4445 = vmax.f32 %v4436, 0.0
        %v4446 = vmax.f32 %v4437, 0.0
        %v4447 = vmax.f32 %v4438, 0.0
        %v4448 = vmax.f32 %v4439, 0.0
        %v4449 = vmax.f32 %v4440, 0.0
        %v4450 = vmax.f32 %v4441, 0.0
        %v4451 = vmax.f32 %v4442, 0.0
        %v4452 = vmax.f32 %v4443, 0.0
        %4462 = vrot.lane.b32.xlu0 %v4444, 66
        %v4463 = vpop.permute.xlu0 %4462
        %4464 = vrot.lane.b32.xlu0 %v4445, 66
        %v4465 = vpop.permute.xlu0 %4464
        %4466 = vrot.lane.b32.xlu0 %v4446, 66
        %v4467 = vpop.permute.xlu0 %4466
        %4468 = vrot.lane.b32.xlu0 %v4447, 66
        %v4469 = vpop.permute.xlu0 %4468
        %4470 = vrot.lane.b32.xlu0 %v4448, 66
        %v4471 = vpop.permute.xlu0 %4470
        %4472 = vrot.lane.b32.xlu0 %v4449, 66
        %v4473 = vpop.permute.xlu0 %4472
        %4474 = vrot.lane.b32.xlu0 %v4450, 66
        %v4475 = vpop.permute.xlu0 %4474
        %4476 = vrot.lane.b32.xlu0 %v4451, 66
        %v4477 = vpop.permute.xlu0 %4476
        %4478 = vrot.lane.b32.xlu0 %v4452, 66
        %v4479 = vpop.permute.xlu0 %4478
        %v4480 = vsel %vm1069, %v4463, %v4465
        %v4481 = vsel %vm1069, %v4465, %v4467
        %v4482 = vsel %vm1069, %v4467, %v4469
        %v4483 = vsel %vm1069, %v4469, %v4471
        %v4484 = vsel %vm1069, %v4471, %v4473
        %v4485 = vsel %vm1069, %v4473, %v4475
        %v4486 = vsel %vm1069, %v4475, %v4477
        %v4487 = vsel %vm1069, %v4477, %v4479
        %4496 = vst [vmem:[#allocation3] sm:$0xff] %v4480
        %4497 = vst [vmem:[#allocation3 + $0x8] sm:$0xff] %v4481
        %4498 = vst [vmem:[#allocation3 + $0x10] sm:$0xff] %v4482
        %4499 = vst [vmem:[#allocation3 + $0x18] sm:$0xff] %v4483
        %4500 = vst [vmem:[#allocation3 + $0x20] sm:$0xff] %v4484
        %4501 = vst [vmem:[#allocation3 + $0x28] sm:$0xff] %v4485
        %4502 = vst [vmem:[#allocation3 + $0x30] sm:$0xff] %v4486
        %4503 = vst [vmem:[#allocation3 + $0x38] sm:$0xff] %v4487
        %v4504 = vld [vmem:[#allocation3] sm:$0xff]
        %v4505 = vld [vmem:[#allocation3 + $0x8] sm:$0xff]
        %v4506 = vld [vmem:[#allocation3 + $0x10] sm:$0xff]
        %v4507 = vld [vmem:[#allocation3 + $0x18] sm:$0xff]
        %v4508 = vld [vmem:[#allocation3 + $0x20] sm:$0xff]
        %v4509 = vld [vmem:[#allocation3 + $0x28] sm:$0xff]
        %v4510 = vld [vmem:[#allocation3 + $0x30] sm:$0xff]
        %v4511 = vld [vmem:[#allocation3 + $0x38] sm:$0xff]
        %v4512 = vld [vmem:[#allocation3] sm:$0xff]
        %v4513 = vld [vmem:[#allocation3 + $0x8] sm:$0xff]
        %v4514 = vld [vmem:[#allocation3 + $0x10] sm:$0xff]
        %v4515 = vld [vmem:[#allocation3 + $0x18] sm:$0xff]
        %v4516 = vld [vmem:[#allocation3 + $0x20] sm:$0xff]
        %v4517 = vld [vmem:[#allocation3 + $0x28] sm:$0xff]
        %v4518 = vld [vmem:[#allocation3 + $0x30] sm:$0xff]
        %v4519 = vld [vmem:[#allocation3 + $0x38] sm:$0xff]
        %v4520 = vld [vmem:[#allocation3 + $0x40] sm:$0xff]
        %4530 = vrot.lane.b32.xlu0 %v4512, 126
        %v4531 = vpop.permute.xlu0 %4530
        %4532 = vrot.lane.b32.xlu0 %v4513, 126
        %v4533 = vpop.permute.xlu0 %4532
        %4534 = vrot.lane.b32.xlu0 %v4514, 126
        %v4535 = vpop.permute.xlu0 %4534
        %4536 = vrot.lane.b32.xlu0 %v4515, 126
        %v4537 = vpop.permute.xlu0 %4536
        %4538 = vrot.lane.b32.xlu0 %v4516, 126
        %v4539 = vpop.permute.xlu0 %4538
        %4540 = vrot.lane.b32.xlu0 %v4517, 126
        %v4541 = vpop.permute.xlu0 %4540
        %4542 = vrot.lane.b32.xlu0 %v4518, 126
        %v4543 = vpop.permute.xlu0 %4542
        %4544 = vrot.lane.b32.xlu0 %v4519, 126
        %v4545 = vpop.permute.xlu0 %4544
        %4546 = vrot.lane.b32.xlu0 %v4520, 126
        %v4547 = vpop.permute.xlu0 %4546
        %v4548 = vsel %vm592, %v4531, %v4533
        %v4549 = vsel %vm592, %v4533, %v4535
        %v4550 = vsel %vm592, %v4535, %v4537
        %v4551 = vsel %vm592, %v4537, %v4539
        %v4552 = vsel %vm592, %v4539, %v4541
        %v4553 = vsel %vm592, %v4541, %v4543
        %v4554 = vsel %vm592, %v4543, %v4545
        %v4555 = vsel %vm592, %v4545, %v4547
        %v4564 = vmax.f32 %v4504, %v4548
        %v4565 = vmax.f32 %v4505, %v4549
        %v4566 = vmax.f32 %v4506, %v4550
        %v4567 = vmax.f32 %v4507, %v4551
        %v4568 = vmax.f32 %v4508, %v4552
        %v4569 = vmax.f32 %v4509, %v4553
        %v4570 = vmax.f32 %v4510, %v4554
        %v4571 = vmax.f32 %v4511, %v4555
        %v4573 = vmax.f32 %v4512, %v4548
        %v4574 = vmax.f32 %v4513, %v4549
        %v4575 = vmax.f32 %v4514, %v4550
        %v4576 = vmax.f32 %v4515, %v4551
        %v4577 = vmax.f32 %v4516, %v4552
        %v4578 = vmax.f32 %v4517, %v4553
        %v4579 = vmax.f32 %v4518, %v4554
        %v4580 = vmax.f32 %v4519, %v4555
        %v4581 = vmax.f32 %v4520, %v4547
        %4591 = vrot.lane.b32.xlu0 %v4573, 64
        %v4592 = vpop.permute.xlu0 %4591
        %4593 = vrot.lane.b32.xlu0 %v4574, 64
        %v4594 = vpop.permute.xlu0 %4593
        %4595 = vrot.lane.b32.xlu0 %v4575, 64
        %v4596 = vpop.permute.xlu0 %4595
        %4597 = vrot.lane.b32.xlu0 %v4576, 64
        %v4598 = vpop.permute.xlu0 %4597
        %4599 = vrot.lane.b32.xlu0 %v4577, 64
        %v4600 = vpop.permute.xlu0 %4599
        %4601 = vrot.lane.b32.xlu0 %v4578, 64
        %v4602 = vpop.permute.xlu0 %4601
        %4603 = vrot.lane.b32.xlu0 %v4579, 64
        %v4604 = vpop.permute.xlu0 %4603
        %4605 = vrot.lane.b32.xlu0 %v4580, 64
        %v4606 = vpop.permute.xlu0 %4605
        %4607 = vrot.lane.b32.xlu0 %v4581, 64
        %v4608 = vpop.permute.xlu0 %4607
        %v4609 = vsel %vm722, %v4592, %v4594
        %v4610 = vsel %vm722, %v4594, %v4596
        %v4611 = vsel %vm722, %v4596, %v4598
        %v4612 = vsel %vm722, %v4598, %v4600
        %v4613 = vsel %vm722, %v4600, %v4602
        %v4614 = vsel %vm722, %v4602, %v4604
        %v4615 = vsel %vm722, %v4604, %v4606
        %v4616 = vsel %vm722, %v4606, %v4608
        %v4625 = vmax.f32 %v4564, %v4609
        %v4626 = vmax.f32 %v4565, %v4610
        %v4627 = vmax.f32 %v4566, %v4611
        %v4628 = vmax.f32 %v4567, %v4612
        %v4629 = vmax.f32 %v4568, %v4613
        %v4630 = vmax.f32 %v4569, %v4614
        %v4631 = vmax.f32 %v4570, %v4615
        %v4632 = vmax.f32 %v4571, %v4616
        %4633 = vst [vmem:[#allocation4 + $0x140] sm:$0xff] %v4625
        %4634 = vst [vmem:[#allocation4 + $0x148] sm:$0xff] %v4626
        %4635 = vst [vmem:[#allocation4 + $0x150] sm:$0xff] %v4627
        %4636 = vst [vmem:[#allocation4 + $0x158] sm:$0xff] %v4628
        %4637 = vst [vmem:[#allocation4 + $0x160] sm:$0xff] %v4629
        %4638 = vst [vmem:[#allocation4 + $0x168] sm:$0xff] %v4630
        %4639 = vst [vmem:[#allocation4 + $0x170] sm:$0xff] %v4631
        %4640 = vst [vmem:[#allocation4 + $0x178] sm:$0xff] %v4632
        %s4641 = sld [smem:[#allocation8 + $0x300]]
        %v4642 = vstv %s4641
        %v4643 = vmul.f32 %v524, %v4642
        %v4644 = vmul.f32 %v525, %v4642
        %v4645 = vmul.f32 %v526, %v4642
        %v4646 = vmul.f32 %v527, %v4642
        %v4647 = vmul.f32 %v528, %v4642
        %v4648 = vmul.f32 %v529, %v4642
        %v4649 = vmul.f32 %v530, %v4642
        %v4650 = vmul.f32 %v531, %v4642
        %v4651 = vmul.f32 %v532, %v4642
        %s4652 = sld [smem:[#allocation8 + $0x301]]
        %v4653 = vstv %s4652
        %v4654 = vmul.f32 %v524, %v4653
        %v4655 = vmul.f32 %v525, %v4653
        %v4656 = vmul.f32 %v526, %v4653
        %v4657 = vmul.f32 %v527, %v4653
        %v4658 = vmul.f32 %v528, %v4653
        %v4659 = vmul.f32 %v529, %v4653
        %v4660 = vmul.f32 %v530, %v4653
        %v4661 = vmul.f32 %v531, %v4653
        %v4662 = vmul.f32 %v532, %v4653
        %4672 = vrot.lane.b32.xlu0 %v4654, 126
        %v4673 = vpop.permute.xlu0 %4672
        %4674 = vrot.lane.b32.xlu0 %v4655, 126
        %v4675 = vpop.permute.xlu0 %4674
        %4676 = vrot.lane.b32.xlu0 %v4656, 126
        %v4677 = vpop.permute.xlu0 %4676
        %4678 = vrot.lane.b32.xlu0 %v4657, 126
        %v4679 = vpop.permute.xlu0 %4678
        %4680 = vrot.lane.b32.xlu0 %v4658, 126
        %v4681 = vpop.permute.xlu0 %4680
        %4682 = vrot.lane.b32.xlu0 %v4659, 126
        %v4683 = vpop.permute.xlu0 %4682
        %4684 = vrot.lane.b32.xlu0 %v4660, 126
        %v4685 = vpop.permute.xlu0 %4684
        %4686 = vrot.lane.b32.xlu0 %v4661, 126
        %v4687 = vpop.permute.xlu0 %4686
        %4688 = vrot.lane.b32.xlu0 %v4662, 126
        %v4689 = vpop.permute.xlu0 %4688
        %v4690 = vsel %vm592, %v4673, %v4675
        %v4691 = vsel %vm592, %v4675, %v4677
        %v4692 = vsel %vm592, %v4677, %v4679
        %v4693 = vsel %vm592, %v4679, %v4681
        %v4694 = vsel %vm592, %v4681, %v4683
        %v4695 = vsel %vm592, %v4683, %v4685
        %v4696 = vsel %vm592, %v4685, %v4687
        %v4697 = vsel %vm592, %v4687, %v4689
        %v4707 = vadd.f32 %v4643, %v4690
        %v4708 = vadd.f32 %v4644, %v4691
        %v4709 = vadd.f32 %v4645, %v4692
        %v4710 = vadd.f32 %v4646, %v4693
        %v4711 = vadd.f32 %v4647, %v4694
        %v4712 = vadd.f32 %v4648, %v4695
        %v4713 = vadd.f32 %v4649, %v4696
        %v4714 = vadd.f32 %v4650, %v4697
        %v4715 = vadd.f32 %v4651, %v4689
        %s4716 = sld [smem:[#allocation8 + $0x302]]
        %v4717 = vstv %s4716
        %v4718 = vmul.f32 %v524, %v4717
        %v4719 = vmul.f32 %v525, %v4717
        %v4720 = vmul.f32 %v526, %v4717
        %v4721 = vmul.f32 %v527, %v4717
        %v4722 = vmul.f32 %v528, %v4717
        %v4723 = vmul.f32 %v529, %v4717
        %v4724 = vmul.f32 %v530, %v4717
        %v4725 = vmul.f32 %v531, %v4717
        %v4726 = vmul.f32 %v532, %v4717
        %4736 = vrot.lane.b32.xlu0 %v4718, 124
        %v4737 = vpop.permute.xlu0 %4736
        %4738 = vrot.lane.b32.xlu0 %v4719, 124
        %v4739 = vpop.permute.xlu0 %4738
        %4740 = vrot.lane.b32.xlu0 %v4720, 124
        %v4741 = vpop.permute.xlu0 %4740
        %4742 = vrot.lane.b32.xlu0 %v4721, 124
        %v4743 = vpop.permute.xlu0 %4742
        %4744 = vrot.lane.b32.xlu0 %v4722, 124
        %v4745 = vpop.permute.xlu0 %4744
        %4746 = vrot.lane.b32.xlu0 %v4723, 124
        %v4747 = vpop.permute.xlu0 %4746
        %4748 = vrot.lane.b32.xlu0 %v4724, 124
        %v4749 = vpop.permute.xlu0 %4748
        %4750 = vrot.lane.b32.xlu0 %v4725, 124
        %v4751 = vpop.permute.xlu0 %4750
        %4752 = vrot.lane.b32.xlu0 %v4726, 124
        %v4753 = vpop.permute.xlu0 %4752
        %v4754 = vsel %vm657, %v4737, %v4739
        %v4755 = vsel %vm657, %v4739, %v4741
        %v4756 = vsel %vm657, %v4741, %v4743
        %v4757 = vsel %vm657, %v4743, %v4745
        %v4758 = vsel %vm657, %v4745, %v4747
        %v4759 = vsel %vm657, %v4747, %v4749
        %v4760 = vsel %vm657, %v4749, %v4751
        %v4761 = vsel %vm657, %v4751, %v4753
        %v4771 = vadd.f32 %v4707, %v4754
        %v4772 = vadd.f32 %v4708, %v4755
        %v4773 = vadd.f32 %v4709, %v4756
        %v4774 = vadd.f32 %v4710, %v4757
        %v4775 = vadd.f32 %v4711, %v4758
        %v4776 = vadd.f32 %v4712, %v4759
        %v4777 = vadd.f32 %v4713, %v4760
        %v4778 = vadd.f32 %v4714, %v4761
        %v4779 = vadd.f32 %v4715, %v4753
        %s4780 = sld [smem:[#allocation8 + $0x303]]
        %v4781 = vstv %s4780
        %v4782 = vmul.f32 %v524, %v4781
        %v4783 = vmul.f32 %v525, %v4781
        %v4784 = vmul.f32 %v526, %v4781
        %v4785 = vmul.f32 %v527, %v4781
        %v4786 = vmul.f32 %v528, %v4781
        %v4787 = vmul.f32 %v529, %v4781
        %v4788 = vmul.f32 %v530, %v4781
        %v4789 = vmul.f32 %v531, %v4781
        %v4790 = vmul.f32 %v532, %v4781
        %4800 = vrot.lane.b32.xlu0 %v4782, 64
        %v4801 = vpop.permute.xlu0 %4800
        %4802 = vrot.lane.b32.xlu0 %v4783, 64
        %v4803 = vpop.permute.xlu0 %4802
        %4804 = vrot.lane.b32.xlu0 %v4784, 64
        %v4805 = vpop.permute.xlu0 %4804
        %4806 = vrot.lane.b32.xlu0 %v4785, 64
        %v4807 = vpop.permute.xlu0 %4806
        %4808 = vrot.lane.b32.xlu0 %v4786, 64
        %v4809 = vpop.permute.xlu0 %4808
        %4810 = vrot.lane.b32.xlu0 %v4787, 64
        %v4811 = vpop.permute.xlu0 %4810
        %4812 = vrot.lane.b32.xlu0 %v4788, 64
        %v4813 = vpop.permute.xlu0 %4812
        %4814 = vrot.lane.b32.xlu0 %v4789, 64
        %v4815 = vpop.permute.xlu0 %4814
        %4816 = vrot.lane.b32.xlu0 %v4790, 64
        %v4817 = vpop.permute.xlu0 %4816
        %v4818 = vsel %vm722, %v4801, %v4803
        %v4819 = vsel %vm722, %v4803, %v4805
        %v4820 = vsel %vm722, %v4805, %v4807
        %v4821 = vsel %vm722, %v4807, %v4809
        %v4822 = vsel %vm722, %v4809, %v4811
        %v4823 = vsel %vm722, %v4811, %v4813
        %v4824 = vsel %vm722, %v4813, %v4815
        %v4825 = vsel %vm722, %v4815, %v4817
        %v4835 = vadd.f32 %v4771, %v4818
        %v4836 = vadd.f32 %v4772, %v4819
        %v4837 = vadd.f32 %v4773, %v4820
        %v4838 = vadd.f32 %v4774, %v4821
        %v4839 = vadd.f32 %v4775, %v4822
        %v4840 = vadd.f32 %v4776, %v4823
        %v4841 = vadd.f32 %v4777, %v4824
        %v4842 = vadd.f32 %v4778, %v4825
        %v4843 = vadd.f32 %v4779, %v4817
        %s4844 = sld [smem:[#allocation8 + $0x304]]
        %v4845 = vstv %s4844
        %v4846 = vmul.f32 %v525, %v4845
        %v4847 = vmul.f32 %v526, %v4845
        %v4848 = vmul.f32 %v527, %v4845
        %v4849 = vmul.f32 %v528, %v4845
        %v4850 = vmul.f32 %v529, %v4845
        %v4851 = vmul.f32 %v530, %v4845
        %v4852 = vmul.f32 %v531, %v4845
        %v4853 = vmul.f32 %v532, %v4845
        %4862 = vrot.lane.b32.xlu0 %v4846, 62
        %v4863 = vpop.permute.xlu0 %4862
        %4864 = vrot.lane.b32.xlu0 %v4847, 62
        %v4865 = vpop.permute.xlu0 %4864
        %4866 = vrot.lane.b32.xlu0 %v4848, 62
        %v4867 = vpop.permute.xlu0 %4866
        %4868 = vrot.lane.b32.xlu0 %v4849, 62
        %v4869 = vpop.permute.xlu0 %4868
        %4870 = vrot.lane.b32.xlu0 %v4850, 62
        %v4871 = vpop.permute.xlu0 %4870
        %4872 = vrot.lane.b32.xlu0 %v4851, 62
        %v4873 = vpop.permute.xlu0 %4872
        %4874 = vrot.lane.b32.xlu0 %v4852, 62
        %v4875 = vpop.permute.xlu0 %4874
        %4876 = vrot.lane.b32.xlu0 %v4853, 62
        %v4877 = vpop.permute.xlu0 %4876
        %v4878 = vsel %vm783, %v4863, %v4865
        %v4879 = vsel %vm783, %v4865, %v4867
        %v4880 = vsel %vm783, %v4867, %v4869
        %v4881 = vsel %vm783, %v4869, %v4871
        %v4882 = vsel %vm783, %v4871, %v4873
        %v4883 = vsel %vm783, %v4873, %v4875
        %v4884 = vsel %vm783, %v4875, %v4877
        %v4894 = vadd.f32 %v4835, %v4863
        %v4895 = vadd.f32 %v4836, %v4878
        %v4896 = vadd.f32 %v4837, %v4879
        %v4897 = vadd.f32 %v4838, %v4880
        %v4898 = vadd.f32 %v4839, %v4881
        %v4899 = vadd.f32 %v4840, %v4882
        %v4900 = vadd.f32 %v4841, %v4883
        %v4901 = vadd.f32 %v4842, %v4884
        %v4902 = vadd.f32 %v4843, %v4877
        %s4903 = sld [smem:[#allocation8 + $0x305]]
        %v4904 = vstv %s4903
        %v4905 = vmul.f32 %v533, %v4904
        %v4906 = vmul.f32 %v534, %v4904
        %v4907 = vmul.f32 %v535, %v4904
        %v4908 = vmul.f32 %v536, %v4904
        %v4909 = vmul.f32 %v537, %v4904
        %v4910 = vmul.f32 %v538, %v4904
        %v4911 = vmul.f32 %v539, %v4904
        %v4912 = vmul.f32 %v540, %v4904
        %v4913 = vmul.f32 %v541, %v4904
        %4923 = vrot.lane.b32.xlu0 %v4905, 60
        %v4924 = vpop.permute.xlu0 %4923
        %4925 = vrot.lane.b32.xlu0 %v4906, 60
        %v4926 = vpop.permute.xlu0 %4925
        %4927 = vrot.lane.b32.xlu0 %v4907, 60
        %v4928 = vpop.permute.xlu0 %4927
        %4929 = vrot.lane.b32.xlu0 %v4908, 60
        %v4930 = vpop.permute.xlu0 %4929
        %4931 = vrot.lane.b32.xlu0 %v4909, 60
        %v4932 = vpop.permute.xlu0 %4931
        %4933 = vrot.lane.b32.xlu0 %v4910, 60
        %v4934 = vpop.permute.xlu0 %4933
        %4935 = vrot.lane.b32.xlu0 %v4911, 60
        %v4936 = vpop.permute.xlu0 %4935
        %4937 = vrot.lane.b32.xlu0 %v4912, 60
        %v4938 = vpop.permute.xlu0 %4937
        %4939 = vrot.lane.b32.xlu0 %v4913, 60
        %v4940 = vpop.permute.xlu0 %4939
        %v4941 = vsel %vm847, %v4924, %v4926
        %v4942 = vsel %vm847, %v4926, %v4928
        %v4943 = vsel %vm847, %v4928, %v4930
        %v4944 = vsel %vm847, %v4930, %v4932
        %v4945 = vsel %vm847, %v4932, %v4934
        %v4946 = vsel %vm847, %v4934, %v4936
        %v4947 = vsel %vm847, %v4936, %v4938
        %v4948 = vsel %vm847, %v4938, %v4940
        %v4958 = vadd.f32 %v4894, %v4924
        %v4959 = vadd.f32 %v4895, %v4941
        %v4960 = vadd.f32 %v4896, %v4942
        %v4961 = vadd.f32 %v4897, %v4943
        %v4962 = vadd.f32 %v4898, %v4944
        %v4963 = vadd.f32 %v4899, %v4945
        %v4964 = vadd.f32 %v4900, %v4946
        %v4965 = vadd.f32 %v4901, %v4947
        %v4966 = vadd.f32 %v4902, %v4948
        %s4967 = sld [smem:[#allocation8 + $0x306]]
        %v4968 = vstv %s4967
        %v4969 = vmul.f32 %v533, %v4968
        %v4970 = vmul.f32 %v534, %v4968
        %v4971 = vmul.f32 %v535, %v4968
        %v4972 = vmul.f32 %v536, %v4968
        %v4973 = vmul.f32 %v537, %v4968
        %v4974 = vmul.f32 %v538, %v4968
        %v4975 = vmul.f32 %v539, %v4968
        %v4976 = vmul.f32 %v540, %v4968
        %v4977 = vmul.f32 %v541, %v4968
        %v4978 = vadd.f32 %v4958, %v4969
        %v4979 = vadd.f32 %v4959, %v4970
        %v4980 = vadd.f32 %v4960, %v4971
        %v4981 = vadd.f32 %v4961, %v4972
        %v4982 = vadd.f32 %v4962, %v4973
        %v4983 = vadd.f32 %v4963, %v4974
        %v4984 = vadd.f32 %v4964, %v4975
        %v4985 = vadd.f32 %v4965, %v4976
        %v4986 = vadd.f32 %v4966, %v4977
        %s4987 = sld [smem:[#allocation8 + $0x307]]
        %v4988 = vstv %s4987
        %v4989 = vmul.f32 %v533, %v4988
        %v4990 = vmul.f32 %v534, %v4988
        %v4991 = vmul.f32 %v535, %v4988
        %v4992 = vmul.f32 %v536, %v4988
        %v4993 = vmul.f32 %v537, %v4988
        %v4994 = vmul.f32 %v538, %v4988
        %v4995 = vmul.f32 %v539, %v4988
        %v4996 = vmul.f32 %v540, %v4988
        %v4997 = vmul.f32 %v541, %v4988
        %5007 = vrot.lane.b32.xlu0 %v4989, 126
        %v5008 = vpop.permute.xlu0 %5007
        %5009 = vrot.lane.b32.xlu0 %v4990, 126
        %v5010 = vpop.permute.xlu0 %5009
        %5011 = vrot.lane.b32.xlu0 %v4991, 126
        %v5012 = vpop.permute.xlu0 %5011
        %5013 = vrot.lane.b32.xlu0 %v4992, 126
        %v5014 = vpop.permute.xlu0 %5013
        %5015 = vrot.lane.b32.xlu0 %v4993, 126
        %v5016 = vpop.permute.xlu0 %5015
        %5017 = vrot.lane.b32.xlu0 %v4994, 126
        %v5018 = vpop.permute.xlu0 %5017
        %5019 = vrot.lane.b32.xlu0 %v4995, 126
        %v5020 = vpop.permute.xlu0 %5019
        %5021 = vrot.lane.b32.xlu0 %v4996, 126
        %v5022 = vpop.permute.xlu0 %5021
        %5023 = vrot.lane.b32.xlu0 %v4997, 126
        %v5024 = vpop.permute.xlu0 %5023
        %v5025 = vsel %vm592, %v5008, %v5010
        %v5026 = vsel %vm592, %v5010, %v5012
        %v5027 = vsel %vm592, %v5012, %v5014
        %v5028 = vsel %vm592, %v5014, %v5016
        %v5029 = vsel %vm592, %v5016, %v5018
        %v5030 = vsel %vm592, %v5018, %v5020
        %v5031 = vsel %vm592, %v5020, %v5022
        %v5032 = vsel %vm592, %v5022, %v5024
        %v5042 = vadd.f32 %v4978, %v5025
        %v5043 = vadd.f32 %v4979, %v5026
        %v5044 = vadd.f32 %v4980, %v5027
        %v5045 = vadd.f32 %v4981, %v5028
        %v5046 = vadd.f32 %v4982, %v5029
        %v5047 = vadd.f32 %v4983, %v5030
        %v5048 = vadd.f32 %v4984, %v5031
        %v5049 = vadd.f32 %v4985, %v5032
        %v5050 = vadd.f32 %v4986, %v5024
        %s5051 = sld [smem:[#allocation8 + $0x308]]
        %v5052 = vstv %s5051
        %v5053 = vmul.f32 %v533, %v5052
        %v5054 = vmul.f32 %v534, %v5052
        %v5055 = vmul.f32 %v535, %v5052
        %v5056 = vmul.f32 %v536, %v5052
        %v5057 = vmul.f32 %v537, %v5052
        %v5058 = vmul.f32 %v538, %v5052
        %v5059 = vmul.f32 %v539, %v5052
        %v5060 = vmul.f32 %v540, %v5052
        %v5061 = vmul.f32 %v541, %v5052
        %5071 = vrot.lane.b32.xlu0 %v5053, 124
        %v5072 = vpop.permute.xlu0 %5071
        %5073 = vrot.lane.b32.xlu0 %v5054, 124
        %v5074 = vpop.permute.xlu0 %5073
        %5075 = vrot.lane.b32.xlu0 %v5055, 124
        %v5076 = vpop.permute.xlu0 %5075
        %5077 = vrot.lane.b32.xlu0 %v5056, 124
        %v5078 = vpop.permute.xlu0 %5077
        %5079 = vrot.lane.b32.xlu0 %v5057, 124
        %v5080 = vpop.permute.xlu0 %5079
        %5081 = vrot.lane.b32.xlu0 %v5058, 124
        %v5082 = vpop.permute.xlu0 %5081
        %5083 = vrot.lane.b32.xlu0 %v5059, 124
        %v5084 = vpop.permute.xlu0 %5083
        %5085 = vrot.lane.b32.xlu0 %v5060, 124
        %v5086 = vpop.permute.xlu0 %5085
        %5087 = vrot.lane.b32.xlu0 %v5061, 124
        %v5088 = vpop.permute.xlu0 %5087
        %v5089 = vsel %vm657, %v5072, %v5074
        %v5090 = vsel %vm657, %v5074, %v5076
        %v5091 = vsel %vm657, %v5076, %v5078
        %v5092 = vsel %vm657, %v5078, %v5080
        %v5093 = vsel %vm657, %v5080, %v5082
        %v5094 = vsel %vm657, %v5082, %v5084
        %v5095 = vsel %vm657, %v5084, %v5086
        %v5096 = vsel %vm657, %v5086, %v5088
        %v5106 = vadd.f32 %v5042, %v5089
        %v5107 = vadd.f32 %v5043, %v5090
        %v5108 = vadd.f32 %v5044, %v5091
        %v5109 = vadd.f32 %v5045, %v5092
        %v5110 = vadd.f32 %v5046, %v5093
        %v5111 = vadd.f32 %v5047, %v5094
        %v5112 = vadd.f32 %v5048, %v5095
        %v5113 = vadd.f32 %v5049, %v5096
        %v5114 = vadd.f32 %v5050, %v5088
        %s5115 = sld [smem:[#allocation10 + $0x6]]
        %v5116 = vstv %s5115
        %v5117 = vadd.f32 %v5106, %v5116
        %v5118 = vadd.f32 %v5107, %v5116
        %v5119 = vadd.f32 %v5108, %v5116
        %v5120 = vadd.f32 %v5109, %v5116
        %v5121 = vadd.f32 %v5110, %v5116
        %v5122 = vadd.f32 %v5111, %v5116
        %v5123 = vadd.f32 %v5112, %v5116
        %v5124 = vadd.f32 %v5113, %v5116
        %v5125 = vadd.f32 %v5114, %v5116
        %v5126 = vmax.f32 %v5117, 0.0
        %v5127 = vmax.f32 %v5118, 0.0
        %v5128 = vmax.f32 %v5119, 0.0
        %v5129 = vmax.f32 %v5120, 0.0
        %v5130 = vmax.f32 %v5121, 0.0
        %v5131 = vmax.f32 %v5122, 0.0
        %v5132 = vmax.f32 %v5123, 0.0
        %v5133 = vmax.f32 %v5124, 0.0
        %v5134 = vmax.f32 %v5125, 0.0
        %5144 = vrot.lane.b32.xlu0 %v5126, 66
        %v5145 = vpop.permute.xlu0 %5144
        %5146 = vrot.lane.b32.xlu0 %v5127, 66
        %v5147 = vpop.permute.xlu0 %5146
        %5148 = vrot.lane.b32.xlu0 %v5128, 66
        %v5149 = vpop.permute.xlu0 %5148
        %5150 = vrot.lane.b32.xlu0 %v5129, 66
        %v5151 = vpop.permute.xlu0 %5150
        %5152 = vrot.lane.b32.xlu0 %v5130, 66
        %v5153 = vpop.permute.xlu0 %5152
        %5154 = vrot.lane.b32.xlu0 %v5131, 66
        %v5155 = vpop.permute.xlu0 %5154
        %5156 = vrot.lane.b32.xlu0 %v5132, 66
        %v5157 = vpop.permute.xlu0 %5156
        %5158 = vrot.lane.b32.xlu0 %v5133, 66
        %v5159 = vpop.permute.xlu0 %5158
        %5160 = vrot.lane.b32.xlu0 %v5134, 66
        %v5161 = vpop.permute.xlu0 %5160
        %v5162 = vsel %vm1069, %v5145, %v5147
        %v5163 = vsel %vm1069, %v5147, %v5149
        %v5164 = vsel %vm1069, %v5149, %v5151
        %v5165 = vsel %vm1069, %v5151, %v5153
        %v5166 = vsel %vm1069, %v5153, %v5155
        %v5167 = vsel %vm1069, %v5155, %v5157
        %v5168 = vsel %vm1069, %v5157, %v5159
        %v5169 = vsel %vm1069, %v5159, %v5161
        %5178 = vst [vmem:[#allocation3] sm:$0xff] %v5162
        %5179 = vst [vmem:[#allocation3 + $0x8] sm:$0xff] %v5163
        %5180 = vst [vmem:[#allocation3 + $0x10] sm:$0xff] %v5164
        %5181 = vst [vmem:[#allocation3 + $0x18] sm:$0xff] %v5165
        %5182 = vst [vmem:[#allocation3 + $0x20] sm:$0xff] %v5166
        %5183 = vst [vmem:[#allocation3 + $0x28] sm:$0xff] %v5167
        %5184 = vst [vmem:[#allocation3 + $0x30] sm:$0xff] %v5168
        %5185 = vst [vmem:[#allocation3 + $0x38] sm:$0xff] %v5169
        %v5186 = vld [vmem:[#allocation3] sm:$0xff]
        %v5187 = vld [vmem:[#allocation3 + $0x8] sm:$0xff]
        %v5188 = vld [vmem:[#allocation3 + $0x10] sm:$0xff]
        %v5189 = vld [vmem:[#allocation3 + $0x18] sm:$0xff]
        %v5190 = vld [vmem:[#allocation3 + $0x20] sm:$0xff]
        %v5191 = vld [vmem:[#allocation3 + $0x28] sm:$0xff]
        %v5192 = vld [vmem:[#allocation3 + $0x30] sm:$0xff]
        %v5193 = vld [vmem:[#allocation3 + $0x38] sm:$0xff]
        %v5194 = vld [vmem:[#allocation3] sm:$0xff]
        %v5195 = vld [vmem:[#allocation3 + $0x8] sm:$0xff]
        %v5196 = vld [vmem:[#allocation3 + $0x10] sm:$0xff]
        %v5197 = vld [vmem:[#allocation3 + $0x18] sm:$0xff]
        %v5198 = vld [vmem:[#allocation3 + $0x20] sm:$0xff]
        %v5199 = vld [vmem:[#allocation3 + $0x28] sm:$0xff]
        %v5200 = vld [vmem:[#allocation3 + $0x30] sm:$0xff]
        %v5201 = vld [vmem:[#allocation3 + $0x38] sm:$0xff]
        %v5202 = vld [vmem:[#allocation3 + $0x40] sm:$0xff]
        %5212 = vrot.lane.b32.xlu0 %v5194, 126
        %v5213 = vpop.permute.xlu0 %5212
        %5214 = vrot.lane.b32.xlu0 %v5195, 126
        %v5215 = vpop.permute.xlu0 %5214
        %5216 = vrot.lane.b32.xlu0 %v5196, 126
        %v5217 = vpop.permute.xlu0 %5216
        %5218 = vrot.lane.b32.xlu0 %v5197, 126
        %v5219 = vpop.permute.xlu0 %5218
        %5220 = vrot.lane.b32.xlu0 %v5198, 126
        %v5221 = vpop.permute.xlu0 %5220
        %5222 = vrot.lane.b32.xlu0 %v5199, 126
        %v5223 = vpop.permute.xlu0 %5222
        %5224 = vrot.lane.b32.xlu0 %v5200, 126
        %v5225 = vpop.permute.xlu0 %5224
        %5226 = vrot.lane.b32.xlu0 %v5201, 126
        %v5227 = vpop.permute.xlu0 %5226
        %5228 = vrot.lane.b32.xlu0 %v5202, 126
        %v5229 = vpop.permute.xlu0 %5228
        %v5230 = vsel %vm592, %v5213, %v5215
        %v5231 = vsel %vm592, %v5215, %v5217
        %v5232 = vsel %vm592, %v5217, %v5219
        %v5233 = vsel %vm592, %v5219, %v5221
        %v5234 = vsel %vm592, %v5221, %v5223
        %v5235 = vsel %vm592, %v5223, %v5225
        %v5236 = vsel %vm592, %v5225, %v5227
        %v5237 = vsel %vm592, %v5227, %v5229
        %v5246 = vmax.f32 %v5186, %v5230
        %v5247 = vmax.f32 %v5187, %v5231
        %v5248 = vmax.f32 %v5188, %v5232
        %v5249 = vmax.f32 %v5189, %v5233
        %v5250 = vmax.f32 %v5190, %v5234
        %v5251 = vmax.f32 %v5191, %v5235
        %v5252 = vmax.f32 %v5192, %v5236
        %v5253 = vmax.f32 %v5193, %v5237
        %v5255 = vmax.f32 %v5194, %v5230
        %v5256 = vmax.f32 %v5195, %v5231
        %v5257 = vmax.f32 %v5196, %v5232
        %v5258 = vmax.f32 %v5197, %v5233
        %v5259 = vmax.f32 %v5198, %v5234
        %v5260 = vmax.f32 %v5199, %v5235
        %v5261 = vmax.f32 %v5200, %v5236
        %v5262 = vmax.f32 %v5201, %v5237
        %v5263 = vmax.f32 %v5202, %v5229
        %5273 = vrot.lane.b32.xlu0 %v5255, 64
        %v5274 = vpop.permute.xlu0 %5273
        %5275 = vrot.lane.b32.xlu0 %v5256, 64
        %v5276 = vpop.permute.xlu0 %5275
        %5277 = vrot.lane.b32.xlu0 %v5257, 64
        %v5278 = vpop.permute.xlu0 %5277
        %5279 = vrot.lane.b32.xlu0 %v5258, 64
        %v5280 = vpop.permute.xlu0 %5279
        %5281 = vrot.lane.b32.xlu0 %v5259, 64
        %v5282 = vpop.permute.xlu0 %5281
        %5283 = vrot.lane.b32.xlu0 %v5260, 64
        %v5284 = vpop.permute.xlu0 %5283
        %5285 = vrot.lane.b32.xlu0 %v5261, 64
        %v5286 = vpop.permute.xlu0 %5285
        %5287 = vrot.lane.b32.xlu0 %v5262, 64
        %v5288 = vpop.permute.xlu0 %5287
        %5289 = vrot.lane.b32.xlu0 %v5263, 64
        %v5290 = vpop.permute.xlu0 %5289
        %v5291 = vsel %vm722, %v5274, %v5276
        %v5292 = vsel %vm722, %v5276, %v5278
        %v5293 = vsel %vm722, %v5278, %v5280
        %v5294 = vsel %vm722, %v5280, %v5282
        %v5295 = vsel %vm722, %v5282, %v5284
        %v5296 = vsel %vm722, %v5284, %v5286
        %v5297 = vsel %vm722, %v5286, %v5288
        %v5298 = vsel %vm722, %v5288, %v5290
        %v5307 = vmax.f32 %v5246, %v5291
        %v5308 = vmax.f32 %v5247, %v5292
        %v5309 = vmax.f32 %v5248, %v5293
        %v5310 = vmax.f32 %v5249, %v5294
        %v5311 = vmax.f32 %v5250, %v5295
        %v5312 = vmax.f32 %v5251, %v5296
        %v5313 = vmax.f32 %v5252, %v5297
        %v5314 = vmax.f32 %v5253, %v5298
        %5315 = vst [vmem:[#allocation4 + $0x180] sm:$0xff] %v5307
        %5316 = vst [vmem:[#allocation4 + $0x188] sm:$0xff] %v5308
        %5317 = vst [vmem:[#allocation4 + $0x190] sm:$0xff] %v5309
        %5318 = vst [vmem:[#allocation4 + $0x198] sm:$0xff] %v5310
        %5319 = vst [vmem:[#allocation4 + $0x1a0] sm:$0xff] %v5311
        %5320 = vst [vmem:[#allocation4 + $0x1a8] sm:$0xff] %v5312
        %5321 = vst [vmem:[#allocation4 + $0x1b0] sm:$0xff] %v5313
        %5322 = vst [vmem:[#allocation4 + $0x1b8] sm:$0xff] %v5314
        %s5323 = sld [smem:[#allocation8 + $0x380]]
        %v5324 = vstv %s5323
        %v5325 = vmul.f32 %v524, %v5324
        %v5326 = vmul.f32 %v525, %v5324
        %v5327 = vmul.f32 %v526, %v5324
        %v5328 = vmul.f32 %v527, %v5324
        %v5329 = vmul.f32 %v528, %v5324
        %v5330 = vmul.f32 %v529, %v5324
        %v5331 = vmul.f32 %v530, %v5324
        %v5332 = vmul.f32 %v531, %v5324
        %v5333 = vmul.f32 %v532, %v5324
        %s5334 = sld [smem:[#allocation8 + $0x381]]
        %v5335 = vstv %s5334
        %v5336 = vmul.f32 %v524, %v5335
        %v5337 = vmul.f32 %v525, %v5335
        %v5338 = vmul.f32 %v526, %v5335
        %v5339 = vmul.f32 %v527, %v5335
        %v5340 = vmul.f32 %v528, %v5335
        %v5341 = vmul.f32 %v529, %v5335
        %v5342 = vmul.f32 %v530, %v5335
        %v5343 = vmul.f32 %v531, %v5335
        %v5344 = vmul.f32 %v532, %v5335
        %5354 = vrot.lane.b32.xlu0 %v5336, 126
        %v5355 = vpop.permute.xlu0 %5354
        %5356 = vrot.lane.b32.xlu0 %v5337, 126
        %v5357 = vpop.permute.xlu0 %5356
        %5358 = vrot.lane.b32.xlu0 %v5338, 126
        %v5359 = vpop.permute.xlu0 %5358
        %5360 = vrot.lane.b32.xlu0 %v5339, 126
        %v5361 = vpop.permute.xlu0 %5360
        %5362 = vrot.lane.b32.xlu0 %v5340, 126
        %v5363 = vpop.permute.xlu0 %5362
        %5364 = vrot.lane.b32.xlu0 %v5341, 126
        %v5365 = vpop.permute.xlu0 %5364
        %5366 = vrot.lane.b32.xlu0 %v5342, 126
        %v5367 = vpop.permute.xlu0 %5366
        %5368 = vrot.lane.b32.xlu0 %v5343, 126
        %v5369 = vpop.permute.xlu0 %5368
        %5370 = vrot.lane.b32.xlu0 %v5344, 126
        %v5371 = vpop.permute.xlu0 %5370
        %v5372 = vsel %vm592, %v5355, %v5357
        %v5373 = vsel %vm592, %v5357, %v5359
        %v5374 = vsel %vm592, %v5359, %v5361
        %v5375 = vsel %vm592, %v5361, %v5363
        %v5376 = vsel %vm592, %v5363, %v5365
        %v5377 = vsel %vm592, %v5365, %v5367
        %v5378 = vsel %vm592, %v5367, %v5369
        %v5379 = vsel %vm592, %v5369, %v5371
        %v5389 = vadd.f32 %v5325, %v5372
        %v5390 = vadd.f32 %v5326, %v5373
        %v5391 = vadd.f32 %v5327, %v5374
        %v5392 = vadd.f32 %v5328, %v5375
        %v5393 = vadd.f32 %v5329, %v5376
        %v5394 = vadd.f32 %v5330, %v5377
        %v5395 = vadd.f32 %v5331, %v5378
        %v5396 = vadd.f32 %v5332, %v5379
        %v5397 = vadd.f32 %v5333, %v5371
        %s5398 = sld [smem:[#allocation8 + $0x382]]
        %v5399 = vstv %s5398
        %v5400 = vmul.f32 %v524, %v5399
        %v5401 = vmul.f32 %v525, %v5399
        %v5402 = vmul.f32 %v526, %v5399
        %v5403 = vmul.f32 %v527, %v5399
        %v5404 = vmul.f32 %v528, %v5399
        %v5405 = vmul.f32 %v529, %v5399
        %v5406 = vmul.f32 %v530, %v5399
        %v5407 = vmul.f32 %v531, %v5399
        %v5408 = vmul.f32 %v532, %v5399
        %5418 = vrot.lane.b32.xlu0 %v5400, 124
        %v5419 = vpop.permute.xlu0 %5418
        %5420 = vrot.lane.b32.xlu0 %v5401, 124
        %v5421 = vpop.permute.xlu0 %5420
        %5422 = vrot.lane.b32.xlu0 %v5402, 124
        %v5423 = vpop.permute.xlu0 %5422
        %5424 = vrot.lane.b32.xlu0 %v5403, 124
        %v5425 = vpop.permute.xlu0 %5424
        %5426 = vrot.lane.b32.xlu0 %v5404, 124
        %v5427 = vpop.permute.xlu0 %5426
        %5428 = vrot.lane.b32.xlu0 %v5405, 124
        %v5429 = vpop.permute.xlu0 %5428
        %5430 = vrot.lane.b32.xlu0 %v5406, 124
        %v5431 = vpop.permute.xlu0 %5430
        %5432 = vrot.lane.b32.xlu0 %v5407, 124
        %v5433 = vpop.permute.xlu0 %5432
        %5434 = vrot.lane.b32.xlu0 %v5408, 124
        %v5435 = vpop.permute.xlu0 %5434
        %v5436 = vsel %vm657, %v5419, %v5421
        %v5437 = vsel %vm657, %v5421, %v5423
        %v5438 = vsel %vm657, %v5423, %v5425
        %v5439 = vsel %vm657, %v5425, %v5427
        %v5440 = vsel %vm657, %v5427, %v5429
        %v5441 = vsel %vm657, %v5429, %v5431
        %v5442 = vsel %vm657, %v5431, %v5433
        %v5443 = vsel %vm657, %v5433, %v5435
        %v5453 = vadd.f32 %v5389, %v5436
        %v5454 = vadd.f32 %v5390, %v5437
        %v5455 = vadd.f32 %v5391, %v5438
        %v5456 = vadd.f32 %v5392, %v5439
        %v5457 = vadd.f32 %v5393, %v5440
        %v5458 = vadd.f32 %v5394, %v5441
        %v5459 = vadd.f32 %v5395, %v5442
        %v5460 = vadd.f32 %v5396, %v5443
        %v5461 = vadd.f32 %v5397, %v5435
        %s5462 = sld [smem:[#allocation8 + $0x383]]
        %v5463 = vstv %s5462
        %v5464 = vmul.f32 %v524, %v5463
        %v5465 = vmul.f32 %v525, %v5463
        %v5466 = vmul.f32 %v526, %v5463
        %v5467 = vmul.f32 %v527, %v5463
        %v5468 = vmul.f32 %v528, %v5463
        %v5469 = vmul.f32 %v529, %v5463
        %v5470 = vmul.f32 %v530, %v5463
        %v5471 = vmul.f32 %v531, %v5463
        %v5472 = vmul.f32 %v532, %v5463
        %5482 = vrot.lane.b32.xlu0 %v5464, 64
        %v5483 = vpop.permute.xlu0 %5482
        %5484 = vrot.lane.b32.xlu0 %v5465, 64
        %v5485 = vpop.permute.xlu0 %5484
        %5486 = vrot.lane.b32.xlu0 %v5466, 64
        %v5487 = vpop.permute.xlu0 %5486
        %5488 = vrot.lane.b32.xlu0 %v5467, 64
        %v5489 = vpop.permute.xlu0 %5488
        %5490 = vrot.lane.b32.xlu0 %v5468, 64
        %v5491 = vpop.permute.xlu0 %5490
        %5492 = vrot.lane.b32.xlu0 %v5469, 64
        %v5493 = vpop.permute.xlu0 %5492
        %5494 = vrot.lane.b32.xlu0 %v5470, 64
        %v5495 = vpop.permute.xlu0 %5494
        %5496 = vrot.lane.b32.xlu0 %v5471, 64
        %v5497 = vpop.permute.xlu0 %5496
        %5498 = vrot.lane.b32.xlu0 %v5472, 64
        %v5499 = vpop.permute.xlu0 %5498
        %v5500 = vsel %vm722, %v5483, %v5485
        %v5501 = vsel %vm722, %v5485, %v5487
        %v5502 = vsel %vm722, %v5487, %v5489
        %v5503 = vsel %vm722, %v5489, %v5491
        %v5504 = vsel %vm722, %v5491, %v5493
        %v5505 = vsel %vm722, %v5493, %v5495
        %v5506 = vsel %vm722, %v5495, %v5497
        %v5507 = vsel %vm722, %v5497, %v5499
        %v5517 = vadd.f32 %v5453, %v5500
        %v5518 = vadd.f32 %v5454, %v5501
        %v5519 = vadd.f32 %v5455, %v5502
        %v5520 = vadd.f32 %v5456, %v5503
        %v5521 = vadd.f32 %v5457, %v5504
        %v5522 = vadd.f32 %v5458, %v5505
        %v5523 = vadd.f32 %v5459, %v5506
        %v5524 = vadd.f32 %v5460, %v5507
        %v5525 = vadd.f32 %v5461, %v5499
        %s5526 = sld [smem:[#allocation8 + $0x384]]
        %v5527 = vstv %s5526
        %v5528 = vmul.f32 %v525, %v5527
        %v5529 = vmul.f32 %v526, %v5527
        %v5530 = vmul.f32 %v527, %v5527
        %v5531 = vmul.f32 %v528, %v5527
        %v5532 = vmul.f32 %v529, %v5527
        %v5533 = vmul.f32 %v530, %v5527
        %v5534 = vmul.f32 %v531, %v5527
        %v5535 = vmul.f32 %v532, %v5527
        %5544 = vrot.lane.b32.xlu0 %v5528, 62
        %v5545 = vpop.permute.xlu0 %5544
        %5546 = vrot.lane.b32.xlu0 %v5529, 62
        %v5547 = vpop.permute.xlu0 %5546
        %5548 = vrot.lane.b32.xlu0 %v5530, 62
        %v5549 = vpop.permute.xlu0 %5548
        %5550 = vrot.lane.b32.xlu0 %v5531, 62
        %v5551 = vpop.permute.xlu0 %5550
        %5552 = vrot.lane.b32.xlu0 %v5532, 62
        %v5553 = vpop.permute.xlu0 %5552
        %5554 = vrot.lane.b32.xlu0 %v5533, 62
        %v5555 = vpop.permute.xlu0 %5554
        %5556 = vrot.lane.b32.xlu0 %v5534, 62
        %v5557 = vpop.permute.xlu0 %5556
        %5558 = vrot.lane.b32.xlu0 %v5535, 62
        %v5559 = vpop.permute.xlu0 %5558
        %v5560 = vsel %vm783, %v5545, %v5547
        %v5561 = vsel %vm783, %v5547, %v5549
        %v5562 = vsel %vm783, %v5549, %v5551
        %v5563 = vsel %vm783, %v5551, %v5553
        %v5564 = vsel %vm783, %v5553, %v5555
        %v5565 = vsel %vm783, %v5555, %v5557
        %v5566 = vsel %vm783, %v5557, %v5559
        %v5576 = vadd.f32 %v5517, %v5545
        %v5577 = vadd.f32 %v5518, %v5560
        %v5578 = vadd.f32 %v5519, %v5561
        %v5579 = vadd.f32 %v5520, %v5562
        %v5580 = vadd.f32 %v5521, %v5563
        %v5581 = vadd.f32 %v5522, %v5564
        %v5582 = vadd.f32 %v5523, %v5565
        %v5583 = vadd.f32 %v5524, %v5566
        %v5584 = vadd.f32 %v5525, %v5559
        %s5585 = sld [smem:[#allocation8 + $0x385]]
        %v5586 = vstv %s5585
        %v5587 = vmul.f32 %v533, %v5586
        %v5588 = vmul.f32 %v534, %v5586
        %v5589 = vmul.f32 %v535, %v5586
        %v5590 = vmul.f32 %v536, %v5586
        %v5591 = vmul.f32 %v537, %v5586
        %v5592 = vmul.f32 %v538, %v5586
        %v5593 = vmul.f32 %v539, %v5586
        %v5594 = vmul.f32 %v540, %v5586
        %v5595 = vmul.f32 %v541, %v5586
        %5605 = vrot.lane.b32.xlu0 %v5587, 60
        %v5606 = vpop.permute.xlu0 %5605
        %5607 = vrot.lane.b32.xlu0 %v5588, 60
        %v5608 = vpop.permute.xlu0 %5607
        %5609 = vrot.lane.b32.xlu0 %v5589, 60
        %v5610 = vpop.permute.xlu0 %5609
        %5611 = vrot.lane.b32.xlu0 %v5590, 60
        %v5612 = vpop.permute.xlu0 %5611
        %5613 = vrot.lane.b32.xlu0 %v5591, 60
        %v5614 = vpop.permute.xlu0 %5613
        %5615 = vrot.lane.b32.xlu0 %v5592, 60
        %v5616 = vpop.permute.xlu0 %5615
        %5617 = vrot.lane.b32.xlu0 %v5593, 60
        %v5618 = vpop.permute.xlu0 %5617
        %5619 = vrot.lane.b32.xlu0 %v5594, 60
        %v5620 = vpop.permute.xlu0 %5619
        %5621 = vrot.lane.b32.xlu0 %v5595, 60
        %v5622 = vpop.permute.xlu0 %5621
        %v5623 = vsel %vm847, %v5606, %v5608
        %v5624 = vsel %vm847, %v5608, %v5610
        %v5625 = vsel %vm847, %v5610, %v5612
        %v5626 = vsel %vm847, %v5612, %v5614
        %v5627 = vsel %vm847, %v5614, %v5616
        %v5628 = vsel %vm847, %v5616, %v5618
        %v5629 = vsel %vm847, %v5618, %v5620
        %v5630 = vsel %vm847, %v5620, %v5622
        %v5640 = vadd.f32 %v5576, %v5606
        %v5641 = vadd.f32 %v5577, %v5623
        %v5642 = vadd.f32 %v5578, %v5624
        %v5643 = vadd.f32 %v5579, %v5625
        %v5644 = vadd.f32 %v5580, %v5626
        %v5645 = vadd.f32 %v5581, %v5627
        %v5646 = vadd.f32 %v5582, %v5628
        %v5647 = vadd.f32 %v5583, %v5629
        %v5648 = vadd.f32 %v5584, %v5630
        %s5649 = sld [smem:[#allocation8 + $0x386]]
        %v5650 = vstv %s5649
        %v5651 = vmul.f32 %v533, %v5650
        %v5652 = vmul.f32 %v534, %v5650
        %v5653 = vmul.f32 %v535, %v5650
        %v5654 = vmul.f32 %v536, %v5650
        %v5655 = vmul.f32 %v537, %v5650
        %v5656 = vmul.f32 %v538, %v5650
        %v5657 = vmul.f32 %v539, %v5650
        %v5658 = vmul.f32 %v540, %v5650
        %v5659 = vmul.f32 %v541, %v5650
        %v5660 = vadd.f32 %v5640, %v5651
        %v5661 = vadd.f32 %v5641, %v5652
        %v5662 = vadd.f32 %v5642, %v5653
        %v5663 = vadd.f32 %v5643, %v5654
        %v5664 = vadd.f32 %v5644, %v5655
        %v5665 = vadd.f32 %v5645, %v5656
        %v5666 = vadd.f32 %v5646, %v5657
        %v5667 = vadd.f32 %v5647, %v5658
        %v5668 = vadd.f32 %v5648, %v5659
        %s5669 = sld [smem:[#allocation8 + $0x387]]
        %v5670 = vstv %s5669
        %v5671 = vmul.f32 %v533, %v5670
        %v5672 = vmul.f32 %v534, %v5670
        %v5673 = vmul.f32 %v535, %v5670
        %v5674 = vmul.f32 %v536, %v5670
        %v5675 = vmul.f32 %v537, %v5670
        %v5676 = vmul.f32 %v538, %v5670
        %v5677 = vmul.f32 %v539, %v5670
        %v5678 = vmul.f32 %v540, %v5670
        %v5679 = vmul.f32 %v541, %v5670
        %5689 = vrot.lane.b32.xlu0 %v5671, 126
        %v5690 = vpop.permute.xlu0 %5689
        %5691 = vrot.lane.b32.xlu0 %v5672, 126
        %v5692 = vpop.permute.xlu0 %5691
        %5693 = vrot.lane.b32.xlu0 %v5673, 126
        %v5694 = vpop.permute.xlu0 %5693
        %5695 = vrot.lane.b32.xlu0 %v5674, 126
        %v5696 = vpop.permute.xlu0 %5695
        %5697 = vrot.lane.b32.xlu0 %v5675, 126
        %v5698 = vpop.permute.xlu0 %5697
        %5699 = vrot.lane.b32.xlu0 %v5676, 126
        %v5700 = vpop.permute.xlu0 %5699
        %5701 = vrot.lane.b32.xlu0 %v5677, 126
        %v5702 = vpop.permute.xlu0 %5701
        %5703 = vrot.lane.b32.xlu0 %v5678, 126
        %v5704 = vpop.permute.xlu0 %5703
        %5705 = vrot.lane.b32.xlu0 %v5679, 126
        %v5706 = vpop.permute.xlu0 %5705
        %v5707 = vsel %vm592, %v5690, %v5692
        %v5708 = vsel %vm592, %v5692, %v5694
        %v5709 = vsel %vm592, %v5694, %v5696
        %v5710 = vsel %vm592, %v5696, %v5698
        %v5711 = vsel %vm592, %v5698, %v5700
        %v5712 = vsel %vm592, %v5700, %v5702
        %v5713 = vsel %vm592, %v5702, %v5704
        %v5714 = vsel %vm592, %v5704, %v5706
        %v5724 = vadd.f32 %v5660, %v5707
        %v5725 = vadd.f32 %v5661, %v5708
        %v5726 = vadd.f32 %v5662, %v5709
        %v5727 = vadd.f32 %v5663, %v5710
        %v5728 = vadd.f32 %v5664, %v5711
        %v5729 = vadd.f32 %v5665, %v5712
        %v5730 = vadd.f32 %v5666, %v5713
        %v5731 = vadd.f32 %v5667, %v5714
        %v5732 = vadd.f32 %v5668, %v5706
        %s5733 = sld [smem:[#allocation8 + $0x388]]
        %v5734 = vstv %s5733
        %v5735 = vmul.f32 %v533, %v5734
        %v5736 = vmul.f32 %v534, %v5734
        %v5737 = vmul.f32 %v535, %v5734
        %v5738 = vmul.f32 %v536, %v5734
        %v5739 = vmul.f32 %v537, %v5734
        %v5740 = vmul.f32 %v538, %v5734
        %v5741 = vmul.f32 %v539, %v5734
        %v5742 = vmul.f32 %v540, %v5734
        %v5743 = vmul.f32 %v541, %v5734
        %5753 = vrot.lane.b32.xlu0 %v5735, 124
        %v5754 = vpop.permute.xlu0 %5753
        %5755 = vrot.lane.b32.xlu0 %v5736, 124
        %v5756 = vpop.permute.xlu0 %5755
        %5757 = vrot.lane.b32.xlu0 %v5737, 124
        %v5758 = vpop.permute.xlu0 %5757
        %5759 = vrot.lane.b32.xlu0 %v5738, 124
        %v5760 = vpop.permute.xlu0 %5759
        %5761 = vrot.lane.b32.xlu0 %v5739, 124
        %v5762 = vpop.permute.xlu0 %5761
        %5763 = vrot.lane.b32.xlu0 %v5740, 124
        %v5764 = vpop.permute.xlu0 %5763
        %5765 = vrot.lane.b32.xlu0 %v5741, 124
        %v5766 = vpop.permute.xlu0 %5765
        %5767 = vrot.lane.b32.xlu0 %v5742, 124
        %v5768 = vpop.permute.xlu0 %5767
        %5769 = vrot.lane.b32.xlu0 %v5743, 124
        %v5770 = vpop.permute.xlu0 %5769
        %v5771 = vsel %vm657, %v5754, %v5756
        %v5772 = vsel %vm657, %v5756, %v5758
        %v5773 = vsel %vm657, %v5758, %v5760
        %v5774 = vsel %vm657, %v5760, %v5762
        %v5775 = vsel %vm657, %v5762, %v5764
        %v5776 = vsel %vm657, %v5764, %v5766
        %v5777 = vsel %vm657, %v5766, %v5768
        %v5778 = vsel %vm657, %v5768, %v5770
        %v5788 = vadd.f32 %v5724, %v5771
        %v5789 = vadd.f32 %v5725, %v5772
        %v5790 = vadd.f32 %v5726, %v5773
        %v5791 = vadd.f32 %v5727, %v5774
        %v5792 = vadd.f32 %v5728, %v5775
        %v5793 = vadd.f32 %v5729, %v5776
        %v5794 = vadd.f32 %v5730, %v5777
        %v5795 = vadd.f32 %v5731, %v5778
        %v5796 = vadd.f32 %v5732, %v5770
        %s5797 = sld [smem:[#allocation10 + $0x7]]
        %v5798 = vstv %s5797
        %v5799 = vadd.f32 %v5788, %v5798
        %v5800 = vadd.f32 %v5789, %v5798
        %v5801 = vadd.f32 %v5790, %v5798
        %v5802 = vadd.f32 %v5791, %v5798
        %v5803 = vadd.f32 %v5792, %v5798
        %v5804 = vadd.f32 %v5793, %v5798
        %v5805 = vadd.f32 %v5794, %v5798
        %v5806 = vadd.f32 %v5795, %v5798
        %v5807 = vadd.f32 %v5796, %v5798
        %v5808 = vmax.f32 %v5799, 0.0
        %v5809 = vmax.f32 %v5800, 0.0
        %v5810 = vmax.f32 %v5801, 0.0
        %v5811 = vmax.f32 %v5802, 0.0
        %v5812 = vmax.f32 %v5803, 0.0
        %v5813 = vmax.f32 %v5804, 0.0
        %v5814 = vmax.f32 %v5805, 0.0
        %v5815 = vmax.f32 %v5806, 0.0
        %v5816 = vmax.f32 %v5807, 0.0
        %5826 = vrot.lane.b32.xlu0 %v5808, 66
        %v5827 = vpop.permute.xlu0 %5826
        %5828 = vrot.lane.b32.xlu0 %v5809, 66
        %v5829 = vpop.permute.xlu0 %5828
        %5830 = vrot.lane.b32.xlu0 %v5810, 66
        %v5831 = vpop.permute.xlu0 %5830
        %5832 = vrot.lane.b32.xlu0 %v5811, 66
        %v5833 = vpop.permute.xlu0 %5832
        %5834 = vrot.lane.b32.xlu0 %v5812, 66
        %v5835 = vpop.permute.xlu0 %5834
        %5836 = vrot.lane.b32.xlu0 %v5813, 66
        %v5837 = vpop.permute.xlu0 %5836
        %5838 = vrot.lane.b32.xlu0 %v5814, 66
        %v5839 = vpop.permute.xlu0 %5838
        %5840 = vrot.lane.b32.xlu0 %v5815, 66
        %v5841 = vpop.permute.xlu0 %5840
        %5842 = vrot.lane.b32.xlu0 %v5816, 66
        %v5843 = vpop.permute.xlu0 %5842
        %v5844 = vsel %vm1069, %v5827, %v5829
        %v5845 = vsel %vm1069, %v5829, %v5831
        %v5846 = vsel %vm1069, %v5831, %v5833
        %v5847 = vsel %vm1069, %v5833, %v5835
        %v5848 = vsel %vm1069, %v5835, %v5837
        %v5849 = vsel %vm1069, %v5837, %v5839
        %v5850 = vsel %vm1069, %v5839, %v5841
        %v5851 = vsel %vm1069, %v5841, %v5843
        %5860 = vst [vmem:[#allocation3] sm:$0xff] %v5844
        %5861 = vst [vmem:[#allocation3 + $0x8] sm:$0xff] %v5845
        %5862 = vst [vmem:[#allocation3 + $0x10] sm:$0xff] %v5846
        %5863 = vst [vmem:[#allocation3 + $0x18] sm:$0xff] %v5847
        %5864 = vst [vmem:[#allocation3 + $0x20] sm:$0xff] %v5848
        %5865 = vst [vmem:[#allocation3 + $0x28] sm:$0xff] %v5849
        %5866 = vst [vmem:[#allocation3 + $0x30] sm:$0xff] %v5850
        %5867 = vst [vmem:[#allocation3 + $0x38] sm:$0xff] %v5851
        %v5868 = vld [vmem:[#allocation3] sm:$0xff]
        %v5869 = vld [vmem:[#allocation3 + $0x8] sm:$0xff]
        %v5870 = vld [vmem:[#allocation3 + $0x10] sm:$0xff]
        %v5871 = vld [vmem:[#allocation3 + $0x18] sm:$0xff]
        %v5872 = vld [vmem:[#allocation3 + $0x20] sm:$0xff]
        %v5873 = vld [vmem:[#allocation3 + $0x28] sm:$0xff]
        %v5874 = vld [vmem:[#allocation3 + $0x30] sm:$0xff]
        %v5875 = vld [vmem:[#allocation3 + $0x38] sm:$0xff]
        %v5876 = vld [vmem:[#allocation3] sm:$0xff]
        %v5877 = vld [vmem:[#allocation3 + $0x8] sm:$0xff]
        %v5878 = vld [vmem:[#allocation3 + $0x10] sm:$0xff]
        %v5879 = vld [vmem:[#allocation3 + $0x18] sm:$0xff]
        %v5880 = vld [vmem:[#allocation3 + $0x20] sm:$0xff]
        %v5881 = vld [vmem:[#allocation3 + $0x28] sm:$0xff]
        %v5882 = vld [vmem:[#allocation3 + $0x30] sm:$0xff]
        %v5883 = vld [vmem:[#allocation3 + $0x38] sm:$0xff]
        %v5884 = vld [vmem:[#allocation3 + $0x40] sm:$0xff]
        %5894 = vrot.lane.b32.xlu0 %v5876, 126
        %v5895 = vpop.permute.xlu0 %5894
        %5896 = vrot.lane.b32.xlu0 %v5877, 126
        %v5897 = vpop.permute.xlu0 %5896
        %5898 = vrot.lane.b32.xlu0 %v5878, 126
        %v5899 = vpop.permute.xlu0 %5898
        %5900 = vrot.lane.b32.xlu0 %v5879, 126
        %v5901 = vpop.permute.xlu0 %5900
        %5902 = vrot.lane.b32.xlu0 %v5880, 126
        %v5903 = vpop.permute.xlu0 %5902
        %5904 = vrot.lane.b32.xlu0 %v5881, 126
        %v5905 = vpop.permute.xlu0 %5904
        %5906 = vrot.lane.b32.xlu0 %v5882, 126
        %v5907 = vpop.permute.xlu0 %5906
        %5908 = vrot.lane.b32.xlu0 %v5883, 126
        %v5909 = vpop.permute.xlu0 %5908
        %5910 = vrot.lane.b32.xlu0 %v5884, 126
        %v5911 = vpop.permute.xlu0 %5910
        %v5912 = vsel %vm592, %v5895, %v5897
        %v5913 = vsel %vm592, %v5897, %v5899
        %v5914 = vsel %vm592, %v5899, %v5901
        %v5915 = vsel %vm592, %v5901, %v5903
        %v5916 = vsel %vm592, %v5903, %v5905
        %v5917 = vsel %vm592, %v5905, %v5907
        %v5918 = vsel %vm592, %v5907, %v5909
        %v5919 = vsel %vm592, %v5909, %v5911
        %v5928 = vmax.f32 %v5868, %v5912
        %v5929 = vmax.f32 %v5869, %v5913
        %v5930 = vmax.f32 %v5870, %v5914
        %v5931 = vmax.f32 %v5871, %v5915
        %v5932 = vmax.f32 %v5872, %v5916
        %v5933 = vmax.f32 %v5873, %v5917
        %v5934 = vmax.f32 %v5874, %v5918
        %v5935 = vmax.f32 %v5875, %v5919
        %v5937 = vmax.f32 %v5876, %v5912
        %v5938 = vmax.f32 %v5877, %v5913
        %v5939 = vmax.f32 %v5878, %v5914
        %v5940 = vmax.f32 %v5879, %v5915
        %v5941 = vmax.f32 %v5880, %v5916
        %v5942 = vmax.f32 %v5881, %v5917
        %v5943 = vmax.f32 %v5882, %v5918
        %v5944 = vmax.f32 %v5883, %v5919
        %v5945 = vmax.f32 %v5884, %v5911
        %5955 = vrot.lane.b32.xlu0 %v5937, 64
        %v5956 = vpop.permute.xlu0 %5955
        %5957 = vrot.lane.b32.xlu0 %v5938, 64
        %v5958 = vpop.permute.xlu0 %5957
        %5959 = vrot.lane.b32.xlu0 %v5939, 64
        %v5960 = vpop.permute.xlu0 %5959
        %5961 = vrot.lane.b32.xlu0 %v5940, 64
        %v5962 = vpop.permute.xlu0 %5961
        %5963 = vrot.lane.b32.xlu0 %v5941, 64
        %v5964 = vpop.permute.xlu0 %5963
        %5965 = vrot.lane.b32.xlu0 %v5942, 64
        %v5966 = vpop.permute.xlu0 %5965
        %5967 = vrot.lane.b32.xlu0 %v5943, 64
        %v5968 = vpop.permute.xlu0 %5967
        %5969 = vrot.lane.b32.xlu0 %v5944, 64
        %v5970 = vpop.permute.xlu0 %5969
        %5971 = vrot.lane.b32.xlu0 %v5945, 64
        %v5972 = vpop.permute.xlu0 %5971
        %v5973 = vsel %vm722, %v5956, %v5958
        %v5974 = vsel %vm722, %v5958, %v5960
        %v5975 = vsel %vm722, %v5960, %v5962
        %v5976 = vsel %vm722, %v5962, %v5964
        %v5977 = vsel %vm722, %v5964, %v5966
        %v5978 = vsel %vm722, %v5966, %v5968
        %v5979 = vsel %vm722, %v5968, %v5970
        %v5980 = vsel %vm722, %v5970, %v5972
        %v5989 = vmax.f32 %v5928, %v5973
        %v5990 = vmax.f32 %v5929, %v5974
        %v5991 = vmax.f32 %v5930, %v5975
        %v5992 = vmax.f32 %v5931, %v5976
        %v5993 = vmax.f32 %v5932, %v5977
        %v5994 = vmax.f32 %v5933, %v5978
        %v5995 = vmax.f32 %v5934, %v5979
        %v5996 = vmax.f32 %v5935, %v5980
        %5997 = vst [vmem:[#allocation4 + $0x1c0] sm:$0xff] %v5989
        %5998 = vst [vmem:[#allocation4 + $0x1c8] sm:$0xff] %v5990
        %5999 = vst [vmem:[#allocation4 + $0x1d0] sm:$0xff] %v5991
        %6000 = vst [vmem:[#allocation4 + $0x1d8] sm:$0xff] %v5992
        %6001 = vst [vmem:[#allocation4 + $0x1e0] sm:$0xff] %v5993
        %6002 = vst [vmem:[#allocation4 + $0x1e8] sm:$0xff] %v5994
        %6003 = vst [vmem:[#allocation4 + $0x1f0] sm:$0xff] %v5995
        %6004 = vst [vmem:[#allocation4 + $0x1f8] sm:$0xff] %v5996
        %v6005 = vld [vmem:[#allocation4] sm:$0xff]
        %v6006 = vld [vmem:[#allocation4 + $0x8] sm:$0xff]
        %v6007 = vld [vmem:[#allocation4 + $0x10] sm:$0xff]
        %v6008 = vld [vmem:[#allocation4 + $0x18] sm:$0xff]
        %v6009 = vld [vmem:[#allocation4 + $0x20] sm:$0xff]
        %v6010 = vld [vmem:[#allocation4 + $0x28] sm:$0xff]
        %v6011 = vld [vmem:[#allocation4 + $0x30] sm:$0xff]
        %v6012 = vld [vmem:[#allocation4 + $0x38] sm:$0xff]
        %v6013 = vld [vmem:[#allocation4 + $0x40] sm:$0xff]
        %v6014 = vld [vmem:[#allocation4 + $0x48] sm:$0xff]
        %v6015 = vld [vmem:[#allocation4 + $0x50] sm:$0xff]
        %v6016 = vld [vmem:[#allocation4 + $0x58] sm:$0xff]
        %v6017 = vld [vmem:[#allocation4 + $0x60] sm:$0xff]
        %v6018 = vld [vmem:[#allocation4 + $0x68] sm:$0xff]
        %v6019 = vld [vmem:[#allocation4 + $0x70] sm:$0xff]
        %v6020 = vld [vmem:[#allocation4 + $0x78] sm:$0xff]
        %v6021 = vld [vmem:[#allocation4 + $0x80] sm:$0xff]
        %v6022 = vld [vmem:[#allocation4 + $0x88] sm:$0xff]
        %v6023 = vld [vmem:[#allocation4 + $0x90] sm:$0xff]
        %v6024 = vld [vmem:[#allocation4 + $0x98] sm:$0xff]
        %v6025 = vld [vmem:[#allocation4 + $0xa0] sm:$0xff]
        %v6026 = vld [vmem:[#allocation4 + $0xa8] sm:$0xff]
        %v6027 = vld [vmem:[#allocation4 + $0xb0] sm:$0xff]
        %v6028 = vld [vmem:[#allocation4 + $0xb8] sm:$0xff]
        %v6029 = vld [vmem:[#allocation4 + $0xc0] sm:$0xff]
        %v6030 = vld [vmem:[#allocation4 + $0xc8] sm:$0xff]
        %v6031 = vld [vmem:[#allocation4 + $0xd0] sm:$0xff]
        %v6032 = vld [vmem:[#allocation4 + $0xd8] sm:$0xff]
        %v6033 = vld [vmem:[#allocation4 + $0xe0] sm:$0xff]
        %v6034 = vld [vmem:[#allocation4 + $0xe8] sm:$0xff]
        %v6035 = vld [vmem:[#allocation4 + $0xf0] sm:$0xff]
        %v6036 = vld [vmem:[#allocation4 + $0xf8] sm:$0xff]
        %v6037 = vld [vmem:[#allocation4 + $0x100] sm:$0xff]
        %v6038 = vld [vmem:[#allocation4 + $0x108] sm:$0xff]
        %v6039 = vld [vmem:[#allocation4 + $0x110] sm:$0xff]
        %v6040 = vld [vmem:[#allocation4 + $0x118] sm:$0xff]
        %v6041 = vld [vmem:[#allocation4 + $0x120] sm:$0xff]
        %v6042 = vld [vmem:[#allocation4 + $0x128] sm:$0xff]
        %v6043 = vld [vmem:[#allocation4 + $0x130] sm:$0xff]
        %v6044 = vld [vmem:[#allocation4 + $0x138] sm:$0xff]
        %v6045 = vld [vmem:[#allocation4 + $0x140] sm:$0xff]
        %v6046 = vld [vmem:[#allocation4 + $0x148] sm:$0xff]
        %v6047 = vld [vmem:[#allocation4 + $0x150] sm:$0xff]
        %v6048 = vld [vmem:[#allocation4 + $0x158] sm:$0xff]
        %v6049 = vld [vmem:[#allocation4 + $0x160] sm:$0xff]
        %v6050 = vld [vmem:[#allocation4 + $0x168] sm:$0xff]
        %v6051 = vld [vmem:[#allocation4 + $0x170] sm:$0xff]
        %v6052 = vld [vmem:[#allocation4 + $0x178] sm:$0xff]
        %v6053 = vld [vmem:[#allocation4 + $0x180] sm:$0xff]
        %v6054 = vld [vmem:[#allocation4 + $0x188] sm:$0xff]
        %v6055 = vld [vmem:[#allocation4 + $0x190] sm:$0xff]
        %v6056 = vld [vmem:[#allocation4 + $0x198] sm:$0xff]
        %v6057 = vld [vmem:[#allocation4 + $0x1a0] sm:$0xff]
        %v6058 = vld [vmem:[#allocation4 + $0x1a8] sm:$0xff]
        %v6059 = vld [vmem:[#allocation4 + $0x1b0] sm:$0xff]
        %v6060 = vld [vmem:[#allocation4 + $0x1b8] sm:$0xff]
        %v6061 = vld [vmem:[#allocation4 + $0x1c0] sm:$0xff]
        %v6062 = vld [vmem:[#allocation4 + $0x1c8] sm:$0xff]
        %v6063 = vld [vmem:[#allocation4 + $0x1d0] sm:$0xff]
        %v6064 = vld [vmem:[#allocation4 + $0x1d8] sm:$0xff]
        %v6065 = vld [vmem:[#allocation4 + $0x1e0] sm:$0xff]
        %v6066 = vld [vmem:[#allocation4 + $0x1e8] sm:$0xff]
        %v6067 = vld [vmem:[#allocation4 + $0x1f0] sm:$0xff]
        %v6068 = vld [vmem:[#allocation4 + $0x1f8] sm:$0xff]
        %v6069 = vld [vmem:[%s1] sm:$0xff]
        %v6070 = vld [vmem:[%s1 + $0x8] sm:$0xff]
        %v6071 = vld [vmem:[%s1 + $0x10] sm:$0xff]
        %v6072 = vld [vmem:[%s1 + $0x18] sm:$0xff]
        %v6073 = vld [vmem:[%s1 + $0x20] sm:$0xff]
        %v6074 = vld [vmem:[%s1 + $0x28] sm:$0xff]
        %v6075 = vld [vmem:[%s1 + $0x30] sm:$0xff]
        %v6076 = vld [vmem:[%s1 + $0x38] sm:$0xff]
        %v6077 = vld [vmem:[%s1 + $0x40] sm:$0xff]
        %v6078 = vld [vmem:[%s1 + $0x48] sm:$0xff]
        %v6079 = vld [vmem:[%s1 + $0x50] sm:$0xff]
        %v6080 = vld [vmem:[%s1 + $0x58] sm:$0xff]
        %v6081 = vld [vmem:[%s1 + $0x60] sm:$0xff]
        %v6082 = vld [vmem:[%s1 + $0x68] sm:$0xff]
        %v6083 = vld [vmem:[%s1 + $0x70] sm:$0xff]
        %v6084 = vld [vmem:[%s1 + $0x78] sm:$0xff]
        %v6085 = vld [vmem:[%s1 + $0x80] sm:$0xff]
        %v6086 = vld [vmem:[%s1 + $0x88] sm:$0xff]
        %v6087 = vld [vmem:[%s1 + $0x90] sm:$0xff]
        %v6088 = vld [vmem:[%s1 + $0x98] sm:$0xff]
        %v6089 = vld [vmem:[%s1 + $0xa0] sm:$0xff]
        %v6090 = vld [vmem:[%s1 + $0xa8] sm:$0xff]
        %v6091 = vld [vmem:[%s1 + $0xb0] sm:$0xff]
        %v6092 = vld [vmem:[%s1 + $0xb8] sm:$0xff]
        %v6093 = vld [vmem:[%s1 + $0xc0] sm:$0xff]
        %v6094 = vld [vmem:[%s1 + $0xc8] sm:$0xff]
        %v6095 = vld [vmem:[%s1 + $0xd0] sm:$0xff]
        %v6096 = vld [vmem:[%s1 + $0xd8] sm:$0xff]
        %v6097 = vld [vmem:[%s1 + $0xe0] sm:$0xff]
        %v6098 = vld [vmem:[%s1 + $0xe8] sm:$0xff]
        %v6099 = vld [vmem:[%s1 + $0xf0] sm:$0xff]
        %v6100 = vld [vmem:[%s1 + $0xf8] sm:$0xff]
        %v6101 = vld [vmem:[%s1 + $0x100] sm:$0xff]
        %v6102 = vld [vmem:[%s1 + $0x108] sm:$0xff]
        %v6103 = vld [vmem:[%s1 + $0x110] sm:$0xff]
        %v6104 = vld [vmem:[%s1 + $0x118] sm:$0xff]
        %v6105 = vld [vmem:[%s1 + $0x120] sm:$0xff]
        %v6106 = vld [vmem:[%s1 + $0x128] sm:$0xff]
        %v6107 = vld [vmem:[%s1 + $0x130] sm:$0xff]
        %v6108 = vld [vmem:[%s1 + $0x138] sm:$0xff]
        %v6109 = vld [vmem:[%s1 + $0x140] sm:$0xff]
        %v6110 = vld [vmem:[%s1 + $0x148] sm:$0xff]
        %v6111 = vld [vmem:[%s1 + $0x150] sm:$0xff]
        %v6112 = vld [vmem:[%s1 + $0x158] sm:$0xff]
        %v6113 = vld [vmem:[%s1 + $0x160] sm:$0xff]
        %v6114 = vld [vmem:[%s1 + $0x168] sm:$0xff]
        %v6115 = vld [vmem:[%s1 + $0x170] sm:$0xff]
        %v6116 = vld [vmem:[%s1 + $0x178] sm:$0xff]
        %v6117 = vld [vmem:[%s1 + $0x180] sm:$0xff]
        %v6118 = vld [vmem:[%s1 + $0x188] sm:$0xff]
        %v6119 = vld [vmem:[%s1 + $0x190] sm:$0xff]
        %v6120 = vld [vmem:[%s1 + $0x198] sm:$0xff]
        %v6121 = vld [vmem:[%s1 + $0x1a0] sm:$0xff]
        %v6122 = vld [vmem:[%s1 + $0x1a8] sm:$0xff]
        %v6123 = vld [vmem:[%s1 + $0x1b0] sm:$0xff]
        %v6124 = vld [vmem:[%s1 + $0x1b8] sm:$0xff]
        %v6125 = vld [vmem:[%s1 + $0x1c0] sm:$0xff]
        %v6126 = vld [vmem:[%s1 + $0x1c8] sm:$0xff]
        %v6127 = vld [vmem:[%s1 + $0x1d0] sm:$0xff]
        %v6128 = vld [vmem:[%s1 + $0x1d8] sm:$0xff]
        %v6129 = vld [vmem:[%s1 + $0x1e0] sm:$0xff]
        %v6130 = vld [vmem:[%s1 + $0x1e8] sm:$0xff]
        %v6131 = vld [vmem:[%s1 + $0x1f0] sm:$0xff]
        %v6132 = vld [vmem:[%s1 + $0x1f8] sm:$0xff]
        %v6133 = vld [vmem:[%s1 + $0x200] sm:$0xff]
        %v6134 = vld [vmem:[%s1 + $0x208] sm:$0xff]
        %v6135 = vld [vmem:[%s1 + $0x210] sm:$0xff]
        %v6136 = vld [vmem:[%s1 + $0x218] sm:$0xff]
        %v6137 = vld [vmem:[%s1 + $0x220] sm:$0xff]
        %v6138 = vld [vmem:[%s1 + $0x228] sm:$0xff]
        %v6139 = vld [vmem:[%s1 + $0x230] sm:$0xff]
        %v6140 = vld [vmem:[%s1 + $0x238] sm:$0xff]
        %v6141 = vld [vmem:[%s1 + $0x240] sm:$0xff]
        %v6142 = vld [vmem:[%s1 + $0x248] sm:$0xff]
        %v6143 = vld [vmem:[%s1 + $0x250] sm:$0xff]
        %v6144 = vld [vmem:[%s1 + $0x258] sm:$0xff]
        %v6145 = vld [vmem:[%s1 + $0x260] sm:$0xff]
        %v6146 = vld [vmem:[%s1 + $0x268] sm:$0xff]
        %v6147 = vld [vmem:[%s1 + $0x270] sm:$0xff]
        %v6148 = vld [vmem:[%s1 + $0x278] sm:$0xff]
        %v6149 = vld [vmem:[%s1 + $0x280] sm:$0xff]
        %v6150 = vld [vmem:[%s1 + $0x288] sm:$0xff]
        %v6151 = vld [vmem:[%s1 + $0x290] sm:$0xff]
        %v6152 = vld [vmem:[%s1 + $0x298] sm:$0xff]
        %v6153 = vld [vmem:[%s1 + $0x2a0] sm:$0xff]
        %v6154 = vld [vmem:[%s1 + $0x2a8] sm:$0xff]
        %v6155 = vld [vmem:[%s1 + $0x2b0] sm:$0xff]
        %v6156 = vld [vmem:[%s1 + $0x2b8] sm:$0xff]
        %v6157 = vld [vmem:[%s1 + $0x2c0] sm:$0xff]
        %v6158 = vld [vmem:[%s1 + $0x2c8] sm:$0xff]
        %v6159 = vld [vmem:[%s1 + $0x2d0] sm:$0xff]
        %v6160 = vld [vmem:[%s1 + $0x2d8] sm:$0xff]
        %v6161 = vld [vmem:[%s1 + $0x2e0] sm:$0xff]
        %v6162 = vld [vmem:[%s1 + $0x2e8] sm:$0xff]
        %v6163 = vld [vmem:[%s1 + $0x2f0] sm:$0xff]
        %v6164 = vld [vmem:[%s1 + $0x2f8] sm:$0xff]
        %v6165 = vld [vmem:[%s1 + $0x300] sm:$0xff]
        %v6166 = vld [vmem:[%s1 + $0x308] sm:$0xff]
        %v6167 = vld [vmem:[%s1 + $0x310] sm:$0xff]
        %v6168 = vld [vmem:[%s1 + $0x318] sm:$0xff]
        %v6169 = vld [vmem:[%s1 + $0x320] sm:$0xff]
        %v6170 = vld [vmem:[%s1 + $0x328] sm:$0xff]
        %v6171 = vld [vmem:[%s1 + $0x330] sm:$0xff]
        %v6172 = vld [vmem:[%s1 + $0x338] sm:$0xff]
        %v6173 = vld [vmem:[%s1 + $0x340] sm:$0xff]
        %v6174 = vld [vmem:[%s1 + $0x348] sm:$0xff]
        %v6175 = vld [vmem:[%s1 + $0x350] sm:$0xff]
        %v6176 = vld [vmem:[%s1 + $0x358] sm:$0xff]
        %v6177 = vld [vmem:[%s1 + $0x360] sm:$0xff]
        %v6178 = vld [vmem:[%s1 + $0x368] sm:$0xff]
        %v6179 = vld [vmem:[%s1 + $0x370] sm:$0xff]
        %v6180 = vld [vmem:[%s1 + $0x378] sm:$0xff]
        %v6181 = vld [vmem:[%s1 + $0x380] sm:$0xff]
        %v6182 = vld [vmem:[%s1 + $0x388] sm:$0xff]
        %v6183 = vld [vmem:[%s1 + $0x390] sm:$0xff]
        %v6184 = vld [vmem:[%s1 + $0x398] sm:$0xff]
        %v6185 = vld [vmem:[%s1 + $0x3a0] sm:$0xff]
        %v6186 = vld [vmem:[%s1 + $0x3a8] sm:$0xff]
        %v6187 = vld [vmem:[%s1 + $0x3b0] sm:$0xff]
        %v6188 = vld [vmem:[%s1 + $0x3b8] sm:$0xff]
        %v6189 = vld [vmem:[%s1 + $0x3c0] sm:$0xff]
        %v6190 = vld [vmem:[%s1 + $0x3c8] sm:$0xff]
        %v6191 = vld [vmem:[%s1 + $0x3d0] sm:$0xff]
        %v6192 = vld [vmem:[%s1 + $0x3d8] sm:$0xff]
        %v6193 = vld [vmem:[%s1 + $0x3e0] sm:$0xff]
        %v6194 = vld [vmem:[%s1 + $0x3e8] sm:$0xff]
        %v6195 = vld [vmem:[%s1 + $0x3f0] sm:$0xff]
        %v6196 = vld [vmem:[%s1 + $0x3f8] sm:$0xff]
        %6197 = vmatprep.subr.mxu0 0.0
        %v6198 = vand.u32 %v6069, 4294901760
        %6199 = vmatpush1.msra.mxu0 %v6198
        %6200 = vmatprep.subr.mxu0 0.0
        %v6201 = vand.u32 %v6070, 4294901760
        %6202 = vmatpush1.msra.mxu0 %v6201
        %6203 = vmatprep.subr.mxu0 0.0
        %v6204 = vand.u32 %v6071, 4294901760
        %6205 = vmatpush1.msra.mxu0 %v6204
        %6206 = vmatprep.subr.mxu0 0.0
        %v6207 = vand.u32 %v6072, 4294901760
        %6208 = vmatpush1.msra.mxu0 %v6207
        %6209 = vmatprep.subr.mxu0 0.0
        %v6210 = vand.u32 %v6073, 4294901760
        %6211 = vmatpush1.msra.mxu0 %v6210
        %6212 = vmatprep.subr.mxu0 0.0
        %v6213 = vand.u32 %v6074, 4294901760
        %6214 = vmatpush1.msra.mxu0 %v6213
        %6215 = vmatprep.subr.mxu0 0.0
        %v6216 = vand.u32 %v6075, 4294901760
        %6217 = vmatpush1.msra.mxu0 %v6216
        %6218 = vmatprep.subr.mxu0 0.0
        %v6219 = vand.u32 %v6076, 4294901760
        %6220 = vmatpush1.msra.mxu0 %v6219
        %6221 = vmatprep.subr.mxu0 0.0
        %v6222 = vand.u32 %v6077, 4294901760
        %6223 = vmatpush1.msra.mxu0 %v6222
        %6224 = vmatprep.subr.mxu0 0.0
        %v6225 = vand.u32 %v6078, 4294901760
        %6226 = vmatpush1.msra.mxu0 %v6225
        %6227 = vmatprep.subr.mxu0 0.0
        %v6228 = vand.u32 %v6079, 4294901760
        %6229 = vmatpush1.msra.mxu0 %v6228
        %6230 = vmatprep.subr.mxu0 0.0
        %v6231 = vand.u32 %v6080, 4294901760
        %6232 = vmatpush1.msra.mxu0 %v6231
        %6233 = vmatprep.subr.mxu0 0.0
        %v6234 = vand.u32 %v6081, 4294901760
        %6235 = vmatpush1.msra.mxu0 %v6234
        %6236 = vmatprep.subr.mxu0 0.0
        %v6237 = vand.u32 %v6082, 4294901760
        %6238 = vmatpush1.msra.mxu0 %v6237
        %6239 = vmatprep.subr.mxu0 0.0
        %v6240 = vand.u32 %v6083, 4294901760
        %6241 = vmatpush1.msra.mxu0 %v6240
        %6242 = vmatprep.subr.mxu0 0.0
        %v6243 = vand.u32 %v6084, 4294901760
        %6244 = vmatpush1.msra.mxu0 %v6243
        %6245 = vmatprep.subr.mxu0 0.0
        %v6246 = vand.u32 %v6085, 4294901760
        %6247 = vmatpush1.msra.mxu0 %v6246
        %6248 = vmatprep.subr.mxu0 0.0
        %v6249 = vand.u32 %v6086, 4294901760
        %6250 = vmatpush1.msra.mxu0 %v6249
        %6251 = vmatprep.subr.mxu0 0.0
        %v6252 = vand.u32 %v6087, 4294901760
        %6253 = vmatpush1.msra.mxu0 %v6252
        %6254 = vmatprep.subr.mxu0 0.0
        %v6255 = vand.u32 %v6088, 4294901760
        %6256 = vmatpush1.msra.mxu0 %v6255
        %6257 = vmatprep.subr.mxu0 0.0
        %v6258 = vand.u32 %v6089, 4294901760
        %6259 = vmatpush1.msra.mxu0 %v6258
        %6260 = vmatprep.subr.mxu0 0.0
        %v6261 = vand.u32 %v6090, 4294901760
        %6262 = vmatpush1.msra.mxu0 %v6261
        %6263 = vmatprep.subr.mxu0 0.0
        %v6264 = vand.u32 %v6091, 4294901760
        %6265 = vmatpush1.msra.mxu0 %v6264
        %6266 = vmatprep.subr.mxu0 0.0
        %v6267 = vand.u32 %v6092, 4294901760
        %6268 = vmatpush1.msra.mxu0 %v6267
        %6269 = vmatprep.subr.mxu0 0.0
        %v6270 = vand.u32 %v6093, 4294901760
        %6271 = vmatpush1.msra.mxu0 %v6270
        %6272 = vmatprep.subr.mxu0 0.0
        %v6273 = vand.u32 %v6094, 4294901760
        %6274 = vmatpush1.msra.mxu0 %v6273
        %6275 = vmatprep.subr.mxu0 0.0
        %v6276 = vand.u32 %v6095, 4294901760
        %6277 = vmatpush1.msra.mxu0 %v6276
        %6278 = vmatprep.subr.mxu0 0.0
        %v6279 = vand.u32 %v6096, 4294901760
        %6280 = vmatpush1.msra.mxu0 %v6279
        %6281 = vmatprep.subr.mxu0 0.0
        %v6282 = vand.u32 %v6097, 4294901760
        %6283 = vmatpush1.msra.mxu0 %v6282
        %6284 = vmatprep.subr.mxu0 0.0
        %v6285 = vand.u32 %v6098, 4294901760
        %6286 = vmatpush1.msra.mxu0 %v6285
        %6287 = vmatprep.subr.mxu0 0.0
        %v6288 = vand.u32 %v6099, 4294901760
        %6289 = vmatpush1.msra.mxu0 %v6288
        %6290 = vmatprep.subr.mxu0 0.0
        %v6291 = vand.u32 %v6100, 4294901760
        %6292 = vmatpush1.msra.mxu0 %v6291
        %v6293 = vand.u32 %v6006, 4294901760
        %v6294 = vsub.f32 %v6006, %v6293
        %v6295 = vand.u32 %v6294, 4294901760
        %v6296 = vsub.f32 %v6294, %v6295
        %v6297 = vand.u32 %v6296, 4294901760
        %6298 = vmatprep.mubr.f32.mxu0 %v6297
        %v6299 = vand.u32 %v6005, 4294901760
        %v6300 = vsub.f32 %v6005, %v6299
        %v6301 = vand.u32 %v6300, 4294901760
        %v6302 = vsub.f32 %v6300, %v6301
        %v6303 = vand.u32 %v6302, 4294901760
        %6304 = vmatmul.mubr.f32.gmra.mrb[0].mxu0 %v6303
        %v6305 = vpop.f32.mrb[0].mxu0
        %v6306 = vadd.f32 0.0, %v6305
        %v6307 = vpop.f32.mrb[0].mxu0
        %v6308 = vand.u32 %v6014, 4294901760
        %v6309 = vsub.f32 %v6014, %v6308
        %v6310 = vand.u32 %v6309, 4294901760
        %v6311 = vsub.f32 %v6309, %v6310
        %v6312 = vand.u32 %v6311, 4294901760
        %6313 = vmatprep.mubr.f32.mxu0 %v6312
        %v6314 = vand.u32 %v6013, 4294901760
        %v6315 = vsub.f32 %v6013, %v6314
        %v6316 = vand.u32 %v6315, 4294901760
        %v6317 = vsub.f32 %v6315, %v6316
        %v6318 = vand.u32 %v6317, 4294901760
        %6319 = vmatmul.mubr.f32.gmra.mrb[0].mxu0 %v6318
        %v6320 = vpop.f32.mrb[0].mxu0
        %v6321 = vadd.f32 0.0, %v6320
        %v6322 = vpop.f32.mrb[0].mxu0
        %v6323 = vand.u32 %v6022, 4294901760
        %v6324 = vsub.f32 %v6022, %v6323
        %v6325 = vand.u32 %v6324, 4294901760
        %v6326 = vsub.f32 %v6324, %v6325
        %v6327 = vand.u32 %v6326, 4294901760
        %6328 = vmatprep.mubr.f32.mxu0 %v6327
        %v6329 = vand.u32 %v6021, 4294901760
        %v6330 = vsub.f32 %v6021, %v6329
        %v6331 = vand.u32 %v6330, 4294901760
        %v6332 = vsub.f32 %v6330, %v6331
        %v6333 = vand.u32 %v6332, 4294901760
        %6334 = vmatmul.mubr.f32.gmra.mrb[0].mxu0 %v6333
        %v6335 = vpop.f32.mrb[0].mxu0
        %v6336 = vadd.f32 0.0, %v6335
        %v6337 = vpop.f32.mrb[0].mxu0
        %v6338 = vand.u32 %v6030, 4294901760
        %v6339 = vsub.f32 %v6030, %v6338
        %v6340 = vand.u32 %v6339, 4294901760
        %v6341 = vsub.f32 %v6339, %v6340
        %v6342 = vand.u32 %v6341, 4294901760
        %6343 = vmatprep.mubr.f32.mxu0 %v6342
        %v6344 = vand.u32 %v6029, 4294901760
        %v6345 = vsub.f32 %v6029, %v6344
        %v6346 = vand.u32 %v6345, 4294901760
        %v6347 = vsub.f32 %v6345, %v6346
        %v6348 = vand.u32 %v6347, 4294901760
        %6349 = vmatmul.mubr.f32.gmra.mrb[0].mxu0 %v6348
        %v6350 = vpop.f32.mrb[0].mxu0
        %v6351 = vadd.f32 0.0, %v6350
        %v6352 = vpop.f32.mrb[0].mxu0
        %v6353 = vand.u32 %v6038, 4294901760
        %v6354 = vsub.f32 %v6038, %v6353
        %v6355 = vand.u32 %v6354, 4294901760
        %v6356 = vsub.f32 %v6354, %v6355
        %v6357 = vand.u32 %v6356, 4294901760
        %6358 = vmatprep.mubr.f32.mxu0 %v6357
        %v6359 = vand.u32 %v6037, 4294901760
        %v6360 = vsub.f32 %v6037, %v6359
        %v6361 = vand.u32 %v6360, 4294901760
        %v6362 = vsub.f32 %v6360, %v6361
        %v6363 = vand.u32 %v6362, 4294901760
        %6364 = vmatmul.mubr.f32.gmra.mrb[0].mxu0 %v6363
        %v6365 = vpop.f32.mrb[0].mxu0
        %v6366 = vadd.f32 0.0, %v6365
        %v6367 = vpop.f32.mrb[0].mxu0
        %v6368 = vand.u32 %v6046, 4294901760
        %v6369 = vsub.f32 %v6046, %v6368
        %v6370 = vand.u32 %v6369, 4294901760
        %v6371 = vsub.f32 %v6369, %v6370
        %v6372 = vand.u32 %v6371, 4294901760
        %6373 = vmatprep.mubr.f32.mxu0 %v6372
        %v6374 = vand.u32 %v6045, 4294901760
        %v6375 = vsub.f32 %v6045, %v6374
        %v6376 = vand.u32 %v6375, 4294901760
        %v6377 = vsub.f32 %v6375, %v6376
        %v6378 = vand.u32 %v6377, 4294901760
        %6379 = vmatmul.mubr.f32.gmra.mrb[0].mxu0 %v6378
        %v6380 = vpop.f32.mrb[0].mxu0
        %v6381 = vadd.f32 0.0, %v6380
        %v6382 = vpop.f32.mrb[0].mxu0
        %v6383 = vand.u32 %v6054, 4294901760
        %v6384 = vsub.f32 %v6054, %v6383
        %v6385 = vand.u32 %v6384, 4294901760
        %v6386 = vsub.f32 %v6384, %v6385
        %v6387 = vand.u32 %v6386, 4294901760
        %6388 = vmatprep.mubr.f32.mxu0 %v6387
        %v6389 = vand.u32 %v6053, 4294901760
        %v6390 = vsub.f32 %v6053, %v6389
        %v6391 = vand.u32 %v6390, 4294901760
        %v6392 = vsub.f32 %v6390, %v6391
        %v6393 = vand.u32 %v6392, 4294901760
        %6394 = vmatmul.mubr.f32.gmra.mrb[0].mxu0 %v6393
        %v6395 = vpop.f32.mrb[0].mxu0
        %v6396 = vadd.f32 0.0, %v6395
        %v6397 = vpop.f32.mrb[0].mxu0
        %v6398 = vand.u32 %v6062, 4294901760
        %v6399 = vsub.f32 %v6062, %v6398
        %v6400 = vand.u32 %v6399, 4294901760
        %v6401 = vsub.f32 %v6399, %v6400
        %v6402 = vand.u32 %v6401, 4294901760
        %6403 = vmatprep.mubr.f32.mxu0 %v6402
        %v6404 = vand.u32 %v6061, 4294901760
        %v6405 = vsub.f32 %v6061, %v6404
        %v6406 = vand.u32 %v6405, 4294901760
        %v6407 = vsub.f32 %v6405, %v6406
        %v6408 = vand.u32 %v6407, 4294901760
        %6409 = vmatmul.mubr.f32.gmra.mrb[0].mxu0 %v6408
        %v6410 = vpop.f32.mrb[0].mxu0
        %v6411 = vadd.f32 0.0, %v6410
        %v6412 = vpop.f32.mrb[0].mxu0
        %6413 = vdwg.mxu0
        %6414 = vmatprep.subr.mxu0 0.0
        %v6415 = vand.u32 %v6069, 4294901760
        %v6416 = vsub.f32 %v6069, %v6415
        %v6417 = vand.u32 %v6416, 4294901760
        %v6418 = vsub.f32 %v6416, %v6417
        %v6419 = vand.u32 %v6418, 4294901760
        %6420 = vmatpush1.msra.mxu0 %v6419
        %6421 = vmatprep.subr.mxu0 0.0
        %v6422 = vand.u32 %v6070, 4294901760
        %v6423 = vsub.f32 %v6070, %v6422
        %v6424 = vand.u32 %v6423, 4294901760
        %v6425 = vsub.f32 %v6423, %v6424
        %v6426 = vand.u32 %v6425, 4294901760
        %6427 = vmatpush1.msra.mxu0 %v6426
        %6428 = vmatprep.subr.mxu0 0.0
        %v6429 = vand.u32 %v6071, 4294901760
        %v6430 = vsub.f32 %v6071, %v6429
        %v6431 = vand.u32 %v6430, 4294901760
        %v6432 = vsub.f32 %v6430, %v6431
        %v6433 = vand.u32 %v6432, 4294901760
        %6434 = vmatpush1.msra.mxu0 %v6433
        %6435 = vmatprep.subr.mxu0 0.0
        %v6436 = vand.u32 %v6072, 4294901760
        %v6437 = vsub.f32 %v6072, %v6436
        %v6438 = vand.u32 %v6437, 4294901760
        %v6439 = vsub.f32 %v6437, %v6438
        %v6440 = vand.u32 %v6439, 4294901760
        %6441 = vmatpush1.msra.mxu0 %v6440
        %6442 = vmatprep.subr.mxu0 0.0
        %v6443 = vand.u32 %v6073, 4294901760
        %v6444 = vsub.f32 %v6073, %v6443
        %v6445 = vand.u32 %v6444, 4294901760
        %v6446 = vsub.f32 %v6444, %v6445
        %v6447 = vand.u32 %v6446, 4294901760
        %6448 = vmatpush1.msra.mxu0 %v6447
        %6449 = vmatprep.subr.mxu0 0.0
        %v6450 = vand.u32 %v6074, 4294901760
        %v6451 = vsub.f32 %v6074, %v6450
        %v6452 = vand.u32 %v6451, 4294901760
        %v6453 = vsub.f32 %v6451, %v6452
        %v6454 = vand.u32 %v6453, 4294901760
        %6455 = vmatpush1.msra.mxu0 %v6454
        %6456 = vmatprep.subr.mxu0 0.0
        %v6457 = vand.u32 %v6075, 4294901760
        %v6458 = vsub.f32 %v6075, %v6457
        %v6459 = vand.u32 %v6458, 4294901760
        %v6460 = vsub.f32 %v6458, %v6459
        %v6461 = vand.u32 %v6460, 4294901760
        %6462 = vmatpush1.msra.mxu0 %v6461
        %6463 = vmatprep.subr.mxu0 0.0
        %v6464 = vand.u32 %v6076, 4294901760
        %v6465 = vsub.f32 %v6076, %v6464
        %v6466 = vand.u32 %v6465, 4294901760
        %v6467 = vsub.f32 %v6465, %v6466
        %v6468 = vand.u32 %v6467, 4294901760
        %6469 = vmatpush1.msra.mxu0 %v6468
        %6470 = vmatprep.subr.mxu0 0.0
        %v6471 = vand.u32 %v6077, 4294901760
        %v6472 = vsub.f32 %v6077, %v6471
        %v6473 = vand.u32 %v6472, 4294901760
        %v6474 = vsub.f32 %v6472, %v6473
        %v6475 = vand.u32 %v6474, 4294901760
        %6476 = vmatpush1.msra.mxu0 %v6475
        %6477 = vmatprep.subr.mxu0 0.0
        %v6478 = vand.u32 %v6078, 4294901760
        %v6479 = vsub.f32 %v6078, %v6478
        %v6480 = vand.u32 %v6479, 4294901760
        %v6481 = vsub.f32 %v6479, %v6480
        %v6482 = vand.u32 %v6481, 4294901760
        %6483 = vmatpush1.msra.mxu0 %v6482
        %6484 = vmatprep.subr.mxu0 0.0
        %v6485 = vand.u32 %v6079, 4294901760
        %v6486 = vsub.f32 %v6079, %v6485
        %v6487 = vand.u32 %v6486, 4294901760
        %v6488 = vsub.f32 %v6486, %v6487
        %v6489 = vand.u32 %v6488, 4294901760
        %6490 = vmatpush1.msra.mxu0 %v6489
        %6491 = vmatprep.subr.mxu0 0.0
        %v6492 = vand.u32 %v6080, 4294901760
        %v6493 = vsub.f32 %v6080, %v6492
        %v6494 = vand.u32 %v6493, 4294901760
        %v6495 = vsub.f32 %v6493, %v6494
        %v6496 = vand.u32 %v6495, 4294901760
        %6497 = vmatpush1.msra.mxu0 %v6496
        %6498 = vmatprep.subr.mxu0 0.0
        %v6499 = vand.u32 %v6081, 4294901760
        %v6500 = vsub.f32 %v6081, %v6499
        %v6501 = vand.u32 %v6500, 4294901760
        %v6502 = vsub.f32 %v6500, %v6501
        %v6503 = vand.u32 %v6502, 4294901760
        %6504 = vmatpush1.msra.mxu0 %v6503
        %6505 = vmatprep.subr.mxu0 0.0
        %v6506 = vand.u32 %v6082, 4294901760
        %v6507 = vsub.f32 %v6082, %v6506
        %v6508 = vand.u32 %v6507, 4294901760
        %v6509 = vsub.f32 %v6507, %v6508
        %v6510 = vand.u32 %v6509, 4294901760
        %6511 = vmatpush1.msra.mxu0 %v6510
        %6512 = vmatprep.subr.mxu0 0.0
        %v6513 = vand.u32 %v6083, 4294901760
        %v6514 = vsub.f32 %v6083, %v6513
        %v6515 = vand.u32 %v6514, 4294901760
        %v6516 = vsub.f32 %v6514, %v6515
        %v6517 = vand.u32 %v6516, 4294901760
        %6518 = vmatpush1.msra.mxu0 %v6517
        %6519 = vmatprep.subr.mxu0 0.0
        %v6520 = vand.u32 %v6084, 4294901760
        %v6521 = vsub.f32 %v6084, %v6520
        %v6522 = vand.u32 %v6521, 4294901760
        %v6523 = vsub.f32 %v6521, %v6522
        %v6524 = vand.u32 %v6523, 4294901760
        %6525 = vmatpush1.msra.mxu0 %v6524
        %6526 = vmatprep.subr.mxu0 0.0
        %v6527 = vand.u32 %v6085, 4294901760
        %v6528 = vsub.f32 %v6085, %v6527
        %v6529 = vand.u32 %v6528, 4294901760
        %v6530 = vsub.f32 %v6528, %v6529
        %v6531 = vand.u32 %v6530, 4294901760
        %6532 = vmatpush1.msra.mxu0 %v6531
        %6533 = vmatprep.subr.mxu0 0.0
        %v6534 = vand.u32 %v6086, 4294901760
        %v6535 = vsub.f32 %v6086, %v6534
        %v6536 = vand.u32 %v6535, 4294901760
        %v6537 = vsub.f32 %v6535, %v6536
        %v6538 = vand.u32 %v6537, 4294901760
        %6539 = vmatpush1.msra.mxu0 %v6538
        %6540 = vmatprep.subr.mxu0 0.0
        %v6541 = vand.u32 %v6087, 4294901760
        %v6542 = vsub.f32 %v6087, %v6541
        %v6543 = vand.u32 %v6542, 4294901760
        %v6544 = vsub.f32 %v6542, %v6543
        %v6545 = vand.u32 %v6544, 4294901760
        %6546 = vmatpush1.msra.mxu0 %v6545
        %6547 = vmatprep.subr.mxu0 0.0
        %v6548 = vand.u32 %v6088, 4294901760
        %v6549 = vsub.f32 %v6088, %v6548
        %v6550 = vand.u32 %v6549, 4294901760
        %v6551 = vsub.f32 %v6549, %v6550
        %v6552 = vand.u32 %v6551, 4294901760
        %6553 = vmatpush1.msra.mxu0 %v6552
        %6554 = vmatprep.subr.mxu0 0.0
        %v6555 = vand.u32 %v6089, 4294901760
        %v6556 = vsub.f32 %v6089, %v6555
        %v6557 = vand.u32 %v6556, 4294901760
        %v6558 = vsub.f32 %v6556, %v6557
        %v6559 = vand.u32 %v6558, 4294901760
        %6560 = vmatpush1.msra.mxu0 %v6559
        %6561 = vmatprep.subr.mxu0 0.0
        %v6562 = vand.u32 %v6090, 4294901760
        %v6563 = vsub.f32 %v6090, %v6562
        %v6564 = vand.u32 %v6563, 4294901760
        %v6565 = vsub.f32 %v6563, %v6564
        %v6566 = vand.u32 %v6565, 4294901760
        %6567 = vmatpush1.msra.mxu0 %v6566
        %6568 = vmatprep.subr.mxu0 0.0
        %v6569 = vand.u32 %v6091, 4294901760
        %v6570 = vsub.f32 %v6091, %v6569
        %v6571 = vand.u32 %v6570, 4294901760
        %v6572 = vsub.f32 %v6570, %v6571
        %v6573 = vand.u32 %v6572, 4294901760
        %6574 = vmatpush1.msra.mxu0 %v6573
        %6575 = vmatprep.subr.mxu0 0.0
        %v6576 = vand.u32 %v6092, 4294901760
        %v6577 = vsub.f32 %v6092, %v6576
        %v6578 = vand.u32 %v6577, 4294901760
        %v6579 = vsub.f32 %v6577, %v6578
        %v6580 = vand.u32 %v6579, 4294901760
        %6581 = vmatpush1.msra.mxu0 %v6580
        %6582 = vmatprep.subr.mxu0 0.0
        %v6583 = vand.u32 %v6093, 4294901760
        %v6584 = vsub.f32 %v6093, %v6583
        %v6585 = vand.u32 %v6584, 4294901760
        %v6586 = vsub.f32 %v6584, %v6585
        %v6587 = vand.u32 %v6586, 4294901760
        %6588 = vmatpush1.msra.mxu0 %v6587
        %6589 = vmatprep.subr.mxu0 0.0
        %v6590 = vand.u32 %v6094, 4294901760
        %v6591 = vsub.f32 %v6094, %v6590
        %v6592 = vand.u32 %v6591, 4294901760
        %v6593 = vsub.f32 %v6591, %v6592
        %v6594 = vand.u32 %v6593, 4294901760
        %6595 = vmatpush1.msra.mxu0 %v6594
        %6596 = vmatprep.subr.mxu0 0.0
        %v6597 = vand.u32 %v6095, 4294901760
        %v6598 = vsub.f32 %v6095, %v6597
        %v6599 = vand.u32 %v6598, 4294901760
        %v6600 = vsub.f32 %v6598, %v6599
        %v6601 = vand.u32 %v6600, 4294901760
        %6602 = vmatpush1.msra.mxu0 %v6601
        %6603 = vmatprep.subr.mxu0 0.0
        %v6604 = vand.u32 %v6096, 4294901760
        %v6605 = vsub.f32 %v6096, %v6604
        %v6606 = vand.u32 %v6605, 4294901760
        %v6607 = vsub.f32 %v6605, %v6606
        %v6608 = vand.u32 %v6607, 4294901760
        %6609 = vmatpush1.msra.mxu0 %v6608
        %6610 = vmatprep.subr.mxu0 0.0
        %v6611 = vand.u32 %v6097, 4294901760
        %v6612 = vsub.f32 %v6097, %v6611
        %v6613 = vand.u32 %v6612, 4294901760
        %v6614 = vsub.f32 %v6612, %v6613
        %v6615 = vand.u32 %v6614, 4294901760
        %6616 = vmatpush1.msra.mxu0 %v6615
        %6617 = vmatprep.subr.mxu0 0.0
        %v6618 = vand.u32 %v6098, 4294901760
        %v6619 = vsub.f32 %v6098, %v6618
        %v6620 = vand.u32 %v6619, 4294901760
        %v6621 = vsub.f32 %v6619, %v6620
        %v6622 = vand.u32 %v6621, 4294901760
        %6623 = vmatpush1.msra.mxu0 %v6622
        %6624 = vmatprep.subr.mxu0 0.0
        %v6625 = vand.u32 %v6099, 4294901760
        %v6626 = vsub.f32 %v6099, %v6625
        %v6627 = vand.u32 %v6626, 4294901760
        %v6628 = vsub.f32 %v6626, %v6627
        %v6629 = vand.u32 %v6628, 4294901760
        %6630 = vmatpush1.msra.mxu0 %v6629
        %6631 = vmatprep.subr.mxu0 0.0
        %v6632 = vand.u32 %v6100, 4294901760
        %v6633 = vsub.f32 %v6100, %v6632
        %v6634 = vand.u32 %v6633, 4294901760
        %v6635 = vsub.f32 %v6633, %v6634
        %v6636 = vand.u32 %v6635, 4294901760
        %6637 = vmatpush1.msra.mxu0 %v6636
        %v6638 = vand.u32 %v6006, 4294901760
        %6639 = vmatprep.mubr.f32.mxu0 %v6638
        %v6640 = vand.u32 %v6005, 4294901760
        %6641 = vmatmul.mubr.f32.gmra.mrb[0].mxu0 %v6640
        %v6642 = vpop.f32.mrb[0].mxu0
        %v6643 = vadd.f32 %v6306, %v6642
        %v6644 = vpop.f32.mrb[0].mxu0
        %v6645 = vand.u32 %v6014, 4294901760
        %6646 = vmatprep.mubr.f32.mxu0 %v6645
        %v6647 = vand.u32 %v6013, 4294901760
        %6648 = vmatmul.mubr.f32.gmra.mrb[0].mxu0 %v6647
        %v6649 = vpop.f32.mrb[0].mxu0
        %v6650 = vadd.f32 %v6321, %v6649
        %v6651 = vpop.f32.mrb[0].mxu0
        %v6652 = vand.u32 %v6022, 4294901760
        %6653 = vmatprep.mubr.f32.mxu0 %v6652
        %v6654 = vand.u32 %v6021, 4294901760
        %6655 = vmatmul.mubr.f32.gmra.mrb[0].mxu0 %v6654
        %v6656 = vpop.f32.mrb[0].mxu0
        %v6657 = vadd.f32 %v6336, %v6656
        %v6658 = vpop.f32.mrb[0].mxu0
        %v6659 = vand.u32 %v6030, 4294901760
        %6660 = vmatprep.mubr.f32.mxu0 %v6659
        %v6661 = vand.u32 %v6029, 4294901760
        %6662 = vmatmul.mubr.f32.gmra.mrb[0].mxu0 %v6661
        %v6663 = vpop.f32.mrb[0].mxu0
        %v6664 = vadd.f32 %v6351, %v6663
        %v6665 = vpop.f32.mrb[0].mxu0
        %v6666 = vand.u32 %v6038, 4294901760
        %6667 = vmatprep.mubr.f32.mxu0 %v6666
        %v6668 = vand.u32 %v6037, 4294901760
        %6669 = vmatmul.mubr.f32.gmra.mrb[0].mxu0 %v6668
        %v6670 = vpop.f32.mrb[0].mxu0
        %v6671 = vadd.f32 %v6366, %v6670
        %v6672 = vpop.f32.mrb[0].mxu0
        %v6673 = vand.u32 %v6046, 4294901760
        %6674 = vmatprep.mubr.f32.mxu0 %v6673
        %v6675 = vand.u32 %v6045, 4294901760
        %6676 = vmatmul.mubr.f32.gmra.mrb[0].mxu0 %v6675
        %v6677 = vpop.f32.mrb[0].mxu0
        %v6678 = vadd.f32 %v6381, %v6677
        %v6679 = vpop.f32.mrb[0].mxu0
        %v6680 = vand.u32 %v6054, 4294901760
        %6681 = vmatprep.mubr.f32.mxu0 %v6680
        %v6682 = vand.u32 %v6053, 4294901760
        %6683 = vmatmul.mubr.f32.gmra.mrb[0].mxu0 %v6682
        %v6684 = vpop.f32.mrb[0].mxu0
        %v6685 = vadd.f32 %v6396, %v6684
        %v6686 = vpop.f32.mrb[0].mxu0
        %v6687 = vand.u32 %v6062, 4294901760
        %6688 = vmatprep.mubr.f32.mxu0 %v6687
        %v6689 = vand.u32 %v6061, 4294901760
        %6690 = vmatmul.mubr.f32.gmra.mrb[0].mxu0 %v6689
        %v6691 = vpop.f32.mrb[0].mxu0
        %v6692 = vadd.f32 %v6411, %v6691
        %v6693 = vpop.f32.mrb[0].mxu0
        %6694 = vdwg.mxu0
        %6695 = vmatprep.subr.mxu0 0.0
        %v6696 = vand.u32 %v6069, 4294901760
        %v6697 = vsub.f32 %v6069, %v6696
        %6698 = vmatpush1.msra.mxu0 %v6697
        %6699 = vmatprep.subr.mxu0 0.0
        %v6700 = vand.u32 %v6070, 4294901760
        %v6701 = vsub.f32 %v6070, %v6700
        %6702 = vmatpush1.msra.mxu0 %v6701
        %6703 = vmatprep.subr.mxu0 0.0
        %v6704 = vand.u32 %v6071, 4294901760
        %v6705 = vsub.f32 %v6071, %v6704
        %6706 = vmatpush1.msra.mxu0 %v6705
        %6707 = vmatprep.subr.mxu0 0.0
        %v6708 = vand.u32 %v6072, 4294901760
        %v6709 = vsub.f32 %v6072, %v6708
        %6710 = vmatpush1.msra.mxu0 %v6709
        %6711 = vmatprep.subr.mxu0 0.0
        %v6712 = vand.u32 %v6073, 4294901760
        %v6713 = vsub.f32 %v6073, %v6712
        %6714 = vmatpush1.msra.mxu0 %v6713
        %6715 = vmatprep.subr.mxu0 0.0
        %v6716 = vand.u32 %v6074, 4294901760
        %v6717 = vsub.f32 %v6074, %v6716
        %6718 = vmatpush1.msra.mxu0 %v6717
        %6719 = vmatprep.subr.mxu0 0.0
        %v6720 = vand.u32 %v6075, 4294901760
        %v6721 = vsub.f32 %v6075, %v6720
        %6722 = vmatpush1.msra.mxu0 %v6721
        %6723 = vmatprep.subr.mxu0 0.0
        %v6724 = vand.u32 %v6076, 4294901760
        %v6725 = vsub.f32 %v6076, %v6724
        %6726 = vmatpush1.msra.mxu0 %v6725
        %6727 = vmatprep.subr.mxu0 0.0
        %v6728 = vand.u32 %v6077, 4294901760
        %v6729 = vsub.f32 %v6077, %v6728
        %6730 = vmatpush1.msra.mxu0 %v6729
        %6731 = vmatprep.subr.mxu0 0.0
        %v6732 = vand.u32 %v6078, 4294901760
        %v6733 = vsub.f32 %v6078, %v6732
        %6734 = vmatpush1.msra.mxu0 %v6733
        %6735 = vmatprep.subr.mxu0 0.0
        %v6736 = vand.u32 %v6079, 4294901760
        %v6737 = vsub.f32 %v6079, %v6736
        %6738 = vmatpush1.msra.mxu0 %v6737
        %6739 = vmatprep.subr.mxu0 0.0
        %v6740 = vand.u32 %v6080, 4294901760
        %v6741 = vsub.f32 %v6080, %v6740
        %6742 = vmatpush1.msra.mxu0 %v6741
        %6743 = vmatprep.subr.mxu0 0.0
        %v6744 = vand.u32 %v6081, 4294901760
        %v6745 = vsub.f32 %v6081, %v6744
        %6746 = vmatpush1.msra.mxu0 %v6745
        %6747 = vmatprep.subr.mxu0 0.0
        %v6748 = vand.u32 %v6082, 4294901760
        %v6749 = vsub.f32 %v6082, %v6748
        %6750 = vmatpush1.msra.mxu0 %v6749
        %6751 = vmatprep.subr.mxu0 0.0
        %v6752 = vand.u32 %v6083, 4294901760
        %v6753 = vsub.f32 %v6083, %v6752
        %6754 = vmatpush1.msra.mxu0 %v6753
        %6755 = vmatprep.subr.mxu0 0.0
        %v6756 = vand.u32 %v6084, 4294901760
        %v6757 = vsub.f32 %v6084, %v6756
        %6758 = vmatpush1.msra.mxu0 %v6757
        %6759 = vmatprep.subr.mxu0 0.0
        %v6760 = vand.u32 %v6085, 4294901760
        %v6761 = vsub.f32 %v6085, %v6760
        %6762 = vmatpush1.msra.mxu0 %v6761
        %6763 = vmatprep.subr.mxu0 0.0
        %v6764 = vand.u32 %v6086, 4294901760
        %v6765 = vsub.f32 %v6086, %v6764
        %6766 = vmatpush1.msra.mxu0 %v6765
        %6767 = vmatprep.subr.mxu0 0.0
        %v6768 = vand.u32 %v6087, 4294901760
        %v6769 = vsub.f32 %v6087, %v6768
        %6770 = vmatpush1.msra.mxu0 %v6769
        %6771 = vmatprep.subr.mxu0 0.0
        %v6772 = vand.u32 %v6088, 4294901760
        %v6773 = vsub.f32 %v6088, %v6772
        %6774 = vmatpush1.msra.mxu0 %v6773
        %6775 = vmatprep.subr.mxu0 0.0
        %v6776 = vand.u32 %v6089, 4294901760
        %v6777 = vsub.f32 %v6089, %v6776
        %6778 = vmatpush1.msra.mxu0 %v6777
        %6779 = vmatprep.subr.mxu0 0.0
        %v6780 = vand.u32 %v6090, 4294901760
        %v6781 = vsub.f32 %v6090, %v6780
        %6782 = vmatpush1.msra.mxu0 %v6781
        %6783 = vmatprep.subr.mxu0 0.0
        %v6784 = vand.u32 %v6091, 4294901760
        %v6785 = vsub.f32 %v6091, %v6784
        %6786 = vmatpush1.msra.mxu0 %v6785
        %6787 = vmatprep.subr.mxu0 0.0
        %v6788 = vand.u32 %v6092, 4294901760
        %v6789 = vsub.f32 %v6092, %v6788
        %6790 = vmatpush1.msra.mxu0 %v6789
        %6791 = vmatprep.subr.mxu0 0.0
        %v6792 = vand.u32 %v6093, 4294901760
        %v6793 = vsub.f32 %v6093, %v6792
        %6794 = vmatpush1.msra.mxu0 %v6793
        %6795 = vmatprep.subr.mxu0 0.0
        %v6796 = vand.u32 %v6094, 4294901760
        %v6797 = vsub.f32 %v6094, %v6796
        %6798 = vmatpush1.msra.mxu0 %v6797
        %6799 = vmatprep.subr.mxu0 0.0
        %v6800 = vand.u32 %v6095, 4294901760
        %v6801 = vsub.f32 %v6095, %v6800
        %6802 = vmatpush1.msra.mxu0 %v6801
        %6803 = vmatprep.subr.mxu0 0.0
        %v6804 = vand.u32 %v6096, 4294901760
        %v6805 = vsub.f32 %v6096, %v6804
        %6806 = vmatpush1.msra.mxu0 %v6805
        %6807 = vmatprep.subr.mxu0 0.0
        %v6808 = vand.u32 %v6097, 4294901760
        %v6809 = vsub.f32 %v6097, %v6808
        %6810 = vmatpush1.msra.mxu0 %v6809
        %6811 = vmatprep.subr.mxu0 0.0
        %v6812 = vand.u32 %v6098, 4294901760
        %v6813 = vsub.f32 %v6098, %v6812
        %6814 = vmatpush1.msra.mxu0 %v6813
        %6815 = vmatprep.subr.mxu0 0.0
        %v6816 = vand.u32 %v6099, 4294901760
        %v6817 = vsub.f32 %v6099, %v6816
        %6818 = vmatpush1.msra.mxu0 %v6817
        %6819 = vmatprep.subr.mxu0 0.0
        %v6820 = vand.u32 %v6100, 4294901760
        %v6821 = vsub.f32 %v6100, %v6820
        %6822 = vmatpush1.msra.mxu0 %v6821
        %v6823 = vand.u32 %v6006, 4294901760
        %v6824 = vsub.f32 %v6006, %v6823
        %6825 = vmatprep.mubr.f32.mxu0 %v6824
        %v6826 = vand.u32 %v6005, 4294901760
        %v6827 = vsub.f32 %v6005, %v6826
        %6828 = vmatmul.mubr.f32.gmra.mrb[0].mxu0 %v6827
        %v6829 = vpop.f32.mrb[0].mxu0
        %v6830 = vadd.f32 %v6643, %v6829
        %v6831 = vpop.f32.mrb[0].mxu0
        %v6832 = vand.u32 %v6014, 4294901760
        %v6833 = vsub.f32 %v6014, %v6832
        %6834 = vmatprep.mubr.f32.mxu0 %v6833
        %v6835 = vand.u32 %v6013, 4294901760
        %v6836 = vsub.f32 %v6013, %v6835
        %6837 = vmatmul.mubr.f32.gmra.mrb[0].mxu0 %v6836
        %v6838 = vpop.f32.mrb[0].mxu0
        %v6839 = vadd.f32 %v6650, %v6838
        %v6840 = vpop.f32.mrb[0].mxu0
        %v6841 = vand.u32 %v6022, 4294901760
        %v6842 = vsub.f32 %v6022, %v6841
        %6843 = vmatprep.mubr.f32.mxu0 %v6842
        %v6844 = vand.u32 %v6021, 4294901760
        %v6845 = vsub.f32 %v6021, %v6844
        %6846 = vmatmul.mubr.f32.gmra.mrb[0].mxu0 %v6845
        %v6847 = vpop.f32.mrb[0].mxu0
        %v6848 = vadd.f32 %v6657, %v6847
        %v6849 = vpop.f32.mrb[0].mxu0
        %v6850 = vand.u32 %v6030, 4294901760
        %v6851 = vsub.f32 %v6030, %v6850
        %6852 = vmatprep.mubr.f32.mxu0 %v6851
        %v6853 = vand.u32 %v6029, 4294901760
        %v6854 = vsub.f32 %v6029, %v6853
        %6855 = vmatmul.mubr.f32.gmra.mrb[0].mxu0 %v6854
        %v6856 = vpop.f32.mrb[0].mxu0
        %v6857 = vadd.f32 %v6664, %v6856
        %v6858 = vpop.f32.mrb[0].mxu0
        %v6859 = vand.u32 %v6038, 4294901760
        %v6860 = vsub.f32 %v6038, %v6859
        %6861 = vmatprep.mubr.f32.mxu0 %v6860
        %v6862 = vand.u32 %v6037, 4294901760
        %v6863 = vsub.f32 %v6037, %v6862
        %6864 = vmatmul.mubr.f32.gmra.mrb[0].mxu0 %v6863
        %v6865 = vpop.f32.mrb[0].mxu0
        %v6866 = vadd.f32 %v6671, %v6865
        %v6867 = vpop.f32.mrb[0].mxu0
        %v6868 = vand.u32 %v6046, 4294901760
        %v6869 = vsub.f32 %v6046, %v6868
        %6870 = vmatprep.mubr.f32.mxu0 %v6869
        %v6871 = vand.u32 %v6045, 4294901760
        %v6872 = vsub.f32 %v6045, %v6871
        %6873 = vmatmul.mubr.f32.gmra.mrb[0].mxu0 %v6872
        %v6874 = vpop.f32.mrb[0].mxu0
        %v6875 = vadd.f32 %v6678, %v6874
        %v6876 = vpop.f32.mrb[0].mxu0
        %v6877 = vand.u32 %v6054, 4294901760
        %v6878 = vsub.f32 %v6054, %v6877
        %6879 = vmatprep.mubr.f32.mxu0 %v6878
        %v6880 = vand.u32 %v6053, 4294901760
        %v6881 = vsub.f32 %v6053, %v6880
        %6882 = vmatmul.mubr.f32.gmra.mrb[0].mxu0 %v6881
        %v6883 = vpop.f32.mrb[0].mxu0
        %v6884 = vadd.f32 %v6685, %v6883
        %v6885 = vpop.f32.mrb[0].mxu0
        %v6886 = vand.u32 %v6062, 4294901760
        %v6887 = vsub.f32 %v6062, %v6886
        %6888 = vmatprep.mubr.f32.mxu0 %v6887
        %v6889 = vand.u32 %v6061, 4294901760
        %v6890 = vsub.f32 %v6061, %v6889
        %6891 = vmatmul.mubr.f32.gmra.mrb[0].mxu0 %v6890
        %v6892 = vpop.f32.mrb[0].mxu0
        %v6893 = vadd.f32 %v6692, %v6892
        %v6894 = vpop.f32.mrb[0].mxu0
        %6895 = vdwg.mxu0
        %6896 = vmatprep.subr.mxu0 0.0
        %v6897 = vand.u32 %v6069, 4294901760
        %6898 = vmatpush1.msra.mxu0 %v6897
        %6899 = vmatprep.subr.mxu0 0.0
        %v6900 = vand.u32 %v6070, 4294901760
        %6901 = vmatpush1.msra.mxu0 %v6900
        %6902 = vmatprep.subr.mxu0 0.0
        %v6903 = vand.u32 %v6071, 4294901760
        %6904 = vmatpush1.msra.mxu0 %v6903
        %6905 = vmatprep.subr.mxu0 0.0
        %v6906 = vand.u32 %v6072, 4294901760
        %6907 = vmatpush1.msra.mxu0 %v6906
        %6908 = vmatprep.subr.mxu0 0.0
        %v6909 = vand.u32 %v6073, 4294901760
        %6910 = vmatpush1.msra.mxu0 %v6909
        %6911 = vmatprep.subr.mxu0 0.0
        %v6912 = vand.u32 %v6074, 4294901760
        %6913 = vmatpush1.msra.mxu0 %v6912
        %6914 = vmatprep.subr.mxu0 0.0
        %v6915 = vand.u32 %v6075, 4294901760
        %6916 = vmatpush1.msra.mxu0 %v6915
        %6917 = vmatprep.subr.mxu0 0.0
        %v6918 = vand.u32 %v6076, 4294901760
        %6919 = vmatpush1.msra.mxu0 %v6918
        %6920 = vmatprep.subr.mxu0 0.0
        %v6921 = vand.u32 %v6077, 4294901760
        %6922 = vmatpush1.msra.mxu0 %v6921
        %6923 = vmatprep.subr.mxu0 0.0
        %v6924 = vand.u32 %v6078, 4294901760
        %6925 = vmatpush1.msra.mxu0 %v6924
        %6926 = vmatprep.subr.mxu0 0.0
        %v6927 = vand.u32 %v6079, 4294901760
        %6928 = vmatpush1.msra.mxu0 %v6927
        %6929 = vmatprep.subr.mxu0 0.0
        %v6930 = vand.u32 %v6080, 4294901760
        %6931 = vmatpush1.msra.mxu0 %v6930
        %6932 = vmatprep.subr.mxu0 0.0
        %v6933 = vand.u32 %v6081, 4294901760
        %6934 = vmatpush1.msra.mxu0 %v6933
        %6935 = vmatprep.subr.mxu0 0.0
        %v6936 = vand.u32 %v6082, 4294901760
        %6937 = vmatpush1.msra.mxu0 %v6936
        %6938 = vmatprep.subr.mxu0 0.0
        %v6939 = vand.u32 %v6083, 4294901760
        %6940 = vmatpush1.msra.mxu0 %v6939
        %6941 = vmatprep.subr.mxu0 0.0
        %v6942 = vand.u32 %v6084, 4294901760
        %6943 = vmatpush1.msra.mxu0 %v6942
        %6944 = vmatprep.subr.mxu0 0.0
        %v6945 = vand.u32 %v6085, 4294901760
        %6946 = vmatpush1.msra.mxu0 %v6945
        %6947 = vmatprep.subr.mxu0 0.0
        %v6948 = vand.u32 %v6086, 4294901760
        %6949 = vmatpush1.msra.mxu0 %v6948
        %6950 = vmatprep.subr.mxu0 0.0
        %v6951 = vand.u32 %v6087, 4294901760
        %6952 = vmatpush1.msra.mxu0 %v6951
        %6953 = vmatprep.subr.mxu0 0.0
        %v6954 = vand.u32 %v6088, 4294901760
        %6955 = vmatpush1.msra.mxu0 %v6954
        %6956 = vmatprep.subr.mxu0 0.0
        %v6957 = vand.u32 %v6089, 4294901760
        %6958 = vmatpush1.msra.mxu0 %v6957
        %6959 = vmatprep.subr.mxu0 0.0
        %v6960 = vand.u32 %v6090, 4294901760
        %6961 = vmatpush1.msra.mxu0 %v6960
        %6962 = vmatprep.subr.mxu0 0.0
        %v6963 = vand.u32 %v6091, 4294901760
        %6964 = vmatpush1.msra.mxu0 %v6963
        %6965 = vmatprep.subr.mxu0 0.0
        %v6966 = vand.u32 %v6092, 4294901760
        %6967 = vmatpush1.msra.mxu0 %v6966
        %6968 = vmatprep.subr.mxu0 0.0
        %v6969 = vand.u32 %v6093, 4294901760
        %6970 = vmatpush1.msra.mxu0 %v6969
        %6971 = vmatprep.subr.mxu0 0.0
        %v6972 = vand.u32 %v6094, 4294901760
        %6973 = vmatpush1.msra.mxu0 %v6972
        %6974 = vmatprep.subr.mxu0 0.0
        %v6975 = vand.u32 %v6095, 4294901760
        %6976 = vmatpush1.msra.mxu0 %v6975
        %6977 = vmatprep.subr.mxu0 0.0
        %v6978 = vand.u32 %v6096, 4294901760
        %6979 = vmatpush1.msra.mxu0 %v6978
        %6980 = vmatprep.subr.mxu0 0.0
        %v6981 = vand.u32 %v6097, 4294901760
        %6982 = vmatpush1.msra.mxu0 %v6981
        %6983 = vmatprep.subr.mxu0 0.0
        %v6984 = vand.u32 %v6098, 4294901760
        %6985 = vmatpush1.msra.mxu0 %v6984
        %6986 = vmatprep.subr.mxu0 0.0
        %v6987 = vand.u32 %v6099, 4294901760
        %6988 = vmatpush1.msra.mxu0 %v6987
        %6989 = vmatprep.subr.mxu0 0.0
        %v6990 = vand.u32 %v6100, 4294901760
        %6991 = vmatpush1.msra.mxu0 %v6990
        %v6992 = vand.u32 %v6006, 4294901760
        %v6993 = vsub.f32 %v6006, %v6992
        %v6994 = vand.u32 %v6993, 4294901760
        %6995 = vmatprep.mubr.f32.mxu0 %v6994
        %v6996 = vand.u32 %v6005, 4294901760
        %v6997 = vsub.f32 %v6005, %v6996
        %v6998 = vand.u32 %v6997, 4294901760
        %6999 = vmatmul.mubr.f32.gmra.mrb[0].mxu0 %v6998
        %v7000 = vpop.f32.mrb[0].mxu0
        %v7001 = vadd.f32 %v6830, %v7000
        %v7002 = vpop.f32.mrb[0].mxu0
        %v7003 = vand.u32 %v6014, 4294901760
        %v7004 = vsub.f32 %v6014, %v7003
        %v7005 = vand.u32 %v7004, 4294901760
        %7006 = vmatprep.mubr.f32.mxu0 %v7005
        %v7007 = vand.u32 %v6013, 4294901760
        %v7008 = vsub.f32 %v6013, %v7007
        %v7009 = vand.u32 %v7008, 4294901760
        %7010 = vmatmul.mubr.f32.gmra.mrb[0].mxu0 %v7009
        %v7011 = vpop.f32.mrb[0].mxu0
        %v7012 = vadd.f32 %v6839, %v7011
        %v7013 = vpop.f32.mrb[0].mxu0
        %v7014 = vand.u32 %v6022, 4294901760
        %v7015 = vsub.f32 %v6022, %v7014
        %v7016 = vand.u32 %v7015, 4294901760
        %7017 = vmatprep.mubr.f32.mxu0 %v7016
        %v7018 = vand.u32 %v6021, 4294901760
        %v7019 = vsub.f32 %v6021, %v7018
        %v7020 = vand.u32 %v7019, 4294901760
        %7021 = vmatmul.mubr.f32.gmra.mrb[0].mxu0 %v7020
        %v7022 = vpop.f32.mrb[0].mxu0
        %v7023 = vadd.f32 %v6848, %v7022
        %v7024 = vpop.f32.mrb[0].mxu0
        %v7025 = vand.u32 %v6030, 4294901760
        %v7026 = vsub.f32 %v6030, %v7025
        %v7027 = vand.u32 %v7026, 4294901760
        %7028 = vmatprep.mubr.f32.mxu0 %v7027
        %v7029 = vand.u32 %v6029, 4294901760
        %v7030 = vsub.f32 %v6029, %v7029
        %v7031 = vand.u32 %v7030, 4294901760
        %7032 = vmatmul.mubr.f32.gmra.mrb[0].mxu0 %v7031
        %v7033 = vpop.f32.mrb[0].mxu0
        %v7034 = vadd.f32 %v6857, %v7033
        %v7035 = vpop.f32.mrb[0].mxu0
        %v7036 = vand.u32 %v6038, 4294901760
        %v7037 = vsub.f32 %v6038, %v7036
        %v7038 = vand.u32 %v7037, 4294901760
        %7039 = vmatprep.mubr.f32.mxu0 %v7038
        %v7040 = vand.u32 %v6037, 4294901760
        %v7041 = vsub.f32 %v6037, %v7040
        %v7042 = vand.u32 %v7041, 4294901760
        %7043 = vmatmul.mubr.f32.gmra.mrb[0].mxu0 %v7042
        %v7044 = vpop.f32.mrb[0].mxu0
        %v7045 = vadd.f32 %v6866, %v7044
        %v7046 = vpop.f32.mrb[0].mxu0
        %v7047 = vand.u32 %v6046, 4294901760
        %v7048 = vsub.f32 %v6046, %v7047
        %v7049 = vand.u32 %v7048, 4294901760
        %7050 = vmatprep.mubr.f32.mxu0 %v7049
        %v7051 = vand.u32 %v6045, 4294901760
        %v7052 = vsub.f32 %v6045, %v7051
        %v7053 = vand.u32 %v7052, 4294901760
        %7054 = vmatmul.mubr.f32.gmra.mrb[0].mxu0 %v7053
        %v7055 = vpop.f32.mrb[0].mxu0
        %v7056 = vadd.f32 %v6875, %v7055
        %v7057 = vpop.f32.mrb[0].mxu0
        %v7058 = vand.u32 %v6054, 4294901760
        %v7059 = vsub.f32 %v6054, %v7058
        %v7060 = vand.u32 %v7059, 4294901760
        %7061 = vmatprep.mubr.f32.mxu0 %v7060
        %v7062 = vand.u32 %v6053, 4294901760
        %v7063 = vsub.f32 %v6053, %v7062
        %v7064 = vand.u32 %v7063, 4294901760
        %7065 = vmatmul.mubr.f32.gmra.mrb[0].mxu0 %v7064
        %v7066 = vpop.f32.mrb[0].mxu0
        %v7067 = vadd.f32 %v6884, %v7066
        %v7068 = vpop.f32.mrb[0].mxu0
        %v7069 = vand.u32 %v6062, 4294901760
        %v7070 = vsub.f32 %v6062, %v7069
        %v7071 = vand.u32 %v7070, 4294901760
        %7072 = vmatprep.mubr.f32.mxu0 %v7071
        %v7073 = vand.u32 %v6061, 4294901760
        %v7074 = vsub.f32 %v6061, %v7073
        %v7075 = vand.u32 %v7074, 4294901760
        %7076 = vmatmul.mubr.f32.gmra.mrb[0].mxu0 %v7075
        %v7077 = vpop.f32.mrb[0].mxu0
        %v7078 = vadd.f32 %v6893, %v7077
        %v7079 = vpop.f32.mrb[0].mxu0
        %7080 = vdwg.mxu0
        %7081 = vmatprep.subr.mxu0 0.0
        %v7082 = vand.u32 %v6069, 4294901760
        %v7083 = vsub.f32 %v6069, %v7082
        %v7084 = vand.u32 %v7083, 4294901760
        %7085 = vmatpush1.msra.mxu0 %v7084
        %7086 = vmatprep.subr.mxu0 0.0
        %v7087 = vand.u32 %v6070, 4294901760
        %v7088 = vsub.f32 %v6070, %v7087
        %v7089 = vand.u32 %v7088, 4294901760
        %7090 = vmatpush1.msra.mxu0 %v7089
        %7091 = vmatprep.subr.mxu0 0.0
        %v7092 = vand.u32 %v6071, 4294901760
        %v7093 = vsub.f32 %v6071, %v7092
        %v7094 = vand.u32 %v7093, 4294901760
        %7095 = vmatpush1.msra.mxu0 %v7094
        %7096 = vmatprep.subr.mxu0 0.0
        %v7097 = vand.u32 %v6072, 4294901760
        %v7098 = vsub.f32 %v6072, %v7097
        %v7099 = vand.u32 %v7098, 4294901760
        %7100 = vmatpush1.msra.mxu0 %v7099
        %7101 = vmatprep.subr.mxu0 0.0
        %v7102 = vand.u32 %v6073, 4294901760
        %v7103 = vsub.f32 %v6073, %v7102
        %v7104 = vand.u32 %v7103, 4294901760
        %7105 = vmatpush1.msra.mxu0 %v7104
        %7106 = vmatprep.subr.mxu0 0.0
        %v7107 = vand.u32 %v6074, 4294901760
        %v7108 = vsub.f32 %v6074, %v7107
        %v7109 = vand.u32 %v7108, 4294901760
        %7110 = vmatpush1.msra.mxu0 %v7109
        %7111 = vmatprep.subr.mxu0 0.0
        %v7112 = vand.u32 %v6075, 4294901760
        %v7113 = vsub.f32 %v6075, %v7112
        %v7114 = vand.u32 %v7113, 4294901760
        %7115 = vmatpush1.msra.mxu0 %v7114
        %7116 = vmatprep.subr.mxu0 0.0
        %v7117 = vand.u32 %v6076, 4294901760
        %v7118 = vsub.f32 %v6076, %v7117
        %v7119 = vand.u32 %v7118, 4294901760
        %7120 = vmatpush1.msra.mxu0 %v7119
        %7121 = vmatprep.subr.mxu0 0.0
        %v7122 = vand.u32 %v6077, 4294901760
        %v7123 = vsub.f32 %v6077, %v7122
        %v7124 = vand.u32 %v7123, 4294901760
        %7125 = vmatpush1.msra.mxu0 %v7124
        %7126 = vmatprep.subr.mxu0 0.0
        %v7127 = vand.u32 %v6078, 4294901760
        %v7128 = vsub.f32 %v6078, %v7127
        %v7129 = vand.u32 %v7128, 4294901760
        %7130 = vmatpush1.msra.mxu0 %v7129
        %7131 = vmatprep.subr.mxu0 0.0
        %v7132 = vand.u32 %v6079, 4294901760
        %v7133 = vsub.f32 %v6079, %v7132
        %v7134 = vand.u32 %v7133, 4294901760
        %7135 = vmatpush1.msra.mxu0 %v7134
        %7136 = vmatprep.subr.mxu0 0.0
        %v7137 = vand.u32 %v6080, 4294901760
        %v7138 = vsub.f32 %v6080, %v7137
        %v7139 = vand.u32 %v7138, 4294901760
        %7140 = vmatpush1.msra.mxu0 %v7139
        %7141 = vmatprep.subr.mxu0 0.0
        %v7142 = vand.u32 %v6081, 4294901760
        %v7143 = vsub.f32 %v6081, %v7142
        %v7144 = vand.u32 %v7143, 4294901760
        %7145 = vmatpush1.msra.mxu0 %v7144
        %7146 = vmatprep.subr.mxu0 0.0
        %v7147 = vand.u32 %v6082, 4294901760
        %v7148 = vsub.f32 %v6082, %v7147
        %v7149 = vand.u32 %v7148, 4294901760
        %7150 = vmatpush1.msra.mxu0 %v7149
        %7151 = vmatprep.subr.mxu0 0.0
        %v7152 = vand.u32 %v6083, 4294901760
        %v7153 = vsub.f32 %v6083, %v7152
        %v7154 = vand.u32 %v7153, 4294901760
        %7155 = vmatpush1.msra.mxu0 %v7154
        %7156 = vmatprep.subr.mxu0 0.0
        %v7157 = vand.u32 %v6084, 4294901760
        %v7158 = vsub.f32 %v6084, %v7157
        %v7159 = vand.u32 %v7158, 4294901760
        %7160 = vmatpush1.msra.mxu0 %v7159
        %7161 = vmatprep.subr.mxu0 0.0
        %v7162 = vand.u32 %v6085, 4294901760
        %v7163 = vsub.f32 %v6085, %v7162
        %v7164 = vand.u32 %v7163, 4294901760
        %7165 = vmatpush1.msra.mxu0 %v7164
        %7166 = vmatprep.subr.mxu0 0.0
        %v7167 = vand.u32 %v6086, 4294901760
        %v7168 = vsub.f32 %v6086, %v7167
        %v7169 = vand.u32 %v7168, 4294901760
        %7170 = vmatpush1.msra.mxu0 %v7169
        %7171 = vmatprep.subr.mxu0 0.0
        %v7172 = vand.u32 %v6087, 4294901760
        %v7173 = vsub.f32 %v6087, %v7172
        %v7174 = vand.u32 %v7173, 4294901760
        %7175 = vmatpush1.msra.mxu0 %v7174
        %7176 = vmatprep.subr.mxu0 0.0
        %v7177 = vand.u32 %v6088, 4294901760
        %v7178 = vsub.f32 %v6088, %v7177
        %v7179 = vand.u32 %v7178, 4294901760
        %7180 = vmatpush1.msra.mxu0 %v7179
        %7181 = vmatprep.subr.mxu0 0.0
        %v7182 = vand.u32 %v6089, 4294901760
        %v7183 = vsub.f32 %v6089, %v7182
        %v7184 = vand.u32 %v7183, 4294901760
        %7185 = vmatpush1.msra.mxu0 %v7184
        %7186 = vmatprep.subr.mxu0 0.0
        %v7187 = vand.u32 %v6090, 4294901760
        %v7188 = vsub.f32 %v6090, %v7187
        %v7189 = vand.u32 %v7188, 4294901760
        %7190 = vmatpush1.msra.mxu0 %v7189
        %7191 = vmatprep.subr.mxu0 0.0
        %v7192 = vand.u32 %v6091, 4294901760
        %v7193 = vsub.f32 %v6091, %v7192
        %v7194 = vand.u32 %v7193, 4294901760
        %7195 = vmatpush1.msra.mxu0 %v7194
        %7196 = vmatprep.subr.mxu0 0.0
        %v7197 = vand.u32 %v6092, 4294901760
        %v7198 = vsub.f32 %v6092, %v7197
        %v7199 = vand.u32 %v7198, 4294901760
        %7200 = vmatpush1.msra.mxu0 %v7199
        %7201 = vmatprep.subr.mxu0 0.0
        %v7202 = vand.u32 %v6093, 4294901760
        %v7203 = vsub.f32 %v6093, %v7202
        %v7204 = vand.u32 %v7203, 4294901760
        %7205 = vmatpush1.msra.mxu0 %v7204
        %7206 = vmatprep.subr.mxu0 0.0
        %v7207 = vand.u32 %v6094, 4294901760
        %v7208 = vsub.f32 %v6094, %v7207
        %v7209 = vand.u32 %v7208, 4294901760
        %7210 = vmatpush1.msra.mxu0 %v7209
        %7211 = vmatprep.subr.mxu0 0.0
        %v7212 = vand.u32 %v6095, 4294901760
        %v7213 = vsub.f32 %v6095, %v7212
        %v7214 = vand.u32 %v7213, 4294901760
        %7215 = vmatpush1.msra.mxu0 %v7214
        %7216 = vmatprep.subr.mxu0 0.0
        %v7217 = vand.u32 %v6096, 4294901760
        %v7218 = vsub.f32 %v6096, %v7217
        %v7219 = vand.u32 %v7218, 4294901760
        %7220 = vmatpush1.msra.mxu0 %v7219
        %7221 = vmatprep.subr.mxu0 0.0
        %v7222 = vand.u32 %v6097, 4294901760
        %v7223 = vsub.f32 %v6097, %v7222
        %v7224 = vand.u32 %v7223, 4294901760
        %7225 = vmatpush1.msra.mxu0 %v7224
        %7226 = vmatprep.subr.mxu0 0.0
        %v7227 = vand.u32 %v6098, 4294901760
        %v7228 = vsub.f32 %v6098, %v7227
        %v7229 = vand.u32 %v7228, 4294901760
        %7230 = vmatpush1.msra.mxu0 %v7229
        %7231 = vmatprep.subr.mxu0 0.0
        %v7232 = vand.u32 %v6099, 4294901760
        %v7233 = vsub.f32 %v6099, %v7232
        %v7234 = vand.u32 %v7233, 4294901760
        %7235 = vmatpush1.msra.mxu0 %v7234
        %7236 = vmatprep.subr.mxu0 0.0
        %v7237 = vand.u32 %v6100, 4294901760
        %v7238 = vsub.f32 %v6100, %v7237
        %v7239 = vand.u32 %v7238, 4294901760
        %7240 = vmatpush1.msra.mxu0 %v7239
        %v7241 = vand.u32 %v6006, 4294901760
        %7242 = vmatprep.mubr.f32.mxu0 %v7241
        %v7243 = vand.u32 %v6005, 4294901760
        %7244 = vmatmul.mubr.f32.gmra.mrb[0].mxu0 %v7243
        %v7245 = vpop.f32.mrb[0].mxu0
        %v7246 = vadd.f32 %v7001, %v7245
        %v7247 = vpop.f32.mrb[0].mxu0
        %v7248 = vand.u32 %v6014, 4294901760
        %7249 = vmatprep.mubr.f32.mxu0 %v7248
        %v7250 = vand.u32 %v6013, 4294901760
        %7251 = vmatmul.mubr.f32.gmra.mrb[0].mxu0 %v7250
        %v7252 = vpop.f32.mrb[0].mxu0
        %v7253 = vadd.f32 %v7012, %v7252
        %v7254 = vpop.f32.mrb[0].mxu0
        %v7255 = vand.u32 %v6022, 4294901760
        %7256 = vmatprep.mubr.f32.mxu0 %v7255
        %v7257 = vand.u32 %v6021, 4294901760
        %7258 = vmatmul.mubr.f32.gmra.mrb[0].mxu0 %v7257
        %v7259 = vpop.f32.mrb[0].mxu0
        %v7260 = vadd.f32 %v7023, %v7259
        %v7261 = vpop.f32.mrb[0].mxu0
        %v7262 = vand.u32 %v6030, 4294901760
        %7263 = vmatprep.mubr.f32.mxu0 %v7262
        %v7264 = vand.u32 %v6029, 4294901760
        %7265 = vmatmul.mubr.f32.gmra.mrb[0].mxu0 %v7264
        %v7266 = vpop.f32.mrb[0].mxu0
        %v7267 = vadd.f32 %v7034, %v7266
        %v7268 = vpop.f32.mrb[0].mxu0
        %v7269 = vand.u32 %v6038, 4294901760
        %7270 = vmatprep.mubr.f32.mxu0 %v7269
        %v7271 = vand.u32 %v6037, 4294901760
        %7272 = vmatmul.mubr.f32.gmra.mrb[0].mxu0 %v7271
        %v7273 = vpop.f32.mrb[0].mxu0
        %v7274 = vadd.f32 %v7045, %v7273
        %v7275 = vpop.f32.mrb[0].mxu0
        %v7276 = vand.u32 %v6046, 4294901760
        %7277 = vmatprep.mubr.f32.mxu0 %v7276
        %v7278 = vand.u32 %v6045, 4294901760
        %7279 = vmatmul.mubr.f32.gmra.mrb[0].mxu0 %v7278
        %v7280 = vpop.f32.mrb[0].mxu0
        %v7281 = vadd.f32 %v7056, %v7280
        %v7282 = vpop.f32.mrb[0].mxu0
        %v7283 = vand.u32 %v6054, 4294901760
        %7284 = vmatprep.mubr.f32.mxu0 %v7283
        %v7285 = vand.u32 %v6053, 4294901760
        %7286 = vmatmul.mubr.f32.gmra.mrb[0].mxu0 %v7285
        %v7287 = vpop.f32.mrb[0].mxu0
        %v7288 = vadd.f32 %v7067, %v7287
        %v7289 = vpop.f32.mrb[0].mxu0
        %v7290 = vand.u32 %v6062, 4294901760
        %7291 = vmatprep.mubr.f32.mxu0 %v7290
        %v7292 = vand.u32 %v6061, 4294901760
        %7293 = vmatmul.mubr.f32.gmra.mrb[0].mxu0 %v7292
        %v7294 = vpop.f32.mrb[0].mxu0
        %v7295 = vadd.f32 %v7078, %v7294
        %v7296 = vpop.f32.mrb[0].mxu0
        %7297 = vdwg.mxu0
        %7298 = vmatprep.subr.mxu0 0.0
        %v7299 = vand.u32 %v6069, 4294901760
        %7300 = vmatpush1.msra.mxu0 %v7299
        %7301 = vmatprep.subr.mxu0 0.0
        %v7302 = vand.u32 %v6070, 4294901760
        %7303 = vmatpush1.msra.mxu0 %v7302
        %7304 = vmatprep.subr.mxu0 0.0
        %v7305 = vand.u32 %v6071, 4294901760
        %7306 = vmatpush1.msra.mxu0 %v7305
        %7307 = vmatprep.subr.mxu0 0.0
        %v7308 = vand.u32 %v6072, 4294901760
        %7309 = vmatpush1.msra.mxu0 %v7308
        %7310 = vmatprep.subr.mxu0 0.0
        %v7311 = vand.u32 %v6073, 4294901760
        %7312 = vmatpush1.msra.mxu0 %v7311
        %7313 = vmatprep.subr.mxu0 0.0
        %v7314 = vand.u32 %v6074, 4294901760
        %7315 = vmatpush1.msra.mxu0 %v7314
        %7316 = vmatprep.subr.mxu0 0.0
        %v7317 = vand.u32 %v6075, 4294901760
        %7318 = vmatpush1.msra.mxu0 %v7317
        %7319 = vmatprep.subr.mxu0 0.0
        %v7320 = vand.u32 %v6076, 4294901760
        %7321 = vmatpush1.msra.mxu0 %v7320
        %7322 = vmatprep.subr.mxu0 0.0
        %v7323 = vand.u32 %v6077, 4294901760
        %7324 = vmatpush1.msra.mxu0 %v7323
        %7325 = vmatprep.subr.mxu0 0.0
        %v7326 = vand.u32 %v6078, 4294901760
        %7327 = vmatpush1.msra.mxu0 %v7326
        %7328 = vmatprep.subr.mxu0 0.0
        %v7329 = vand.u32 %v6079, 4294901760
        %7330 = vmatpush1.msra.mxu0 %v7329
        %7331 = vmatprep.subr.mxu0 0.0
        %v7332 = vand.u32 %v6080, 4294901760
        %7333 = vmatpush1.msra.mxu0 %v7332
        %7334 = vmatprep.subr.mxu0 0.0
        %v7335 = vand.u32 %v6081, 4294901760
        %7336 = vmatpush1.msra.mxu0 %v7335
        %7337 = vmatprep.subr.mxu0 0.0
        %v7338 = vand.u32 %v6082, 4294901760
        %7339 = vmatpush1.msra.mxu0 %v7338
        %7340 = vmatprep.subr.mxu0 0.0
        %v7341 = vand.u32 %v6083, 4294901760
        %7342 = vmatpush1.msra.mxu0 %v7341
        %7343 = vmatprep.subr.mxu0 0.0
        %v7344 = vand.u32 %v6084, 4294901760
        %7345 = vmatpush1.msra.mxu0 %v7344
        %7346 = vmatprep.subr.mxu0 0.0
        %v7347 = vand.u32 %v6085, 4294901760
        %7348 = vmatpush1.msra.mxu0 %v7347
        %7349 = vmatprep.subr.mxu0 0.0
        %v7350 = vand.u32 %v6086, 4294901760
        %7351 = vmatpush1.msra.mxu0 %v7350
        %7352 = vmatprep.subr.mxu0 0.0
        %v7353 = vand.u32 %v6087, 4294901760
        %7354 = vmatpush1.msra.mxu0 %v7353
        %7355 = vmatprep.subr.mxu0 0.0
        %v7356 = vand.u32 %v6088, 4294901760
        %7357 = vmatpush1.msra.mxu0 %v7356
        %7358 = vmatprep.subr.mxu0 0.0
        %v7359 = vand.u32 %v6089, 4294901760
        %7360 = vmatpush1.msra.mxu0 %v7359
        %7361 = vmatprep.subr.mxu0 0.0
        %v7362 = vand.u32 %v6090, 4294901760
        %7363 = vmatpush1.msra.mxu0 %v7362
        %7364 = vmatprep.subr.mxu0 0.0
        %v7365 = vand.u32 %v6091, 4294901760
        %7366 = vmatpush1.msra.mxu0 %v7365
        %7367 = vmatprep.subr.mxu0 0.0
        %v7368 = vand.u32 %v6092, 4294901760
        %7369 = vmatpush1.msra.mxu0 %v7368
        %7370 = vmatprep.subr.mxu0 0.0
        %v7371 = vand.u32 %v6093, 4294901760
        %7372 = vmatpush1.msra.mxu0 %v7371
        %7373 = vmatprep.subr.mxu0 0.0
        %v7374 = vand.u32 %v6094, 4294901760
        %7375 = vmatpush1.msra.mxu0 %v7374
        %7376 = vmatprep.subr.mxu0 0.0
        %v7377 = vand.u32 %v6095, 4294901760
        %7378 = vmatpush1.msra.mxu0 %v7377
        %7379 = vmatprep.subr.mxu0 0.0
        %v7380 = vand.u32 %v6096, 4294901760
        %7381 = vmatpush1.msra.mxu0 %v7380
        %7382 = vmatprep.subr.mxu0 0.0
        %v7383 = vand.u32 %v6097, 4294901760
        %7384 = vmatpush1.msra.mxu0 %v7383
        %7385 = vmatprep.subr.mxu0 0.0
        %v7386 = vand.u32 %v6098, 4294901760
        %7387 = vmatpush1.msra.mxu0 %v7386
        %7388 = vmatprep.subr.mxu0 0.0
        %v7389 = vand.u32 %v6099, 4294901760
        %7390 = vmatpush1.msra.mxu0 %v7389
        %7391 = vmatprep.subr.mxu0 0.0
        %v7392 = vand.u32 %v6100, 4294901760
        %7393 = vmatpush1.msra.mxu0 %v7392
        %v7394 = vand.u32 %v6006, 4294901760
        %7395 = vmatprep.mubr.f32.mxu0 %v7394
        %v7396 = vand.u32 %v6005, 4294901760
        %7397 = vmatmul.mubr.f32.gmra.mrb[0].mxu0 %v7396
        %v7398 = vpop.f32.mrb[0].mxu0
        %v7399 = vadd.f32 %v7246, %v7398
        %v7400 = vpop.f32.mrb[0].mxu0
        %v7401 = vand.u32 %v6014, 4294901760
        %7402 = vmatprep.mubr.f32.mxu0 %v7401
        %v7403 = vand.u32 %v6013, 4294901760
        %7404 = vmatmul.mubr.f32.gmra.mrb[0].mxu0 %v7403
        %v7405 = vpop.f32.mrb[0].mxu0
        %v7406 = vadd.f32 %v7253, %v7405
        %v7407 = vpop.f32.mrb[0].mxu0
        %v7408 = vand.u32 %v6022, 4294901760
        %7409 = vmatprep.mubr.f32.mxu0 %v7408
        %v7410 = vand.u32 %v6021, 4294901760
        %7411 = vmatmul.mubr.f32.gmra.mrb[0].mxu0 %v7410
        %v7412 = vpop.f32.mrb[0].mxu0
        %v7413 = vadd.f32 %v7260, %v7412
        %v7414 = vpop.f32.mrb[0].mxu0
        %v7415 = vand.u32 %v6030, 4294901760
        %7416 = vmatprep.mubr.f32.mxu0 %v7415
        %v7417 = vand.u32 %v6029, 4294901760
        %7418 = vmatmul.mubr.f32.gmra.mrb[0].mxu0 %v7417
        %v7419 = vpop.f32.mrb[0].mxu0
        %v7420 = vadd.f32 %v7267, %v7419
        %v7421 = vpop.f32.mrb[0].mxu0
        %v7422 = vand.u32 %v6038, 4294901760
        %7423 = vmatprep.mubr.f32.mxu0 %v7422
        %v7424 = vand.u32 %v6037, 4294901760
        %7425 = vmatmul.mubr.f32.gmra.mrb[0].mxu0 %v7424
        %v7426 = vpop.f32.mrb[0].mxu0
        %v7427 = vadd.f32 %v7274, %v7426
        %v7428 = vpop.f32.mrb[0].mxu0
        %v7429 = vand.u32 %v6046, 4294901760
        %7430 = vmatprep.mubr.f32.mxu0 %v7429
        %v7431 = vand.u32 %v6045, 4294901760
        %7432 = vmatmul.mubr.f32.gmra.mrb[0].mxu0 %v7431
        %v7433 = vpop.f32.mrb[0].mxu0
        %v7434 = vadd.f32 %v7281, %v7433
        %v7435 = vpop.f32.mrb[0].mxu0
        %v7436 = vand.u32 %v6054, 4294901760
        %7437 = vmatprep.mubr.f32.mxu0 %v7436
        %v7438 = vand.u32 %v6053, 4294901760
        %7439 = vmatmul.mubr.f32.gmra.mrb[0].mxu0 %v7438
        %v7440 = vpop.f32.mrb[0].mxu0
        %v7441 = vadd.f32 %v7288, %v7440
        %v7442 = vpop.f32.mrb[0].mxu0
        %v7443 = vand.u32 %v6062, 4294901760
        %7444 = vmatprep.mubr.f32.mxu0 %v7443
        %v7445 = vand.u32 %v6061, 4294901760
        %7446 = vmatmul.mubr.f32.gmra.mrb[0].mxu0 %v7445
        %v7447 = vpop.f32.mrb[0].mxu0
        %v7448 = vadd.f32 %v7295, %v7447
        %v7449 = vpop.f32.mrb[0].mxu0
        %7450 = vdwg.mxu0
        %7451 = vmatprep.subr.mxu0 0.0
        %v7452 = vand.u32 %v6101, 4294901760
        %7453 = vmatpush1.msra.mxu0 %v7452
        %7454 = vmatprep.subr.mxu0 0.0
        %v7455 = vand.u32 %v6102, 4294901760
        %7456 = vmatpush1.msra.mxu0 %v7455
        %7457 = vmatprep.subr.mxu0 0.0
        %v7458 = vand.u32 %v6103, 4294901760
        %7459 = vmatpush1.msra.mxu0 %v7458
        %7460 = vmatprep.subr.mxu0 0.0
        %v7461 = vand.u32 %v6104, 4294901760
        %7462 = vmatpush1.msra.mxu0 %v7461
        %7463 = vmatprep.subr.mxu0 0.0
        %v7464 = vand.u32 %v6105, 4294901760
        %7465 = vmatpush1.msra.mxu0 %v7464
        %7466 = vmatprep.subr.mxu0 0.0
        %v7467 = vand.u32 %v6106, 4294901760
        %7468 = vmatpush1.msra.mxu0 %v7467
        %7469 = vmatprep.subr.mxu0 0.0
        %v7470 = vand.u32 %v6107, 4294901760
        %7471 = vmatpush1.msra.mxu0 %v7470
        %7472 = vmatprep.subr.mxu0 0.0
        %v7473 = vand.u32 %v6108, 4294901760
        %7474 = vmatpush1.msra.mxu0 %v7473
        %7475 = vmatprep.subr.mxu0 0.0
        %v7476 = vand.u32 %v6109, 4294901760
        %7477 = vmatpush1.msra.mxu0 %v7476
        %7478 = vmatprep.subr.mxu0 0.0
        %v7479 = vand.u32 %v6110, 4294901760
        %7480 = vmatpush1.msra.mxu0 %v7479
        %7481 = vmatprep.subr.mxu0 0.0
        %v7482 = vand.u32 %v6111, 4294901760
        %7483 = vmatpush1.msra.mxu0 %v7482
        %7484 = vmatprep.subr.mxu0 0.0
        %v7485 = vand.u32 %v6112, 4294901760
        %7486 = vmatpush1.msra.mxu0 %v7485
        %7487 = vmatprep.subr.mxu0 0.0
        %v7488 = vand.u32 %v6113, 4294901760
        %7489 = vmatpush1.msra.mxu0 %v7488
        %7490 = vmatprep.subr.mxu0 0.0
        %v7491 = vand.u32 %v6114, 4294901760
        %7492 = vmatpush1.msra.mxu0 %v7491
        %7493 = vmatprep.subr.mxu0 0.0
        %v7494 = vand.u32 %v6115, 4294901760
        %7495 = vmatpush1.msra.mxu0 %v7494
        %7496 = vmatprep.subr.mxu0 0.0
        %v7497 = vand.u32 %v6116, 4294901760
        %7498 = vmatpush1.msra.mxu0 %v7497
        %7499 = vmatprep.subr.mxu0 0.0
        %v7500 = vand.u32 %v6117, 4294901760
        %7501 = vmatpush1.msra.mxu0 %v7500
        %7502 = vmatprep.subr.mxu0 0.0
        %v7503 = vand.u32 %v6118, 4294901760
        %7504 = vmatpush1.msra.mxu0 %v7503
        %7505 = vmatprep.subr.mxu0 0.0
        %v7506 = vand.u32 %v6119, 4294901760
        %7507 = vmatpush1.msra.mxu0 %v7506
        %7508 = vmatprep.subr.mxu0 0.0
        %v7509 = vand.u32 %v6120, 4294901760
        %7510 = vmatpush1.msra.mxu0 %v7509
        %7511 = vmatprep.subr.mxu0 0.0
        %v7512 = vand.u32 %v6121, 4294901760
        %7513 = vmatpush1.msra.mxu0 %v7512
        %7514 = vmatprep.subr.mxu0 0.0
        %v7515 = vand.u32 %v6122, 4294901760
        %7516 = vmatpush1.msra.mxu0 %v7515
        %7517 = vmatprep.subr.mxu0 0.0
        %v7518 = vand.u32 %v6123, 4294901760
        %7519 = vmatpush1.msra.mxu0 %v7518
        %7520 = vmatprep.subr.mxu0 0.0
        %v7521 = vand.u32 %v6124, 4294901760
        %7522 = vmatpush1.msra.mxu0 %v7521
        %7523 = vmatprep.subr.mxu0 0.0
        %v7524 = vand.u32 %v6125, 4294901760
        %7525 = vmatpush1.msra.mxu0 %v7524
        %7526 = vmatprep.subr.mxu0 0.0
        %v7527 = vand.u32 %v6126, 4294901760
        %7528 = vmatpush1.msra.mxu0 %v7527
        %7529 = vmatprep.subr.mxu0 0.0
        %v7530 = vand.u32 %v6127, 4294901760
        %7531 = vmatpush1.msra.mxu0 %v7530
        %7532 = vmatprep.subr.mxu0 0.0
        %v7533 = vand.u32 %v6128, 4294901760
        %7534 = vmatpush1.msra.mxu0 %v7533
        %7535 = vmatprep.subr.mxu0 0.0
        %v7536 = vand.u32 %v6129, 4294901760
        %7537 = vmatpush1.msra.mxu0 %v7536
        %7538 = vmatprep.subr.mxu0 0.0
        %v7539 = vand.u32 %v6130, 4294901760
        %7540 = vmatpush1.msra.mxu0 %v7539
        %7541 = vmatprep.subr.mxu0 0.0
        %v7542 = vand.u32 %v6131, 4294901760
        %7543 = vmatpush1.msra.mxu0 %v7542
        %7544 = vmatprep.subr.mxu0 0.0
        %v7545 = vand.u32 %v6132, 4294901760
        %7546 = vmatpush1.msra.mxu0 %v7545
        %v7547 = vand.u32 %v6008, 4294901760
        %v7548 = vsub.f32 %v6008, %v7547
        %v7549 = vand.u32 %v7548, 4294901760
        %v7550 = vsub.f32 %v7548, %v7549
        %v7551 = vand.u32 %v7550, 4294901760
        %7552 = vmatprep.mubr.f32.mxu0 %v7551
        %v7553 = vand.u32 %v6007, 4294901760
        %v7554 = vsub.f32 %v6007, %v7553
        %v7555 = vand.u32 %v7554, 4294901760
        %v7556 = vsub.f32 %v7554, %v7555
        %v7557 = vand.u32 %v7556, 4294901760
        %7558 = vmatmul.mubr.f32.gmra.mrb[0].mxu0 %v7557
        %v7559 = vpop.f32.mrb[0].mxu0
        %v7560 = vadd.f32 %v7399, %v7559
        %v7561 = vpop.f32.mrb[0].mxu0
        %v7562 = vand.u32 %v6016, 4294901760
        %v7563 = vsub.f32 %v6016, %v7562
        %v7564 = vand.u32 %v7563, 4294901760
        %v7565 = vsub.f32 %v7563, %v7564
        %v7566 = vand.u32 %v7565, 4294901760
        %7567 = vmatprep.mubr.f32.mxu0 %v7566
        %v7568 = vand.u32 %v6015, 4294901760
        %v7569 = vsub.f32 %v6015, %v7568
        %v7570 = vand.u32 %v7569, 4294901760
        %v7571 = vsub.f32 %v7569, %v7570
        %v7572 = vand.u32 %v7571, 4294901760
        %7573 = vmatmul.mubr.f32.gmra.mrb[0].mxu0 %v7572
        %v7574 = vpop.f32.mrb[0].mxu0
        %v7575 = vadd.f32 %v7406, %v7574
        %v7576 = vpop.f32.mrb[0].mxu0
        %v7577 = vand.u32 %v6024, 4294901760
        %v7578 = vsub.f32 %v6024, %v7577
        %v7579 = vand.u32 %v7578, 4294901760
        %v7580 = vsub.f32 %v7578, %v7579
        %v7581 = vand.u32 %v7580, 4294901760
        %7582 = vmatprep.mubr.f32.mxu0 %v7581
        %v7583 = vand.u32 %v6023, 4294901760
        %v7584 = vsub.f32 %v6023, %v7583
        %v7585 = vand.u32 %v7584, 4294901760
        %v7586 = vsub.f32 %v7584, %v7585
        %v7587 = vand.u32 %v7586, 4294901760
        %7588 = vmatmul.mubr.f32.gmra.mrb[0].mxu0 %v7587
        %v7589 = vpop.f32.mrb[0].mxu0
        %v7590 = vadd.f32 %v7413, %v7589
        %v7591 = vpop.f32.mrb[0].mxu0
        %v7592 = vand.u32 %v6032, 4294901760
        %v7593 = vsub.f32 %v6032, %v7592
        %v7594 = vand.u32 %v7593, 4294901760
        %v7595 = vsub.f32 %v7593, %v7594
        %v7596 = vand.u32 %v7595, 4294901760
        %7597 = vmatprep.mubr.f32.mxu0 %v7596
        %v7598 = vand.u32 %v6031, 4294901760
        %v7599 = vsub.f32 %v6031, %v7598
        %v7600 = vand.u32 %v7599, 4294901760
        %v7601 = vsub.f32 %v7599, %v7600
        %v7602 = vand.u32 %v7601, 4294901760
        %7603 = vmatmul.mubr.f32.gmra.mrb[0].mxu0 %v7602
        %v7604 = vpop.f32.mrb[0].mxu0
        %v7605 = vadd.f32 %v7420, %v7604
        %v7606 = vpop.f32.mrb[0].mxu0
        %v7607 = vand.u32 %v6040, 4294901760
        %v7608 = vsub.f32 %v6040, %v7607
        %v7609 = vand.u32 %v7608, 4294901760
        %v7610 = vsub.f32 %v7608, %v7609
        %v7611 = vand.u32 %v7610, 4294901760
        %7612 = vmatprep.mubr.f32.mxu0 %v7611
        %v7613 = vand.u32 %v6039, 4294901760
        %v7614 = vsub.f32 %v6039, %v7613
        %v7615 = vand.u32 %v7614, 4294901760
        %v7616 = vsub.f32 %v7614, %v7615
        %v7617 = vand.u32 %v7616, 4294901760
        %7618 = vmatmul.mubr.f32.gmra.mrb[0].mxu0 %v7617
        %v7619 = vpop.f32.mrb[0].mxu0
        %v7620 = vadd.f32 %v7427, %v7619
        %v7621 = vpop.f32.mrb[0].mxu0
        %v7622 = vand.u32 %v6048, 4294901760
        %v7623 = vsub.f32 %v6048, %v7622
        %v7624 = vand.u32 %v7623, 4294901760
        %v7625 = vsub.f32 %v7623, %v7624
        %v7626 = vand.u32 %v7625, 4294901760
        %7627 = vmatprep.mubr.f32.mxu0 %v7626
        %v7628 = vand.u32 %v6047, 4294901760
        %v7629 = vsub.f32 %v6047, %v7628
        %v7630 = vand.u32 %v7629, 4294901760
        %v7631 = vsub.f32 %v7629, %v7630
        %v7632 = vand.u32 %v7631, 4294901760
        %7633 = vmatmul.mubr.f32.gmra.mrb[0].mxu0 %v7632
        %v7634 = vpop.f32.mrb[0].mxu0
        %v7635 = vadd.f32 %v7434, %v7634
        %v7636 = vpop.f32.mrb[0].mxu0
        %v7637 = vand.u32 %v6056, 4294901760
        %v7638 = vsub.f32 %v6056, %v7637
        %v7639 = vand.u32 %v7638, 4294901760
        %v7640 = vsub.f32 %v7638, %v7639
        %v7641 = vand.u32 %v7640, 4294901760
        %7642 = vmatprep.mubr.f32.mxu0 %v7641
        %v7643 = vand.u32 %v6055, 4294901760
        %v7644 = vsub.f32 %v6055, %v7643
        %v7645 = vand.u32 %v7644, 4294901760
        %v7646 = vsub.f32 %v7644, %v7645
        %v7647 = vand.u32 %v7646, 4294901760
        %7648 = vmatmul.mubr.f32.gmra.mrb[0].mxu0 %v7647
        %v7649 = vpop.f32.mrb[0].mxu0
        %v7650 = vadd.f32 %v7441, %v7649
        %v7651 = vpop.f32.mrb[0].mxu0
        %v7652 = vand.u32 %v6064, 4294901760
        %v7653 = vsub.f32 %v6064, %v7652
        %v7654 = vand.u32 %v7653, 4294901760
        %v7655 = vsub.f32 %v7653, %v7654
        %v7656 = vand.u32 %v7655, 4294901760
        %7657 = vmatprep.mubr.f32.mxu0 %v7656
        %v7658 = vand.u32 %v6063, 4294901760
        %v7659 = vsub.f32 %v6063, %v7658
        %v7660 = vand.u32 %v7659, 4294901760
        %v7661 = vsub.f32 %v7659, %v7660
        %v7662 = vand.u32 %v7661, 4294901760
        %7663 = vmatmul.mubr.f32.gmra.mrb[0].mxu0 %v7662
        %v7664 = vpop.f32.mrb[0].mxu0
        %v7665 = vadd.f32 %v7448, %v7664
        %v7666 = vpop.f32.mrb[0].mxu0
        %7667 = vdwg.mxu0
        %7668 = vmatprep.subr.mxu0 0.0
        %v7669 = vand.u32 %v6101, 4294901760
        %v7670 = vsub.f32 %v6101, %v7669
        %v7671 = vand.u32 %v7670, 4294901760
        %v7672 = vsub.f32 %v7670, %v7671
        %v7673 = vand.u32 %v7672, 4294901760
        %7674 = vmatpush1.msra.mxu0 %v7673
        %7675 = vmatprep.subr.mxu0 0.0
        %v7676 = vand.u32 %v6102, 4294901760
        %v7677 = vsub.f32 %v6102, %v7676
        %v7678 = vand.u32 %v7677, 4294901760
        %v7679 = vsub.f32 %v7677, %v7678
        %v7680 = vand.u32 %v7679, 4294901760
        %7681 = vmatpush1.msra.mxu0 %v7680
        %7682 = vmatprep.subr.mxu0 0.0
        %v7683 = vand.u32 %v6103, 4294901760
        %v7684 = vsub.f32 %v6103, %v7683
        %v7685 = vand.u32 %v7684, 4294901760
        %v7686 = vsub.f32 %v7684, %v7685
        %v7687 = vand.u32 %v7686, 4294901760
        %7688 = vmatpush1.msra.mxu0 %v7687
        %7689 = vmatprep.subr.mxu0 0.0
        %v7690 = vand.u32 %v6104, 4294901760
        %v7691 = vsub.f32 %v6104, %v7690
        %v7692 = vand.u32 %v7691, 4294901760
        %v7693 = vsub.f32 %v7691, %v7692
        %v7694 = vand.u32 %v7693, 4294901760
        %7695 = vmatpush1.msra.mxu0 %v7694
        %7696 = vmatprep.subr.mxu0 0.0
        %v7697 = vand.u32 %v6105, 4294901760
        %v7698 = vsub.f32 %v6105, %v7697
        %v7699 = vand.u32 %v7698, 4294901760
        %v7700 = vsub.f32 %v7698, %v7699
        %v7701 = vand.u32 %v7700, 4294901760
        %7702 = vmatpush1.msra.mxu0 %v7701
        %7703 = vmatprep.subr.mxu0 0.0
        %v7704 = vand.u32 %v6106, 4294901760
        %v7705 = vsub.f32 %v6106, %v7704
        %v7706 = vand.u32 %v7705, 4294901760
        %v7707 = vsub.f32 %v7705, %v7706
        %v7708 = vand.u32 %v7707, 4294901760
        %7709 = vmatpush1.msra.mxu0 %v7708
        %7710 = vmatprep.subr.mxu0 0.0
        %v7711 = vand.u32 %v6107, 4294901760
        %v7712 = vsub.f32 %v6107, %v7711
        %v7713 = vand.u32 %v7712, 4294901760
        %v7714 = vsub.f32 %v7712, %v7713
        %v7715 = vand.u32 %v7714, 4294901760
        %7716 = vmatpush1.msra.mxu0 %v7715
        %7717 = vmatprep.subr.mxu0 0.0
        %v7718 = vand.u32 %v6108, 4294901760
        %v7719 = vsub.f32 %v6108, %v7718
        %v7720 = vand.u32 %v7719, 4294901760
        %v7721 = vsub.f32 %v7719, %v7720
        %v7722 = vand.u32 %v7721, 4294901760
        %7723 = vmatpush1.msra.mxu0 %v7722
        %7724 = vmatprep.subr.mxu0 0.0
        %v7725 = vand.u32 %v6109, 4294901760
        %v7726 = vsub.f32 %v6109, %v7725
        %v7727 = vand.u32 %v7726, 4294901760
        %v7728 = vsub.f32 %v7726, %v7727
        %v7729 = vand.u32 %v7728, 4294901760
        %7730 = vmatpush1.msra.mxu0 %v7729
        %7731 = vmatprep.subr.mxu0 0.0
        %v7732 = vand.u32 %v6110, 4294901760
        %v7733 = vsub.f32 %v6110, %v7732
        %v7734 = vand.u32 %v7733, 4294901760
        %v7735 = vsub.f32 %v7733, %v7734
        %v7736 = vand.u32 %v7735, 4294901760
        %7737 = vmatpush1.msra.mxu0 %v7736
        %7738 = vmatprep.subr.mxu0 0.0
        %v7739 = vand.u32 %v6111, 4294901760
        %v7740 = vsub.f32 %v6111, %v7739
        %v7741 = vand.u32 %v7740, 4294901760
        %v7742 = vsub.f32 %v7740, %v7741
        %v7743 = vand.u32 %v7742, 4294901760
        %7744 = vmatpush1.msra.mxu0 %v7743
        %7745 = vmatprep.subr.mxu0 0.0
        %v7746 = vand.u32 %v6112, 4294901760
        %v7747 = vsub.f32 %v6112, %v7746
        %v7748 = vand.u32 %v7747, 4294901760
        %v7749 = vsub.f32 %v7747, %v7748
        %v7750 = vand.u32 %v7749, 4294901760
        %7751 = vmatpush1.msra.mxu0 %v7750
        %7752 = vmatprep.subr.mxu0 0.0
        %v7753 = vand.u32 %v6113, 4294901760
        %v7754 = vsub.f32 %v6113, %v7753
        %v7755 = vand.u32 %v7754, 4294901760
        %v7756 = vsub.f32 %v7754, %v7755
        %v7757 = vand.u32 %v7756, 4294901760
        %7758 = vmatpush1.msra.mxu0 %v7757
        %7759 = vmatprep.subr.mxu0 0.0
        %v7760 = vand.u32 %v6114, 4294901760
        %v7761 = vsub.f32 %v6114, %v7760
        %v7762 = vand.u32 %v7761, 4294901760
        %v7763 = vsub.f32 %v7761, %v7762
        %v7764 = vand.u32 %v7763, 4294901760
        %7765 = vmatpush1.msra.mxu0 %v7764
        %7766 = vmatprep.subr.mxu0 0.0
        %v7767 = vand.u32 %v6115, 4294901760
        %v7768 = vsub.f32 %v6115, %v7767
        %v7769 = vand.u32 %v7768, 4294901760
        %v7770 = vsub.f32 %v7768, %v7769
        %v7771 = vand.u32 %v7770, 4294901760
        %7772 = vmatpush1.msra.mxu0 %v7771
        %7773 = vmatprep.subr.mxu0 0.0
        %v7774 = vand.u32 %v6116, 4294901760
        %v7775 = vsub.f32 %v6116, %v7774
        %v7776 = vand.u32 %v7775, 4294901760
        %v7777 = vsub.f32 %v7775, %v7776
        %v7778 = vand.u32 %v7777, 4294901760
        %7779 = vmatpush1.msra.mxu0 %v7778
        %7780 = vmatprep.subr.mxu0 0.0
        %v7781 = vand.u32 %v6117, 4294901760
        %v7782 = vsub.f32 %v6117, %v7781
        %v7783 = vand.u32 %v7782, 4294901760
        %v7784 = vsub.f32 %v7782, %v7783
        %v7785 = vand.u32 %v7784, 4294901760
        %7786 = vmatpush1.msra.mxu0 %v7785
        %7787 = vmatprep.subr.mxu0 0.0
        %v7788 = vand.u32 %v6118, 4294901760
        %v7789 = vsub.f32 %v6118, %v7788
        %v7790 = vand.u32 %v7789, 4294901760
        %v7791 = vsub.f32 %v7789, %v7790
        %v7792 = vand.u32 %v7791, 4294901760
        %7793 = vmatpush1.msra.mxu0 %v7792
        %7794 = vmatprep.subr.mxu0 0.0
        %v7795 = vand.u32 %v6119, 4294901760
        %v7796 = vsub.f32 %v6119, %v7795
        %v7797 = vand.u32 %v7796, 4294901760
        %v7798 = vsub.f32 %v7796, %v7797
        %v7799 = vand.u32 %v7798, 4294901760
        %7800 = vmatpush1.msra.mxu0 %v7799
        %7801 = vmatprep.subr.mxu0 0.0
        %v7802 = vand.u32 %v6120, 4294901760
        %v7803 = vsub.f32 %v6120, %v7802
        %v7804 = vand.u32 %v7803, 4294901760
        %v7805 = vsub.f32 %v7803, %v7804
        %v7806 = vand.u32 %v7805, 4294901760
        %7807 = vmatpush1.msra.mxu0 %v7806
        %7808 = vmatprep.subr.mxu0 0.0
        %v7809 = vand.u32 %v6121, 4294901760
        %v7810 = vsub.f32 %v6121, %v7809
        %v7811 = vand.u32 %v7810, 4294901760
        %v7812 = vsub.f32 %v7810, %v7811
        %v7813 = vand.u32 %v7812, 4294901760
        %7814 = vmatpush1.msra.mxu0 %v7813
        %7815 = vmatprep.subr.mxu0 0.0
        %v7816 = vand.u32 %v6122, 4294901760
        %v7817 = vsub.f32 %v6122, %v7816
        %v7818 = vand.u32 %v7817, 4294901760
        %v7819 = vsub.f32 %v7817, %v7818
        %v7820 = vand.u32 %v7819, 4294901760
        %7821 = vmatpush1.msra.mxu0 %v7820
        %7822 = vmatprep.subr.mxu0 0.0
        %v7823 = vand.u32 %v6123, 4294901760
        %v7824 = vsub.f32 %v6123, %v7823
        %v7825 = vand.u32 %v7824, 4294901760
        %v7826 = vsub.f32 %v7824, %v7825
        %v7827 = vand.u32 %v7826, 4294901760
        %7828 = vmatpush1.msra.mxu0 %v7827
        %7829 = vmatprep.subr.mxu0 0.0
        %v7830 = vand.u32 %v6124, 4294901760
        %v7831 = vsub.f32 %v6124, %v7830
        %v7832 = vand.u32 %v7831, 4294901760
        %v7833 = vsub.f32 %v7831, %v7832
        %v7834 = vand.u32 %v7833, 4294901760
        %7835 = vmatpush1.msra.mxu0 %v7834
        %7836 = vmatprep.subr.mxu0 0.0
        %v7837 = vand.u32 %v6125, 4294901760
        %v7838 = vsub.f32 %v6125, %v7837
        %v7839 = vand.u32 %v7838, 4294901760
        %v7840 = vsub.f32 %v7838, %v7839
        %v7841 = vand.u32 %v7840, 4294901760
        %7842 = vmatpush1.msra.mxu0 %v7841
        %7843 = vmatprep.subr.mxu0 0.0
        %v7844 = vand.u32 %v6126, 4294901760
        %v7845 = vsub.f32 %v6126, %v7844
        %v7846 = vand.u32 %v7845, 4294901760
        %v7847 = vsub.f32 %v7845, %v7846
        %v7848 = vand.u32 %v7847, 4294901760
        %7849 = vmatpush1.msra.mxu0 %v7848
        %7850 = vmatprep.subr.mxu0 0.0
        %v7851 = vand.u32 %v6127, 4294901760
        %v7852 = vsub.f32 %v6127, %v7851
        %v7853 = vand.u32 %v7852, 4294901760
        %v7854 = vsub.f32 %v7852, %v7853
        %v7855 = vand.u32 %v7854, 4294901760
        %7856 = vmatpush1.msra.mxu0 %v7855
        %7857 = vmatprep.subr.mxu0 0.0
        %v7858 = vand.u32 %v6128, 4294901760
        %v7859 = vsub.f32 %v6128, %v7858
        %v7860 = vand.u32 %v7859, 4294901760
        %v7861 = vsub.f32 %v7859, %v7860
        %v7862 = vand.u32 %v7861, 4294901760
        %7863 = vmatpush1.msra.mxu0 %v7862
        %7864 = vmatprep.subr.mxu0 0.0
        %v7865 = vand.u32 %v6129, 4294901760
        %v7866 = vsub.f32 %v6129, %v7865
        %v7867 = vand.u32 %v7866, 4294901760
        %v7868 = vsub.f32 %v7866, %v7867
        %v7869 = vand.u32 %v7868, 4294901760
        %7870 = vmatpush1.msra.mxu0 %v7869
        %7871 = vmatprep.subr.mxu0 0.0
        %v7872 = vand.u32 %v6130, 4294901760
        %v7873 = vsub.f32 %v6130, %v7872
        %v7874 = vand.u32 %v7873, 4294901760
        %v7875 = vsub.f32 %v7873, %v7874
        %v7876 = vand.u32 %v7875, 4294901760
        %7877 = vmatpush1.msra.mxu0 %v7876
        %7878 = vmatprep.subr.mxu0 0.0
        %v7879 = vand.u32 %v6131, 4294901760
        %v7880 = vsub.f32 %v6131, %v7879
        %v7881 = vand.u32 %v7880, 4294901760
        %v7882 = vsub.f32 %v7880, %v7881
        %v7883 = vand.u32 %v7882, 4294901760
        %7884 = vmatpush1.msra.mxu0 %v7883
        %7885 = vmatprep.subr.mxu0 0.0
        %v7886 = vand.u32 %v6132, 4294901760
        %v7887 = vsub.f32 %v6132, %v7886
        %v7888 = vand.u32 %v7887, 4294901760
        %v7889 = vsub.f32 %v7887, %v7888
        %v7890 = vand.u32 %v7889, 4294901760
        %7891 = vmatpush1.msra.mxu0 %v7890
        %v7892 = vand.u32 %v6008, 4294901760
        %7893 = vmatprep.mubr.f32.mxu0 %v7892
        %v7894 = vand.u32 %v6007, 4294901760
        %7895 = vmatmul.mubr.f32.gmra.mrb[0].mxu0 %v7894
        %v7896 = vpop.f32.mrb[0].mxu0
        %v7897 = vadd.f32 %v7560, %v7896
        %v7898 = vpop.f32.mrb[0].mxu0
        %v7899 = vand.u32 %v6016, 4294901760
        %7900 = vmatprep.mubr.f32.mxu0 %v7899
        %v7901 = vand.u32 %v6015, 4294901760
        %7902 = vmatmul.mubr.f32.gmra.mrb[0].mxu0 %v7901
        %v7903 = vpop.f32.mrb[0].mxu0
        %v7904 = vadd.f32 %v7575, %v7903
        %v7905 = vpop.f32.mrb[0].mxu0
        %v7906 = vand.u32 %v6024, 4294901760
        %7907 = vmatprep.mubr.f32.mxu0 %v7906
        %v7908 = vand.u32 %v6023, 4294901760
        %7909 = vmatmul.mubr.f32.gmra.mrb[0].mxu0 %v7908
        %v7910 = vpop.f32.mrb[0].mxu0
        %v7911 = vadd.f32 %v7590, %v7910
        %v7912 = vpop.f32.mrb[0].mxu0
        %v7913 = vand.u32 %v6032, 4294901760
        %7914 = vmatprep.mubr.f32.mxu0 %v7913
        %v7915 = vand.u32 %v6031, 4294901760
        %7916 = vmatmul.mubr.f32.gmra.mrb[0].mxu0 %v7915
        %v7917 = vpop.f32.mrb[0].mxu0
        %v7918 = vadd.f32 %v7605, %v7917
        %v7919 = vpop.f32.mrb[0].mxu0
        %v7920 = vand.u32 %v6040, 4294901760
        %7921 = vmatprep.mubr.f32.mxu0 %v7920
        %v7922 = vand.u32 %v6039, 4294901760
        %7923 = vmatmul.mubr.f32.gmra.mrb[0].mxu0 %v7922
        %v7924 = vpop.f32.mrb[0].mxu0
        %v7925 = vadd.f32 %v7620, %v7924
        %v7926 = vpop.f32.mrb[0].mxu0
        %v7927 = vand.u32 %v6048, 4294901760
        %7928 = vmatprep.mubr.f32.mxu0 %v7927
        %v7929 = vand.u32 %v6047, 4294901760
        %7930 = vmatmul.mubr.f32.gmra.mrb[0].mxu0 %v7929
        %v7931 = vpop.f32.mrb[0].mxu0
        %v7932 = vadd.f32 %v7635, %v7931
        %v7933 = vpop.f32.mrb[0].mxu0
        %v7934 = vand.u32 %v6056, 4294901760
        %7935 = vmatprep.mubr.f32.mxu0 %v7934
        %v7936 = vand.u32 %v6055, 4294901760
        %7937 = vmatmul.mubr.f32.gmra.mrb[0].mxu0 %v7936
        %v7938 = vpop.f32.mrb[0].mxu0
        %v7939 = vadd.f32 %v7650, %v7938
        %v7940 = vpop.f32.mrb[0].mxu0
        %v7941 = vand.u32 %v6064, 4294901760
        %7942 = vmatprep.mubr.f32.mxu0 %v7941
        %v7943 = vand.u32 %v6063, 4294901760
        %7944 = vmatmul.mubr.f32.gmra.mrb[0].mxu0 %v7943
        %v7945 = vpop.f32.mrb[0].mxu0
        %v7946 = vadd.f32 %v7665, %v7945
        %v7947 = vpop.f32.mrb[0].mxu0
        %7948 = vdwg.mxu0
        %7949 = vmatprep.subr.mxu0 0.0
        %v7950 = vand.u32 %v6101, 4294901760
        %v7951 = vsub.f32 %v6101, %v7950
        %7952 = vmatpush1.msra.mxu0 %v7951
        %7953 = vmatprep.subr.mxu0 0.0
        %v7954 = vand.u32 %v6102, 4294901760
        %v7955 = vsub.f32 %v6102, %v7954
        %7956 = vmatpush1.msra.mxu0 %v7955
        %7957 = vmatprep.subr.mxu0 0.0
        %v7958 = vand.u32 %v6103, 4294901760
        %v7959 = vsub.f32 %v6103, %v7958
        %7960 = vmatpush1.msra.mxu0 %v7959
        %7961 = vmatprep.subr.mxu0 0.0
        %v7962 = vand.u32 %v6104, 4294901760
        %v7963 = vsub.f32 %v6104, %v7962
        %7964 = vmatpush1.msra.mxu0 %v7963
        %7965 = vmatprep.subr.mxu0 0.0
        %v7966 = vand.u32 %v6105, 4294901760
        %v7967 = vsub.f32 %v6105, %v7966
        %7968 = vmatpush1.msra.mxu0 %v7967
        %7969 = vmatprep.subr.mxu0 0.0
        %v7970 = vand.u32 %v6106, 4294901760
        %v7971 = vsub.f32 %v6106, %v7970
        %7972 = vmatpush1.msra.mxu0 %v7971
        %7973 = vmatprep.subr.mxu0 0.0
        %v7974 = vand.u32 %v6107, 4294901760
        %v7975 = vsub.f32 %v6107, %v7974
        %7976 = vmatpush1.msra.mxu0 %v7975
        %7977 = vmatprep.subr.mxu0 0.0
        %v7978 = vand.u32 %v6108, 4294901760
        %v7979 = vsub.f32 %v6108, %v7978
        %7980 = vmatpush1.msra.mxu0 %v7979
        %7981 = vmatprep.subr.mxu0 0.0
        %v7982 = vand.u32 %v6109, 4294901760
        %v7983 = vsub.f32 %v6109, %v7982
        %7984 = vmatpush1.msra.mxu0 %v7983
        %7985 = vmatprep.subr.mxu0 0.0
        %v7986 = vand.u32 %v6110, 4294901760
        %v7987 = vsub.f32 %v6110, %v7986
        %7988 = vmatpush1.msra.mxu0 %v7987
        %7989 = vmatprep.subr.mxu0 0.0
        %v7990 = vand.u32 %v6111, 4294901760
        %v7991 = vsub.f32 %v6111, %v7990
        %7992 = vmatpush1.msra.mxu0 %v7991
        %7993 = vmatprep.subr.mxu0 0.0
        %v7994 = vand.u32 %v6112, 4294901760
        %v7995 = vsub.f32 %v6112, %v7994
        %7996 = vmatpush1.msra.mxu0 %v7995
        %7997 = vmatprep.subr.mxu0 0.0
        %v7998 = vand.u32 %v6113, 4294901760
        %v7999 = vsub.f32 %v6113, %v7998
        %8000 = vmatpush1.msra.mxu0 %v7999
        %8001 = vmatprep.subr.mxu0 0.0
        %v8002 = vand.u32 %v6114, 4294901760
        %v8003 = vsub.f32 %v6114, %v8002
        %8004 = vmatpush1.msra.mxu0 %v8003
        %8005 = vmatprep.subr.mxu0 0.0
        %v8006 = vand.u32 %v6115, 4294901760
        %v8007 = vsub.f32 %v6115, %v8006
        %8008 = vmatpush1.msra.mxu0 %v8007
        %8009 = vmatprep.subr.mxu0 0.0
        %v8010 = vand.u32 %v6116, 4294901760
        %v8011 = vsub.f32 %v6116, %v8010
        %8012 = vmatpush1.msra.mxu0 %v8011
        %8013 = vmatprep.subr.mxu0 0.0
        %v8014 = vand.u32 %v6117, 4294901760
        %v8015 = vsub.f32 %v6117, %v8014
        %8016 = vmatpush1.msra.mxu0 %v8015
        %8017 = vmatprep.subr.mxu0 0.0
        %v8018 = vand.u32 %v6118, 4294901760
        %v8019 = vsub.f32 %v6118, %v8018
        %8020 = vmatpush1.msra.mxu0 %v8019
        %8021 = vmatprep.subr.mxu0 0.0
        %v8022 = vand.u32 %v6119, 4294901760
        %v8023 = vsub.f32 %v6119, %v8022
        %8024 = vmatpush1.msra.mxu0 %v8023
        %8025 = vmatprep.subr.mxu0 0.0
        %v8026 = vand.u32 %v6120, 4294901760
        %v8027 = vsub.f32 %v6120, %v8026
        %8028 = vmatpush1.msra.mxu0 %v8027
        %8029 = vmatprep.subr.mxu0 0.0
        %v8030 = vand.u32 %v6121, 4294901760
        %v8031 = vsub.f32 %v6121, %v8030
        %8032 = vmatpush1.msra.mxu0 %v8031
        %8033 = vmatprep.subr.mxu0 0.0
        %v8034 = vand.u32 %v6122, 4294901760
        %v8035 = vsub.f32 %v6122, %v8034
        %8036 = vmatpush1.msra.mxu0 %v8035
        %8037 = vmatprep.subr.mxu0 0.0
        %v8038 = vand.u32 %v6123, 4294901760
        %v8039 = vsub.f32 %v6123, %v8038
        %8040 = vmatpush1.msra.mxu0 %v8039
        %8041 = vmatprep.subr.mxu0 0.0
        %v8042 = vand.u32 %v6124, 4294901760
        %v8043 = vsub.f32 %v6124, %v8042
        %8044 = vmatpush1.msra.mxu0 %v8043
        %8045 = vmatprep.subr.mxu0 0.0
        %v8046 = vand.u32 %v6125, 4294901760
        %v8047 = vsub.f32 %v6125, %v8046
        %8048 = vmatpush1.msra.mxu0 %v8047
        %8049 = vmatprep.subr.mxu0 0.0
        %v8050 = vand.u32 %v6126, 4294901760
        %v8051 = vsub.f32 %v6126, %v8050
        %8052 = vmatpush1.msra.mxu0 %v8051
        %8053 = vmatprep.subr.mxu0 0.0
        %v8054 = vand.u32 %v6127, 4294901760
        %v8055 = vsub.f32 %v6127, %v8054
        %8056 = vmatpush1.msra.mxu0 %v8055
        %8057 = vmatprep.subr.mxu0 0.0
        %v8058 = vand.u32 %v6128, 4294901760
        %v8059 = vsub.f32 %v6128, %v8058
        %8060 = vmatpush1.msra.mxu0 %v8059
        %8061 = vmatprep.subr.mxu0 0.0
        %v8062 = vand.u32 %v6129, 4294901760
        %v8063 = vsub.f32 %v6129, %v8062
        %8064 = vmatpush1.msra.mxu0 %v8063
        %8065 = vmatprep.subr.mxu0 0.0
        %v8066 = vand.u32 %v6130, 4294901760
        %v8067 = vsub.f32 %v6130, %v8066
        %8068 = vmatpush1.msra.mxu0 %v8067
        %8069 = vmatprep.subr.mxu0 0.0
        %v8070 = vand.u32 %v6131, 4294901760
        %v8071 = vsub.f32 %v6131, %v8070
        %8072 = vmatpush1.msra.mxu0 %v8071
        %8073 = vmatprep.subr.mxu0 0.0
        %v8074 = vand.u32 %v6132, 4294901760
        %v8075 = vsub.f32 %v6132, %v8074
        %8076 = vmatpush1.msra.mxu0 %v8075
        %v8077 = vand.u32 %v6008, 4294901760
        %v8078 = vsub.f32 %v6008, %v8077
        %8079 = vmatprep.mubr.f32.mxu0 %v8078
        %v8080 = vand.u32 %v6007, 4294901760
        %v8081 = vsub.f32 %v6007, %v8080
        %8082 = vmatmul.mubr.f32.gmra.mrb[0].mxu0 %v8081
        %v8083 = vpop.f32.mrb[0].mxu0
        %v8084 = vadd.f32 %v7897, %v8083
        %v8085 = vpop.f32.mrb[0].mxu0
        %v8086 = vand.u32 %v6016, 4294901760
        %v8087 = vsub.f32 %v6016, %v8086
        %8088 = vmatprep.mubr.f32.mxu0 %v8087
        %v8089 = vand.u32 %v6015, 4294901760
        %v8090 = vsub.f32 %v6015, %v8089
        %8091 = vmatmul.mubr.f32.gmra.mrb[0].mxu0 %v8090
        %v8092 = vpop.f32.mrb[0].mxu0
        %v8093 = vadd.f32 %v7904, %v8092
        %v8094 = vpop.f32.mrb[0].mxu0
        %v8095 = vand.u32 %v6024, 4294901760
        %v8096 = vsub.f32 %v6024, %v8095
        %8097 = vmatprep.mubr.f32.mxu0 %v8096
        %v8098 = vand.u32 %v6023, 4294901760
        %v8099 = vsub.f32 %v6023, %v8098
        %8100 = vmatmul.mubr.f32.gmra.mrb[0].mxu0 %v8099
        %v8101 = vpop.f32.mrb[0].mxu0
        %v8102 = vadd.f32 %v7911, %v8101
        %v8103 = vpop.f32.mrb[0].mxu0
        %v8104 = vand.u32 %v6032, 4294901760
        %v8105 = vsub.f32 %v6032, %v8104
        %8106 = vmatprep.mubr.f32.mxu0 %v8105
        %v8107 = vand.u32 %v6031, 4294901760
        %v8108 = vsub.f32 %v6031, %v8107
        %8109 = vmatmul.mubr.f32.gmra.mrb[0].mxu0 %v8108
        %v8110 = vpop.f32.mrb[0].mxu0
        %v8111 = vadd.f32 %v7918, %v8110
        %v8112 = vpop.f32.mrb[0].mxu0
        %v8113 = vand.u32 %v6040, 4294901760
        %v8114 = vsub.f32 %v6040, %v8113
        %8115 = vmatprep.mubr.f32.mxu0 %v8114
        %v8116 = vand.u32 %v6039, 4294901760
        %v8117 = vsub.f32 %v6039, %v8116
        %8118 = vmatmul.mubr.f32.gmra.mrb[0].mxu0 %v8117
        %v8119 = vpop.f32.mrb[0].mxu0
        %v8120 = vadd.f32 %v7925, %v8119
        %v8121 = vpop.f32.mrb[0].mxu0
        %v8122 = vand.u32 %v6048, 4294901760
        %v8123 = vsub.f32 %v6048, %v8122
        %8124 = vmatprep.mubr.f32.mxu0 %v8123
        %v8125 = vand.u32 %v6047, 4294901760
        %v8126 = vsub.f32 %v6047, %v8125
        %8127 = vmatmul.mubr.f32.gmra.mrb[0].mxu0 %v8126
        %v8128 = vpop.f32.mrb[0].mxu0
        %v8129 = vadd.f32 %v7932, %v8128
        %v8130 = vpop.f32.mrb[0].mxu0
        %v8131 = vand.u32 %v6056, 4294901760
        %v8132 = vsub.f32 %v6056, %v8131
        %8133 = vmatprep.mubr.f32.mxu0 %v8132
        %v8134 = vand.u32 %v6055, 4294901760
        %v8135 = vsub.f32 %v6055, %v8134
        %8136 = vmatmul.mubr.f32.gmra.mrb[0].mxu0 %v8135
        %v8137 = vpop.f32.mrb[0].mxu0
        %v8138 = vadd.f32 %v7939, %v8137
        %v8139 = vpop.f32.mrb[0].mxu0
        %v8140 = vand.u32 %v6064, 4294901760
        %v8141 = vsub.f32 %v6064, %v8140
        %8142 = vmatprep.mubr.f32.mxu0 %v8141
        %v8143 = vand.u32 %v6063, 4294901760
        %v8144 = vsub.f32 %v6063, %v8143
        %8145 = vmatmul.mubr.f32.gmra.mrb[0].mxu0 %v8144
        %v8146 = vpop.f32.mrb[0].mxu0
        %v8147 = vadd.f32 %v7946, %v8146
        %v8148 = vpop.f32.mrb[0].mxu0
        %8149 = vdwg.mxu0
        %8150 = vmatprep.subr.mxu0 0.0
        %v8151 = vand.u32 %v6101, 4294901760
        %8152 = vmatpush1.msra.mxu0 %v8151
        %8153 = vmatprep.subr.mxu0 0.0
        %v8154 = vand.u32 %v6102, 4294901760
        %8155 = vmatpush1.msra.mxu0 %v8154
        %8156 = vmatprep.subr.mxu0 0.0
        %v8157 = vand.u32 %v6103, 4294901760
        %8158 = vmatpush1.msra.mxu0 %v8157
        %8159 = vmatprep.subr.mxu0 0.0
        %v8160 = vand.u32 %v6104, 4294901760
        %8161 = vmatpush1.msra.mxu0 %v8160
        %8162 = vmatprep.subr.mxu0 0.0
        %v8163 = vand.u32 %v6105, 4294901760
        %8164 = vmatpush1.msra.mxu0 %v8163
        %8165 = vmatprep.subr.mxu0 0.0
        %v8166 = vand.u32 %v6106, 4294901760
        %8167 = vmatpush1.msra.mxu0 %v8166
        %8168 = vmatprep.subr.mxu0 0.0
        %v8169 = vand.u32 %v6107, 4294901760
        %8170 = vmatpush1.msra.mxu0 %v8169
        %8171 = vmatprep.subr.mxu0 0.0
        %v8172 = vand.u32 %v6108, 4294901760
        %8173 = vmatpush1.msra.mxu0 %v8172
        %8174 = vmatprep.subr.mxu0 0.0
        %v8175 = vand.u32 %v6109, 4294901760
        %8176 = vmatpush1.msra.mxu0 %v8175
        %8177 = vmatprep.subr.mxu0 0.0
        %v8178 = vand.u32 %v6110, 4294901760
        %8179 = vmatpush1.msra.mxu0 %v8178
        %8180 = vmatprep.subr.mxu0 0.0
        %v8181 = vand.u32 %v6111, 4294901760
        %8182 = vmatpush1.msra.mxu0 %v8181
        %8183 = vmatprep.subr.mxu0 0.0
        %v8184 = vand.u32 %v6112, 4294901760
        %8185 = vmatpush1.msra.mxu0 %v8184
        %8186 = vmatprep.subr.mxu0 0.0
        %v8187 = vand.u32 %v6113, 4294901760
        %8188 = vmatpush1.msra.mxu0 %v8187
        %8189 = vmatprep.subr.mxu0 0.0
        %v8190 = vand.u32 %v6114, 4294901760
        %8191 = vmatpush1.msra.mxu0 %v8190
        %8192 = vmatprep.subr.mxu0 0.0
        %v8193 = vand.u32 %v6115, 4294901760
        %8194 = vmatpush1.msra.mxu0 %v8193
        %8195 = vmatprep.subr.mxu0 0.0
        %v8196 = vand.u32 %v6116, 4294901760
        %8197 = vmatpush1.msra.mxu0 %v8196
        %8198 = vmatprep.subr.mxu0 0.0
        %v8199 = vand.u32 %v6117, 4294901760
        %8200 = vmatpush1.msra.mxu0 %v8199
        %8201 = vmatprep.subr.mxu0 0.0
        %v8202 = vand.u32 %v6118, 4294901760
        %8203 = vmatpush1.msra.mxu0 %v8202
        %8204 = vmatprep.subr.mxu0 0.0
        %v8205 = vand.u32 %v6119, 4294901760
        %8206 = vmatpush1.msra.mxu0 %v8205
        %8207 = vmatprep.subr.mxu0 0.0
        %v8208 = vand.u32 %v6120, 4294901760
        %8209 = vmatpush1.msra.mxu0 %v8208
        %8210 = vmatprep.subr.mxu0 0.0
        %v8211 = vand.u32 %v6121, 4294901760
        %8212 = vmatpush1.msra.mxu0 %v8211
        %8213 = vmatprep.subr.mxu0 0.0
        %v8214 = vand.u32 %v6122, 4294901760
        %8215 = vmatpush1.msra.mxu0 %v8214
        %8216 = vmatprep.subr.mxu0 0.0
        %v8217 = vand.u32 %v6123, 4294901760
        %8218 = vmatpush1.msra.mxu0 %v8217
        %8219 = vmatprep.subr.mxu0 0.0
        %v8220 = vand.u32 %v6124, 4294901760
        %8221 = vmatpush1.msra.mxu0 %v8220
        %8222 = vmatprep.subr.mxu0 0.0
        %v8223 = vand.u32 %v6125, 4294901760
        %8224 = vmatpush1.msra.mxu0 %v8223
        %8225 = vmatprep.subr.mxu0 0.0
        %v8226 = vand.u32 %v6126, 4294901760
        %8227 = vmatpush1.msra.mxu0 %v8226
        %8228 = vmatprep.subr.mxu0 0.0
        %v8229 = vand.u32 %v6127, 4294901760
        %8230 = vmatpush1.msra.mxu0 %v8229
        %8231 = vmatprep.subr.mxu0 0.0
        %v8232 = vand.u32 %v6128, 4294901760
        %8233 = vmatpush1.msra.mxu0 %v8232
        %8234 = vmatprep.subr.mxu0 0.0
        %v8235 = vand.u32 %v6129, 4294901760
        %8236 = vmatpush1.msra.mxu0 %v8235
        %8237 = vmatprep.subr.mxu0 0.0
        %v8238 = vand.u32 %v6130, 4294901760
        %8239 = vmatpush1.msra.mxu0 %v8238
        %8240 = vmatprep.subr.mxu0 0.0
        %v8241 = vand.u32 %v6131, 4294901760
        %8242 = vmatpush1.msra.mxu0 %v8241
        %8243 = vmatprep.subr.mxu0 0.0
        %v8244 = vand.u32 %v6132, 4294901760
        %8245 = vmatpush1.msra.mxu0 %v8244
        %v8246 = vand.u32 %v6008, 4294901760
        %v8247 = vsub.f32 %v6008, %v8246
        %v8248 = vand.u32 %v8247, 4294901760
        %8249 = vmatprep.mubr.f32.mxu0 %v8248
        %v8250 = vand.u32 %v6007, 4294901760
        %v8251 = vsub.f32 %v6007, %v8250
        %v8252 = vand.u32 %v8251, 4294901760
        %8253 = vmatmul.mubr.f32.gmra.mrb[0].mxu0 %v8252
        %v8254 = vpop.f32.mrb[0].mxu0
        %v8255 = vadd.f32 %v8084, %v8254
        %v8256 = vpop.f32.mrb[0].mxu0
        %v8257 = vand.u32 %v6016, 4294901760
        %v8258 = vsub.f32 %v6016, %v8257
        %v8259 = vand.u32 %v8258, 4294901760
        %8260 = vmatprep.mubr.f32.mxu0 %v8259
        %v8261 = vand.u32 %v6015, 4294901760
        %v8262 = vsub.f32 %v6015, %v8261
        %v8263 = vand.u32 %v8262, 4294901760
        %8264 = vmatmul.mubr.f32.gmra.mrb[0].mxu0 %v8263
        %v8265 = vpop.f32.mrb[0].mxu0
        %v8266 = vadd.f32 %v8093, %v8265
        %v8267 = vpop.f32.mrb[0].mxu0
        %v8268 = vand.u32 %v6024, 4294901760
        %v8269 = vsub.f32 %v6024, %v8268
        %v8270 = vand.u32 %v8269, 4294901760
        %8271 = vmatprep.mubr.f32.mxu0 %v8270
        %v8272 = vand.u32 %v6023, 4294901760
        %v8273 = vsub.f32 %v6023, %v8272
        %v8274 = vand.u32 %v8273, 4294901760
        %8275 = vmatmul.mubr.f32.gmra.mrb[0].mxu0 %v8274
        %v8276 = vpop.f32.mrb[0].mxu0
        %v8277 = vadd.f32 %v8102, %v8276
        %v8278 = vpop.f32.mrb[0].mxu0
        %v8279 = vand.u32 %v6032, 4294901760
        %v8280 = vsub.f32 %v6032, %v8279
        %v8281 = vand.u32 %v8280, 4294901760
        %8282 = vmatprep.mubr.f32.mxu0 %v8281
        %v8283 = vand.u32 %v6031, 4294901760
        %v8284 = vsub.f32 %v6031, %v8283
        %v8285 = vand.u32 %v8284, 4294901760
        %8286 = vmatmul.mubr.f32.gmra.mrb[0].mxu0 %v8285
        %v8287 = vpop.f32.mrb[0].mxu0
        %v8288 = vadd.f32 %v8111, %v8287
        %v8289 = vpop.f32.mrb[0].mxu0
        %v8290 = vand.u32 %v6040, 4294901760
        %v8291 = vsub.f32 %v6040, %v8290
        %v8292 = vand.u32 %v8291, 4294901760
        %8293 = vmatprep.mubr.f32.mxu0 %v8292
        %v8294 = vand.u32 %v6039, 4294901760
        %v8295 = vsub.f32 %v6039, %v8294
        %v8296 = vand.u32 %v8295, 4294901760
        %8297 = vmatmul.mubr.f32.gmra.mrb[0].mxu0 %v8296
        %v8298 = vpop.f32.mrb[0].mxu0
        %v8299 = vadd.f32 %v8120, %v8298
        %v8300 = vpop.f32.mrb[0].mxu0
        %v8301 = vand.u32 %v6048, 4294901760
        %v8302 = vsub.f32 %v6048, %v8301
        %v8303 = vand.u32 %v8302, 4294901760
        %8304 = vmatprep.mubr.f32.mxu0 %v8303
        %v8305 = vand.u32 %v6047, 4294901760
        %v8306 = vsub.f32 %v6047, %v8305
        %v8307 = vand.u32 %v8306, 4294901760
        %8308 = vmatmul.mubr.f32.gmra.mrb[0].mxu0 %v8307
        %v8309 = vpop.f32.mrb[0].mxu0
        %v8310 = vadd.f32 %v8129, %v8309
        %v8311 = vpop.f32.mrb[0].mxu0
        %v8312 = vand.u32 %v6056, 4294901760
        %v8313 = vsub.f32 %v6056, %v8312
        %v8314 = vand.u32 %v8313, 4294901760
        %8315 = vmatprep.mubr.f32.mxu0 %v8314
        %v8316 = vand.u32 %v6055, 4294901760
        %v8317 = vsub.f32 %v6055, %v8316
        %v8318 = vand.u32 %v8317, 4294901760
        %8319 = vmatmul.mubr.f32.gmra.mrb[0].mxu0 %v8318
        %v8320 = vpop.f32.mrb[0].mxu0
        %v8321 = vadd.f32 %v8138, %v8320
        %v8322 = vpop.f32.mrb[0].mxu0
        %v8323 = vand.u32 %v6064, 4294901760
        %v8324 = vsub.f32 %v6064, %v8323
        %v8325 = vand.u32 %v8324, 4294901760
        %8326 = vmatprep.mubr.f32.mxu0 %v8325
        %v8327 = vand.u32 %v6063, 4294901760
        %v8328 = vsub.f32 %v6063, %v8327
        %v8329 = vand.u32 %v8328, 4294901760
        %8330 = vmatmul.mubr.f32.gmra.mrb[0].mxu0 %v8329
        %v8331 = vpop.f32.mrb[0].mxu0
        %v8332 = vadd.f32 %v8147, %v8331
        %v8333 = vpop.f32.mrb[0].mxu0
        %8334 = vdwg.mxu0
        %8335 = vmatprep.subr.mxu0 0.0
        %v8336 = vand.u32 %v6101, 4294901760
        %v8337 = vsub.f32 %v6101, %v8336
        %v8338 = vand.u32 %v8337, 4294901760
        %8339 = vmatpush1.msra.mxu0 %v8338
        %8340 = vmatprep.subr.mxu0 0.0
        %v8341 = vand.u32 %v6102, 4294901760
        %v8342 = vsub.f32 %v6102, %v8341
        %v8343 = vand.u32 %v8342, 4294901760
        %8344 = vmatpush1.msra.mxu0 %v8343
        %8345 = vmatprep.subr.mxu0 0.0
        %v8346 = vand.u32 %v6103, 4294901760
        %v8347 = vsub.f32 %v6103, %v8346
        %v8348 = vand.u32 %v8347, 4294901760
        %8349 = vmatpush1.msra.mxu0 %v8348
        %8350 = vmatprep.subr.mxu0 0.0
        %v8351 = vand.u32 %v6104, 4294901760
        %v8352 = vsub.f32 %v6104, %v8351
        %v8353 = vand.u32 %v8352, 4294901760
        %8354 = vmatpush1.msra.mxu0 %v8353
        %8355 = vmatprep.subr.mxu0 0.0
        %v8356 = vand.u32 %v6105, 4294901760
        %v8357 = vsub.f32 %v6105, %v8356
        %v8358 = vand.u32 %v8357, 4294901760
        %8359 = vmatpush1.msra.mxu0 %v8358
        %8360 = vmatprep.subr.mxu0 0.0
        %v8361 = vand.u32 %v6106, 4294901760
        %v8362 = vsub.f32 %v6106, %v8361
        %v8363 = vand.u32 %v8362, 4294901760
        %8364 = vmatpush1.msra.mxu0 %v8363
        %8365 = vmatprep.subr.mxu0 0.0
        %v8366 = vand.u32 %v6107, 4294901760
        %v8367 = vsub.f32 %v6107, %v8366
        %v8368 = vand.u32 %v8367, 4294901760
        %8369 = vmatpush1.msra.mxu0 %v8368
        %8370 = vmatprep.subr.mxu0 0.0
        %v8371 = vand.u32 %v6108, 4294901760
        %v8372 = vsub.f32 %v6108, %v8371
        %v8373 = vand.u32 %v8372, 4294901760
        %8374 = vmatpush1.msra.mxu0 %v8373
        %8375 = vmatprep.subr.mxu0 0.0
        %v8376 = vand.u32 %v6109, 4294901760
        %v8377 = vsub.f32 %v6109, %v8376
        %v8378 = vand.u32 %v8377, 4294901760
        %8379 = vmatpush1.msra.mxu0 %v8378
        %8380 = vmatprep.subr.mxu0 0.0
        %v8381 = vand.u32 %v6110, 4294901760
        %v8382 = vsub.f32 %v6110, %v8381
        %v8383 = vand.u32 %v8382, 4294901760
        %8384 = vmatpush1.msra.mxu0 %v8383
        %8385 = vmatprep.subr.mxu0 0.0
        %v8386 = vand.u32 %v6111, 4294901760
        %v8387 = vsub.f32 %v6111, %v8386
        %v8388 = vand.u32 %v8387, 4294901760
        %8389 = vmatpush1.msra.mxu0 %v8388
        %8390 = vmatprep.subr.mxu0 0.0
        %v8391 = vand.u32 %v6112, 4294901760
        %v8392 = vsub.f32 %v6112, %v8391
        %v8393 = vand.u32 %v8392, 4294901760
        %8394 = vmatpush1.msra.mxu0 %v8393
        %8395 = vmatprep.subr.mxu0 0.0
        %v8396 = vand.u32 %v6113, 4294901760
        %v8397 = vsub.f32 %v6113, %v8396
        %v8398 = vand.u32 %v8397, 4294901760
        %8399 = vmatpush1.msra.mxu0 %v8398
        %8400 = vmatprep.subr.mxu0 0.0
        %v8401 = vand.u32 %v6114, 4294901760
        %v8402 = vsub.f32 %v6114, %v8401
        %v8403 = vand.u32 %v8402, 4294901760
        %8404 = vmatpush1.msra.mxu0 %v8403
        %8405 = vmatprep.subr.mxu0 0.0
        %v8406 = vand.u32 %v6115, 4294901760
        %v8407 = vsub.f32 %v6115, %v8406
        %v8408 = vand.u32 %v8407, 4294901760
        %8409 = vmatpush1.msra.mxu0 %v8408
        %8410 = vmatprep.subr.mxu0 0.0
        %v8411 = vand.u32 %v6116, 4294901760
        %v8412 = vsub.f32 %v6116, %v8411
        %v8413 = vand.u32 %v8412, 4294901760
        %8414 = vmatpush1.msra.mxu0 %v8413
        %8415 = vmatprep.subr.mxu0 0.0
        %v8416 = vand.u32 %v6117, 4294901760
        %v8417 = vsub.f32 %v6117, %v8416
        %v8418 = vand.u32 %v8417, 4294901760
        %8419 = vmatpush1.msra.mxu0 %v8418
        %8420 = vmatprep.subr.mxu0 0.0
        %v8421 = vand.u32 %v6118, 4294901760
        %v8422 = vsub.f32 %v6118, %v8421
        %v8423 = vand.u32 %v8422, 4294901760
        %8424 = vmatpush1.msra.mxu0 %v8423
        %8425 = vmatprep.subr.mxu0 0.0
        %v8426 = vand.u32 %v6119, 4294901760
        %v8427 = vsub.f32 %v6119, %v8426
        %v8428 = vand.u32 %v8427, 4294901760
        %8429 = vmatpush1.msra.mxu0 %v8428
        %8430 = vmatprep.subr.mxu0 0.0
        %v8431 = vand.u32 %v6120, 4294901760
        %v8432 = vsub.f32 %v6120, %v8431
        %v8433 = vand.u32 %v8432, 4294901760
        %8434 = vmatpush1.msra.mxu0 %v8433
        %8435 = vmatprep.subr.mxu0 0.0
        %v8436 = vand.u32 %v6121, 4294901760
        %v8437 = vsub.f32 %v6121, %v8436
        %v8438 = vand.u32 %v8437, 4294901760
        %8439 = vmatpush1.msra.mxu0 %v8438
        %8440 = vmatprep.subr.mxu0 0.0
        %v8441 = vand.u32 %v6122, 4294901760
        %v8442 = vsub.f32 %v6122, %v8441
        %v8443 = vand.u32 %v8442, 4294901760
        %8444 = vmatpush1.msra.mxu0 %v8443
        %8445 = vmatprep.subr.mxu0 0.0
        %v8446 = vand.u32 %v6123, 4294901760
        %v8447 = vsub.f32 %v6123, %v8446
        %v8448 = vand.u32 %v8447, 4294901760
        %8449 = vmatpush1.msra.mxu0 %v8448
        %8450 = vmatprep.subr.mxu0 0.0
        %v8451 = vand.u32 %v6124, 4294901760
        %v8452 = vsub.f32 %v6124, %v8451
        %v8453 = vand.u32 %v8452, 4294901760
        %8454 = vmatpush1.msra.mxu0 %v8453
        %8455 = vmatprep.subr.mxu0 0.0
        %v8456 = vand.u32 %v6125, 4294901760
        %v8457 = vsub.f32 %v6125, %v8456
        %v8458 = vand.u32 %v8457, 4294901760
        %8459 = vmatpush1.msra.mxu0 %v8458
        %8460 = vmatprep.subr.mxu0 0.0
        %v8461 = vand.u32 %v6126, 4294901760
        %v8462 = vsub.f32 %v6126, %v8461
        %v8463 = vand.u32 %v8462, 4294901760
        %8464 = vmatpush1.msra.mxu0 %v8463
        %8465 = vmatprep.subr.mxu0 0.0
        %v8466 = vand.u32 %v6127, 4294901760
        %v8467 = vsub.f32 %v6127, %v8466
        %v8468 = vand.u32 %v8467, 4294901760
        %8469 = vmatpush1.msra.mxu0 %v8468
        %8470 = vmatprep.subr.mxu0 0.0
        %v8471 = vand.u32 %v6128, 4294901760
        %v8472 = vsub.f32 %v6128, %v8471
        %v8473 = vand.u32 %v8472, 4294901760
        %8474 = vmatpush1.msra.mxu0 %v8473
        %8475 = vmatprep.subr.mxu0 0.0
        %v8476 = vand.u32 %v6129, 4294901760
        %v8477 = vsub.f32 %v6129, %v8476
        %v8478 = vand.u32 %v8477, 4294901760
        %8479 = vmatpush1.msra.mxu0 %v8478
        %8480 = vmatprep.subr.mxu0 0.0
        %v8481 = vand.u32 %v6130, 4294901760
        %v8482 = vsub.f32 %v6130, %v8481
        %v8483 = vand.u32 %v8482, 4294901760
        %8484 = vmatpush1.msra.mxu0 %v8483
        %8485 = vmatprep.subr.mxu0 0.0
        %v8486 = vand.u32 %v6131, 4294901760
        %v8487 = vsub.f32 %v6131, %v8486
        %v8488 = vand.u32 %v8487, 4294901760
        %8489 = vmatpush1.msra.mxu0 %v8488
        %8490 = vmatprep.subr.mxu0 0.0
        %v8491 = vand.u32 %v6132, 4294901760
        %v8492 = vsub.f32 %v6132, %v8491
        %v8493 = vand.u32 %v8492, 4294901760
        %8494 = vmatpush1.msra.mxu0 %v8493
        %v8495 = vand.u32 %v6008, 4294901760
        %8496 = vmatprep.mubr.f32.mxu0 %v8495
        %v8497 = vand.u32 %v6007, 4294901760
        %8498 = vmatmul.mubr.f32.gmra.mrb[0].mxu0 %v8497
        %v8499 = vpop.f32.mrb[0].mxu0
        %v8500 = vadd.f32 %v8255, %v8499
        %v8501 = vpop.f32.mrb[0].mxu0
        %v8502 = vand.u32 %v6016, 4294901760
        %8503 = vmatprep.mubr.f32.mxu0 %v8502
        %v8504 = vand.u32 %v6015, 4294901760
        %8505 = vmatmul.mubr.f32.gmra.mrb[0].mxu0 %v8504
        %v8506 = vpop.f32.mrb[0].mxu0
        %v8507 = vadd.f32 %v8266, %v8506
        %v8508 = vpop.f32.mrb[0].mxu0
        %v8509 = vand.u32 %v6024, 4294901760
        %8510 = vmatprep.mubr.f32.mxu0 %v8509
        %v8511 = vand.u32 %v6023, 4294901760
        %8512 = vmatmul.mubr.f32.gmra.mrb[0].mxu0 %v8511
        %v8513 = vpop.f32.mrb[0].mxu0
        %v8514 = vadd.f32 %v8277, %v8513
        %v8515 = vpop.f32.mrb[0].mxu0
        %v8516 = vand.u32 %v6032, 4294901760
        %8517 = vmatprep.mubr.f32.mxu0 %v8516
        %v8518 = vand.u32 %v6031, 4294901760
        %8519 = vmatmul.mubr.f32.gmra.mrb[0].mxu0 %v8518
        %v8520 = vpop.f32.mrb[0].mxu0
        %v8521 = vadd.f32 %v8288, %v8520
        %v8522 = vpop.f32.mrb[0].mxu0
        %v8523 = vand.u32 %v6040, 4294901760
        %8524 = vmatprep.mubr.f32.mxu0 %v8523
        %v8525 = vand.u32 %v6039, 4294901760
        %8526 = vmatmul.mubr.f32.gmra.mrb[0].mxu0 %v8525
        %v8527 = vpop.f32.mrb[0].mxu0
        %v8528 = vadd.f32 %v8299, %v8527
        %v8529 = vpop.f32.mrb[0].mxu0
        %v8530 = vand.u32 %v6048, 4294901760
        %8531 = vmatprep.mubr.f32.mxu0 %v8530
        %v8532 = vand.u32 %v6047, 4294901760
        %8533 = vmatmul.mubr.f32.gmra.mrb[0].mxu0 %v8532
        %v8534 = vpop.f32.mrb[0].mxu0
        %v8535 = vadd.f32 %v8310, %v8534
        %v8536 = vpop.f32.mrb[0].mxu0
        %v8537 = vand.u32 %v6056, 4294901760
        %8538 = vmatprep.mubr.f32.mxu0 %v8537
        %v8539 = vand.u32 %v6055, 4294901760
        %8540 = vmatmul.mubr.f32.gmra.mrb[0].mxu0 %v8539
        %v8541 = vpop.f32.mrb[0].mxu0
        %v8542 = vadd.f32 %v8321, %v8541
        %v8543 = vpop.f32.mrb[0].mxu0
        %v8544 = vand.u32 %v6064, 4294901760
        %8545 = vmatprep.mubr.f32.mxu0 %v8544
        %v8546 = vand.u32 %v6063, 4294901760
        %8547 = vmatmul.mubr.f32.gmra.mrb[0].mxu0 %v8546
        %v8548 = vpop.f32.mrb[0].mxu0
        %v8549 = vadd.f32 %v8332, %v8548
        %v8550 = vpop.f32.mrb[0].mxu0
        %8551 = vdwg.mxu0
        %8552 = vmatprep.subr.mxu0 0.0
        %v8553 = vand.u32 %v6101, 4294901760
        %8554 = vmatpush1.msra.mxu0 %v8553
        %8555 = vmatprep.subr.mxu0 0.0
        %v8556 = vand.u32 %v6102, 4294901760
        %8557 = vmatpush1.msra.mxu0 %v8556
        %8558 = vmatprep.subr.mxu0 0.0
        %v8559 = vand.u32 %v6103, 4294901760
        %8560 = vmatpush1.msra.mxu0 %v8559
        %8561 = vmatprep.subr.mxu0 0.0
        %v8562 = vand.u32 %v6104, 4294901760
        %8563 = vmatpush1.msra.mxu0 %v8562
        %8564 = vmatprep.subr.mxu0 0.0
        %v8565 = vand.u32 %v6105, 4294901760
        %8566 = vmatpush1.msra.mxu0 %v8565
        %8567 = vmatprep.subr.mxu0 0.0
        %v8568 = vand.u32 %v6106, 4294901760
        %8569 = vmatpush1.msra.mxu0 %v8568
        %8570 = vmatprep.subr.mxu0 0.0
        %v8571 = vand.u32 %v6107, 4294901760
        %8572 = vmatpush1.msra.mxu0 %v8571
        %8573 = vmatprep.subr.mxu0 0.0
        %v8574 = vand.u32 %v6108, 4294901760
        %8575 = vmatpush1.msra.mxu0 %v8574
        %8576 = vmatprep.subr.mxu0 0.0
        %v8577 = vand.u32 %v6109, 4294901760
        %8578 = vmatpush1.msra.mxu0 %v8577
        %8579 = vmatprep.subr.mxu0 0.0
        %v8580 = vand.u32 %v6110, 4294901760
        %8581 = vmatpush1.msra.mxu0 %v8580
        %8582 = vmatprep.subr.mxu0 0.0
        %v8583 = vand.u32 %v6111, 4294901760
        %8584 = vmatpush1.msra.mxu0 %v8583
        %8585 = vmatprep.subr.mxu0 0.0
        %v8586 = vand.u32 %v6112, 4294901760
        %8587 = vmatpush1.msra.mxu0 %v8586
        %8588 = vmatprep.subr.mxu0 0.0
        %v8589 = vand.u32 %v6113, 4294901760
        %8590 = vmatpush1.msra.mxu0 %v8589
        %8591 = vmatprep.subr.mxu0 0.0
        %v8592 = vand.u32 %v6114, 4294901760
        %8593 = vmatpush1.msra.mxu0 %v8592
        %8594 = vmatprep.subr.mxu0 0.0
        %v8595 = vand.u32 %v6115, 4294901760
        %8596 = vmatpush1.msra.mxu0 %v8595
        %8597 = vmatprep.subr.mxu0 0.0
        %v8598 = vand.u32 %v6116, 4294901760
        %8599 = vmatpush1.msra.mxu0 %v8598
        %8600 = vmatprep.subr.mxu0 0.0
        %v8601 = vand.u32 %v6117, 4294901760
        %8602 = vmatpush1.msra.mxu0 %v8601
        %8603 = vmatprep.subr.mxu0 0.0
        %v8604 = vand.u32 %v6118, 4294901760
        %8605 = vmatpush1.msra.mxu0 %v8604
        %8606 = vmatprep.subr.mxu0 0.0
        %v8607 = vand.u32 %v6119, 4294901760
        %8608 = vmatpush1.msra.mxu0 %v8607
        %8609 = vmatprep.subr.mxu0 0.0
        %v8610 = vand.u32 %v6120, 4294901760
        %8611 = vmatpush1.msra.mxu0 %v8610
        %8612 = vmatprep.subr.mxu0 0.0
        %v8613 = vand.u32 %v6121, 4294901760
        %8614 = vmatpush1.msra.mxu0 %v8613
        %8615 = vmatprep.subr.mxu0 0.0
        %v8616 = vand.u32 %v6122, 4294901760
        %8617 = vmatpush1.msra.mxu0 %v8616
        %8618 = vmatprep.subr.mxu0 0.0
        %v8619 = vand.u32 %v6123, 4294901760
        %8620 = vmatpush1.msra.mxu0 %v8619
        %8621 = vmatprep.subr.mxu0 0.0
        %v8622 = vand.u32 %v6124, 4294901760
        %8623 = vmatpush1.msra.mxu0 %v8622
        %8624 = vmatprep.subr.mxu0 0.0
        %v8625 = vand.u32 %v6125, 4294901760
        %8626 = vmatpush1.msra.mxu0 %v8625
        %8627 = vmatprep.subr.mxu0 0.0
        %v8628 = vand.u32 %v6126, 4294901760
        %8629 = vmatpush1.msra.mxu0 %v8628
        %8630 = vmatprep.subr.mxu0 0.0
        %v8631 = vand.u32 %v6127, 4294901760
        %8632 = vmatpush1.msra.mxu0 %v8631
        %8633 = vmatprep.subr.mxu0 0.0
        %v8634 = vand.u32 %v6128, 4294901760
        %8635 = vmatpush1.msra.mxu0 %v8634
        %8636 = vmatprep.subr.mxu0 0.0
        %v8637 = vand.u32 %v6129, 4294901760
        %8638 = vmatpush1.msra.mxu0 %v8637
        %8639 = vmatprep.subr.mxu0 0.0
        %v8640 = vand.u32 %v6130, 4294901760
        %8641 = vmatpush1.msra.mxu0 %v8640
        %8642 = vmatprep.subr.mxu0 0.0
        %v8643 = vand.u32 %v6131, 4294901760
        %8644 = vmatpush1.msra.mxu0 %v8643
        %8645 = vmatprep.subr.mxu0 0.0
        %v8646 = vand.u32 %v6132, 4294901760
        %8647 = vmatpush1.msra.mxu0 %v8646
        %v8648 = vand.u32 %v6008, 4294901760
        %8649 = vmatprep.mubr.f32.mxu0 %v8648
        %v8650 = vand.u32 %v6007, 4294901760
        %8651 = vmatmul.mubr.f32.gmra.mrb[0].mxu0 %v8650
        %v8652 = vpop.f32.mrb[0].mxu0
        %v8653 = vadd.f32 %v8500, %v8652
        %v8654 = vpop.f32.mrb[0].mxu0
        %v8655 = vand.u32 %v6016, 4294901760
        %8656 = vmatprep.mubr.f32.mxu0 %v8655
        %v8657 = vand.u32 %v6015, 4294901760
        %8658 = vmatmul.mubr.f32.gmra.mrb[0].mxu0 %v8657
        %v8659 = vpop.f32.mrb[0].mxu0
        %v8660 = vadd.f32 %v8507, %v8659
        %v8661 = vpop.f32.mrb[0].mxu0
        %v8662 = vand.u32 %v6024, 4294901760
        %8663 = vmatprep.mubr.f32.mxu0 %v8662
        %v8664 = vand.u32 %v6023, 4294901760
        %8665 = vmatmul.mubr.f32.gmra.mrb[0].mxu0 %v8664
        %v8666 = vpop.f32.mrb[0].mxu0
        %v8667 = vadd.f32 %v8514, %v8666
        %v8668 = vpop.f32.mrb[0].mxu0
        %v8669 = vand.u32 %v6032, 4294901760
        %8670 = vmatprep.mubr.f32.mxu0 %v8669
        %v8671 = vand.u32 %v6031, 4294901760
        %8672 = vmatmul.mubr.f32.gmra.mrb[0].mxu0 %v8671
        %v8673 = vpop.f32.mrb[0].mxu0
        %v8674 = vadd.f32 %v8521, %v8673
        %v8675 = vpop.f32.mrb[0].mxu0
        %v8676 = vand.u32 %v6040, 4294901760
        %8677 = vmatprep.mubr.f32.mxu0 %v8676
        %v8678 = vand.u32 %v6039, 4294901760
        %8679 = vmatmul.mubr.f32.gmra.mrb[0].mxu0 %v8678
        %v8680 = vpop.f32.mrb[0].mxu0
        %v8681 = vadd.f32 %v8528, %v8680
        %v8682 = vpop.f32.mrb[0].mxu0
        %v8683 = vand.u32 %v6048, 4294901760
        %8684 = vmatprep.mubr.f32.mxu0 %v8683
        %v8685 = vand.u32 %v6047, 4294901760
        %8686 = vmatmul.mubr.f32.gmra.mrb[0].mxu0 %v8685
        %v8687 = vpop.f32.mrb[0].mxu0
        %v8688 = vadd.f32 %v8535, %v8687
        %v8689 = vpop.f32.mrb[0].mxu0
        %v8690 = vand.u32 %v6056, 4294901760
        %8691 = vmatprep.mubr.f32.mxu0 %v8690
        %v8692 = vand.u32 %v6055, 4294901760
        %8693 = vmatmul.mubr.f32.gmra.mrb[0].mxu0 %v8692
        %v8694 = vpop.f32.mrb[0].mxu0
        %v8695 = vadd.f32 %v8542, %v8694
        %v8696 = vpop.f32.mrb[0].mxu0
        %v8697 = vand.u32 %v6064, 4294901760
        %8698 = vmatprep.mubr.f32.mxu0 %v8697
        %v8699 = vand.u32 %v6063, 4294901760
        %8700 = vmatmul.mubr.f32.gmra.mrb[0].mxu0 %v8699
        %v8701 = vpop.f32.mrb[0].mxu0
        %v8702 = vadd.f32 %v8549, %v8701
        %v8703 = vpop.f32.mrb[0].mxu0
        %8704 = vdwg.mxu0
        %8705 = vmatprep.subr.mxu0 0.0
        %v8706 = vand.u32 %v6133, 4294901760
        %8707 = vmatpush1.msra.mxu0 %v8706
        %8708 = vmatprep.subr.mxu0 0.0
        %v8709 = vand.u32 %v6134, 4294901760
        %8710 = vmatpush1.msra.mxu0 %v8709
        %8711 = vmatprep.subr.mxu0 0.0
        %v8712 = vand.u32 %v6135, 4294901760
        %8713 = vmatpush1.msra.mxu0 %v8712
        %8714 = vmatprep.subr.mxu0 0.0
        %v8715 = vand.u32 %v6136, 4294901760
        %8716 = vmatpush1.msra.mxu0 %v8715
        %8717 = vmatprep.subr.mxu0 0.0
        %v8718 = vand.u32 %v6137, 4294901760
        %8719 = vmatpush1.msra.mxu0 %v8718
        %8720 = vmatprep.subr.mxu0 0.0
        %v8721 = vand.u32 %v6138, 4294901760
        %8722 = vmatpush1.msra.mxu0 %v8721
        %8723 = vmatprep.subr.mxu0 0.0
        %v8724 = vand.u32 %v6139, 4294901760
        %8725 = vmatpush1.msra.mxu0 %v8724
        %8726 = vmatprep.subr.mxu0 0.0
        %v8727 = vand.u32 %v6140, 4294901760
        %8728 = vmatpush1.msra.mxu0 %v8727
        %8729 = vmatprep.subr.mxu0 0.0
        %v8730 = vand.u32 %v6141, 4294901760
        %8731 = vmatpush1.msra.mxu0 %v8730
        %8732 = vmatprep.subr.mxu0 0.0
        %v8733 = vand.u32 %v6142, 4294901760
        %8734 = vmatpush1.msra.mxu0 %v8733
        %8735 = vmatprep.subr.mxu0 0.0
        %v8736 = vand.u32 %v6143, 4294901760
        %8737 = vmatpush1.msra.mxu0 %v8736
        %8738 = vmatprep.subr.mxu0 0.0
        %v8739 = vand.u32 %v6144, 4294901760
        %8740 = vmatpush1.msra.mxu0 %v8739
        %8741 = vmatprep.subr.mxu0 0.0
        %v8742 = vand.u32 %v6145, 4294901760
        %8743 = vmatpush1.msra.mxu0 %v8742
        %8744 = vmatprep.subr.mxu0 0.0
        %v8745 = vand.u32 %v6146, 4294901760
        %8746 = vmatpush1.msra.mxu0 %v8745
        %8747 = vmatprep.subr.mxu0 0.0
        %v8748 = vand.u32 %v6147, 4294901760
        %8749 = vmatpush1.msra.mxu0 %v8748
        %8750 = vmatprep.subr.mxu0 0.0
        %v8751 = vand.u32 %v6148, 4294901760
        %8752 = vmatpush1.msra.mxu0 %v8751
        %8753 = vmatprep.subr.mxu0 0.0
        %v8754 = vand.u32 %v6149, 4294901760
        %8755 = vmatpush1.msra.mxu0 %v8754
        %8756 = vmatprep.subr.mxu0 0.0
        %v8757 = vand.u32 %v6150, 4294901760
        %8758 = vmatpush1.msra.mxu0 %v8757
        %8759 = vmatprep.subr.mxu0 0.0
        %v8760 = vand.u32 %v6151, 4294901760
        %8761 = vmatpush1.msra.mxu0 %v8760
        %8762 = vmatprep.subr.mxu0 0.0
        %v8763 = vand.u32 %v6152, 4294901760
        %8764 = vmatpush1.msra.mxu0 %v8763
        %8765 = vmatprep.subr.mxu0 0.0
        %v8766 = vand.u32 %v6153, 4294901760
        %8767 = vmatpush1.msra.mxu0 %v8766
        %8768 = vmatprep.subr.mxu0 0.0
        %v8769 = vand.u32 %v6154, 4294901760
        %8770 = vmatpush1.msra.mxu0 %v8769
        %8771 = vmatprep.subr.mxu0 0.0
        %v8772 = vand.u32 %v6155, 4294901760
        %8773 = vmatpush1.msra.mxu0 %v8772
        %8774 = vmatprep.subr.mxu0 0.0
        %v8775 = vand.u32 %v6156, 4294901760
        %8776 = vmatpush1.msra.mxu0 %v8775
        %8777 = vmatprep.subr.mxu0 0.0
        %v8778 = vand.u32 %v6157, 4294901760
        %8779 = vmatpush1.msra.mxu0 %v8778
        %8780 = vmatprep.subr.mxu0 0.0
        %v8781 = vand.u32 %v6158, 4294901760
        %8782 = vmatpush1.msra.mxu0 %v8781
        %8783 = vmatprep.subr.mxu0 0.0
        %v8784 = vand.u32 %v6159, 4294901760
        %8785 = vmatpush1.msra.mxu0 %v8784
        %8786 = vmatprep.subr.mxu0 0.0
        %v8787 = vand.u32 %v6160, 4294901760
        %8788 = vmatpush1.msra.mxu0 %v8787
        %8789 = vmatprep.subr.mxu0 0.0
        %v8790 = vand.u32 %v6161, 4294901760
        %8791 = vmatpush1.msra.mxu0 %v8790
        %8792 = vmatprep.subr.mxu0 0.0
        %v8793 = vand.u32 %v6162, 4294901760
        %8794 = vmatpush1.msra.mxu0 %v8793
        %8795 = vmatprep.subr.mxu0 0.0
        %v8796 = vand.u32 %v6163, 4294901760
        %8797 = vmatpush1.msra.mxu0 %v8796
        %8798 = vmatprep.subr.mxu0 0.0
        %v8799 = vand.u32 %v6164, 4294901760
        %8800 = vmatpush1.msra.mxu0 %v8799
        %v8801 = vand.u32 %v6010, 4294901760
        %v8802 = vsub.f32 %v6010, %v8801
        %v8803 = vand.u32 %v8802, 4294901760
        %v8804 = vsub.f32 %v8802, %v8803
        %v8805 = vand.u32 %v8804, 4294901760
        %8806 = vmatprep.mubr.f32.mxu0 %v8805
        %v8807 = vand.u32 %v6009, 4294901760
        %v8808 = vsub.f32 %v6009, %v8807
        %v8809 = vand.u32 %v8808, 4294901760
        %v8810 = vsub.f32 %v8808, %v8809
        %v8811 = vand.u32 %v8810, 4294901760
        %8812 = vmatmul.mubr.f32.gmra.mrb[0].mxu0 %v8811
        %v8813 = vpop.f32.mrb[0].mxu0
        %v8814 = vadd.f32 %v8653, %v8813
        %v8815 = vpop.f32.mrb[0].mxu0
        %v8816 = vand.u32 %v6018, 4294901760
        %v8817 = vsub.f32 %v6018, %v8816
        %v8818 = vand.u32 %v8817, 4294901760
        %v8819 = vsub.f32 %v8817, %v8818
        %v8820 = vand.u32 %v8819, 4294901760
        %8821 = vmatprep.mubr.f32.mxu0 %v8820
        %v8822 = vand.u32 %v6017, 4294901760
        %v8823 = vsub.f32 %v6017, %v8822
        %v8824 = vand.u32 %v8823, 4294901760
        %v8825 = vsub.f32 %v8823, %v8824
        %v8826 = vand.u32 %v8825, 4294901760
        %8827 = vmatmul.mubr.f32.gmra.mrb[0].mxu0 %v8826
        %v8828 = vpop.f32.mrb[0].mxu0
        %v8829 = vadd.f32 %v8660, %v8828
        %v8830 = vpop.f32.mrb[0].mxu0
        %v8831 = vand.u32 %v6026, 4294901760
        %v8832 = vsub.f32 %v6026, %v8831
        %v8833 = vand.u32 %v8832, 4294901760
        %v8834 = vsub.f32 %v8832, %v8833
        %v8835 = vand.u32 %v8834, 4294901760
        %8836 = vmatprep.mubr.f32.mxu0 %v8835
        %v8837 = vand.u32 %v6025, 4294901760
        %v8838 = vsub.f32 %v6025, %v8837
        %v8839 = vand.u32 %v8838, 4294901760
        %v8840 = vsub.f32 %v8838, %v8839
        %v8841 = vand.u32 %v8840, 4294901760
        %8842 = vmatmul.mubr.f32.gmra.mrb[0].mxu0 %v8841
        %v8843 = vpop.f32.mrb[0].mxu0
        %v8844 = vadd.f32 %v8667, %v8843
        %v8845 = vpop.f32.mrb[0].mxu0
        %v8846 = vand.u32 %v6034, 4294901760
        %v8847 = vsub.f32 %v6034, %v8846
        %v8848 = vand.u32 %v8847, 4294901760
        %v8849 = vsub.f32 %v8847, %v8848
        %v8850 = vand.u32 %v8849, 4294901760
        %8851 = vmatprep.mubr.f32.mxu0 %v8850
        %v8852 = vand.u32 %v6033, 4294901760
        %v8853 = vsub.f32 %v6033, %v8852
        %v8854 = vand.u32 %v8853, 4294901760
        %v8855 = vsub.f32 %v8853, %v8854
        %v8856 = vand.u32 %v8855, 4294901760
        %8857 = vmatmul.mubr.f32.gmra.mrb[0].mxu0 %v8856
        %v8858 = vpop.f32.mrb[0].mxu0
        %v8859 = vadd.f32 %v8674, %v8858
        %v8860 = vpop.f32.mrb[0].mxu0
        %v8861 = vand.u32 %v6042, 4294901760
        %v8862 = vsub.f32 %v6042, %v8861
        %v8863 = vand.u32 %v8862, 4294901760
        %v8864 = vsub.f32 %v8862, %v8863
        %v8865 = vand.u32 %v8864, 4294901760
        %8866 = vmatprep.mubr.f32.mxu0 %v8865
        %v8867 = vand.u32 %v6041, 4294901760
        %v8868 = vsub.f32 %v6041, %v8867
        %v8869 = vand.u32 %v8868, 4294901760
        %v8870 = vsub.f32 %v8868, %v8869
        %v8871 = vand.u32 %v8870, 4294901760
        %8872 = vmatmul.mubr.f32.gmra.mrb[0].mxu0 %v8871
        %v8873 = vpop.f32.mrb[0].mxu0
        %v8874 = vadd.f32 %v8681, %v8873
        %v8875 = vpop.f32.mrb[0].mxu0
        %v8876 = vand.u32 %v6050, 4294901760
        %v8877 = vsub.f32 %v6050, %v8876
        %v8878 = vand.u32 %v8877, 4294901760
        %v8879 = vsub.f32 %v8877, %v8878
        %v8880 = vand.u32 %v8879, 4294901760
        %8881 = vmatprep.mubr.f32.mxu0 %v8880
        %v8882 = vand.u32 %v6049, 4294901760
        %v8883 = vsub.f32 %v6049, %v8882
        %v8884 = vand.u32 %v8883, 4294901760
        %v8885 = vsub.f32 %v8883, %v8884
        %v8886 = vand.u32 %v8885, 4294901760
        %8887 = vmatmul.mubr.f32.gmra.mrb[0].mxu0 %v8886
        %v8888 = vpop.f32.mrb[0].mxu0
        %v8889 = vadd.f32 %v8688, %v8888
        %v8890 = vpop.f32.mrb[0].mxu0
        %v8891 = vand.u32 %v6058, 4294901760
        %v8892 = vsub.f32 %v6058, %v8891
        %v8893 = vand.u32 %v8892, 4294901760
        %v8894 = vsub.f32 %v8892, %v8893
        %v8895 = vand.u32 %v8894, 4294901760
        %8896 = vmatprep.mubr.f32.mxu0 %v8895
        %v8897 = vand.u32 %v6057, 4294901760
        %v8898 = vsub.f32 %v6057, %v8897
        %v8899 = vand.u32 %v8898, 4294901760
        %v8900 = vsub.f32 %v8898, %v8899
        %v8901 = vand.u32 %v8900, 4294901760
        %8902 = vmatmul.mubr.f32.gmra.mrb[0].mxu0 %v8901
        %v8903 = vpop.f32.mrb[0].mxu0
        %v8904 = vadd.f32 %v8695, %v8903
        %v8905 = vpop.f32.mrb[0].mxu0
        %v8906 = vand.u32 %v6066, 4294901760
        %v8907 = vsub.f32 %v6066, %v8906
        %v8908 = vand.u32 %v8907, 4294901760
        %v8909 = vsub.f32 %v8907, %v8908
        %v8910 = vand.u32 %v8909, 4294901760
        %8911 = vmatprep.mubr.f32.mxu0 %v8910
        %v8912 = vand.u32 %v6065, 4294901760
        %v8913 = vsub.f32 %v6065, %v8912
        %v8914 = vand.u32 %v8913, 4294901760
        %v8915 = vsub.f32 %v8913, %v8914
        %v8916 = vand.u32 %v8915, 4294901760
        %8917 = vmatmul.mubr.f32.gmra.mrb[0].mxu0 %v8916
        %v8918 = vpop.f32.mrb[0].mxu0
        %v8919 = vadd.f32 %v8702, %v8918
        %v8920 = vpop.f32.mrb[0].mxu0
        %8921 = vdwg.mxu0
        %8922 = vmatprep.subr.mxu0 0.0
        %v8923 = vand.u32 %v6133, 4294901760
        %v8924 = vsub.f32 %v6133, %v8923
        %v8925 = vand.u32 %v8924, 4294901760
        %v8926 = vsub.f32 %v8924, %v8925
        %v8927 = vand.u32 %v8926, 4294901760
        %8928 = vmatpush1.msra.mxu0 %v8927
        %8929 = vmatprep.subr.mxu0 0.0
        %v8930 = vand.u32 %v6134, 4294901760
        %v8931 = vsub.f32 %v6134, %v8930
        %v8932 = vand.u32 %v8931, 4294901760
        %v8933 = vsub.f32 %v8931, %v8932
        %v8934 = vand.u32 %v8933, 4294901760
        %8935 = vmatpush1.msra.mxu0 %v8934
        %8936 = vmatprep.subr.mxu0 0.0
        %v8937 = vand.u32 %v6135, 4294901760
        %v8938 = vsub.f32 %v6135, %v8937
        %v8939 = vand.u32 %v8938, 4294901760
        %v8940 = vsub.f32 %v8938, %v8939
        %v8941 = vand.u32 %v8940, 4294901760
        %8942 = vmatpush1.msra.mxu0 %v8941
        %8943 = vmatprep.subr.mxu0 0.0
        %v8944 = vand.u32 %v6136, 4294901760
        %v8945 = vsub.f32 %v6136, %v8944
        %v8946 = vand.u32 %v8945, 4294901760
        %v8947 = vsub.f32 %v8945, %v8946
        %v8948 = vand.u32 %v8947, 4294901760
        %8949 = vmatpush1.msra.mxu0 %v8948
        %8950 = vmatprep.subr.mxu0 0.0
        %v8951 = vand.u32 %v6137, 4294901760
        %v8952 = vsub.f32 %v6137, %v8951
        %v8953 = vand.u32 %v8952, 4294901760
        %v8954 = vsub.f32 %v8952, %v8953
        %v8955 = vand.u32 %v8954, 4294901760
        %8956 = vmatpush1.msra.mxu0 %v8955
        %8957 = vmatprep.subr.mxu0 0.0
        %v8958 = vand.u32 %v6138, 4294901760
        %v8959 = vsub.f32 %v6138, %v8958
        %v8960 = vand.u32 %v8959, 4294901760
        %v8961 = vsub.f32 %v8959, %v8960
        %v8962 = vand.u32 %v8961, 4294901760
        %8963 = vmatpush1.msra.mxu0 %v8962
        %8964 = vmatprep.subr.mxu0 0.0
        %v8965 = vand.u32 %v6139, 4294901760
        %v8966 = vsub.f32 %v6139, %v8965
        %v8967 = vand.u32 %v8966, 4294901760
        %v8968 = vsub.f32 %v8966, %v8967
        %v8969 = vand.u32 %v8968, 4294901760
        %8970 = vmatpush1.msra.mxu0 %v8969
        %8971 = vmatprep.subr.mxu0 0.0
        %v8972 = vand.u32 %v6140, 4294901760
        %v8973 = vsub.f32 %v6140, %v8972
        %v8974 = vand.u32 %v8973, 4294901760
        %v8975 = vsub.f32 %v8973, %v8974
        %v8976 = vand.u32 %v8975, 4294901760
        %8977 = vmatpush1.msra.mxu0 %v8976
        %8978 = vmatprep.subr.mxu0 0.0
        %v8979 = vand.u32 %v6141, 4294901760
        %v8980 = vsub.f32 %v6141, %v8979
        %v8981 = vand.u32 %v8980, 4294901760
        %v8982 = vsub.f32 %v8980, %v8981
        %v8983 = vand.u32 %v8982, 4294901760
        %8984 = vmatpush1.msra.mxu0 %v8983
        %8985 = vmatprep.subr.mxu0 0.0
        %v8986 = vand.u32 %v6142, 4294901760
        %v8987 = vsub.f32 %v6142, %v8986
        %v8988 = vand.u32 %v8987, 4294901760
        %v8989 = vsub.f32 %v8987, %v8988
        %v8990 = vand.u32 %v8989, 4294901760
        %8991 = vmatpush1.msra.mxu0 %v8990
        %8992 = vmatprep.subr.mxu0 0.0
        %v8993 = vand.u32 %v6143, 4294901760
        %v8994 = vsub.f32 %v6143, %v8993
        %v8995 = vand.u32 %v8994, 4294901760
        %v8996 = vsub.f32 %v8994, %v8995
        %v8997 = vand.u32 %v8996, 4294901760
        %8998 = vmatpush1.msra.mxu0 %v8997
        %8999 = vmatprep.subr.mxu0 0.0
        %v9000 = vand.u32 %v6144, 4294901760
        %v9001 = vsub.f32 %v6144, %v9000
        %v9002 = vand.u32 %v9001, 4294901760
        %v9003 = vsub.f32 %v9001, %v9002
        %v9004 = vand.u32 %v9003, 4294901760
        %9005 = vmatpush1.msra.mxu0 %v9004
        %9006 = vmatprep.subr.mxu0 0.0
        %v9007 = vand.u32 %v6145, 4294901760
        %v9008 = vsub.f32 %v6145, %v9007
        %v9009 = vand.u32 %v9008, 4294901760
        %v9010 = vsub.f32 %v9008, %v9009
        %v9011 = vand.u32 %v9010, 4294901760
        %9012 = vmatpush1.msra.mxu0 %v9011
        %9013 = vmatprep.subr.mxu0 0.0
        %v9014 = vand.u32 %v6146, 4294901760
        %v9015 = vsub.f32 %v6146, %v9014
        %v9016 = vand.u32 %v9015, 4294901760
        %v9017 = vsub.f32 %v9015, %v9016
        %v9018 = vand.u32 %v9017, 4294901760
        %9019 = vmatpush1.msra.mxu0 %v9018
        %9020 = vmatprep.subr.mxu0 0.0
        %v9021 = vand.u32 %v6147, 4294901760
        %v9022 = vsub.f32 %v6147, %v9021
        %v9023 = vand.u32 %v9022, 4294901760
        %v9024 = vsub.f32 %v9022, %v9023
        %v9025 = vand.u32 %v9024, 4294901760
        %9026 = vmatpush1.msra.mxu0 %v9025
        %9027 = vmatprep.subr.mxu0 0.0
        %v9028 = vand.u32 %v6148, 4294901760
        %v9029 = vsub.f32 %v6148, %v9028
        %v9030 = vand.u32 %v9029, 4294901760
        %v9031 = vsub.f32 %v9029, %v9030
        %v9032 = vand.u32 %v9031, 4294901760
        %9033 = vmatpush1.msra.mxu0 %v9032
        %9034 = vmatprep.subr.mxu0 0.0
        %v9035 = vand.u32 %v6149, 4294901760
        %v9036 = vsub.f32 %v6149, %v9035
        %v9037 = vand.u32 %v9036, 4294901760
        %v9038 = vsub.f32 %v9036, %v9037
        %v9039 = vand.u32 %v9038, 4294901760
        %9040 = vmatpush1.msra.mxu0 %v9039
        %9041 = vmatprep.subr.mxu0 0.0
        %v9042 = vand.u32 %v6150, 4294901760
        %v9043 = vsub.f32 %v6150, %v9042
        %v9044 = vand.u32 %v9043, 4294901760
        %v9045 = vsub.f32 %v9043, %v9044
        %v9046 = vand.u32 %v9045, 4294901760
        %9047 = vmatpush1.msra.mxu0 %v9046
        %9048 = vmatprep.subr.mxu0 0.0
        %v9049 = vand.u32 %v6151, 4294901760
        %v9050 = vsub.f32 %v6151, %v9049
        %v9051 = vand.u32 %v9050, 4294901760
        %v9052 = vsub.f32 %v9050, %v9051
        %v9053 = vand.u32 %v9052, 4294901760
        %9054 = vmatpush1.msra.mxu0 %v9053
        %9055 = vmatprep.subr.mxu0 0.0
        %v9056 = vand.u32 %v6152, 4294901760
        %v9057 = vsub.f32 %v6152, %v9056
        %v9058 = vand.u32 %v9057, 4294901760
        %v9059 = vsub.f32 %v9057, %v9058
        %v9060 = vand.u32 %v9059, 4294901760
        %9061 = vmatpush1.msra.mxu0 %v9060
        %9062 = vmatprep.subr.mxu0 0.0
        %v9063 = vand.u32 %v6153, 4294901760
        %v9064 = vsub.f32 %v6153, %v9063
        %v9065 = vand.u32 %v9064, 4294901760
        %v9066 = vsub.f32 %v9064, %v9065
        %v9067 = vand.u32 %v9066, 4294901760
        %9068 = vmatpush1.msra.mxu0 %v9067
        %9069 = vmatprep.subr.mxu0 0.0
        %v9070 = vand.u32 %v6154, 4294901760
        %v9071 = vsub.f32 %v6154, %v9070
        %v9072 = vand.u32 %v9071, 4294901760
        %v9073 = vsub.f32 %v9071, %v9072
        %v9074 = vand.u32 %v9073, 4294901760
        %9075 = vmatpush1.msra.mxu0 %v9074
        %9076 = vmatprep.subr.mxu0 0.0
        %v9077 = vand.u32 %v6155, 4294901760
        %v9078 = vsub.f32 %v6155, %v9077
        %v9079 = vand.u32 %v9078, 4294901760
        %v9080 = vsub.f32 %v9078, %v9079
        %v9081 = vand.u32 %v9080, 4294901760
        %9082 = vmatpush1.msra.mxu0 %v9081
        %9083 = vmatprep.subr.mxu0 0.0
        %v9084 = vand.u32 %v6156, 4294901760
        %v9085 = vsub.f32 %v6156, %v9084
        %v9086 = vand.u32 %v9085, 4294901760
        %v9087 = vsub.f32 %v9085, %v9086
        %v9088 = vand.u32 %v9087, 4294901760
        %9089 = vmatpush1.msra.mxu0 %v9088
        %9090 = vmatprep.subr.mxu0 0.0
        %v9091 = vand.u32 %v6157, 4294901760
        %v9092 = vsub.f32 %v6157, %v9091
        %v9093 = vand.u32 %v9092, 4294901760
        %v9094 = vsub.f32 %v9092, %v9093
        %v9095 = vand.u32 %v9094, 4294901760
        %9096 = vmatpush1.msra.mxu0 %v9095
        %9097 = vmatprep.subr.mxu0 0.0
        %v9098 = vand.u32 %v6158, 4294901760
        %v9099 = vsub.f32 %v6158, %v9098
        %v9100 = vand.u32 %v9099, 4294901760
        %v9101 = vsub.f32 %v9099, %v9100
        %v9102 = vand.u32 %v9101, 4294901760
        %9103 = vmatpush1.msra.mxu0 %v9102
        %9104 = vmatprep.subr.mxu0 0.0
        %v9105 = vand.u32 %v6159, 4294901760
        %v9106 = vsub.f32 %v6159, %v9105
        %v9107 = vand.u32 %v9106, 4294901760
        %v9108 = vsub.f32 %v9106, %v9107
        %v9109 = vand.u32 %v9108, 4294901760
        %9110 = vmatpush1.msra.mxu0 %v9109
        %9111 = vmatprep.subr.mxu0 0.0
        %v9112 = vand.u32 %v6160, 4294901760
        %v9113 = vsub.f32 %v6160, %v9112
        %v9114 = vand.u32 %v9113, 4294901760
        %v9115 = vsub.f32 %v9113, %v9114
        %v9116 = vand.u32 %v9115, 4294901760
        %9117 = vmatpush1.msra.mxu0 %v9116
        %9118 = vmatprep.subr.mxu0 0.0
        %v9119 = vand.u32 %v6161, 4294901760
        %v9120 = vsub.f32 %v6161, %v9119
        %v9121 = vand.u32 %v9120, 4294901760
        %v9122 = vsub.f32 %v9120, %v9121
        %v9123 = vand.u32 %v9122, 4294901760
        %9124 = vmatpush1.msra.mxu0 %v9123
        %9125 = vmatprep.subr.mxu0 0.0
        %v9126 = vand.u32 %v6162, 4294901760
        %v9127 = vsub.f32 %v6162, %v9126
        %v9128 = vand.u32 %v9127, 4294901760
        %v9129 = vsub.f32 %v9127, %v9128
        %v9130 = vand.u32 %v9129, 4294901760
        %9131 = vmatpush1.msra.mxu0 %v9130
        %9132 = vmatprep.subr.mxu0 0.0
        %v9133 = vand.u32 %v6163, 4294901760
        %v9134 = vsub.f32 %v6163, %v9133
        %v9135 = vand.u32 %v9134, 4294901760
        %v9136 = vsub.f32 %v9134, %v9135
        %v9137 = vand.u32 %v9136, 4294901760
        %9138 = vmatpush1.msra.mxu0 %v9137
        %9139 = vmatprep.subr.mxu0 0.0
        %v9140 = vand.u32 %v6164, 4294901760
        %v9141 = vsub.f32 %v6164, %v9140
        %v9142 = vand.u32 %v9141, 4294901760
        %v9143 = vsub.f32 %v9141, %v9142
        %v9144 = vand.u32 %v9143, 4294901760
        %9145 = vmatpush1.msra.mxu0 %v9144
        %v9146 = vand.u32 %v6010, 4294901760
        %9147 = vmatprep.mubr.f32.mxu0 %v9146
        %v9148 = vand.u32 %v6009, 4294901760
        %9149 = vmatmul.mubr.f32.gmra.mrb[0].mxu0 %v9148
        %v9150 = vpop.f32.mrb[0].mxu0
        %v9151 = vadd.f32 %v8814, %v9150
        %v9152 = vpop.f32.mrb[0].mxu0
        %v9153 = vand.u32 %v6018, 4294901760
        %9154 = vmatprep.mubr.f32.mxu0 %v9153
        %v9155 = vand.u32 %v6017, 4294901760
        %9156 = vmatmul.mubr.f32.gmra.mrb[0].mxu0 %v9155
        %v9157 = vpop.f32.mrb[0].mxu0
        %v9158 = vadd.f32 %v8829, %v9157
        %v9159 = vpop.f32.mrb[0].mxu0
        %v9160 = vand.u32 %v6026, 4294901760
        %9161 = vmatprep.mubr.f32.mxu0 %v9160
        %v9162 = vand.u32 %v6025, 4294901760
        %9163 = vmatmul.mubr.f32.gmra.mrb[0].mxu0 %v9162
        %v9164 = vpop.f32.mrb[0].mxu0
        %v9165 = vadd.f32 %v8844, %v9164
        %v9166 = vpop.f32.mrb[0].mxu0
        %v9167 = vand.u32 %v6034, 4294901760
        %9168 = vmatprep.mubr.f32.mxu0 %v9167
        %v9169 = vand.u32 %v6033, 4294901760
        %9170 = vmatmul.mubr.f32.gmra.mrb[0].mxu0 %v9169
        %v9171 = vpop.f32.mrb[0].mxu0
        %v9172 = vadd.f32 %v8859, %v9171
        %v9173 = vpop.f32.mrb[0].mxu0
        %v9174 = vand.u32 %v6042, 4294901760
        %9175 = vmatprep.mubr.f32.mxu0 %v9174
        %v9176 = vand.u32 %v6041, 4294901760
        %9177 = vmatmul.mubr.f32.gmra.mrb[0].mxu0 %v9176
        %v9178 = vpop.f32.mrb[0].mxu0
        %v9179 = vadd.f32 %v8874, %v9178
        %v9180 = vpop.f32.mrb[0].mxu0
        %v9181 = vand.u32 %v6050, 4294901760
        %9182 = vmatprep.mubr.f32.mxu0 %v9181
        %v9183 = vand.u32 %v6049, 4294901760
        %9184 = vmatmul.mubr.f32.gmra.mrb[0].mxu0 %v9183
        %v9185 = vpop.f32.mrb[0].mxu0
        %v9186 = vadd.f32 %v8889, %v9185
        %v9187 = vpop.f32.mrb[0].mxu0
        %v9188 = vand.u32 %v6058, 4294901760
        %9189 = vmatprep.mubr.f32.mxu0 %v9188
        %v9190 = vand.u32 %v6057, 4294901760
        %9191 = vmatmul.mubr.f32.gmra.mrb[0].mxu0 %v9190
        %v9192 = vpop.f32.mrb[0].mxu0
        %v9193 = vadd.f32 %v8904, %v9192
        %v9194 = vpop.f32.mrb[0].mxu0
        %v9195 = vand.u32 %v6066, 4294901760
        %9196 = vmatprep.mubr.f32.mxu0 %v9195
        %v9197 = vand.u32 %v6065, 4294901760
        %9198 = vmatmul.mubr.f32.gmra.mrb[0].mxu0 %v9197
        %v9199 = vpop.f32.mrb[0].mxu0
        %v9200 = vadd.f32 %v8919, %v9199
        %v9201 = vpop.f32.mrb[0].mxu0
        %9202 = vdwg.mxu0
        %9203 = vmatprep.subr.mxu0 0.0
        %v9204 = vand.u32 %v6133, 4294901760
        %v9205 = vsub.f32 %v6133, %v9204
        %9206 = vmatpush1.msra.mxu0 %v9205
        %9207 = vmatprep.subr.mxu0 0.0
        %v9208 = vand.u32 %v6134, 4294901760
        %v9209 = vsub.f32 %v6134, %v9208
        %9210 = vmatpush1.msra.mxu0 %v9209
        %9211 = vmatprep.subr.mxu0 0.0
        %v9212 = vand.u32 %v6135, 4294901760
        %v9213 = vsub.f32 %v6135, %v9212
        %9214 = vmatpush1.msra.mxu0 %v9213
        %9215 = vmatprep.subr.mxu0 0.0
        %v9216 = vand.u32 %v6136, 4294901760
        %v9217 = vsub.f32 %v6136, %v9216
        %9218 = vmatpush1.msra.mxu0 %v9217
        %9219 = vmatprep.subr.mxu0 0.0
        %v9220 = vand.u32 %v6137, 4294901760
        %v9221 = vsub.f32 %v6137, %v9220
        %9222 = vmatpush1.msra.mxu0 %v9221
        %9223 = vmatprep.subr.mxu0 0.0
        %v9224 = vand.u32 %v6138, 4294901760
        %v9225 = vsub.f32 %v6138, %v9224
        %9226 = vmatpush1.msra.mxu0 %v9225
        %9227 = vmatprep.subr.mxu0 0.0
        %v9228 = vand.u32 %v6139, 4294901760
        %v9229 = vsub.f32 %v6139, %v9228
        %9230 = vmatpush1.msra.mxu0 %v9229
        %9231 = vmatprep.subr.mxu0 0.0
        %v9232 = vand.u32 %v6140, 4294901760
        %v9233 = vsub.f32 %v6140, %v9232
        %9234 = vmatpush1.msra.mxu0 %v9233
        %9235 = vmatprep.subr.mxu0 0.0
        %v9236 = vand.u32 %v6141, 4294901760
        %v9237 = vsub.f32 %v6141, %v9236
        %9238 = vmatpush1.msra.mxu0 %v9237
        %9239 = vmatprep.subr.mxu0 0.0
        %v9240 = vand.u32 %v6142, 4294901760
        %v9241 = vsub.f32 %v6142, %v9240
        %9242 = vmatpush1.msra.mxu0 %v9241
        %9243 = vmatprep.subr.mxu0 0.0
        %v9244 = vand.u32 %v6143, 4294901760
        %v9245 = vsub.f32 %v6143, %v9244
        %9246 = vmatpush1.msra.mxu0 %v9245
        %9247 = vmatprep.subr.mxu0 0.0
        %v9248 = vand.u32 %v6144, 4294901760
        %v9249 = vsub.f32 %v6144, %v9248
        %9250 = vmatpush1.msra.mxu0 %v9249
        %9251 = vmatprep.subr.mxu0 0.0
        %v9252 = vand.u32 %v6145, 4294901760
        %v9253 = vsub.f32 %v6145, %v9252
        %9254 = vmatpush1.msra.mxu0 %v9253
        %9255 = vmatprep.subr.mxu0 0.0
        %v9256 = vand.u32 %v6146, 4294901760
        %v9257 = vsub.f32 %v6146, %v9256
        %9258 = vmatpush1.msra.mxu0 %v9257
        %9259 = vmatprep.subr.mxu0 0.0
        %v9260 = vand.u32 %v6147, 4294901760
        %v9261 = vsub.f32 %v6147, %v9260
        %9262 = vmatpush1.msra.mxu0 %v9261
        %9263 = vmatprep.subr.mxu0 0.0
        %v9264 = vand.u32 %v6148, 4294901760
        %v9265 = vsub.f32 %v6148, %v9264
        %9266 = vmatpush1.msra.mxu0 %v9265
        %9267 = vmatprep.subr.mxu0 0.0
        %v9268 = vand.u32 %v6149, 4294901760
        %v9269 = vsub.f32 %v6149, %v9268
        %9270 = vmatpush1.msra.mxu0 %v9269
        %9271 = vmatprep.subr.mxu0 0.0
        %v9272 = vand.u32 %v6150, 4294901760
        %v9273 = vsub.f32 %v6150, %v9272
        %9274 = vmatpush1.msra.mxu0 %v9273
        %9275 = vmatprep.subr.mxu0 0.0
        %v9276 = vand.u32 %v6151, 4294901760
        %v9277 = vsub.f32 %v6151, %v9276
        %9278 = vmatpush1.msra.mxu0 %v9277
        %9279 = vmatprep.subr.mxu0 0.0
        %v9280 = vand.u32 %v6152, 4294901760
        %v9281 = vsub.f32 %v6152, %v9280
        %9282 = vmatpush1.msra.mxu0 %v9281
        %9283 = vmatprep.subr.mxu0 0.0
        %v9284 = vand.u32 %v6153, 4294901760
        %v9285 = vsub.f32 %v6153, %v9284
        %9286 = vmatpush1.msra.mxu0 %v9285
        %9287 = vmatprep.subr.mxu0 0.0
        %v9288 = vand.u32 %v6154, 4294901760
        %v9289 = vsub.f32 %v6154, %v9288
        %9290 = vmatpush1.msra.mxu0 %v9289
        %9291 = vmatprep.subr.mxu0 0.0
        %v9292 = vand.u32 %v6155, 4294901760
        %v9293 = vsub.f32 %v6155, %v9292
        %9294 = vmatpush1.msra.mxu0 %v9293
        %9295 = vmatprep.subr.mxu0 0.0
        %v9296 = vand.u32 %v6156, 4294901760
        %v9297 = vsub.f32 %v6156, %v9296
        %9298 = vmatpush1.msra.mxu0 %v9297
        %9299 = vmatprep.subr.mxu0 0.0
        %v9300 = vand.u32 %v6157, 4294901760
        %v9301 = vsub.f32 %v6157, %v9300
        %9302 = vmatpush1.msra.mxu0 %v9301
        %9303 = vmatprep.subr.mxu0 0.0
        %v9304 = vand.u32 %v6158, 4294901760
        %v9305 = vsub.f32 %v6158, %v9304
        %9306 = vmatpush1.msra.mxu0 %v9305
        %9307 = vmatprep.subr.mxu0 0.0
        %v9308 = vand.u32 %v6159, 4294901760
        %v9309 = vsub.f32 %v6159, %v9308
        %9310 = vmatpush1.msra.mxu0 %v9309
        %9311 = vmatprep.subr.mxu0 0.0
        %v9312 = vand.u32 %v6160, 4294901760
        %v9313 = vsub.f32 %v6160, %v9312
        %9314 = vmatpush1.msra.mxu0 %v9313
        %9315 = vmatprep.subr.mxu0 0.0
        %v9316 = vand.u32 %v6161, 4294901760
        %v9317 = vsub.f32 %v6161, %v9316
        %9318 = vmatpush1.msra.mxu0 %v9317
        %9319 = vmatprep.subr.mxu0 0.0
        %v9320 = vand.u32 %v6162, 4294901760
        %v9321 = vsub.f32 %v6162, %v9320
        %9322 = vmatpush1.msra.mxu0 %v9321
        %9323 = vmatprep.subr.mxu0 0.0
        %v9324 = vand.u32 %v6163, 4294901760
        %v9325 = vsub.f32 %v6163, %v9324
        %9326 = vmatpush1.msra.mxu0 %v9325
        %9327 = vmatprep.subr.mxu0 0.0
        %v9328 = vand.u32 %v6164, 4294901760
        %v9329 = vsub.f32 %v6164, %v9328
        %9330 = vmatpush1.msra.mxu0 %v9329
        %v9331 = vand.u32 %v6010, 4294901760
        %v9332 = vsub.f32 %v6010, %v9331
        %9333 = vmatprep.mubr.f32.mxu0 %v9332
        %v9334 = vand.u32 %v6009, 4294901760
        %v9335 = vsub.f32 %v6009, %v9334
        %9336 = vmatmul.mubr.f32.gmra.mrb[0].mxu0 %v9335
        %v9337 = vpop.f32.mrb[0].mxu0
        %v9338 = vadd.f32 %v9151, %v9337
        %v9339 = vpop.f32.mrb[0].mxu0
        %v9340 = vand.u32 %v6018, 4294901760
        %v9341 = vsub.f32 %v6018, %v9340
        %9342 = vmatprep.mubr.f32.mxu0 %v9341
        %v9343 = vand.u32 %v6017, 4294901760
        %v9344 = vsub.f32 %v6017, %v9343
        %9345 = vmatmul.mubr.f32.gmra.mrb[0].mxu0 %v9344
        %v9346 = vpop.f32.mrb[0].mxu0
        %v9347 = vadd.f32 %v9158, %v9346
        %v9348 = vpop.f32.mrb[0].mxu0
        %v9349 = vand.u32 %v6026, 4294901760
        %v9350 = vsub.f32 %v6026, %v9349
        %9351 = vmatprep.mubr.f32.mxu0 %v9350
        %v9352 = vand.u32 %v6025, 4294901760
        %v9353 = vsub.f32 %v6025, %v9352
        %9354 = vmatmul.mubr.f32.gmra.mrb[0].mxu0 %v9353
        %v9355 = vpop.f32.mrb[0].mxu0
        %v9356 = vadd.f32 %v9165, %v9355
        %v9357 = vpop.f32.mrb[0].mxu0
        %v9358 = vand.u32 %v6034, 4294901760
        %v9359 = vsub.f32 %v6034, %v9358
        %9360 = vmatprep.mubr.f32.mxu0 %v9359
        %v9361 = vand.u32 %v6033, 4294901760
        %v9362 = vsub.f32 %v6033, %v9361
        %9363 = vmatmul.mubr.f32.gmra.mrb[0].mxu0 %v9362
        %v9364 = vpop.f32.mrb[0].mxu0
        %v9365 = vadd.f32 %v9172, %v9364
        %v9366 = vpop.f32.mrb[0].mxu0
        %v9367 = vand.u32 %v6042, 4294901760
        %v9368 = vsub.f32 %v6042, %v9367
        %9369 = vmatprep.mubr.f32.mxu0 %v9368
        %v9370 = vand.u32 %v6041, 4294901760
        %v9371 = vsub.f32 %v6041, %v9370
        %9372 = vmatmul.mubr.f32.gmra.mrb[0].mxu0 %v9371
        %v9373 = vpop.f32.mrb[0].mxu0
        %v9374 = vadd.f32 %v9179, %v9373
        %v9375 = vpop.f32.mrb[0].mxu0
        %v9376 = vand.u32 %v6050, 4294901760
        %v9377 = vsub.f32 %v6050, %v9376
        %9378 = vmatprep.mubr.f32.mxu0 %v9377
        %v9379 = vand.u32 %v6049, 4294901760
        %v9380 = vsub.f32 %v6049, %v9379
        %9381 = vmatmul.mubr.f32.gmra.mrb[0].mxu0 %v9380
        %v9382 = vpop.f32.mrb[0].mxu0
        %v9383 = vadd.f32 %v9186, %v9382
        %v9384 = vpop.f32.mrb[0].mxu0
        %v9385 = vand.u32 %v6058, 4294901760
        %v9386 = vsub.f32 %v6058, %v9385
        %9387 = vmatprep.mubr.f32.mxu0 %v9386
        %v9388 = vand.u32 %v6057, 4294901760
        %v9389 = vsub.f32 %v6057, %v9388
        %9390 = vmatmul.mubr.f32.gmra.mrb[0].mxu0 %v9389
        %v9391 = vpop.f32.mrb[0].mxu0
        %v9392 = vadd.f32 %v9193, %v9391
        %v9393 = vpop.f32.mrb[0].mxu0
        %v9394 = vand.u32 %v6066, 4294901760
        %v9395 = vsub.f32 %v6066, %v9394
        %9396 = vmatprep.mubr.f32.mxu0 %v9395
        %v9397 = vand.u32 %v6065, 4294901760
        %v9398 = vsub.f32 %v6065, %v9397
        %9399 = vmatmul.mubr.f32.gmra.mrb[0].mxu0 %v9398
        %v9400 = vpop.f32.mrb[0].mxu0
        %v9401 = vadd.f32 %v9200, %v9400
        %v9402 = vpop.f32.mrb[0].mxu0
        %9403 = vdwg.mxu0
        %9404 = vmatprep.subr.mxu0 0.0
        %v9405 = vand.u32 %v6133, 4294901760
        %9406 = vmatpush1.msra.mxu0 %v9405
        %9407 = vmatprep.subr.mxu0 0.0
        %v9408 = vand.u32 %v6134, 4294901760
        %9409 = vmatpush1.msra.mxu0 %v9408
        %9410 = vmatprep.subr.mxu0 0.0
        %v9411 = vand.u32 %v6135, 4294901760
        %9412 = vmatpush1.msra.mxu0 %v9411
        %9413 = vmatprep.subr.mxu0 0.0
        %v9414 = vand.u32 %v6136, 4294901760
        %9415 = vmatpush1.msra.mxu0 %v9414
        %9416 = vmatprep.subr.mxu0 0.0
        %v9417 = vand.u32 %v6137, 4294901760
        %9418 = vmatpush1.msra.mxu0 %v9417
        %9419 = vmatprep.subr.mxu0 0.0
        %v9420 = vand.u32 %v6138, 4294901760
        %9421 = vmatpush1.msra.mxu0 %v9420
        %9422 = vmatprep.subr.mxu0 0.0
        %v9423 = vand.u32 %v6139, 4294901760
        %9424 = vmatpush1.msra.mxu0 %v9423
        %9425 = vmatprep.subr.mxu0 0.0
        %v9426 = vand.u32 %v6140, 4294901760
        %9427 = vmatpush1.msra.mxu0 %v9426
        %9428 = vmatprep.subr.mxu0 0.0
        %v9429 = vand.u32 %v6141, 4294901760
        %9430 = vmatpush1.msra.mxu0 %v9429
        %9431 = vmatprep.subr.mxu0 0.0
        %v9432 = vand.u32 %v6142, 4294901760
        %9433 = vmatpush1.msra.mxu0 %v9432
        %9434 = vmatprep.subr.mxu0 0.0
        %v9435 = vand.u32 %v6143, 4294901760
        %9436 = vmatpush1.msra.mxu0 %v9435
        %9437 = vmatprep.subr.mxu0 0.0
        %v9438 = vand.u32 %v6144, 4294901760
        %9439 = vmatpush1.msra.mxu0 %v9438
        %9440 = vmatprep.subr.mxu0 0.0
        %v9441 = vand.u32 %v6145, 4294901760
        %9442 = vmatpush1.msra.mxu0 %v9441
        %9443 = vmatprep.subr.mxu0 0.0
        %v9444 = vand.u32 %v6146, 4294901760
        %9445 = vmatpush1.msra.mxu0 %v9444
        %9446 = vmatprep.subr.mxu0 0.0
        %v9447 = vand.u32 %v6147, 4294901760
        %9448 = vmatpush1.msra.mxu0 %v9447
        %9449 = vmatprep.subr.mxu0 0.0
        %v9450 = vand.u32 %v6148, 4294901760
        %9451 = vmatpush1.msra.mxu0 %v9450
        %9452 = vmatprep.subr.mxu0 0.0
        %v9453 = vand.u32 %v6149, 4294901760
        %9454 = vmatpush1.msra.mxu0 %v9453
        %9455 = vmatprep.subr.mxu0 0.0
        %v9456 = vand.u32 %v6150, 4294901760
        %9457 = vmatpush1.msra.mxu0 %v9456
        %9458 = vmatprep.subr.mxu0 0.0
        %v9459 = vand.u32 %v6151, 4294901760
        %9460 = vmatpush1.msra.mxu0 %v9459
        %9461 = vmatprep.subr.mxu0 0.0
        %v9462 = vand.u32 %v6152, 4294901760
        %9463 = vmatpush1.msra.mxu0 %v9462
        %9464 = vmatprep.subr.mxu0 0.0
        %v9465 = vand.u32 %v6153, 4294901760
        %9466 = vmatpush1.msra.mxu0 %v9465
        %9467 = vmatprep.subr.mxu0 0.0
        %v9468 = vand.u32 %v6154, 4294901760
        %9469 = vmatpush1.msra.mxu0 %v9468
        %9470 = vmatprep.subr.mxu0 0.0
        %v9471 = vand.u32 %v6155, 4294901760
        %9472 = vmatpush1.msra.mxu0 %v9471
        %9473 = vmatprep.subr.mxu0 0.0
        %v9474 = vand.u32 %v6156, 4294901760
        %9475 = vmatpush1.msra.mxu0 %v9474
        %9476 = vmatprep.subr.mxu0 0.0
        %v9477 = vand.u32 %v6157, 4294901760
        %9478 = vmatpush1.msra.mxu0 %v9477
        %9479 = vmatprep.subr.mxu0 0.0
        %v9480 = vand.u32 %v6158, 4294901760
        %9481 = vmatpush1.msra.mxu0 %v9480
        %9482 = vmatprep.subr.mxu0 0.0
        %v9483 = vand.u32 %v6159, 4294901760
        %9484 = vmatpush1.msra.mxu0 %v9483
        %9485 = vmatprep.subr.mxu0 0.0
        %v9486 = vand.u32 %v6160, 4294901760
        %9487 = vmatpush1.msra.mxu0 %v9486
        %9488 = vmatprep.subr.mxu0 0.0
        %v9489 = vand.u32 %v6161, 4294901760
        %9490 = vmatpush1.msra.mxu0 %v9489
        %9491 = vmatprep.subr.mxu0 0.0
        %v9492 = vand.u32 %v6162, 4294901760
        %9493 = vmatpush1.msra.mxu0 %v9492
        %9494 = vmatprep.subr.mxu0 0.0
        %v9495 = vand.u32 %v6163, 4294901760
        %9496 = vmatpush1.msra.mxu0 %v9495
        %9497 = vmatprep.subr.mxu0 0.0
        %v9498 = vand.u32 %v6164, 4294901760
        %9499 = vmatpush1.msra.mxu0 %v9498
        %v9500 = vand.u32 %v6010, 4294901760
        %v9501 = vsub.f32 %v6010, %v9500
        %v9502 = vand.u32 %v9501, 4294901760
        %9503 = vmatprep.mubr.f32.mxu0 %v9502
        %v9504 = vand.u32 %v6009, 4294901760
        %v9505 = vsub.f32 %v6009, %v9504
        %v9506 = vand.u32 %v9505, 4294901760
        %9507 = vmatmul.mubr.f32.gmra.mrb[0].mxu0 %v9506
        %v9508 = vpop.f32.mrb[0].mxu0
        %v9509 = vadd.f32 %v9338, %v9508
        %v9510 = vpop.f32.mrb[0].mxu0
        %v9511 = vand.u32 %v6018, 4294901760
        %v9512 = vsub.f32 %v6018, %v9511
        %v9513 = vand.u32 %v9512, 4294901760
        %9514 = vmatprep.mubr.f32.mxu0 %v9513
        %v9515 = vand.u32 %v6017, 4294901760
        %v9516 = vsub.f32 %v6017, %v9515
        %v9517 = vand.u32 %v9516, 4294901760
        %9518 = vmatmul.mubr.f32.gmra.mrb[0].mxu0 %v9517
        %v9519 = vpop.f32.mrb[0].mxu0
        %v9520 = vadd.f32 %v9347, %v9519
        %v9521 = vpop.f32.mrb[0].mxu0
        %v9522 = vand.u32 %v6026, 4294901760
        %v9523 = vsub.f32 %v6026, %v9522
        %v9524 = vand.u32 %v9523, 4294901760
        %9525 = vmatprep.mubr.f32.mxu0 %v9524
        %v9526 = vand.u32 %v6025, 4294901760
        %v9527 = vsub.f32 %v6025, %v9526
        %v9528 = vand.u32 %v9527, 4294901760
        %9529 = vmatmul.mubr.f32.gmra.mrb[0].mxu0 %v9528
        %v9530 = vpop.f32.mrb[0].mxu0
        %v9531 = vadd.f32 %v9356, %v9530
        %v9532 = vpop.f32.mrb[0].mxu0
        %v9533 = vand.u32 %v6034, 4294901760
        %v9534 = vsub.f32 %v6034, %v9533
        %v9535 = vand.u32 %v9534, 4294901760
        %9536 = vmatprep.mubr.f32.mxu0 %v9535
        %v9537 = vand.u32 %v6033, 4294901760
        %v9538 = vsub.f32 %v6033, %v9537
        %v9539 = vand.u32 %v9538, 4294901760
        %9540 = vmatmul.mubr.f32.gmra.mrb[0].mxu0 %v9539
        %v9541 = vpop.f32.mrb[0].mxu0
        %v9542 = vadd.f32 %v9365, %v9541
        %v9543 = vpop.f32.mrb[0].mxu0
        %v9544 = vand.u32 %v6042, 4294901760
        %v9545 = vsub.f32 %v6042, %v9544
        %v9546 = vand.u32 %v9545, 4294901760
        %9547 = vmatprep.mubr.f32.mxu0 %v9546
        %v9548 = vand.u32 %v6041, 4294901760
        %v9549 = vsub.f32 %v6041, %v9548
        %v9550 = vand.u32 %v9549, 4294901760
        %9551 = vmatmul.mubr.f32.gmra.mrb[0].mxu0 %v9550
        %v9552 = vpop.f32.mrb[0].mxu0
        %v9553 = vadd.f32 %v9374, %v9552
        %v9554 = vpop.f32.mrb[0].mxu0
        %v9555 = vand.u32 %v6050, 4294901760
        %v9556 = vsub.f32 %v6050, %v9555
        %v9557 = vand.u32 %v9556, 4294901760
        %9558 = vmatprep.mubr.f32.mxu0 %v9557
        %v9559 = vand.u32 %v6049, 4294901760
        %v9560 = vsub.f32 %v6049, %v9559
        %v9561 = vand.u32 %v9560, 4294901760
        %9562 = vmatmul.mubr.f32.gmra.mrb[0].mxu0 %v9561
        %v9563 = vpop.f32.mrb[0].mxu0
        %v9564 = vadd.f32 %v9383, %v9563
        %v9565 = vpop.f32.mrb[0].mxu0
        %v9566 = vand.u32 %v6058, 4294901760
        %v9567 = vsub.f32 %v6058, %v9566
        %v9568 = vand.u32 %v9567, 4294901760
        %9569 = vmatprep.mubr.f32.mxu0 %v9568
        %v9570 = vand.u32 %v6057, 4294901760
        %v9571 = vsub.f32 %v6057, %v9570
        %v9572 = vand.u32 %v9571, 4294901760
        %9573 = vmatmul.mubr.f32.gmra.mrb[0].mxu0 %v9572
        %v9574 = vpop.f32.mrb[0].mxu0
        %v9575 = vadd.f32 %v9392, %v9574
        %v9576 = vpop.f32.mrb[0].mxu0
        %v9577 = vand.u32 %v6066, 4294901760
        %v9578 = vsub.f32 %v6066, %v9577
        %v9579 = vand.u32 %v9578, 4294901760
        %9580 = vmatprep.mubr.f32.mxu0 %v9579
        %v9581 = vand.u32 %v6065, 4294901760
        %v9582 = vsub.f32 %v6065, %v9581
        %v9583 = vand.u32 %v9582, 4294901760
        %9584 = vmatmul.mubr.f32.gmra.mrb[0].mxu0 %v9583
        %v9585 = vpop.f32.mrb[0].mxu0
        %v9586 = vadd.f32 %v9401, %v9585
        %v9587 = vpop.f32.mrb[0].mxu0
        %9588 = vdwg.mxu0
        %9589 = vmatprep.subr.mxu0 0.0
        %v9590 = vand.u32 %v6133, 4294901760
        %v9591 = vsub.f32 %v6133, %v9590
        %v9592 = vand.u32 %v9591, 4294901760
        %9593 = vmatpush1.msra.mxu0 %v9592
        %9594 = vmatprep.subr.mxu0 0.0
        %v9595 = vand.u32 %v6134, 4294901760
        %v9596 = vsub.f32 %v6134, %v9595
        %v9597 = vand.u32 %v9596, 4294901760
        %9598 = vmatpush1.msra.mxu0 %v9597
        %9599 = vmatprep.subr.mxu0 0.0
        %v9600 = vand.u32 %v6135, 4294901760
        %v9601 = vsub.f32 %v6135, %v9600
        %v9602 = vand.u32 %v9601, 4294901760
        %9603 = vmatpush1.msra.mxu0 %v9602
        %9604 = vmatprep.subr.mxu0 0.0
        %v9605 = vand.u32 %v6136, 4294901760
        %v9606 = vsub.f32 %v6136, %v9605
        %v9607 = vand.u32 %v9606, 4294901760
        %9608 = vmatpush1.msra.mxu0 %v9607
        %9609 = vmatprep.subr.mxu0 0.0
        %v9610 = vand.u32 %v6137, 4294901760
        %v9611 = vsub.f32 %v6137, %v9610
        %v9612 = vand.u32 %v9611, 4294901760
        %9613 = vmatpush1.msra.mxu0 %v9612
        %9614 = vmatprep.subr.mxu0 0.0
        %v9615 = vand.u32 %v6138, 4294901760
        %v9616 = vsub.f32 %v6138, %v9615
        %v9617 = vand.u32 %v9616, 4294901760
        %9618 = vmatpush1.msra.mxu0 %v9617
        %9619 = vmatprep.subr.mxu0 0.0
        %v9620 = vand.u32 %v6139, 4294901760
        %v9621 = vsub.f32 %v6139, %v9620
        %v9622 = vand.u32 %v9621, 4294901760
        %9623 = vmatpush1.msra.mxu0 %v9622
        %9624 = vmatprep.subr.mxu0 0.0
        %v9625 = vand.u32 %v6140, 4294901760
        %v9626 = vsub.f32 %v6140, %v9625
        %v9627 = vand.u32 %v9626, 4294901760
        %9628 = vmatpush1.msra.mxu0 %v9627
        %9629 = vmatprep.subr.mxu0 0.0
        %v9630 = vand.u32 %v6141, 4294901760
        %v9631 = vsub.f32 %v6141, %v9630
        %v9632 = vand.u32 %v9631, 4294901760
        %9633 = vmatpush1.msra.mxu0 %v9632
        %9634 = vmatprep.subr.mxu0 0.0
        %v9635 = vand.u32 %v6142, 4294901760
        %v9636 = vsub.f32 %v6142, %v9635
        %v9637 = vand.u32 %v9636, 4294901760
        %9638 = vmatpush1.msra.mxu0 %v9637
        %9639 = vmatprep.subr.mxu0 0.0
        %v9640 = vand.u32 %v6143, 4294901760
        %v9641 = vsub.f32 %v6143, %v9640
        %v9642 = vand.u32 %v9641, 4294901760
        %9643 = vmatpush1.msra.mxu0 %v9642
        %9644 = vmatprep.subr.mxu0 0.0
        %v9645 = vand.u32 %v6144, 4294901760
        %v9646 = vsub.f32 %v6144, %v9645
        %v9647 = vand.u32 %v9646, 4294901760
        %9648 = vmatpush1.msra.mxu0 %v9647
        %9649 = vmatprep.subr.mxu0 0.0
        %v9650 = vand.u32 %v6145, 4294901760
        %v9651 = vsub.f32 %v6145, %v9650
        %v9652 = vand.u32 %v9651, 4294901760
        %9653 = vmatpush1.msra.mxu0 %v9652
        %9654 = vmatprep.subr.mxu0 0.0
        %v9655 = vand.u32 %v6146, 4294901760
        %v9656 = vsub.f32 %v6146, %v9655
        %v9657 = vand.u32 %v9656, 4294901760
        %9658 = vmatpush1.msra.mxu0 %v9657
        %9659 = vmatprep.subr.mxu0 0.0
        %v9660 = vand.u32 %v6147, 4294901760
        %v9661 = vsub.f32 %v6147, %v9660
        %v9662 = vand.u32 %v9661, 4294901760
        %9663 = vmatpush1.msra.mxu0 %v9662
        %9664 = vmatprep.subr.mxu0 0.0
        %v9665 = vand.u32 %v6148, 4294901760
        %v9666 = vsub.f32 %v6148, %v9665
        %v9667 = vand.u32 %v9666, 4294901760
        %9668 = vmatpush1.msra.mxu0 %v9667
        %9669 = vmatprep.subr.mxu0 0.0
        %v9670 = vand.u32 %v6149, 4294901760
        %v9671 = vsub.f32 %v6149, %v9670
        %v9672 = vand.u32 %v9671, 4294901760
        %9673 = vmatpush1.msra.mxu0 %v9672
        %9674 = vmatprep.subr.mxu0 0.0
        %v9675 = vand.u32 %v6150, 4294901760
        %v9676 = vsub.f32 %v6150, %v9675
        %v9677 = vand.u32 %v9676, 4294901760
        %9678 = vmatpush1.msra.mxu0 %v9677
        %9679 = vmatprep.subr.mxu0 0.0
        %v9680 = vand.u32 %v6151, 4294901760
        %v9681 = vsub.f32 %v6151, %v9680
        %v9682 = vand.u32 %v9681, 4294901760
        %9683 = vmatpush1.msra.mxu0 %v9682
        %9684 = vmatprep.subr.mxu0 0.0
        %v9685 = vand.u32 %v6152, 4294901760
        %v9686 = vsub.f32 %v6152, %v9685
        %v9687 = vand.u32 %v9686, 4294901760
        %9688 = vmatpush1.msra.mxu0 %v9687
        %9689 = vmatprep.subr.mxu0 0.0
        %v9690 = vand.u32 %v6153, 4294901760
        %v9691 = vsub.f32 %v6153, %v9690
        %v9692 = vand.u32 %v9691, 4294901760
        %9693 = vmatpush1.msra.mxu0 %v9692
        %9694 = vmatprep.subr.mxu0 0.0
        %v9695 = vand.u32 %v6154, 4294901760
        %v9696 = vsub.f32 %v6154, %v9695
        %v9697 = vand.u32 %v9696, 4294901760
        %9698 = vmatpush1.msra.mxu0 %v9697
        %9699 = vmatprep.subr.mxu0 0.0
        %v9700 = vand.u32 %v6155, 4294901760
        %v9701 = vsub.f32 %v6155, %v9700
        %v9702 = vand.u32 %v9701, 4294901760
        %9703 = vmatpush1.msra.mxu0 %v9702
        %9704 = vmatprep.subr.mxu0 0.0
        %v9705 = vand.u32 %v6156, 4294901760
        %v9706 = vsub.f32 %v6156, %v9705
        %v9707 = vand.u32 %v9706, 4294901760
        %9708 = vmatpush1.msra.mxu0 %v9707
        %9709 = vmatprep.subr.mxu0 0.0
        %v9710 = vand.u32 %v6157, 4294901760
        %v9711 = vsub.f32 %v6157, %v9710
        %v9712 = vand.u32 %v9711, 4294901760
        %9713 = vmatpush1.msra.mxu0 %v9712
        %9714 = vmatprep.subr.mxu0 0.0
        %v9715 = vand.u32 %v6158, 4294901760
        %v9716 = vsub.f32 %v6158, %v9715
        %v9717 = vand.u32 %v9716, 4294901760
        %9718 = vmatpush1.msra.mxu0 %v9717
        %9719 = vmatprep.subr.mxu0 0.0
        %v9720 = vand.u32 %v6159, 4294901760
        %v9721 = vsub.f32 %v6159, %v9720
        %v9722 = vand.u32 %v9721, 4294901760
        %9723 = vmatpush1.msra.mxu0 %v9722
        %9724 = vmatprep.subr.mxu0 0.0
        %v9725 = vand.u32 %v6160, 4294901760
        %v9726 = vsub.f32 %v6160, %v9725
        %v9727 = vand.u32 %v9726, 4294901760
        %9728 = vmatpush1.msra.mxu0 %v9727
        %9729 = vmatprep.subr.mxu0 0.0
        %v9730 = vand.u32 %v6161, 4294901760
        %v9731 = vsub.f32 %v6161, %v9730
        %v9732 = vand.u32 %v9731, 4294901760
        %9733 = vmatpush1.msra.mxu0 %v9732
        %9734 = vmatprep.subr.mxu0 0.0
        %v9735 = vand.u32 %v6162, 4294901760
        %v9736 = vsub.f32 %v6162, %v9735
        %v9737 = vand.u32 %v9736, 4294901760
        %9738 = vmatpush1.msra.mxu0 %v9737
        %9739 = vmatprep.subr.mxu0 0.0
        %v9740 = vand.u32 %v6163, 4294901760
        %v9741 = vsub.f32 %v6163, %v9740
        %v9742 = vand.u32 %v9741, 4294901760
        %9743 = vmatpush1.msra.mxu0 %v9742
        %9744 = vmatprep.subr.mxu0 0.0
        %v9745 = vand.u32 %v6164, 4294901760
        %v9746 = vsub.f32 %v6164, %v9745
        %v9747 = vand.u32 %v9746, 4294901760
        %9748 = vmatpush1.msra.mxu0 %v9747
        %v9749 = vand.u32 %v6010, 4294901760
        %9750 = vmatprep.mubr.f32.mxu0 %v9749
        %v9751 = vand.u32 %v6009, 4294901760
        %9752 = vmatmul.mubr.f32.gmra.mrb[0].mxu0 %v9751
        %v9753 = vpop.f32.mrb[0].mxu0
        %v9754 = vadd.f32 %v9509, %v9753
        %v9755 = vpop.f32.mrb[0].mxu0
        %v9756 = vand.u32 %v6018, 4294901760
        %9757 = vmatprep.mubr.f32.mxu0 %v9756
        %v9758 = vand.u32 %v6017, 4294901760
        %9759 = vmatmul.mubr.f32.gmra.mrb[0].mxu0 %v9758
        %v9760 = vpop.f32.mrb[0].mxu0
        %v9761 = vadd.f32 %v9520, %v9760
        %v9762 = vpop.f32.mrb[0].mxu0
        %v9763 = vand.u32 %v6026, 4294901760
        %9764 = vmatprep.mubr.f32.mxu0 %v9763
        %v9765 = vand.u32 %v6025, 4294901760
        %9766 = vmatmul.mubr.f32.gmra.mrb[0].mxu0 %v9765
        %v9767 = vpop.f32.mrb[0].mxu0
        %v9768 = vadd.f32 %v9531, %v9767
        %v9769 = vpop.f32.mrb[0].mxu0
        %v9770 = vand.u32 %v6034, 4294901760
        %9771 = vmatprep.mubr.f32.mxu0 %v9770
        %v9772 = vand.u32 %v6033, 4294901760
        %9773 = vmatmul.mubr.f32.gmra.mrb[0].mxu0 %v9772
        %v9774 = vpop.f32.mrb[0].mxu0
        %v9775 = vadd.f32 %v9542, %v9774
        %v9776 = vpop.f32.mrb[0].mxu0
        %v9777 = vand.u32 %v6042, 4294901760
        %9778 = vmatprep.mubr.f32.mxu0 %v9777
        %v9779 = vand.u32 %v6041, 4294901760
        %9780 = vmatmul.mubr.f32.gmra.mrb[0].mxu0 %v9779
        %v9781 = vpop.f32.mrb[0].mxu0
        %v9782 = vadd.f32 %v9553, %v9781
        %v9783 = vpop.f32.mrb[0].mxu0
        %v9784 = vand.u32 %v6050, 4294901760
        %9785 = vmatprep.mubr.f32.mxu0 %v9784
        %v9786 = vand.u32 %v6049, 4294901760
        %9787 = vmatmul.mubr.f32.gmra.mrb[0].mxu0 %v9786
        %v9788 = vpop.f32.mrb[0].mxu0
        %v9789 = vadd.f32 %v9564, %v9788
        %v9790 = vpop.f32.mrb[0].mxu0
        %v9791 = vand.u32 %v6058, 4294901760
        %9792 = vmatprep.mubr.f32.mxu0 %v9791
        %v9793 = vand.u32 %v6057, 4294901760
        %9794 = vmatmul.mubr.f32.gmra.mrb[0].mxu0 %v9793
        %v9795 = vpop.f32.mrb[0].mxu0
        %v9796 = vadd.f32 %v9575, %v9795
        %v9797 = vpop.f32.mrb[0].mxu0
        %v9798 = vand.u32 %v6066, 4294901760
        %9799 = vmatprep.mubr.f32.mxu0 %v9798
        %v9800 = vand.u32 %v6065, 4294901760
        %9801 = vmatmul.mubr.f32.gmra.mrb[0].mxu0 %v9800
        %v9802 = vpop.f32.mrb[0].mxu0
        %v9803 = vadd.f32 %v9586, %v9802
        %v9804 = vpop.f32.mrb[0].mxu0
        %9805 = vdwg.mxu0
        %9806 = vmatprep.subr.mxu0 0.0
        %v9807 = vand.u32 %v6133, 4294901760
        %9808 = vmatpush1.msra.mxu0 %v9807
        %9809 = vmatprep.subr.mxu0 0.0
        %v9810 = vand.u32 %v6134, 4294901760
        %9811 = vmatpush1.msra.mxu0 %v9810
        %9812 = vmatprep.subr.mxu0 0.0
        %v9813 = vand.u32 %v6135, 4294901760
        %9814 = vmatpush1.msra.mxu0 %v9813
        %9815 = vmatprep.subr.mxu0 0.0
        %v9816 = vand.u32 %v6136, 4294901760
        %9817 = vmatpush1.msra.mxu0 %v9816
        %9818 = vmatprep.subr.mxu0 0.0
        %v9819 = vand.u32 %v6137, 4294901760
        %9820 = vmatpush1.msra.mxu0 %v9819
        %9821 = vmatprep.subr.mxu0 0.0
        %v9822 = vand.u32 %v6138, 4294901760
        %9823 = vmatpush1.msra.mxu0 %v9822
        %9824 = vmatprep.subr.mxu0 0.0
        %v9825 = vand.u32 %v6139, 4294901760
        %9826 = vmatpush1.msra.mxu0 %v9825
        %9827 = vmatprep.subr.mxu0 0.0
        %v9828 = vand.u32 %v6140, 4294901760
        %9829 = vmatpush1.msra.mxu0 %v9828
        %9830 = vmatprep.subr.mxu0 0.0
        %v9831 = vand.u32 %v6141, 4294901760
        %9832 = vmatpush1.msra.mxu0 %v9831
        %9833 = vmatprep.subr.mxu0 0.0
        %v9834 = vand.u32 %v6142, 4294901760
        %9835 = vmatpush1.msra.mxu0 %v9834
        %9836 = vmatprep.subr.mxu0 0.0
        %v9837 = vand.u32 %v6143, 4294901760
        %9838 = vmatpush1.msra.mxu0 %v9837
        %9839 = vmatprep.subr.mxu0 0.0
        %v9840 = vand.u32 %v6144, 4294901760
        %9841 = vmatpush1.msra.mxu0 %v9840
        %9842 = vmatprep.subr.mxu0 0.0
        %v9843 = vand.u32 %v6145, 4294901760
        %9844 = vmatpush1.msra.mxu0 %v9843
        %9845 = vmatprep.subr.mxu0 0.0
        %v9846 = vand.u32 %v6146, 4294901760
        %9847 = vmatpush1.msra.mxu0 %v9846
        %9848 = vmatprep.subr.mxu0 0.0
        %v9849 = vand.u32 %v6147, 4294901760
        %9850 = vmatpush1.msra.mxu0 %v9849
        %9851 = vmatprep.subr.mxu0 0.0
        %v9852 = vand.u32 %v6148, 4294901760
        %9853 = vmatpush1.msra.mxu0 %v9852
        %9854 = vmatprep.subr.mxu0 0.0
        %v9855 = vand.u32 %v6149, 4294901760
        %9856 = vmatpush1.msra.mxu0 %v9855
        %9857 = vmatprep.subr.mxu0 0.0
        %v9858 = vand.u32 %v6150, 4294901760
        %9859 = vmatpush1.msra.mxu0 %v9858
        %9860 = vmatprep.subr.mxu0 0.0
        %v9861 = vand.u32 %v6151, 4294901760
        %9862 = vmatpush1.msra.mxu0 %v9861
        %9863 = vmatprep.subr.mxu0 0.0
        %v9864 = vand.u32 %v6152, 4294901760
        %9865 = vmatpush1.msra.mxu0 %v9864
        %9866 = vmatprep.subr.mxu0 0.0
        %v9867 = vand.u32 %v6153, 4294901760
        %9868 = vmatpush1.msra.mxu0 %v9867
        %9869 = vmatprep.subr.mxu0 0.0
        %v9870 = vand.u32 %v6154, 4294901760
        %9871 = vmatpush1.msra.mxu0 %v9870
        %9872 = vmatprep.subr.mxu0 0.0
        %v9873 = vand.u32 %v6155, 4294901760
        %9874 = vmatpush1.msra.mxu0 %v9873
        %9875 = vmatprep.subr.mxu0 0.0
        %v9876 = vand.u32 %v6156, 4294901760
        %9877 = vmatpush1.msra.mxu0 %v9876
        %9878 = vmatprep.subr.mxu0 0.0
        %v9879 = vand.u32 %v6157, 4294901760
        %9880 = vmatpush1.msra.mxu0 %v9879
        %9881 = vmatprep.subr.mxu0 0.0
        %v9882 = vand.u32 %v6158, 4294901760
        %9883 = vmatpush1.msra.mxu0 %v9882
        %9884 = vmatprep.subr.mxu0 0.0
        %v9885 = vand.u32 %v6159, 4294901760
        %9886 = vmatpush1.msra.mxu0 %v9885
        %9887 = vmatprep.subr.mxu0 0.0
        %v9888 = vand.u32 %v6160, 4294901760
        %9889 = vmatpush1.msra.mxu0 %v9888
        %9890 = vmatprep.subr.mxu0 0.0
        %v9891 = vand.u32 %v6161, 4294901760
        %9892 = vmatpush1.msra.mxu0 %v9891
        %9893 = vmatprep.subr.mxu0 0.0
        %v9894 = vand.u32 %v6162, 4294901760
        %9895 = vmatpush1.msra.mxu0 %v9894
        %9896 = vmatprep.subr.mxu0 0.0
        %v9897 = vand.u32 %v6163, 4294901760
        %9898 = vmatpush1.msra.mxu0 %v9897
        %9899 = vmatprep.subr.mxu0 0.0
        %v9900 = vand.u32 %v6164, 4294901760
        %9901 = vmatpush1.msra.mxu0 %v9900
        %v9902 = vand.u32 %v6010, 4294901760
        %9903 = vmatprep.mubr.f32.mxu0 %v9902
        %v9904 = vand.u32 %v6009, 4294901760
        %9905 = vmatmul.mubr.f32.gmra.mrb[0].mxu0 %v9904
        %v9906 = vpop.f32.mrb[0].mxu0
        %v9907 = vadd.f32 %v9754, %v9906
        %v9908 = vpop.f32.mrb[0].mxu0
        %v9909 = vand.u32 %v6018, 4294901760
        %9910 = vmatprep.mubr.f32.mxu0 %v9909
        %v9911 = vand.u32 %v6017, 4294901760
        %9912 = vmatmul.mubr.f32.gmra.mrb[0].mxu0 %v9911
        %v9913 = vpop.f32.mrb[0].mxu0
        %v9914 = vadd.f32 %v9761, %v9913
        %v9915 = vpop.f32.mrb[0].mxu0
        %v9916 = vand.u32 %v6026, 4294901760
        %9917 = vmatprep.mubr.f32.mxu0 %v9916
        %v9918 = vand.u32 %v6025, 4294901760
        %9919 = vmatmul.mubr.f32.gmra.mrb[0].mxu0 %v9918
        %v9920 = vpop.f32.mrb[0].mxu0
        %v9921 = vadd.f32 %v9768, %v9920
        %v9922 = vpop.f32.mrb[0].mxu0
        %v9923 = vand.u32 %v6034, 4294901760
        %9924 = vmatprep.mubr.f32.mxu0 %v9923
        %v9925 = vand.u32 %v6033, 4294901760
        %9926 = vmatmul.mubr.f32.gmra.mrb[0].mxu0 %v9925
        %v9927 = vpop.f32.mrb[0].mxu0
        %v9928 = vadd.f32 %v9775, %v9927
        %v9929 = vpop.f32.mrb[0].mxu0
        %v9930 = vand.u32 %v6042, 4294901760
        %9931 = vmatprep.mubr.f32.mxu0 %v9930
        %v9932 = vand.u32 %v6041, 4294901760
        %9933 = vmatmul.mubr.f32.gmra.mrb[0].mxu0 %v9932
        %v9934 = vpop.f32.mrb[0].mxu0
        %v9935 = vadd.f32 %v9782, %v9934
        %v9936 = vpop.f32.mrb[0].mxu0
        %v9937 = vand.u32 %v6050, 4294901760
        %9938 = vmatprep.mubr.f32.mxu0 %v9937
        %v9939 = vand.u32 %v6049, 4294901760
        %9940 = vmatmul.mubr.f32.gmra.mrb[0].mxu0 %v9939
        %v9941 = vpop.f32.mrb[0].mxu0
        %v9942 = vadd.f32 %v9789, %v9941
        %v9943 = vpop.f32.mrb[0].mxu0
        %v9944 = vand.u32 %v6058, 4294901760
        %9945 = vmatprep.mubr.f32.mxu0 %v9944
        %v9946 = vand.u32 %v6057, 4294901760
        %9947 = vmatmul.mubr.f32.gmra.mrb[0].mxu0 %v9946
        %v9948 = vpop.f32.mrb[0].mxu0
        %v9949 = vadd.f32 %v9796, %v9948
        %v9950 = vpop.f32.mrb[0].mxu0
        %v9951 = vand.u32 %v6066, 4294901760
        %9952 = vmatprep.mubr.f32.mxu0 %v9951
        %v9953 = vand.u32 %v6065, 4294901760
        %9954 = vmatmul.mubr.f32.gmra.mrb[0].mxu0 %v9953
        %v9955 = vpop.f32.mrb[0].mxu0
        %v9956 = vadd.f32 %v9803, %v9955
        %v9957 = vpop.f32.mrb[0].mxu0
        %9958 = vdwg.mxu0
        %9959 = vmatprep.subr.mxu0 0.0
        %v9960 = vand.u32 %v6165, 4294901760
        %9961 = vmatpush1.msra.mxu0 %v9960
        %9962 = vmatprep.subr.mxu0 0.0
        %v9963 = vand.u32 %v6166, 4294901760
        %9964 = vmatpush1.msra.mxu0 %v9963
        %9965 = vmatprep.subr.mxu0 0.0
        %v9966 = vand.u32 %v6167, 4294901760
        %9967 = vmatpush1.msra.mxu0 %v9966
        %9968 = vmatprep.subr.mxu0 0.0
        %v9969 = vand.u32 %v6168, 4294901760
        %9970 = vmatpush1.msra.mxu0 %v9969
        %9971 = vmatprep.subr.mxu0 0.0
        %v9972 = vand.u32 %v6169, 4294901760
        %9973 = vmatpush1.msra.mxu0 %v9972
        %9974 = vmatprep.subr.mxu0 0.0
        %v9975 = vand.u32 %v6170, 4294901760
        %9976 = vmatpush1.msra.mxu0 %v9975
        %9977 = vmatprep.subr.mxu0 0.0
        %v9978 = vand.u32 %v6171, 4294901760
        %9979 = vmatpush1.msra.mxu0 %v9978
        %9980 = vmatprep.subr.mxu0 0.0
        %v9981 = vand.u32 %v6172, 4294901760
        %9982 = vmatpush1.msra.mxu0 %v9981
        %9983 = vmatprep.subr.mxu0 0.0
        %v9984 = vand.u32 %v6173, 4294901760
        %9985 = vmatpush1.msra.mxu0 %v9984
        %9986 = vmatprep.subr.mxu0 0.0
        %v9987 = vand.u32 %v6174, 4294901760
        %9988 = vmatpush1.msra.mxu0 %v9987
        %9989 = vmatprep.subr.mxu0 0.0
        %v9990 = vand.u32 %v6175, 4294901760
        %9991 = vmatpush1.msra.mxu0 %v9990
        %9992 = vmatprep.subr.mxu0 0.0
        %v9993 = vand.u32 %v6176, 4294901760
        %9994 = vmatpush1.msra.mxu0 %v9993
        %9995 = vmatprep.subr.mxu0 0.0
        %v9996 = vand.u32 %v6177, 4294901760
        %9997 = vmatpush1.msra.mxu0 %v9996
        %9998 = vmatprep.subr.mxu0 0.0
        %v9999 = vand.u32 %v6178, 4294901760
        %10000 = vmatpush1.msra.mxu0 %v9999
        %10001 = vmatprep.subr.mxu0 0.0
        %v10002 = vand.u32 %v6179, 4294901760
        %10003 = vmatpush1.msra.mxu0 %v10002
        %10004 = vmatprep.subr.mxu0 0.0
        %v10005 = vand.u32 %v6180, 4294901760
        %10006 = vmatpush1.msra.mxu0 %v10005
        %10007 = vmatprep.subr.mxu0 0.0
        %v10008 = vand.u32 %v6181, 4294901760
        %10009 = vmatpush1.msra.mxu0 %v10008
        %10010 = vmatprep.subr.mxu0 0.0
        %v10011 = vand.u32 %v6182, 4294901760
        %10012 = vmatpush1.msra.mxu0 %v10011
        %10013 = vmatprep.subr.mxu0 0.0
        %v10014 = vand.u32 %v6183, 4294901760
        %10015 = vmatpush1.msra.mxu0 %v10014
        %10016 = vmatprep.subr.mxu0 0.0
        %v10017 = vand.u32 %v6184, 4294901760
        %10018 = vmatpush1.msra.mxu0 %v10017
        %10019 = vmatprep.subr.mxu0 0.0
        %v10020 = vand.u32 %v6185, 4294901760
        %10021 = vmatpush1.msra.mxu0 %v10020
        %10022 = vmatprep.subr.mxu0 0.0
        %v10023 = vand.u32 %v6186, 4294901760
        %10024 = vmatpush1.msra.mxu0 %v10023
        %10025 = vmatprep.subr.mxu0 0.0
        %v10026 = vand.u32 %v6187, 4294901760
        %10027 = vmatpush1.msra.mxu0 %v10026
        %10028 = vmatprep.subr.mxu0 0.0
        %v10029 = vand.u32 %v6188, 4294901760
        %10030 = vmatpush1.msra.mxu0 %v10029
        %10031 = vmatprep.subr.mxu0 0.0
        %v10032 = vand.u32 %v6189, 4294901760
        %10033 = vmatpush1.msra.mxu0 %v10032
        %10034 = vmatprep.subr.mxu0 0.0
        %v10035 = vand.u32 %v6190, 4294901760
        %10036 = vmatpush1.msra.mxu0 %v10035
        %10037 = vmatprep.subr.mxu0 0.0
        %v10038 = vand.u32 %v6191, 4294901760
        %10039 = vmatpush1.msra.mxu0 %v10038
        %10040 = vmatprep.subr.mxu0 0.0
        %v10041 = vand.u32 %v6192, 4294901760
        %10042 = vmatpush1.msra.mxu0 %v10041
        %10043 = vmatprep.subr.mxu0 0.0
        %v10044 = vand.u32 %v6193, 4294901760
        %10045 = vmatpush1.msra.mxu0 %v10044
        %10046 = vmatprep.subr.mxu0 0.0
        %v10047 = vand.u32 %v6194, 4294901760
        %10048 = vmatpush1.msra.mxu0 %v10047
        %10049 = vmatprep.subr.mxu0 0.0
        %v10050 = vand.u32 %v6195, 4294901760
        %10051 = vmatpush1.msra.mxu0 %v10050
        %10052 = vmatprep.subr.mxu0 0.0
        %v10053 = vand.u32 %v6196, 4294901760
        %10054 = vmatpush1.msra.mxu0 %v10053
        %v10055 = vand.u32 %v6012, 4294901760
        %v10056 = vsub.f32 %v6012, %v10055
        %v10057 = vand.u32 %v10056, 4294901760
        %v10058 = vsub.f32 %v10056, %v10057
        %v10059 = vand.u32 %v10058, 4294901760
        %10060 = vmatprep.mubr.f32.mxu0 %v10059
        %v10061 = vand.u32 %v6011, 4294901760
        %v10062 = vsub.f32 %v6011, %v10061
        %v10063 = vand.u32 %v10062, 4294901760
        %v10064 = vsub.f32 %v10062, %v10063
        %v10065 = vand.u32 %v10064, 4294901760
        %10066 = vmatmul.mubr.f32.gmra.mrb[0].mxu0 %v10065
        %v10067 = vpop.f32.mrb[0].mxu0
        %v10068 = vadd.f32 %v9907, %v10067
        %v10069 = vpop.f32.mrb[0].mxu0
        %v10070 = vand.u32 %v6020, 4294901760
        %v10071 = vsub.f32 %v6020, %v10070
        %v10072 = vand.u32 %v10071, 4294901760
        %v10073 = vsub.f32 %v10071, %v10072
        %v10074 = vand.u32 %v10073, 4294901760
        %10075 = vmatprep.mubr.f32.mxu0 %v10074
        %v10076 = vand.u32 %v6019, 4294901760
        %v10077 = vsub.f32 %v6019, %v10076
        %v10078 = vand.u32 %v10077, 4294901760
        %v10079 = vsub.f32 %v10077, %v10078
        %v10080 = vand.u32 %v10079, 4294901760
        %10081 = vmatmul.mubr.f32.gmra.mrb[0].mxu0 %v10080
        %v10082 = vpop.f32.mrb[0].mxu0
        %v10083 = vadd.f32 %v9914, %v10082
        %v10084 = vpop.f32.mrb[0].mxu0
        %v10085 = vand.u32 %v6028, 4294901760
        %v10086 = vsub.f32 %v6028, %v10085
        %v10087 = vand.u32 %v10086, 4294901760
        %v10088 = vsub.f32 %v10086, %v10087
        %v10089 = vand.u32 %v10088, 4294901760
        %10090 = vmatprep.mubr.f32.mxu0 %v10089
        %v10091 = vand.u32 %v6027, 4294901760
        %v10092 = vsub.f32 %v6027, %v10091
        %v10093 = vand.u32 %v10092, 4294901760
        %v10094 = vsub.f32 %v10092, %v10093
        %v10095 = vand.u32 %v10094, 4294901760
        %10096 = vmatmul.mubr.f32.gmra.mrb[0].mxu0 %v10095
        %v10097 = vpop.f32.mrb[0].mxu0
        %v10098 = vadd.f32 %v9921, %v10097
        %v10099 = vpop.f32.mrb[0].mxu0
        %v10100 = vand.u32 %v6036, 4294901760
        %v10101 = vsub.f32 %v6036, %v10100
        %v10102 = vand.u32 %v10101, 4294901760
        %v10103 = vsub.f32 %v10101, %v10102
        %v10104 = vand.u32 %v10103, 4294901760
        %10105 = vmatprep.mubr.f32.mxu0 %v10104
        %v10106 = vand.u32 %v6035, 4294901760
        %v10107 = vsub.f32 %v6035, %v10106
        %v10108 = vand.u32 %v10107, 4294901760
        %v10109 = vsub.f32 %v10107, %v10108
        %v10110 = vand.u32 %v10109, 4294901760
        %10111 = vmatmul.mubr.f32.gmra.mrb[0].mxu0 %v10110
        %v10112 = vpop.f32.mrb[0].mxu0
        %v10113 = vadd.f32 %v9928, %v10112
        %v10114 = vpop.f32.mrb[0].mxu0
        %v10115 = vand.u32 %v6044, 4294901760
        %v10116 = vsub.f32 %v6044, %v10115
        %v10117 = vand.u32 %v10116, 4294901760
        %v10118 = vsub.f32 %v10116, %v10117
        %v10119 = vand.u32 %v10118, 4294901760
        %10120 = vmatprep.mubr.f32.mxu0 %v10119
        %v10121 = vand.u32 %v6043, 4294901760
        %v10122 = vsub.f32 %v6043, %v10121
        %v10123 = vand.u32 %v10122, 4294901760
        %v10124 = vsub.f32 %v10122, %v10123
        %v10125 = vand.u32 %v10124, 4294901760
        %10126 = vmatmul.mubr.f32.gmra.mrb[0].mxu0 %v10125
        %v10127 = vpop.f32.mrb[0].mxu0
        %v10128 = vadd.f32 %v9935, %v10127
        %v10129 = vpop.f32.mrb[0].mxu0
        %v10130 = vand.u32 %v6052, 4294901760
        %v10131 = vsub.f32 %v6052, %v10130
        %v10132 = vand.u32 %v10131, 4294901760
        %v10133 = vsub.f32 %v10131, %v10132
        %v10134 = vand.u32 %v10133, 4294901760
        %10135 = vmatprep.mubr.f32.mxu0 %v10134
        %v10136 = vand.u32 %v6051, 4294901760
        %v10137 = vsub.f32 %v6051, %v10136
        %v10138 = vand.u32 %v10137, 4294901760
        %v10139 = vsub.f32 %v10137, %v10138
        %v10140 = vand.u32 %v10139, 4294901760
        %10141 = vmatmul.mubr.f32.gmra.mrb[0].mxu0 %v10140
        %v10142 = vpop.f32.mrb[0].mxu0
        %v10143 = vadd.f32 %v9942, %v10142
        %v10144 = vpop.f32.mrb[0].mxu0
        %v10145 = vand.u32 %v6060, 4294901760
        %v10146 = vsub.f32 %v6060, %v10145
        %v10147 = vand.u32 %v10146, 4294901760
        %v10148 = vsub.f32 %v10146, %v10147
        %v10149 = vand.u32 %v10148, 4294901760
        %10150 = vmatprep.mubr.f32.mxu0 %v10149
        %v10151 = vand.u32 %v6059, 4294901760
        %v10152 = vsub.f32 %v6059, %v10151
        %v10153 = vand.u32 %v10152, 4294901760
        %v10154 = vsub.f32 %v10152, %v10153
        %v10155 = vand.u32 %v10154, 4294901760
        %10156 = vmatmul.mubr.f32.gmra.mrb[0].mxu0 %v10155
        %v10157 = vpop.f32.mrb[0].mxu0
        %v10158 = vadd.f32 %v9949, %v10157
        %v10159 = vpop.f32.mrb[0].mxu0
        %v10160 = vand.u32 %v6068, 4294901760
        %v10161 = vsub.f32 %v6068, %v10160
        %v10162 = vand.u32 %v10161, 4294901760
        %v10163 = vsub.f32 %v10161, %v10162
        %v10164 = vand.u32 %v10163, 4294901760
        %10165 = vmatprep.mubr.f32.mxu0 %v10164
        %v10166 = vand.u32 %v6067, 4294901760
        %v10167 = vsub.f32 %v6067, %v10166
        %v10168 = vand.u32 %v10167, 4294901760
        %v10169 = vsub.f32 %v10167, %v10168
        %v10170 = vand.u32 %v10169, 4294901760
        %10171 = vmatmul.mubr.f32.gmra.mrb[0].mxu0 %v10170
        %v10172 = vpop.f32.mrb[0].mxu0
        %v10173 = vadd.f32 %v9956, %v10172
        %v10174 = vpop.f32.mrb[0].mxu0
        %10175 = vdwg.mxu0
        %10176 = vmatprep.subr.mxu0 0.0
        %v10177 = vand.u32 %v6165, 4294901760
        %v10178 = vsub.f32 %v6165, %v10177
        %v10179 = vand.u32 %v10178, 4294901760
        %v10180 = vsub.f32 %v10178, %v10179
        %v10181 = vand.u32 %v10180, 4294901760
        %10182 = vmatpush1.msra.mxu0 %v10181
        %10183 = vmatprep.subr.mxu0 0.0
        %v10184 = vand.u32 %v6166, 4294901760
        %v10185 = vsub.f32 %v6166, %v10184
        %v10186 = vand.u32 %v10185, 4294901760
        %v10187 = vsub.f32 %v10185, %v10186
        %v10188 = vand.u32 %v10187, 4294901760
        %10189 = vmatpush1.msra.mxu0 %v10188
        %10190 = vmatprep.subr.mxu0 0.0
        %v10191 = vand.u32 %v6167, 4294901760
        %v10192 = vsub.f32 %v6167, %v10191
        %v10193 = vand.u32 %v10192, 4294901760
        %v10194 = vsub.f32 %v10192, %v10193
        %v10195 = vand.u32 %v10194, 4294901760
        %10196 = vmatpush1.msra.mxu0 %v10195
        %10197 = vmatprep.subr.mxu0 0.0
        %v10198 = vand.u32 %v6168, 4294901760
        %v10199 = vsub.f32 %v6168, %v10198
        %v10200 = vand.u32 %v10199, 4294901760
        %v10201 = vsub.f32 %v10199, %v10200
        %v10202 = vand.u32 %v10201, 4294901760
        %10203 = vmatpush1.msra.mxu0 %v10202
        %10204 = vmatprep.subr.mxu0 0.0
        %v10205 = vand.u32 %v6169, 4294901760
        %v10206 = vsub.f32 %v6169, %v10205
        %v10207 = vand.u32 %v10206, 4294901760
        %v10208 = vsub.f32 %v10206, %v10207
        %v10209 = vand.u32 %v10208, 4294901760
        %10210 = vmatpush1.msra.mxu0 %v10209
        %10211 = vmatprep.subr.mxu0 0.0
        %v10212 = vand.u32 %v6170, 4294901760
        %v10213 = vsub.f32 %v6170, %v10212
        %v10214 = vand.u32 %v10213, 4294901760
        %v10215 = vsub.f32 %v10213, %v10214
        %v10216 = vand.u32 %v10215, 4294901760
        %10217 = vmatpush1.msra.mxu0 %v10216
        %10218 = vmatprep.subr.mxu0 0.0
        %v10219 = vand.u32 %v6171, 4294901760
        %v10220 = vsub.f32 %v6171, %v10219
        %v10221 = vand.u32 %v10220, 4294901760
        %v10222 = vsub.f32 %v10220, %v10221
        %v10223 = vand.u32 %v10222, 4294901760
        %10224 = vmatpush1.msra.mxu0 %v10223
        %10225 = vmatprep.subr.mxu0 0.0
        %v10226 = vand.u32 %v6172, 4294901760
        %v10227 = vsub.f32 %v6172, %v10226
        %v10228 = vand.u32 %v10227, 4294901760
        %v10229 = vsub.f32 %v10227, %v10228
        %v10230 = vand.u32 %v10229, 4294901760
        %10231 = vmatpush1.msra.mxu0 %v10230
        %10232 = vmatprep.subr.mxu0 0.0
        %v10233 = vand.u32 %v6173, 4294901760
        %v10234 = vsub.f32 %v6173, %v10233
        %v10235 = vand.u32 %v10234, 4294901760
        %v10236 = vsub.f32 %v10234, %v10235
        %v10237 = vand.u32 %v10236, 4294901760
        %10238 = vmatpush1.msra.mxu0 %v10237
        %10239 = vmatprep.subr.mxu0 0.0
        %v10240 = vand.u32 %v6174, 4294901760
        %v10241 = vsub.f32 %v6174, %v10240
        %v10242 = vand.u32 %v10241, 4294901760
        %v10243 = vsub.f32 %v10241, %v10242
        %v10244 = vand.u32 %v10243, 4294901760
        %10245 = vmatpush1.msra.mxu0 %v10244
        %10246 = vmatprep.subr.mxu0 0.0
        %v10247 = vand.u32 %v6175, 4294901760
        %v10248 = vsub.f32 %v6175, %v10247
        %v10249 = vand.u32 %v10248, 4294901760
        %v10250 = vsub.f32 %v10248, %v10249
        %v10251 = vand.u32 %v10250, 4294901760
        %10252 = vmatpush1.msra.mxu0 %v10251
        %10253 = vmatprep.subr.mxu0 0.0
        %v10254 = vand.u32 %v6176, 4294901760
        %v10255 = vsub.f32 %v6176, %v10254
        %v10256 = vand.u32 %v10255, 4294901760
        %v10257 = vsub.f32 %v10255, %v10256
        %v10258 = vand.u32 %v10257, 4294901760
        %10259 = vmatpush1.msra.mxu0 %v10258
        %10260 = vmatprep.subr.mxu0 0.0
        %v10261 = vand.u32 %v6177, 4294901760
        %v10262 = vsub.f32 %v6177, %v10261
        %v10263 = vand.u32 %v10262, 4294901760
        %v10264 = vsub.f32 %v10262, %v10263
        %v10265 = vand.u32 %v10264, 4294901760
        %10266 = vmatpush1.msra.mxu0 %v10265
        %10267 = vmatprep.subr.mxu0 0.0
        %v10268 = vand.u32 %v6178, 4294901760
        %v10269 = vsub.f32 %v6178, %v10268
        %v10270 = vand.u32 %v10269, 4294901760
        %v10271 = vsub.f32 %v10269, %v10270
        %v10272 = vand.u32 %v10271, 4294901760
        %10273 = vmatpush1.msra.mxu0 %v10272
        %10274 = vmatprep.subr.mxu0 0.0
        %v10275 = vand.u32 %v6179, 4294901760
        %v10276 = vsub.f32 %v6179, %v10275
        %v10277 = vand.u32 %v10276, 4294901760
        %v10278 = vsub.f32 %v10276, %v10277
        %v10279 = vand.u32 %v10278, 4294901760
        %10280 = vmatpush1.msra.mxu0 %v10279
        %10281 = vmatprep.subr.mxu0 0.0
        %v10282 = vand.u32 %v6180, 4294901760
        %v10283 = vsub.f32 %v6180, %v10282
        %v10284 = vand.u32 %v10283, 4294901760
        %v10285 = vsub.f32 %v10283, %v10284
        %v10286 = vand.u32 %v10285, 4294901760
        %10287 = vmatpush1.msra.mxu0 %v10286
        %10288 = vmatprep.subr.mxu0 0.0
        %v10289 = vand.u32 %v6181, 4294901760
        %v10290 = vsub.f32 %v6181, %v10289
        %v10291 = vand.u32 %v10290, 4294901760
        %v10292 = vsub.f32 %v10290, %v10291
        %v10293 = vand.u32 %v10292, 4294901760
        %10294 = vmatpush1.msra.mxu0 %v10293
        %10295 = vmatprep.subr.mxu0 0.0
        %v10296 = vand.u32 %v6182, 4294901760
        %v10297 = vsub.f32 %v6182, %v10296
        %v10298 = vand.u32 %v10297, 4294901760
        %v10299 = vsub.f32 %v10297, %v10298
        %v10300 = vand.u32 %v10299, 4294901760
        %10301 = vmatpush1.msra.mxu0 %v10300
        %10302 = vmatprep.subr.mxu0 0.0
        %v10303 = vand.u32 %v6183, 4294901760
        %v10304 = vsub.f32 %v6183, %v10303
        %v10305 = vand.u32 %v10304, 4294901760
        %v10306 = vsub.f32 %v10304, %v10305
        %v10307 = vand.u32 %v10306, 4294901760
        %10308 = vmatpush1.msra.mxu0 %v10307
        %10309 = vmatprep.subr.mxu0 0.0
        %v10310 = vand.u32 %v6184, 4294901760
        %v10311 = vsub.f32 %v6184, %v10310
        %v10312 = vand.u32 %v10311, 4294901760
        %v10313 = vsub.f32 %v10311, %v10312
        %v10314 = vand.u32 %v10313, 4294901760
        %10315 = vmatpush1.msra.mxu0 %v10314
        %10316 = vmatprep.subr.mxu0 0.0
        %v10317 = vand.u32 %v6185, 4294901760
        %v10318 = vsub.f32 %v6185, %v10317
        %v10319 = vand.u32 %v10318, 4294901760
        %v10320 = vsub.f32 %v10318, %v10319
        %v10321 = vand.u32 %v10320, 4294901760
        %10322 = vmatpush1.msra.mxu0 %v10321
        %10323 = vmatprep.subr.mxu0 0.0
        %v10324 = vand.u32 %v6186, 4294901760
        %v10325 = vsub.f32 %v6186, %v10324
        %v10326 = vand.u32 %v10325, 4294901760
        %v10327 = vsub.f32 %v10325, %v10326
        %v10328 = vand.u32 %v10327, 4294901760
        %10329 = vmatpush1.msra.mxu0 %v10328
        %10330 = vmatprep.subr.mxu0 0.0
        %v10331 = vand.u32 %v6187, 4294901760
        %v10332 = vsub.f32 %v6187, %v10331
        %v10333 = vand.u32 %v10332, 4294901760
        %v10334 = vsub.f32 %v10332, %v10333
        %v10335 = vand.u32 %v10334, 4294901760
        %10336 = vmatpush1.msra.mxu0 %v10335
        %10337 = vmatprep.subr.mxu0 0.0
        %v10338 = vand.u32 %v6188, 4294901760
        %v10339 = vsub.f32 %v6188, %v10338
        %v10340 = vand.u32 %v10339, 4294901760
        %v10341 = vsub.f32 %v10339, %v10340
        %v10342 = vand.u32 %v10341, 4294901760
        %10343 = vmatpush1.msra.mxu0 %v10342
        %10344 = vmatprep.subr.mxu0 0.0
        %v10345 = vand.u32 %v6189, 4294901760
        %v10346 = vsub.f32 %v6189, %v10345
        %v10347 = vand.u32 %v10346, 4294901760
        %v10348 = vsub.f32 %v10346, %v10347
        %v10349 = vand.u32 %v10348, 4294901760
        %10350 = vmatpush1.msra.mxu0 %v10349
        %10351 = vmatprep.subr.mxu0 0.0
        %v10352 = vand.u32 %v6190, 4294901760
        %v10353 = vsub.f32 %v6190, %v10352
        %v10354 = vand.u32 %v10353, 4294901760
        %v10355 = vsub.f32 %v10353, %v10354
        %v10356 = vand.u32 %v10355, 4294901760
        %10357 = vmatpush1.msra.mxu0 %v10356
        %10358 = vmatprep.subr.mxu0 0.0
        %v10359 = vand.u32 %v6191, 4294901760
        %v10360 = vsub.f32 %v6191, %v10359
        %v10361 = vand.u32 %v10360, 4294901760
        %v10362 = vsub.f32 %v10360, %v10361
        %v10363 = vand.u32 %v10362, 4294901760
        %10364 = vmatpush1.msra.mxu0 %v10363
        %10365 = vmatprep.subr.mxu0 0.0
        %v10366 = vand.u32 %v6192, 4294901760
        %v10367 = vsub.f32 %v6192, %v10366
        %v10368 = vand.u32 %v10367, 4294901760
        %v10369 = vsub.f32 %v10367, %v10368
        %v10370 = vand.u32 %v10369, 4294901760
        %10371 = vmatpush1.msra.mxu0 %v10370
        %10372 = vmatprep.subr.mxu0 0.0
        %v10373 = vand.u32 %v6193, 4294901760
        %v10374 = vsub.f32 %v6193, %v10373
        %v10375 = vand.u32 %v10374, 4294901760
        %v10376 = vsub.f32 %v10374, %v10375
        %v10377 = vand.u32 %v10376, 4294901760
        %10378 = vmatpush1.msra.mxu0 %v10377
        %10379 = vmatprep.subr.mxu0 0.0
        %v10380 = vand.u32 %v6194, 4294901760
        %v10381 = vsub.f32 %v6194, %v10380
        %v10382 = vand.u32 %v10381, 4294901760
        %v10383 = vsub.f32 %v10381, %v10382
        %v10384 = vand.u32 %v10383, 4294901760
        %10385 = vmatpush1.msra.mxu0 %v10384
        %10386 = vmatprep.subr.mxu0 0.0
        %v10387 = vand.u32 %v6195, 4294901760
        %v10388 = vsub.f32 %v6195, %v10387
        %v10389 = vand.u32 %v10388, 4294901760
        %v10390 = vsub.f32 %v10388, %v10389
        %v10391 = vand.u32 %v10390, 4294901760
        %10392 = vmatpush1.msra.mxu0 %v10391
        %10393 = vmatprep.subr.mxu0 0.0
        %v10394 = vand.u32 %v6196, 4294901760
        %v10395 = vsub.f32 %v6196, %v10394
        %v10396 = vand.u32 %v10395, 4294901760
        %v10397 = vsub.f32 %v10395, %v10396
        %v10398 = vand.u32 %v10397, 4294901760
        %10399 = vmatpush1.msra.mxu0 %v10398
        %v10400 = vand.u32 %v6012, 4294901760
        %10401 = vmatprep.mubr.f32.mxu0 %v10400
        %v10402 = vand.u32 %v6011, 4294901760
        %10403 = vmatmul.mubr.f32.gmra.mrb[0].mxu0 %v10402
        %v10404 = vpop.f32.mrb[0].mxu0
        %v10405 = vadd.f32 %v10068, %v10404
        %v10406 = vpop.f32.mrb[0].mxu0
        %v10407 = vand.u32 %v6020, 4294901760
        %10408 = vmatprep.mubr.f32.mxu0 %v10407
        %v10409 = vand.u32 %v6019, 4294901760
        %10410 = vmatmul.mubr.f32.gmra.mrb[0].mxu0 %v10409
        %v10411 = vpop.f32.mrb[0].mxu0
        %v10412 = vadd.f32 %v10083, %v10411
        %v10413 = vpop.f32.mrb[0].mxu0
        %v10414 = vand.u32 %v6028, 4294901760
        %10415 = vmatprep.mubr.f32.mxu0 %v10414
        %v10416 = vand.u32 %v6027, 4294901760
        %10417 = vmatmul.mubr.f32.gmra.mrb[0].mxu0 %v10416
        %v10418 = vpop.f32.mrb[0].mxu0
        %v10419 = vadd.f32 %v10098, %v10418
        %v10420 = vpop.f32.mrb[0].mxu0
        %v10421 = vand.u32 %v6036, 4294901760
        %10422 = vmatprep.mubr.f32.mxu0 %v10421
        %v10423 = vand.u32 %v6035, 4294901760
        %10424 = vmatmul.mubr.f32.gmra.mrb[0].mxu0 %v10423
        %v10425 = vpop.f32.mrb[0].mxu0
        %v10426 = vadd.f32 %v10113, %v10425
        %v10427 = vpop.f32.mrb[0].mxu0
        %v10428 = vand.u32 %v6044, 4294901760
        %10429 = vmatprep.mubr.f32.mxu0 %v10428
        %v10430 = vand.u32 %v6043, 4294901760
        %10431 = vmatmul.mubr.f32.gmra.mrb[0].mxu0 %v10430
        %v10432 = vpop.f32.mrb[0].mxu0
        %v10433 = vadd.f32 %v10128, %v10432
        %v10434 = vpop.f32.mrb[0].mxu0
        %v10435 = vand.u32 %v6052, 4294901760
        %10436 = vmatprep.mubr.f32.mxu0 %v10435
        %v10437 = vand.u32 %v6051, 4294901760
        %10438 = vmatmul.mubr.f32.gmra.mrb[0].mxu0 %v10437
        %v10439 = vpop.f32.mrb[0].mxu0
        %v10440 = vadd.f32 %v10143, %v10439
        %v10441 = vpop.f32.mrb[0].mxu0
        %v10442 = vand.u32 %v6060, 4294901760
        %10443 = vmatprep.mubr.f32.mxu0 %v10442
        %v10444 = vand.u32 %v6059, 4294901760
        %10445 = vmatmul.mubr.f32.gmra.mrb[0].mxu0 %v10444
        %v10446 = vpop.f32.mrb[0].mxu0
        %v10447 = vadd.f32 %v10158, %v10446
        %v10448 = vpop.f32.mrb[0].mxu0
        %v10449 = vand.u32 %v6068, 4294901760
        %10450 = vmatprep.mubr.f32.mxu0 %v10449
        %v10451 = vand.u32 %v6067, 4294901760
        %10452 = vmatmul.mubr.f32.gmra.mrb[0].mxu0 %v10451
        %v10453 = vpop.f32.mrb[0].mxu0
        %v10454 = vadd.f32 %v10173, %v10453
        %v10455 = vpop.f32.mrb[0].mxu0
        %10456 = vdwg.mxu0
        %10457 = vmatprep.subr.mxu0 0.0
        %v10458 = vand.u32 %v6165, 4294901760
        %v10459 = vsub.f32 %v6165, %v10458
        %10460 = vmatpush1.msra.mxu0 %v10459
        %10461 = vmatprep.subr.mxu0 0.0
        %v10462 = vand.u32 %v6166, 4294901760
        %v10463 = vsub.f32 %v6166, %v10462
        %10464 = vmatpush1.msra.mxu0 %v10463
        %10465 = vmatprep.subr.mxu0 0.0
        %v10466 = vand.u32 %v6167, 4294901760
        %v10467 = vsub.f32 %v6167, %v10466
        %10468 = vmatpush1.msra.mxu0 %v10467
        %10469 = vmatprep.subr.mxu0 0.0
        %v10470 = vand.u32 %v6168, 4294901760
        %v10471 = vsub.f32 %v6168, %v10470
        %10472 = vmatpush1.msra.mxu0 %v10471
        %10473 = vmatprep.subr.mxu0 0.0
        %v10474 = vand.u32 %v6169, 4294901760
        %v10475 = vsub.f32 %v6169, %v10474
        %10476 = vmatpush1.msra.mxu0 %v10475
        %10477 = vmatprep.subr.mxu0 0.0
        %v10478 = vand.u32 %v6170, 4294901760
        %v10479 = vsub.f32 %v6170, %v10478
        %10480 = vmatpush1.msra.mxu0 %v10479
        %10481 = vmatprep.subr.mxu0 0.0
        %v10482 = vand.u32 %v6171, 4294901760
        %v10483 = vsub.f32 %v6171, %v10482
        %10484 = vmatpush1.msra.mxu0 %v10483
        %10485 = vmatprep.subr.mxu0 0.0
        %v10486 = vand.u32 %v6172, 4294901760
        %v10487 = vsub.f32 %v6172, %v10486
        %10488 = vmatpush1.msra.mxu0 %v10487
        %10489 = vmatprep.subr.mxu0 0.0
        %v10490 = vand.u32 %v6173, 4294901760
        %v10491 = vsub.f32 %v6173, %v10490
        %10492 = vmatpush1.msra.mxu0 %v10491
        %10493 = vmatprep.subr.mxu0 0.0
        %v10494 = vand.u32 %v6174, 4294901760
        %v10495 = vsub.f32 %v6174, %v10494
        %10496 = vmatpush1.msra.mxu0 %v10495
        %10497 = vmatprep.subr.mxu0 0.0
        %v10498 = vand.u32 %v6175, 4294901760
        %v10499 = vsub.f32 %v6175, %v10498
        %10500 = vmatpush1.msra.mxu0 %v10499
        %10501 = vmatprep.subr.mxu0 0.0
        %v10502 = vand.u32 %v6176, 4294901760
        %v10503 = vsub.f32 %v6176, %v10502
        %10504 = vmatpush1.msra.mxu0 %v10503
        %10505 = vmatprep.subr.mxu0 0.0
        %v10506 = vand.u32 %v6177, 4294901760
        %v10507 = vsub.f32 %v6177, %v10506
        %10508 = vmatpush1.msra.mxu0 %v10507
        %10509 = vmatprep.subr.mxu0 0.0
        %v10510 = vand.u32 %v6178, 4294901760
        %v10511 = vsub.f32 %v6178, %v10510
        %10512 = vmatpush1.msra.mxu0 %v10511
        %10513 = vmatprep.subr.mxu0 0.0
        %v10514 = vand.u32 %v6179, 4294901760
        %v10515 = vsub.f32 %v6179, %v10514
        %10516 = vmatpush1.msra.mxu0 %v10515
        %10517 = vmatprep.subr.mxu0 0.0
        %v10518 = vand.u32 %v6180, 4294901760
        %v10519 = vsub.f32 %v6180, %v10518
        %10520 = vmatpush1.msra.mxu0 %v10519
        %10521 = vmatprep.subr.mxu0 0.0
        %v10522 = vand.u32 %v6181, 4294901760
        %v10523 = vsub.f32 %v6181, %v10522
        %10524 = vmatpush1.msra.mxu0 %v10523
        %10525 = vmatprep.subr.mxu0 0.0
        %v10526 = vand.u32 %v6182, 4294901760
        %v10527 = vsub.f32 %v6182, %v10526
        %10528 = vmatpush1.msra.mxu0 %v10527
        %10529 = vmatprep.subr.mxu0 0.0
        %v10530 = vand.u32 %v6183, 4294901760
        %v10531 = vsub.f32 %v6183, %v10530
        %10532 = vmatpush1.msra.mxu0 %v10531
        %10533 = vmatprep.subr.mxu0 0.0
        %v10534 = vand.u32 %v6184, 4294901760
        %v10535 = vsub.f32 %v6184, %v10534
        %10536 = vmatpush1.msra.mxu0 %v10535
        %10537 = vmatprep.subr.mxu0 0.0
        %v10538 = vand.u32 %v6185, 4294901760
        %v10539 = vsub.f32 %v6185, %v10538
        %10540 = vmatpush1.msra.mxu0 %v10539
        %10541 = vmatprep.subr.mxu0 0.0
        %v10542 = vand.u32 %v6186, 4294901760
        %v10543 = vsub.f32 %v6186, %v10542
        %10544 = vmatpush1.msra.mxu0 %v10543
        %10545 = vmatprep.subr.mxu0 0.0
        %v10546 = vand.u32 %v6187, 4294901760
        %v10547 = vsub.f32 %v6187, %v10546
        %10548 = vmatpush1.msra.mxu0 %v10547
        %10549 = vmatprep.subr.mxu0 0.0
        %v10550 = vand.u32 %v6188, 4294901760
        %v10551 = vsub.f32 %v6188, %v10550
        %10552 = vmatpush1.msra.mxu0 %v10551
        %10553 = vmatprep.subr.mxu0 0.0
        %v10554 = vand.u32 %v6189, 4294901760
        %v10555 = vsub.f32 %v6189, %v10554
        %10556 = vmatpush1.msra.mxu0 %v10555
        %10557 = vmatprep.subr.mxu0 0.0
        %v10558 = vand.u32 %v6190, 4294901760
        %v10559 = vsub.f32 %v6190, %v10558
        %10560 = vmatpush1.msra.mxu0 %v10559
        %10561 = vmatprep.subr.mxu0 0.0
        %v10562 = vand.u32 %v6191, 4294901760
        %v10563 = vsub.f32 %v6191, %v10562
        %10564 = vmatpush1.msra.mxu0 %v10563
        %10565 = vmatprep.subr.mxu0 0.0
        %v10566 = vand.u32 %v6192, 4294901760
        %v10567 = vsub.f32 %v6192, %v10566
        %10568 = vmatpush1.msra.mxu0 %v10567
        %10569 = vmatprep.subr.mxu0 0.0
        %v10570 = vand.u32 %v6193, 4294901760
        %v10571 = vsub.f32 %v6193, %v10570
        %10572 = vmatpush1.msra.mxu0 %v10571
        %10573 = vmatprep.subr.mxu0 0.0
        %v10574 = vand.u32 %v6194, 4294901760
        %v10575 = vsub.f32 %v6194, %v10574
        %10576 = vmatpush1.msra.mxu0 %v10575
        %10577 = vmatprep.subr.mxu0 0.0
        %v10578 = vand.u32 %v6195, 4294901760
        %v10579 = vsub.f32 %v6195, %v10578
        %10580 = vmatpush1.msra.mxu0 %v10579
        %10581 = vmatprep.subr.mxu0 0.0
        %v10582 = vand.u32 %v6196, 4294901760
        %v10583 = vsub.f32 %v6196, %v10582
        %10584 = vmatpush1.msra.mxu0 %v10583
        %v10585 = vand.u32 %v6012, 4294901760
        %v10586 = vsub.f32 %v6012, %v10585
        %10587 = vmatprep.mubr.f32.mxu0 %v10586
        %v10588 = vand.u32 %v6011, 4294901760
        %v10589 = vsub.f32 %v6011, %v10588
        %10590 = vmatmul.mubr.f32.gmra.mrb[0].mxu0 %v10589
        %v10591 = vpop.f32.mrb[0].mxu0
        %v10592 = vadd.f32 %v10405, %v10591
        %v10593 = vpop.f32.mrb[0].mxu0
        %v10594 = vand.u32 %v6020, 4294901760
        %v10595 = vsub.f32 %v6020, %v10594
        %10596 = vmatprep.mubr.f32.mxu0 %v10595
        %v10597 = vand.u32 %v6019, 4294901760
        %v10598 = vsub.f32 %v6019, %v10597
        %10599 = vmatmul.mubr.f32.gmra.mrb[0].mxu0 %v10598
        %v10600 = vpop.f32.mrb[0].mxu0
        %v10601 = vadd.f32 %v10412, %v10600
        %v10602 = vpop.f32.mrb[0].mxu0
        %v10603 = vand.u32 %v6028, 4294901760
        %v10604 = vsub.f32 %v6028, %v10603
        %10605 = vmatprep.mubr.f32.mxu0 %v10604
        %v10606 = vand.u32 %v6027, 4294901760
        %v10607 = vsub.f32 %v6027, %v10606
        %10608 = vmatmul.mubr.f32.gmra.mrb[0].mxu0 %v10607
        %v10609 = vpop.f32.mrb[0].mxu0
        %v10610 = vadd.f32 %v10419, %v10609
        %v10611 = vpop.f32.mrb[0].mxu0
        %v10612 = vand.u32 %v6036, 4294901760
        %v10613 = vsub.f32 %v6036, %v10612
        %10614 = vmatprep.mubr.f32.mxu0 %v10613
        %v10615 = vand.u32 %v6035, 4294901760
        %v10616 = vsub.f32 %v6035, %v10615
        %10617 = vmatmul.mubr.f32.gmra.mrb[0].mxu0 %v10616
        %v10618 = vpop.f32.mrb[0].mxu0
        %v10619 = vadd.f32 %v10426, %v10618
        %v10620 = vpop.f32.mrb[0].mxu0
        %v10621 = vand.u32 %v6044, 4294901760
        %v10622 = vsub.f32 %v6044, %v10621
        %10623 = vmatprep.mubr.f32.mxu0 %v10622
        %v10624 = vand.u32 %v6043, 4294901760
        %v10625 = vsub.f32 %v6043, %v10624
        %10626 = vmatmul.mubr.f32.gmra.mrb[0].mxu0 %v10625
        %v10627 = vpop.f32.mrb[0].mxu0
        %v10628 = vadd.f32 %v10433, %v10627
        %v10629 = vpop.f32.mrb[0].mxu0
        %v10630 = vand.u32 %v6052, 4294901760
        %v10631 = vsub.f32 %v6052, %v10630
        %10632 = vmatprep.mubr.f32.mxu0 %v10631
        %v10633 = vand.u32 %v6051, 4294901760
        %v10634 = vsub.f32 %v6051, %v10633
        %10635 = vmatmul.mubr.f32.gmra.mrb[0].mxu0 %v10634
        %v10636 = vpop.f32.mrb[0].mxu0
        %v10637 = vadd.f32 %v10440, %v10636
        %v10638 = vpop.f32.mrb[0].mxu0
        %v10639 = vand.u32 %v6060, 4294901760
        %v10640 = vsub.f32 %v6060, %v10639
        %10641 = vmatprep.mubr.f32.mxu0 %v10640
        %v10642 = vand.u32 %v6059, 4294901760
        %v10643 = vsub.f32 %v6059, %v10642
        %10644 = vmatmul.mubr.f32.gmra.mrb[0].mxu0 %v10643
        %v10645 = vpop.f32.mrb[0].mxu0
        %v10646 = vadd.f32 %v10447, %v10645
        %v10647 = vpop.f32.mrb[0].mxu0
        %v10648 = vand.u32 %v6068, 4294901760
        %v10649 = vsub.f32 %v6068, %v10648
        %10650 = vmatprep.mubr.f32.mxu0 %v10649
        %v10651 = vand.u32 %v6067, 4294901760
        %v10652 = vsub.f32 %v6067, %v10651
        %10653 = vmatmul.mubr.f32.gmra.mrb[0].mxu0 %v10652
        %v10654 = vpop.f32.mrb[0].mxu0
        %v10655 = vadd.f32 %v10454, %v10654
        %v10656 = vpop.f32.mrb[0].mxu0
        %10657 = vdwg.mxu0
        %10658 = vmatprep.subr.mxu0 0.0
        %v10659 = vand.u32 %v6165, 4294901760
        %10660 = vmatpush1.msra.mxu0 %v10659
        %10661 = vmatprep.subr.mxu0 0.0
        %v10662 = vand.u32 %v6166, 4294901760
        %10663 = vmatpush1.msra.mxu0 %v10662
        %10664 = vmatprep.subr.mxu0 0.0
        %v10665 = vand.u32 %v6167, 4294901760
        %10666 = vmatpush1.msra.mxu0 %v10665
        %10667 = vmatprep.subr.mxu0 0.0
        %v10668 = vand.u32 %v6168, 4294901760
        %10669 = vmatpush1.msra.mxu0 %v10668
        %10670 = vmatprep.subr.mxu0 0.0
        %v10671 = vand.u32 %v6169, 4294901760
        %10672 = vmatpush1.msra.mxu0 %v10671
        %10673 = vmatprep.subr.mxu0 0.0
        %v10674 = vand.u32 %v6170, 4294901760
        %10675 = vmatpush1.msra.mxu0 %v10674
        %10676 = vmatprep.subr.mxu0 0.0
        %v10677 = vand.u32 %v6171, 4294901760
        %10678 = vmatpush1.msra.mxu0 %v10677
        %10679 = vmatprep.subr.mxu0 0.0
        %v10680 = vand.u32 %v6172, 4294901760
        %10681 = vmatpush1.msra.mxu0 %v10680
        %10682 = vmatprep.subr.mxu0 0.0
        %v10683 = vand.u32 %v6173, 4294901760
        %10684 = vmatpush1.msra.mxu0 %v10683
        %10685 = vmatprep.subr.mxu0 0.0
        %v10686 = vand.u32 %v6174, 4294901760
        %10687 = vmatpush1.msra.mxu0 %v10686
        %10688 = vmatprep.subr.mxu0 0.0
        %v10689 = vand.u32 %v6175, 4294901760
        %10690 = vmatpush1.msra.mxu0 %v10689
        %10691 = vmatprep.subr.mxu0 0.0
        %v10692 = vand.u32 %v6176, 4294901760
        %10693 = vmatpush1.msra.mxu0 %v10692
        %10694 = vmatprep.subr.mxu0 0.0
        %v10695 = vand.u32 %v6177, 4294901760
        %10696 = vmatpush1.msra.mxu0 %v10695
        %10697 = vmatprep.subr.mxu0 0.0
        %v10698 = vand.u32 %v6178, 4294901760
        %10699 = vmatpush1.msra.mxu0 %v10698
        %10700 = vmatprep.subr.mxu0 0.0
        %v10701 = vand.u32 %v6179, 4294901760
        %10702 = vmatpush1.msra.mxu0 %v10701
        %10703 = vmatprep.subr.mxu0 0.0
        %v10704 = vand.u32 %v6180, 4294901760
        %10705 = vmatpush1.msra.mxu0 %v10704
        %10706 = vmatprep.subr.mxu0 0.0
        %v10707 = vand.u32 %v6181, 4294901760
        %10708 = vmatpush1.msra.mxu0 %v10707
        %10709 = vmatprep.subr.mxu0 0.0
        %v10710 = vand.u32 %v6182, 4294901760
        %10711 = vmatpush1.msra.mxu0 %v10710
        %10712 = vmatprep.subr.mxu0 0.0
        %v10713 = vand.u32 %v6183, 4294901760
        %10714 = vmatpush1.msra.mxu0 %v10713
        %10715 = vmatprep.subr.mxu0 0.0
        %v10716 = vand.u32 %v6184, 4294901760
        %10717 = vmatpush1.msra.mxu0 %v10716
        %10718 = vmatprep.subr.mxu0 0.0
        %v10719 = vand.u32 %v6185, 4294901760
        %10720 = vmatpush1.msra.mxu0 %v10719
        %10721 = vmatprep.subr.mxu0 0.0
        %v10722 = vand.u32 %v6186, 4294901760
        %10723 = vmatpush1.msra.mxu0 %v10722
        %10724 = vmatprep.subr.mxu0 0.0
        %v10725 = vand.u32 %v6187, 4294901760
        %10726 = vmatpush1.msra.mxu0 %v10725
        %10727 = vmatprep.subr.mxu0 0.0
        %v10728 = vand.u32 %v6188, 4294901760
        %10729 = vmatpush1.msra.mxu0 %v10728
        %10730 = vmatprep.subr.mxu0 0.0
        %v10731 = vand.u32 %v6189, 4294901760
        %10732 = vmatpush1.msra.mxu0 %v10731
        %10733 = vmatprep.subr.mxu0 0.0
        %v10734 = vand.u32 %v6190, 4294901760
        %10735 = vmatpush1.msra.mxu0 %v10734
        %10736 = vmatprep.subr.mxu0 0.0
        %v10737 = vand.u32 %v6191, 4294901760
        %10738 = vmatpush1.msra.mxu0 %v10737
        %10739 = vmatprep.subr.mxu0 0.0
        %v10740 = vand.u32 %v6192, 4294901760
        %10741 = vmatpush1.msra.mxu0 %v10740
        %10742 = vmatprep.subr.mxu0 0.0
        %v10743 = vand.u32 %v6193, 4294901760
        %10744 = vmatpush1.msra.mxu0 %v10743
        %10745 = vmatprep.subr.mxu0 0.0
        %v10746 = vand.u32 %v6194, 4294901760
        %10747 = vmatpush1.msra.mxu0 %v10746
        %10748 = vmatprep.subr.mxu0 0.0
        %v10749 = vand.u32 %v6195, 4294901760
        %10750 = vmatpush1.msra.mxu0 %v10749
        %10751 = vmatprep.subr.mxu0 0.0
        %v10752 = vand.u32 %v6196, 4294901760
        %10753 = vmatpush1.msra.mxu0 %v10752
        %v10754 = vand.u32 %v6012, 4294901760
        %v10755 = vsub.f32 %v6012, %v10754
        %v10756 = vand.u32 %v10755, 4294901760
        %10757 = vmatprep.mubr.f32.mxu0 %v10756
        %v10758 = vand.u32 %v6011, 4294901760
        %v10759 = vsub.f32 %v6011, %v10758
        %v10760 = vand.u32 %v10759, 4294901760
        %10761 = vmatmul.mubr.f32.gmra.mrb[0].mxu0 %v10760
        %v10762 = vpop.f32.mrb[0].mxu0
        %v10763 = vadd.f32 %v10592, %v10762
        %v10764 = vpop.f32.mrb[0].mxu0
        %v10765 = vand.u32 %v6020, 4294901760
        %v10766 = vsub.f32 %v6020, %v10765
        %v10767 = vand.u32 %v10766, 4294901760
        %10768 = vmatprep.mubr.f32.mxu0 %v10767
        %v10769 = vand.u32 %v6019, 4294901760
        %v10770 = vsub.f32 %v6019, %v10769
        %v10771 = vand.u32 %v10770, 4294901760
        %10772 = vmatmul.mubr.f32.gmra.mrb[0].mxu0 %v10771
        %v10773 = vpop.f32.mrb[0].mxu0
        %v10774 = vadd.f32 %v10601, %v10773
        %v10775 = vpop.f32.mrb[0].mxu0
        %v10776 = vand.u32 %v6028, 4294901760
        %v10777 = vsub.f32 %v6028, %v10776
        %v10778 = vand.u32 %v10777, 4294901760
        %10779 = vmatprep.mubr.f32.mxu0 %v10778
        %v10780 = vand.u32 %v6027, 4294901760
        %v10781 = vsub.f32 %v6027, %v10780
        %v10782 = vand.u32 %v10781, 4294901760
        %10783 = vmatmul.mubr.f32.gmra.mrb[0].mxu0 %v10782
        %v10784 = vpop.f32.mrb[0].mxu0
        %v10785 = vadd.f32 %v10610, %v10784
        %v10786 = vpop.f32.mrb[0].mxu0
        %v10787 = vand.u32 %v6036, 4294901760
        %v10788 = vsub.f32 %v6036, %v10787
        %v10789 = vand.u32 %v10788, 4294901760
        %10790 = vmatprep.mubr.f32.mxu0 %v10789
        %v10791 = vand.u32 %v6035, 4294901760
        %v10792 = vsub.f32 %v6035, %v10791
        %v10793 = vand.u32 %v10792, 4294901760
        %10794 = vmatmul.mubr.f32.gmra.mrb[0].mxu0 %v10793
        %v10795 = vpop.f32.mrb[0].mxu0
        %v10796 = vadd.f32 %v10619, %v10795
        %v10797 = vpop.f32.mrb[0].mxu0
        %v10798 = vand.u32 %v6044, 4294901760
        %v10799 = vsub.f32 %v6044, %v10798
        %v10800 = vand.u32 %v10799, 4294901760
        %10801 = vmatprep.mubr.f32.mxu0 %v10800
        %v10802 = vand.u32 %v6043, 4294901760
        %v10803 = vsub.f32 %v6043, %v10802
        %v10804 = vand.u32 %v10803, 4294901760
        %10805 = vmatmul.mubr.f32.gmra.mrb[0].mxu0 %v10804
        %v10806 = vpop.f32.mrb[0].mxu0
        %v10807 = vadd.f32 %v10628, %v10806
        %v10808 = vpop.f32.mrb[0].mxu0
        %v10809 = vand.u32 %v6052, 4294901760
        %v10810 = vsub.f32 %v6052, %v10809
        %v10811 = vand.u32 %v10810, 4294901760
        %10812 = vmatprep.mubr.f32.mxu0 %v10811
        %v10813 = vand.u32 %v6051, 4294901760
        %v10814 = vsub.f32 %v6051, %v10813
        %v10815 = vand.u32 %v10814, 4294901760
        %10816 = vmatmul.mubr.f32.gmra.mrb[0].mxu0 %v10815
        %v10817 = vpop.f32.mrb[0].mxu0
        %v10818 = vadd.f32 %v10637, %v10817
        %v10819 = vpop.f32.mrb[0].mxu0
        %v10820 = vand.u32 %v6060, 4294901760
        %v10821 = vsub.f32 %v6060, %v10820
        %v10822 = vand.u32 %v10821, 4294901760
        %10823 = vmatprep.mubr.f32.mxu0 %v10822
        %v10824 = vand.u32 %v6059, 4294901760
        %v10825 = vsub.f32 %v6059, %v10824
        %v10826 = vand.u32 %v10825, 4294901760
        %10827 = vmatmul.mubr.f32.gmra.mrb[0].mxu0 %v10826
        %v10828 = vpop.f32.mrb[0].mxu0
        %v10829 = vadd.f32 %v10646, %v10828
        %v10830 = vpop.f32.mrb[0].mxu0
        %v10831 = vand.u32 %v6068, 4294901760
        %v10832 = vsub.f32 %v6068, %v10831
        %v10833 = vand.u32 %v10832, 4294901760
        %10834 = vmatprep.mubr.f32.mxu0 %v10833
        %v10835 = vand.u32 %v6067, 4294901760
        %v10836 = vsub.f32 %v6067, %v10835
        %v10837 = vand.u32 %v10836, 4294901760
        %10838 = vmatmul.mubr.f32.gmra.mrb[0].mxu0 %v10837
        %v10839 = vpop.f32.mrb[0].mxu0
        %v10840 = vadd.f32 %v10655, %v10839
        %v10841 = vpop.f32.mrb[0].mxu0
        %10842 = vdwg.mxu0
        %10843 = vmatprep.subr.mxu0 0.0
        %v10844 = vand.u32 %v6165, 4294901760
        %v10845 = vsub.f32 %v6165, %v10844
        %v10846 = vand.u32 %v10845, 4294901760
        %10847 = vmatpush1.msra.mxu0 %v10846
        %10848 = vmatprep.subr.mxu0 0.0
        %v10849 = vand.u32 %v6166, 4294901760
        %v10850 = vsub.f32 %v6166, %v10849
        %v10851 = vand.u32 %v10850, 4294901760
        %10852 = vmatpush1.msra.mxu0 %v10851
        %10853 = vmatprep.subr.mxu0 0.0
        %v10854 = vand.u32 %v6167, 4294901760
        %v10855 = vsub.f32 %v6167, %v10854
        %v10856 = vand.u32 %v10855, 4294901760
        %10857 = vmatpush1.msra.mxu0 %v10856
        %10858 = vmatprep.subr.mxu0 0.0
        %v10859 = vand.u32 %v6168, 4294901760
        %v10860 = vsub.f32 %v6168, %v10859
        %v10861 = vand.u32 %v10860, 4294901760
        %10862 = vmatpush1.msra.mxu0 %v10861
        %10863 = vmatprep.subr.mxu0 0.0
        %v10864 = vand.u32 %v6169, 4294901760
        %v10865 = vsub.f32 %v6169, %v10864
        %v10866 = vand.u32 %v10865, 4294901760
        %10867 = vmatpush1.msra.mxu0 %v10866
        %10868 = vmatprep.subr.mxu0 0.0
        %v10869 = vand.u32 %v6170, 4294901760
        %v10870 = vsub.f32 %v6170, %v10869
        %v10871 = vand.u32 %v10870, 4294901760
        %10872 = vmatpush1.msra.mxu0 %v10871
        %10873 = vmatprep.subr.mxu0 0.0
        %v10874 = vand.u32 %v6171, 4294901760
        %v10875 = vsub.f32 %v6171, %v10874
        %v10876 = vand.u32 %v10875, 4294901760
        %10877 = vmatpush1.msra.mxu0 %v10876
        %10878 = vmatprep.subr.mxu0 0.0
        %v10879 = vand.u32 %v6172, 4294901760
        %v10880 = vsub.f32 %v6172, %v10879
        %v10881 = vand.u32 %v10880, 4294901760
        %10882 = vmatpush1.msra.mxu0 %v10881
        %10883 = vmatprep.subr.mxu0 0.0
        %v10884 = vand.u32 %v6173, 4294901760
        %v10885 = vsub.f32 %v6173, %v10884
        %v10886 = vand.u32 %v10885, 4294901760
        %10887 = vmatpush1.msra.mxu0 %v10886
        %10888 = vmatprep.subr.mxu0 0.0
        %v10889 = vand.u32 %v6174, 4294901760
        %v10890 = vsub.f32 %v6174, %v10889
        %v10891 = vand.u32 %v10890, 4294901760
        %10892 = vmatpush1.msra.mxu0 %v10891
        %10893 = vmatprep.subr.mxu0 0.0
        %v10894 = vand.u32 %v6175, 4294901760
        %v10895 = vsub.f32 %v6175, %v10894
        %v10896 = vand.u32 %v10895, 4294901760
        %10897 = vmatpush1.msra.mxu0 %v10896
        %10898 = vmatprep.subr.mxu0 0.0
        %v10899 = vand.u32 %v6176, 4294901760
        %v10900 = vsub.f32 %v6176, %v10899
        %v10901 = vand.u32 %v10900, 4294901760
        %10902 = vmatpush1.msra.mxu0 %v10901
        %10903 = vmatprep.subr.mxu0 0.0
        %v10904 = vand.u32 %v6177, 4294901760
        %v10905 = vsub.f32 %v6177, %v10904
        %v10906 = vand.u32 %v10905, 4294901760
        %10907 = vmatpush1.msra.mxu0 %v10906
        %10908 = vmatprep.subr.mxu0 0.0
        %v10909 = vand.u32 %v6178, 4294901760
        %v10910 = vsub.f32 %v6178, %v10909
        %v10911 = vand.u32 %v10910, 4294901760
        %10912 = vmatpush1.msra.mxu0 %v10911
        %10913 = vmatprep.subr.mxu0 0.0
        %v10914 = vand.u32 %v6179, 4294901760
        %v10915 = vsub.f32 %v6179, %v10914
        %v10916 = vand.u32 %v10915, 4294901760
        %10917 = vmatpush1.msra.mxu0 %v10916
        %10918 = vmatprep.subr.mxu0 0.0
        %v10919 = vand.u32 %v6180, 4294901760
        %v10920 = vsub.f32 %v6180, %v10919
        %v10921 = vand.u32 %v10920, 4294901760
        %10922 = vmatpush1.msra.mxu0 %v10921
        %10923 = vmatprep.subr.mxu0 0.0
        %v10924 = vand.u32 %v6181, 4294901760
        %v10925 = vsub.f32 %v6181, %v10924
        %v10926 = vand.u32 %v10925, 4294901760
        %10927 = vmatpush1.msra.mxu0 %v10926
        %10928 = vmatprep.subr.mxu0 0.0
        %v10929 = vand.u32 %v6182, 4294901760
        %v10930 = vsub.f32 %v6182, %v10929
        %v10931 = vand.u32 %v10930, 4294901760
        %10932 = vmatpush1.msra.mxu0 %v10931
        %10933 = vmatprep.subr.mxu0 0.0
        %v10934 = vand.u32 %v6183, 4294901760
        %v10935 = vsub.f32 %v6183, %v10934
        %v10936 = vand.u32 %v10935, 4294901760
        %10937 = vmatpush1.msra.mxu0 %v10936
        %10938 = vmatprep.subr.mxu0 0.0
        %v10939 = vand.u32 %v6184, 4294901760
        %v10940 = vsub.f32 %v6184, %v10939
        %v10941 = vand.u32 %v10940, 4294901760
        %10942 = vmatpush1.msra.mxu0 %v10941
        %10943 = vmatprep.subr.mxu0 0.0
        %v10944 = vand.u32 %v6185, 4294901760
        %v10945 = vsub.f32 %v6185, %v10944
        %v10946 = vand.u32 %v10945, 4294901760
        %10947 = vmatpush1.msra.mxu0 %v10946
        %10948 = vmatprep.subr.mxu0 0.0
        %v10949 = vand.u32 %v6186, 4294901760
        %v10950 = vsub.f32 %v6186, %v10949
        %v10951 = vand.u32 %v10950, 4294901760
        %10952 = vmatpush1.msra.mxu0 %v10951
        %10953 = vmatprep.subr.mxu0 0.0
        %v10954 = vand.u32 %v6187, 4294901760
        %v10955 = vsub.f32 %v6187, %v10954
        %v10956 = vand.u32 %v10955, 4294901760
        %10957 = vmatpush1.msra.mxu0 %v10956
        %10958 = vmatprep.subr.mxu0 0.0
        %v10959 = vand.u32 %v6188, 4294901760
        %v10960 = vsub.f32 %v6188, %v10959
        %v10961 = vand.u32 %v10960, 4294901760
        %10962 = vmatpush1.msra.mxu0 %v10961
        %10963 = vmatprep.subr.mxu0 0.0
        %v10964 = vand.u32 %v6189, 4294901760
        %v10965 = vsub.f32 %v6189, %v10964
        %v10966 = vand.u32 %v10965, 4294901760
        %10967 = vmatpush1.msra.mxu0 %v10966
        %10968 = vmatprep.subr.mxu0 0.0
        %v10969 = vand.u32 %v6190, 4294901760
        %v10970 = vsub.f32 %v6190, %v10969
        %v10971 = vand.u32 %v10970, 4294901760
        %10972 = vmatpush1.msra.mxu0 %v10971
        %10973 = vmatprep.subr.mxu0 0.0
        %v10974 = vand.u32 %v6191, 4294901760
        %v10975 = vsub.f32 %v6191, %v10974
        %v10976 = vand.u32 %v10975, 4294901760
        %10977 = vmatpush1.msra.mxu0 %v10976
        %10978 = vmatprep.subr.mxu0 0.0
        %v10979 = vand.u32 %v6192, 4294901760
        %v10980 = vsub.f32 %v6192, %v10979
        %v10981 = vand.u32 %v10980, 4294901760
        %10982 = vmatpush1.msra.mxu0 %v10981
        %10983 = vmatprep.subr.mxu0 0.0
        %v10984 = vand.u32 %v6193, 4294901760
        %v10985 = vsub.f32 %v6193, %v10984
        %v10986 = vand.u32 %v10985, 4294901760
        %10987 = vmatpush1.msra.mxu0 %v10986
        %10988 = vmatprep.subr.mxu0 0.0
        %v10989 = vand.u32 %v6194, 4294901760
        %v10990 = vsub.f32 %v6194, %v10989
        %v10991 = vand.u32 %v10990, 4294901760
        %10992 = vmatpush1.msra.mxu0 %v10991
        %10993 = vmatprep.subr.mxu0 0.0
        %v10994 = vand.u32 %v6195, 4294901760
        %v10995 = vsub.f32 %v6195, %v10994
        %v10996 = vand.u32 %v10995, 4294901760
        %10997 = vmatpush1.msra.mxu0 %v10996
        %10998 = vmatprep.subr.mxu0 0.0
        %v10999 = vand.u32 %v6196, 4294901760
        %v11000 = vsub.f32 %v6196, %v10999
        %v11001 = vand.u32 %v11000, 4294901760
        %11002 = vmatpush1.msra.mxu0 %v11001
        %v11003 = vand.u32 %v6012, 4294901760
        %11004 = vmatprep.mubr.f32.mxu0 %v11003
        %v11005 = vand.u32 %v6011, 4294901760
        %11006 = vmatmul.mubr.f32.gmra.mrb[0].mxu0 %v11005
        %v11007 = vpop.f32.mrb[0].mxu0
        %v11008 = vadd.f32 %v10763, %v11007
        %v11009 = vpop.f32.mrb[0].mxu0
        %v11010 = vand.u32 %v6020, 4294901760
        %11011 = vmatprep.mubr.f32.mxu0 %v11010
        %v11012 = vand.u32 %v6019, 4294901760
        %11013 = vmatmul.mubr.f32.gmra.mrb[0].mxu0 %v11012
        %v11014 = vpop.f32.mrb[0].mxu0
        %v11015 = vadd.f32 %v10774, %v11014
        %v11016 = vpop.f32.mrb[0].mxu0
        %v11017 = vand.u32 %v6028, 4294901760
        %11018 = vmatprep.mubr.f32.mxu0 %v11017
        %v11019 = vand.u32 %v6027, 4294901760
        %11020 = vmatmul.mubr.f32.gmra.mrb[0].mxu0 %v11019
        %v11021 = vpop.f32.mrb[0].mxu0
        %v11022 = vadd.f32 %v10785, %v11021
        %v11023 = vpop.f32.mrb[0].mxu0
        %v11024 = vand.u32 %v6036, 4294901760
        %11025 = vmatprep.mubr.f32.mxu0 %v11024
        %v11026 = vand.u32 %v6035, 4294901760
        %11027 = vmatmul.mubr.f32.gmra.mrb[0].mxu0 %v11026
        %v11028 = vpop.f32.mrb[0].mxu0
        %v11029 = vadd.f32 %v10796, %v11028
        %v11030 = vpop.f32.mrb[0].mxu0
        %v11031 = vand.u32 %v6044, 4294901760
        %11032 = vmatprep.mubr.f32.mxu0 %v11031
        %v11033 = vand.u32 %v6043, 4294901760
        %11034 = vmatmul.mubr.f32.gmra.mrb[0].mxu0 %v11033
        %v11035 = vpop.f32.mrb[0].mxu0
        %v11036 = vadd.f32 %v10807, %v11035
        %v11037 = vpop.f32.mrb[0].mxu0
        %v11038 = vand.u32 %v6052, 4294901760
        %11039 = vmatprep.mubr.f32.mxu0 %v11038
        %v11040 = vand.u32 %v6051, 4294901760
        %11041 = vmatmul.mubr.f32.gmra.mrb[0].mxu0 %v11040
        %v11042 = vpop.f32.mrb[0].mxu0
        %v11043 = vadd.f32 %v10818, %v11042
        %v11044 = vpop.f32.mrb[0].mxu0
        %v11045 = vand.u32 %v6060, 4294901760
        %11046 = vmatprep.mubr.f32.mxu0 %v11045
        %v11047 = vand.u32 %v6059, 4294901760
        %11048 = vmatmul.mubr.f32.gmra.mrb[0].mxu0 %v11047
        %v11049 = vpop.f32.mrb[0].mxu0
        %v11050 = vadd.f32 %v10829, %v11049
        %v11051 = vpop.f32.mrb[0].mxu0
        %v11052 = vand.u32 %v6068, 4294901760
        %11053 = vmatprep.mubr.f32.mxu0 %v11052
        %v11054 = vand.u32 %v6067, 4294901760
        %11055 = vmatmul.mubr.f32.gmra.mrb[0].mxu0 %v11054
        %v11056 = vpop.f32.mrb[0].mxu0
        %v11057 = vadd.f32 %v10840, %v11056
        %v11058 = vpop.f32.mrb[0].mxu0
        %11059 = vdwg.mxu0
        %11060 = vmatprep.subr.mxu0 0.0
        %v11061 = vand.u32 %v6165, 4294901760
        %11062 = vmatpush1.msra.mxu0 %v11061
        %11063 = vmatprep.subr.mxu0 0.0
        %v11064 = vand.u32 %v6166, 4294901760
        %11065 = vmatpush1.msra.mxu0 %v11064
        %11066 = vmatprep.subr.mxu0 0.0
        %v11067 = vand.u32 %v6167, 4294901760
        %11068 = vmatpush1.msra.mxu0 %v11067
        %11069 = vmatprep.subr.mxu0 0.0
        %v11070 = vand.u32 %v6168, 4294901760
        %11071 = vmatpush1.msra.mxu0 %v11070
        %11072 = vmatprep.subr.mxu0 0.0
        %v11073 = vand.u32 %v6169, 4294901760
        %11074 = vmatpush1.msra.mxu0 %v11073
        %11075 = vmatprep.subr.mxu0 0.0
        %v11076 = vand.u32 %v6170, 4294901760
        %11077 = vmatpush1.msra.mxu0 %v11076
        %11078 = vmatprep.subr.mxu0 0.0
        %v11079 = vand.u32 %v6171, 4294901760
        %11080 = vmatpush1.msra.mxu0 %v11079
        %11081 = vmatprep.subr.mxu0 0.0
        %v11082 = vand.u32 %v6172, 4294901760
        %11083 = vmatpush1.msra.mxu0 %v11082
        %11084 = vmatprep.subr.mxu0 0.0
        %v11085 = vand.u32 %v6173, 4294901760
        %11086 = vmatpush1.msra.mxu0 %v11085
        %11087 = vmatprep.subr.mxu0 0.0
        %v11088 = vand.u32 %v6174, 4294901760
        %11089 = vmatpush1.msra.mxu0 %v11088
        %11090 = vmatprep.subr.mxu0 0.0
        %v11091 = vand.u32 %v6175, 4294901760
        %11092 = vmatpush1.msra.mxu0 %v11091
        %11093 = vmatprep.subr.mxu0 0.0
        %v11094 = vand.u32 %v6176, 4294901760
        %11095 = vmatpush1.msra.mxu0 %v11094
        %11096 = vmatprep.subr.mxu0 0.0
        %v11097 = vand.u32 %v6177, 4294901760
        %11098 = vmatpush1.msra.mxu0 %v11097
        %11099 = vmatprep.subr.mxu0 0.0
        %v11100 = vand.u32 %v6178, 4294901760
        %11101 = vmatpush1.msra.mxu0 %v11100
        %11102 = vmatprep.subr.mxu0 0.0
        %v11103 = vand.u32 %v6179, 4294901760
        %11104 = vmatpush1.msra.mxu0 %v11103
        %11105 = vmatprep.subr.mxu0 0.0
        %v11106 = vand.u32 %v6180, 4294901760
        %11107 = vmatpush1.msra.mxu0 %v11106
        %11108 = vmatprep.subr.mxu0 0.0
        %v11109 = vand.u32 %v6181, 4294901760
        %11110 = vmatpush1.msra.mxu0 %v11109
        %11111 = vmatprep.subr.mxu0 0.0
        %v11112 = vand.u32 %v6182, 4294901760
        %11113 = vmatpush1.msra.mxu0 %v11112
        %11114 = vmatprep.subr.mxu0 0.0
        %v11115 = vand.u32 %v6183, 4294901760
        %11116 = vmatpush1.msra.mxu0 %v11115
        %11117 = vmatprep.subr.mxu0 0.0
        %v11118 = vand.u32 %v6184, 4294901760
        %11119 = vmatpush1.msra.mxu0 %v11118
        %11120 = vmatprep.subr.mxu0 0.0
        %v11121 = vand.u32 %v6185, 4294901760
        %11122 = vmatpush1.msra.mxu0 %v11121
        %11123 = vmatprep.subr.mxu0 0.0
        %v11124 = vand.u32 %v6186, 4294901760
        %11125 = vmatpush1.msra.mxu0 %v11124
        %11126 = vmatprep.subr.mxu0 0.0
        %v11127 = vand.u32 %v6187, 4294901760
        %11128 = vmatpush1.msra.mxu0 %v11127
        %11129 = vmatprep.subr.mxu0 0.0
        %v11130 = vand.u32 %v6188, 4294901760
        %11131 = vmatpush1.msra.mxu0 %v11130
        %11132 = vmatprep.subr.mxu0 0.0
        %v11133 = vand.u32 %v6189, 4294901760
        %11134 = vmatpush1.msra.mxu0 %v11133
        %11135 = vmatprep.subr.mxu0 0.0
        %v11136 = vand.u32 %v6190, 4294901760
        %11137 = vmatpush1.msra.mxu0 %v11136
        %11138 = vmatprep.subr.mxu0 0.0
        %v11139 = vand.u32 %v6191, 4294901760
        %11140 = vmatpush1.msra.mxu0 %v11139
        %11141 = vmatprep.subr.mxu0 0.0
        %v11142 = vand.u32 %v6192, 4294901760
        %11143 = vmatpush1.msra.mxu0 %v11142
        %11144 = vmatprep.subr.mxu0 0.0
        %v11145 = vand.u32 %v6193, 4294901760
        %11146 = vmatpush1.msra.mxu0 %v11145
        %11147 = vmatprep.subr.mxu0 0.0
        %v11148 = vand.u32 %v6194, 4294901760
        %11149 = vmatpush1.msra.mxu0 %v11148
        %11150 = vmatprep.subr.mxu0 0.0
        %v11151 = vand.u32 %v6195, 4294901760
        %11152 = vmatpush1.msra.mxu0 %v11151
        %11153 = vmatprep.subr.mxu0 0.0
        %v11154 = vand.u32 %v6196, 4294901760
        %11155 = vmatpush1.msra.mxu0 %v11154
        %v11156 = vand.u32 %v6012, 4294901760
        %11157 = vmatprep.mubr.f32.mxu0 %v11156
        %v11158 = vand.u32 %v6011, 4294901760
        %11159 = vmatmul.mubr.f32.gmra.mrb[0].mxu0 %v11158
        %v11160 = vpop.f32.mrb[0].mxu0
        %v11161 = vadd.f32 %v11008, %v11160
        %v11162 = vpop.f32.mrb[0].mxu0
        %v11163 = vand.u32 %v6020, 4294901760
        %11164 = vmatprep.mubr.f32.mxu0 %v11163
        %v11165 = vand.u32 %v6019, 4294901760
        %11166 = vmatmul.mubr.f32.gmra.mrb[0].mxu0 %v11165
        %v11167 = vpop.f32.mrb[0].mxu0
        %v11168 = vadd.f32 %v11015, %v11167
        %v11169 = vpop.f32.mrb[0].mxu0
        %v11170 = vand.u32 %v6028, 4294901760
        %11171 = vmatprep.mubr.f32.mxu0 %v11170
        %v11172 = vand.u32 %v6027, 4294901760
        %11173 = vmatmul.mubr.f32.gmra.mrb[0].mxu0 %v11172
        %v11174 = vpop.f32.mrb[0].mxu0
        %v11175 = vadd.f32 %v11022, %v11174
        %v11176 = vpop.f32.mrb[0].mxu0
        %v11177 = vand.u32 %v6036, 4294901760
        %11178 = vmatprep.mubr.f32.mxu0 %v11177
        %v11179 = vand.u32 %v6035, 4294901760
        %11180 = vmatmul.mubr.f32.gmra.mrb[0].mxu0 %v11179
        %v11181 = vpop.f32.mrb[0].mxu0
        %v11182 = vadd.f32 %v11029, %v11181
        %v11183 = vpop.f32.mrb[0].mxu0
        %v11184 = vand.u32 %v6044, 4294901760
        %11185 = vmatprep.mubr.f32.mxu0 %v11184
        %v11186 = vand.u32 %v6043, 4294901760
        %11187 = vmatmul.mubr.f32.gmra.mrb[0].mxu0 %v11186
        %v11188 = vpop.f32.mrb[0].mxu0
        %v11189 = vadd.f32 %v11036, %v11188
        %v11190 = vpop.f32.mrb[0].mxu0
        %v11191 = vand.u32 %v6052, 4294901760
        %11192 = vmatprep.mubr.f32.mxu0 %v11191
        %v11193 = vand.u32 %v6051, 4294901760
        %11194 = vmatmul.mubr.f32.gmra.mrb[0].mxu0 %v11193
        %v11195 = vpop.f32.mrb[0].mxu0
        %v11196 = vadd.f32 %v11043, %v11195
        %v11197 = vpop.f32.mrb[0].mxu0
        %v11198 = vand.u32 %v6060, 4294901760
        %11199 = vmatprep.mubr.f32.mxu0 %v11198
        %v11200 = vand.u32 %v6059, 4294901760
        %11201 = vmatmul.mubr.f32.gmra.mrb[0].mxu0 %v11200
        %v11202 = vpop.f32.mrb[0].mxu0
        %v11203 = vadd.f32 %v11050, %v11202
        %v11204 = vpop.f32.mrb[0].mxu0
        %v11205 = vand.u32 %v6068, 4294901760
        %11206 = vmatprep.mubr.f32.mxu0 %v11205
        %v11207 = vand.u32 %v6067, 4294901760
        %11208 = vmatmul.mubr.f32.gmra.mrb[0].mxu0 %v11207
        %v11209 = vpop.f32.mrb[0].mxu0
        %v11210 = vadd.f32 %v11057, %v11209
        %v11211 = vpop.f32.mrb[0].mxu0
        %11212 = vdwg.mxu0
        %11213 = vst.msk [vmem:[%s283] sm:$0xff] %vm722, %v11161
        %11215 = vrot.lane.b32.xlu0 %v11168, 64
        %v11216 = vpop.permute.xlu0 %11215
        %vm11218 = vcmask 1048064
        %11219 = vst.msk [vmem:[%s283] sm:$0xff] %vm11218, %v11216
        %11220 = vst.msk [vmem:[%s283 + $0x8] sm:$0xff] %vm722, %v11175
        %11222 = vrot.lane.b32.xlu0 %v11182, 64
        %v11223 = vpop.permute.xlu0 %11222
        %11225 = vst.msk [vmem:[%s283 + $0x8] sm:$0xff] %vm11218, %v11223
        %11226 = vst.msk [vmem:[%s283 + $0x10] sm:$0xff] %vm722, %v11189
        %11228 = vrot.lane.b32.xlu0 %v11196, 64
        %v11229 = vpop.permute.xlu0 %11228
        %11231 = vst.msk [vmem:[%s283 + $0x10] sm:$0xff] %vm11218, %v11229
        %11232 = vst.msk [vmem:[%s283 + $0x18] sm:$0xff] %vm722, %v11203
        %11234 = vrot.lane.b32.xlu0 %v11210, 64
        %v11235 = vpop.permute.xlu0 %11234
        %11237 = vst.msk [vmem:[%s283 + $0x18] sm:$0xff] %vm11218, %v11235
        %s11238 = sand.u32 %s161, 1
        %s11239 = scalar_lea.sflag [#allocation6], %s11238
        %s11240 = sand.u32 %s161, 1
        %s11241 = smul.addr %s11240, 32
        %s11242 = scalar_lea.vmem [#allocation11], %s11241
        // Predicated region
        $region57: #{tpu_custom_call.1} parent=43 // pred_check
          %p11243 = pneg %p171
        $region58: #{tpu_custom_call.1} parent=43 // pred_check_branch
          %11245 = sbr.rel (%p11243) target = $region60
        $region59: #{tpu_custom_call.1} parent=43 // pred_region
          %s11247 = ssub.s32 512, 512
          %11248 = vsyncadd %s11239, %s11247
          %s11249 = smul.addr %s22, 4
          %s11250 = smul.addr %s11249, 128
          %s11251 = scalar_lea.hbm %s6, %s11250
          %s11253 = sshll.u32 %s11242, 4
          %s11254 = int_to_ptr.vmem [resolvable:$true] %s11253
          %11256 = dma.vmem_to_hbm [thread:$0]  %s11254, 512, %s11251, %s11239
        $region60: #{tpu_custom_call.1} parent=43 // pred_fallthru
          _
      $region44: #{tpu_custom_call.1} parent=5 // pred_fallthru
        _
      %p11257 = scmp.le.s32.totalorder 2, %s17
      // Predicated region
      $region61: #{tpu_custom_call.1} parent=5 // pred_check
        %p11258 = pneg %p11257
      $region62: #{tpu_custom_call.1} parent=5 // pred_check_branch
        %11260 = sbr.rel (%p11258) target = $region64
      $region63: #{tpu_custom_call.1} parent=5 // pred_region
        %s11261 = ssub.s32 %s17, 2
        // Predicated region
        $region65: #{tpu_custom_call.1} parent=63 // pred_check
          %p11262 = pneg %p177
        $region66: #{tpu_custom_call.1} parent=63 // pred_check_branch
          %11264 = sbr.rel (%p11262) target = $region68
        $region67: #{tpu_custom_call.1} parent=63 // pred_region
          %s11265 = sand.u32 %s162, 1
          %s11266 = scalar_lea.sflag [#allocation6], %s11265
          %s11267 = sand.u32 %s162, 1
          %s11268 = smul.addr %s11267, 32
          %s11269 = scalar_lea.vmem [#allocation11], %s11268
          %11270 = dma.done %s11266, 512
        $region68: #{tpu_custom_call.1} parent=63 // pred_fallthru
          _
      $region64: #{tpu_custom_call.1} parent=5 // pred_fallthru
        _
    $region6: #{tpu_custom_call.1} parent=1 // loop_footer
      %s21 = sadd.s32 1, %s17
    $region7: #{tpu_custom_call.1} parent=1 // loop_footer_branch
      %16 = sbr.rel target = $region3
    $region8: #{tpu_custom_call.1} parent=1 // loop_exit
      _
    %11271 = vsyncpa [#allocation6], 1
    %s11272 = scalar_lea.sflag [#allocation6], 1
    %11273 = vsyncpa %s11272, 1
    %11274 = vsyncpa [#allocation7], 1
    %s11275 = scalar_lea.sflag [#allocation7], 1
    %11276 = vsyncpa %s11275, 1
    %11277 = vsyncpa [#allocation9], 1

</llo_original>
